<compile_context>
chip_gen: v6e
topology: v6e:2x2x1
jax: 0.10.0
libtpu: 0.0.40
codegen_flags: <defaults>
</compile_context>

<pallas_src>
import functools

import jax
import jax.numpy as jnp
from jax.experimental import pallas as pl
from jax.experimental.pallas import tpu as pltpu

_EPS = 1e-5  # nn.BatchNorm2d default eps


def _round_up(x, m):
    return (x + m - 1) // m * m


def _conv3x3_taps(src_ref, w_ref, b_ref, *, TM, PH, Wp, C):
    """3x3 cross-correlation over a halo'd row-window held in VMEM.

    src_ref : (TM + 2*PH, C) window; local row (PH + m + d) == flat row
              (tile_start + m + d) of the per-image zero-padded layout.
    w_ref   : (9, C, C) per-tap matmul weights, tap k = kh*3 + kw.
    """
    acc = jnp.zeros((TM, C), jnp.float32)
    for k in range(9):
        oy, ox = k // 3 - 1, k % 3 - 1
        # Shifted-slice tap: the layout is zero-padded per image, so
        # out-of-image taps read genuine zeros (no roll, no select).
        tap = src_ref[pl.ds(PH + oy * Wp + ox, TM), :]
        # TODO(synk): fuse the nine K=C dots into a single (TM,9C)x(9C,C)
        # im2col dot for deeper MXU contraction once minor-dim concat cost
        # on this Mosaic version is validated.
        acc = acc + jnp.dot(tap, w_ref[k], preferred_element_type=jnp.float32)
    return acc + b_ref[...]


def _partial_stats(y, mask, C):
    """Masked per-channel [sum, sum_sq] packed into a (1, 8, C) block."""
    ym = y * mask
    s = jnp.sum(ym, axis=0, keepdims=True)
    ss = jnp.sum(ym * y, axis=0, keepdims=True)          # mask is {0,1}
    sub = jax.lax.broadcasted_iota(jnp.int32, (8, C), 0)
    return (jnp.where(sub == 0, s, 0.0) + jnp.where(sub == 1, ss, 0.0))[None]


def _conv_stats_kernel(x_hbm, mask_ref, w_ref, b_ref,        # inputs
                       y_ref, st_ref,                        # outputs
                       xw_ref, sem,                          # scratch
                       *, TM, PH, Wp, C):
    """Sweep 1: conv1 on a row tile + fused partial BN1 statistics."""
    i = pl.program_id(0)
    start = pl.multiple_of(i * TM, 8)
    win = TM + 2 * PH
    # TODO(synk): double-buffer this halo-window DMA across grid steps.
    cp = pltpu.make_async_copy(x_hbm.at[pl.ds(start, win)], xw_ref, sem)
    cp.start()
    cp.wait()

    y = _conv3x3_taps(xw_ref, w_ref, b_ref, TM=TM, PH=PH, Wp=Wp, C=C)
    y_ref[...] = y                                # TODO(synk): lane-dense store
    st_ref[...] = _partial_stats(y, mask_ref[...], C)


def _bn_act_conv_stats_kernel(alpha_ref, y1_hbm, mask_hbm, sc_ref, sh_ref,
                              w_ref, b_ref,                  # inputs
                              y_ref, st_ref,                 # outputs
                              zw_ref, mw_ref, sem_z, sem_m,  # scratch
                              *, TM, PH, Wp, C):
    """Sweep 2: BN1(affine) -> PReLU -> re-zero padding -> conv2 + BN2 stats."""
    i = pl.program_id(0)
    start = pl.multiple_of(i * TM, 8)
    win = TM + 2 * PH
    cp_z = pltpu.make_async_copy(y1_hbm.at[pl.ds(start, win)], zw_ref, sem_z)
    cp_m = pltpu.make_async_copy(mask_hbm.at[pl.ds(start, win)], mw_ref, sem_m)
    cp_z.start()
    cp_m.start()
    cp_z.wait()
    cp_m.wait()

    a = alpha_ref[0]                                    # PReLU shared alpha
    t = zw_ref[...] * sc_ref[...] + sh_ref[...]         # BN1 folded affine
    t = jnp.where(t >= 0.0, t, a * t)                   # PReLU
    zw_ref[...] = t * mw_ref[...]                       # zero pad / tail rows

    y = _conv3x3_taps(zw_ref, w_ref, b_ref, TM=TM, PH=PH, Wp=Wp, C=C)
    y_ref[...] = y
    st_ref[...] = _partial_stats(y, mw_ref[pl.ds(PH, TM), :], C)


def _bn_residual_kernel(x_ref, y_ref, sc_ref, sh_ref, o_ref):
    """Sweep 3 (lane-dense view): out = x + BN2(y) with folded affine."""
    o_ref[...] = x_ref[...] + y_ref[...] * sc_ref[...] + sh_ref[...]


def residual_block_pallas(x_nchw, params):
    N, C, H, W = x_nchw.shape
    Hp, Wp = H + 2, W + 2                  # per-image zero border (3x3 "same")
    Mp = N * Hp * Wp                       # flattened padded rows
    TM = min(512, _round_up(Mp, 8))        # row tile (kept modest for v7x VMEM)
    G = pl.cdiv(Mp, TM)
    Mtot = G * TM
    PH = _round_up(Wp + 1, 8)              # halo rows (covers all 9 tap shifts)
    WIN = TM + 2 * PH
    f32 = jnp.float32

    # ---- layout plumbing (plain JAX glue) ---------------------------------
    x_nhwc = jnp.transpose(x_nchw, (0, 2, 3, 1)).astype(f32)
    x_padimg = jnp.pad(x_nhwc, ((0, 0), (1, 1), (1, 1), (0, 0)))
    x_flat = jnp.pad(x_padimg.reshape(Mp, C), ((0, Mtot - Mp), (0, 0)))
    x_big = jnp.pad(x_flat, ((PH, PH), (0, 0)))                 # halo'd input

    m_img = jnp.pad(jnp.ones((N, H, W, 1), f32), ((0, 0), (1, 1), (1, 1), (0, 0)))
    m_flat = jnp.pad(m_img.reshape(Mp, 1), ((0, Mtot - Mp), (0, 0)))
    m_big = jnp.pad(m_flat, ((PH, PH), (0, 0)))

    def to_taps(w_oihw):   # PyTorch OIHW -> (tap=kh*3+kw, Cin, Cout)
        return jnp.transpose(w_oihw, (2, 3, 1, 0)).reshape(9, C, C).astype(f32)

    w1 = to_taps(params["conv1_w"])
    b1 = params["conv1_b"].reshape(1, C).astype(f32)
    w2 = to_taps(params["conv2_w"])
    b2 = params["conv2_b"].reshape(1, C).astype(f32)
    alpha = params["prelu_alpha"].astype(f32)

    cparams = pltpu.CompilerParams(
        dimension_semantics=("parallel",),          # v7x: 2 TCs; no-op on 1-TC
        vmem_limit_bytes=32 * 1024 * 1024)

    # ---- sweep 1: conv1 + BN1 partial stats -------------------------------
    kern1 = functools.partial(_conv_stats_kernel, TM=TM, PH=PH, Wp=Wp, C=C)
    y1, st1 = pl.pallas_call(
        kern1,
        grid=(G,),
        in_specs=[
            pl.BlockSpec(memory_space=pl.ANY),                 # x_big (HBM)
            pl.BlockSpec((TM, 1), lambda i: (i, 0)),           # validity mask
            pl.BlockSpec((9, C, C), lambda i: (0, 0, 0)),      # conv1 taps
            pl.BlockSpec((1, C), lambda i: (0, 0)),            # conv1 bias
        ],
        out_specs=[
            pl.BlockSpec((TM, C), lambda i: (i, 0)),
            pl.BlockSpec((1, 8, C), lambda i: (i, 0, 0)),
        ],
        out_shape=[
            jax.ShapeDtypeStruct((Mtot, C), f32),
            jax.ShapeDtypeStruct((G, 8, C), f32),
        ],
        scratch_shapes=[pltpu.VMEM((WIN, C), f32), pltpu.SemaphoreType.DMA],
        compiler_params=cparams,
    )(x_big, m_flat, w1, b1)

    cnt = jnp.float32(N * H * W)

    def bn_affine(st, gamma, beta):
        s = jnp.sum(st[:, 0, :], axis=0)
        ss = jnp.sum(st[:, 1, :], axis=0)
        mean = s / cnt
        var = jnp.maximum(ss / cnt - mean * mean, 0.0)        # biased var (train BN)
        inv = jax.lax.rsqrt(var + _EPS)
        scale = gamma.astype(f32) * inv
        shift = beta.astype(f32) - mean * scale
        return scale.reshape(1, C), shift.reshape(1, C)

    sc1, sh1 = bn_affine(st1, params["bn1_gamma"], params["bn1_beta"])
    y1_big = jnp.pad(y1, ((PH, PH), (0, 0)))

    # ---- sweep 2: BN1 + PReLU + conv2 + BN2 partial stats -----------------
    kern2 = functools.partial(_bn_act_conv_stats_kernel, TM=TM, PH=PH, Wp=Wp, C=C)
    y2, st2 = pl.pallas_call(
        kern2,
        grid=(G,),
        in_specs=[
            pl.BlockSpec(memory_space=pltpu.MemorySpace.SMEM),  # prelu alpha
            pl.BlockSpec(memory_space=pl.ANY),                  # y1_big (HBM)
            pl.BlockSpec(memory_space=pl.ANY),                  # mask_big (HBM)
            pl.BlockSpec((1, C), lambda i: (0, 0)),             # bn1 scale
            pl.BlockSpec((1, C), lambda i: (0, 0)),             # bn1 shift
            pl.BlockSpec((9, C, C), lambda i: (0, 0, 0)),       # conv2 taps
            pl.BlockSpec((1, C), lambda i: (0, 0)),             # conv2 bias
        ],
        out_specs=[
            pl.BlockSpec((TM, C), lambda i: (i, 0)),
            pl.BlockSpec((1, 8, C), lambda i: (i, 0, 0)),
        ],
        out_shape=[
            jax.ShapeDtypeStruct((Mtot, C), f32),
            jax.ShapeDtypeStruct((G, 8, C), f32),
        ],
        scratch_shapes=[pltpu.VMEM((WIN, C), f32), pltpu.VMEM((WIN, 1), f32),
                        pltpu.SemaphoreType.DMA, pltpu.SemaphoreType.DMA],
        compiler_params=cparams,
    )(alpha, y1_big, m_big, sc1, sh1, w2, b2)

    sc2, sh2 = bn_affine(st2, params["bn2_gamma"], params["bn2_beta"])

    # ---- sweep 3: lane-dense BN2-apply + residual add ---------------------
    g = min(8, 128 // C) if (128 % C == 0) else 1
    L = g * C
    R = Mtot // g
    TR = min(1024, R)
    Rp = pl.cdiv(R, TR) * TR

    def dense(a2d):
        d = a2d.reshape(R, L)
        return jnp.pad(d, ((0, Rp - R), (0, 0)))

    xd, yd = dense(x_flat), dense(y2)
    scd = jnp.tile(sc2, (1, g))
    shd = jnp.tile(sh2, (1, g))

    out_d = pl.pallas_call(
        _bn_residual_kernel,
        grid=(Rp // TR,),
        in_specs=[
            pl.BlockSpec((TR, L), lambda i: (i, 0)),
            pl.BlockSpec((TR, L), lambda i: (i, 0)),
            pl.BlockSpec((1, L), lambda i: (0, 0)),
            pl.BlockSpec((1, L), lambda i: (0, 0)),
        ],
        out_specs=pl.BlockSpec((TR, L), lambda i: (i, 0)),
        out_shape=jax.ShapeDtypeStruct((Rp, L), f32),
        compiler_params=cparams,
    )(xd, yd, scd, shd)

    out = out_d[:R].reshape(Mtot, C)[:Mp].reshape(N, Hp, Wp, C)
    out = out[:, 1:H + 1, 1:W + 1, :]
    return jnp.transpose(out, (0, 3, 1, 2)).astype(x_nchw.dtype)


def residual_block_reference(x, params):
    """Pure-JAX ground truth matching the PyTorch forward (train-mode BN)."""
    def conv(t, w, b):
        y = jax.lax.conv_general_dilated(
            t, w, window_strides=(1, 1), padding="SAME",
            dimension_numbers=("NCHW", "OIHW", "NCHW"),
            precision=jax.lax.Precision.HIGHEST)
        return y + b[None, :, None, None]

    def bn(t, g, be):
        mean = jnp.mean(t, axis=(0, 2, 3), keepdims=True)
        var = jnp.mean((t - mean) ** 2, axis=(0, 2, 3), keepdims=True)
        return (g[None, :, None, None] * (t - mean) * jax.lax.rsqrt(var + _EPS)
                + be[None, :, None, None])

    r = conv(x, params["conv1_w"], params["conv1_b"])
    r = bn(r, params["bn1_gamma"], params["bn1_beta"])
    a = params["prelu_alpha"][0]
    r = jnp.where(r >= 0.0, r, a * r)
    r = conv(r, params["conv2_w"], params["conv2_b"])
    r = bn(r, params["bn2_gamma"], params["bn2_beta"])
    return x + r


if __name__ == "__main__":
    nf, N, H, W = 16, 2, 16, 16                 # small shapes (nf default 64 -> 16)
    key = jax.random.PRNGKey(0)
    ks = jax.random.split(key, 9)
    fan_in = nf * 3 * 3
    params = {
        "conv1_w": jax.random.normal(ks[0], (nf, nf, 3, 3), jnp.float32) / jnp.sqrt(fan_in),
        "conv1_b": 0.1 * jax.random.normal(ks[1], (nf,), jnp.float32),
        "bn1_gamma": 1.0 + 0.1 * jax.random.normal(ks[2], (nf,), jnp.float32),
        "bn1_beta": 0.1 * jax.random.normal(ks[3], (nf,), jnp.float32),
        "conv2_w": jax.random.normal(ks[4], (nf, nf, 3, 3), jnp.float32) / jnp.sqrt(fan_in),
        "conv2_b": 0.1 * jax.random.normal(ks[5], (nf,), jnp.float32),
        "bn2_gamma": 1.0 + 0.1 * jax.random.normal(ks[6], (nf,), jnp.float32),
        "bn2_beta": 0.1 * jax.random.normal(ks[7], (nf,), jnp.float32),
        "prelu_alpha": jnp.array([0.25], jnp.float32),   # nn.PReLU() default init
    }
    x = jax.random.normal(ks[8], (N, nf, H, W), jnp.float32)   # NCHW like PyTorch

    out = jax.block_until_ready(residual_block_pallas(x, params))
    ref = residual_block_reference(x, params)

    assert out.shape == x.shape and out.dtype == x.dtype
    max_err = float(jnp.max(jnp.abs(out - ref)))
    # Kernel matmuls run at DEFAULT (single-pass bf16) MXU precision per the
    # perf review; tolerance vs the HIGHEST-precision reference is relaxed
    # accordingly (typical max|err| ~1e-2 on unit-scale activations).
    assert jnp.allclose(out, ref, atol=5e-2, rtol=5e-2), f"max abs err {max_err}"
    print("KERNEL_OK")
</pallas_src>

<mosaic_0001>
module attributes {stable_mosaic.version = 11 : i64} {
  func.func @_conv_stats_kernel(%arg0: i32, %arg1: memref<1072x16xf32, #tpu.memory_space<any>>, %arg2: memref<512x1xf32, #tpu.memory_space<vmem>>, %arg3: memref<9x16x16xf32, #tpu.memory_space<vmem>>, %arg4: memref<1x16xf32, #tpu.memory_space<vmem>>, %arg5: memref<512x16xf32, #tpu.memory_space<vmem>>, %arg6: memref<1x8x16xf32, #tpu.memory_space<vmem>>, %arg7: memref<560x16xf32, #tpu.memory_space<vmem>>, %arg8: memref<!tpu.dma_semaphore, #tpu.memory_space<semaphore_mem>>) attributes {dimension_semantics = [#tpu.dimension_semantics<parallel>], iteration_bounds = array<i64: 2>, scalar_prefetch = 0 : i64, scratch_operands = 2 : i64, tpu.core_type = #tpu.core_type<tc>, window_params = [{}, {transform_indices = @transform_1, window_bounds = array<i64: 512, 1>}, {pipeline_mode = #tpu.pipeline_mode<synchronous>, transform_indices = @transform_2, window_bounds = array<i64: 9, 16, 16>}, {pipeline_mode = #tpu.pipeline_mode<synchronous>, transform_indices = @transform_3, window_bounds = array<i64: 1, 16>}, {transform_indices = @transform_4, window_bounds = array<i64: 512, 16>}, {transform_indices = @transform_5, window_bounds = array<i64: 1, 8, 16>}]} {
    %c512_i32 = arith.constant 512 : i32
    %0 = arith.muli %arg0, %c512_i32 : i32
    %1 = tpu.assume_multiple %0, 8 : i32
    %c0_i32 = arith.constant 0 : i32
    %2 = tpu.memref_slice %arg1[%1, %c0_i32] : memref<1072x16xf32, #tpu.memory_space<any>> -> memref<560x16xf32, #tpu.memory_space<any>>
    tpu.enqueue_dma source(%2 : memref<560x16xf32, #tpu.memory_space<any>>) target(%arg7 : memref<560x16xf32, #tpu.memory_space<vmem>>) target_semaphore(%arg8 : memref<!tpu.dma_semaphore, #tpu.memory_space<semaphore_mem>>)
    %c0_i32_0 = arith.constant 0 : i32
    %3 = tpu.memref_slice %arg1[%1, %c0_i32_0] : memref<1072x16xf32, #tpu.memory_space<any>> -> memref<560x16xf32, #tpu.memory_space<any>>
    tpu.wait_dma2 semaphore(%arg8 : memref<!tpu.dma_semaphore, #tpu.memory_space<semaphore_mem>>) src(%3 : memref<560x16xf32, #tpu.memory_space<any>>) dst(%arg7 : memref<560x16xf32, #tpu.memory_space<vmem>>)
    %cst = arith.constant 0.000000e+00 : f32
    %4 = vector.broadcast %cst : f32 to vector<512x16xf32>
    %c5 = arith.constant 5 : index
    %c0 = arith.constant 0 : index
    %5 = vector.load %arg7[%c5, %c0] : memref<560x16xf32, #tpu.memory_space<vmem>>, vector<512x16xf32>
    %c0_1 = arith.constant 0 : index
    %c0_2 = arith.constant 0 : index
    %c0_3 = arith.constant 0 : index
    %6 = vector.load %arg3[%c0_1, %c0_2, %c0_3] : memref<9x16x16xf32, #tpu.memory_space<vmem>>, vector<1x16x16xf32>
    %7 = vector.shape_cast %6 : vector<1x16x16xf32> to vector<16x16xf32>
    %cst_4 = arith.constant dense<0.000000e+00> : vector<512x16xf32>
    %8 = tpu.matmul %5, %7, %cst_4 {dimension_numbers = #tpu.dot_dimension_numbers<[1], [0], [0], [1], [0, 0, 1, 1], [], []>} : vector<512x16xf32>, vector<16x16xf32>, vector<512x16xf32> -> vector<512x16xf32>
    %9 = arith.addf %4, %8 : vector<512x16xf32>
    %c6 = arith.constant 6 : index
    %c0_5 = arith.constant 0 : index
    %10 = vector.load %arg7[%c6, %c0_5] : memref<560x16xf32, #tpu.memory_space<vmem>>, vector<512x16xf32>
    %c1 = arith.constant 1 : index
    %c0_6 = arith.constant 0 : index
    %c0_7 = arith.constant 0 : index
    %11 = vector.load %arg3[%c1, %c0_6, %c0_7] : memref<9x16x16xf32, #tpu.memory_space<vmem>>, vector<1x16x16xf32>
    %12 = vector.shape_cast %11 : vector<1x16x16xf32> to vector<16x16xf32>
    %cst_8 = arith.constant dense<0.000000e+00> : vector<512x16xf32>
    %13 = tpu.matmul %10, %12, %cst_8 {dimension_numbers = #tpu.dot_dimension_numbers<[1], [0], [0], [1], [0, 0, 1, 1], [], []>} : vector<512x16xf32>, vector<16x16xf32>, vector<512x16xf32> -> vector<512x16xf32>
    %14 = arith.addf %9, %13 : vector<512x16xf32>
    %c7 = arith.constant 7 : index
    %c0_9 = arith.constant 0 : index
    %15 = vector.load %arg7[%c7, %c0_9] : memref<560x16xf32, #tpu.memory_space<vmem>>, vector<512x16xf32>
    %c2 = arith.constant 2 : index
    %c0_10 = arith.constant 0 : index
    %c0_11 = arith.constant 0 : index
    %16 = vector.load %arg3[%c2, %c0_10, %c0_11] : memref<9x16x16xf32, #tpu.memory_space<vmem>>, vector<1x16x16xf32>
    %17 = vector.shape_cast %16 : vector<1x16x16xf32> to vector<16x16xf32>
    %cst_12 = arith.constant dense<0.000000e+00> : vector<512x16xf32>
    %18 = tpu.matmul %15, %17, %cst_12 {dimension_numbers = #tpu.dot_dimension_numbers<[1], [0], [0], [1], [0, 0, 1, 1], [], []>} : vector<512x16xf32>, vector<16x16xf32>, vector<512x16xf32> -> vector<512x16xf32>
    %19 = arith.addf %14, %18 : vector<512x16xf32>
    %c23 = arith.constant 23 : index
    %c0_13 = arith.constant 0 : index
    %20 = vector.load %arg7[%c23, %c0_13] : memref<560x16xf32, #tpu.memory_space<vmem>>, vector<512x16xf32>
    %c3 = arith.constant 3 : index
    %c0_14 = arith.constant 0 : index
    %c0_15 = arith.constant 0 : index
    %21 = vector.load %arg3[%c3, %c0_14, %c0_15] : memref<9x16x16xf32, #tpu.memory_space<vmem>>, vector<1x16x16xf32>
    %22 = vector.shape_cast %21 : vector<1x16x16xf32> to vector<16x16xf32>
    %cst_16 = arith.constant dense<0.000000e+00> : vector<512x16xf32>
    %23 = tpu.matmul %20, %22, %cst_16 {dimension_numbers = #tpu.dot_dimension_numbers<[1], [0], [0], [1], [0, 0, 1, 1], [], []>} : vector<512x16xf32>, vector<16x16xf32>, vector<512x16xf32> -> vector<512x16xf32>
    %24 = arith.addf %19, %23 : vector<512x16xf32>
    %c24 = arith.constant 24 : index
    %c0_17 = arith.constant 0 : index
    %25 = vector.load %arg7[%c24, %c0_17] : memref<560x16xf32, #tpu.memory_space<vmem>>, vector<512x16xf32>
    %c4 = arith.constant 4 : index
    %c0_18 = arith.constant 0 : index
    %c0_19 = arith.constant 0 : index
    %26 = vector.load %arg3[%c4, %c0_18, %c0_19] : memref<9x16x16xf32, #tpu.memory_space<vmem>>, vector<1x16x16xf32>
    %27 = vector.shape_cast %26 : vector<1x16x16xf32> to vector<16x16xf32>
    %cst_20 = arith.constant dense<0.000000e+00> : vector<512x16xf32>
    %28 = tpu.matmul %25, %27, %cst_20 {dimension_numbers = #tpu.dot_dimension_numbers<[1], [0], [0], [1], [0, 0, 1, 1], [], []>} : vector<512x16xf32>, vector<16x16xf32>, vector<512x16xf32> -> vector<512x16xf32>
    %29 = arith.addf %24, %28 : vector<512x16xf32>
    %c25 = arith.constant 25 : index
    %c0_21 = arith.constant 0 : index
    %30 = vector.load %arg7[%c25, %c0_21] : memref<560x16xf32, #tpu.memory_space<vmem>>, vector<512x16xf32>
    %c5_22 = arith.constant 5 : index
    %c0_23 = arith.constant 0 : index
    %c0_24 = arith.constant 0 : index
    %31 = vector.load %arg3[%c5_22, %c0_23, %c0_24] : memref<9x16x16xf32, #tpu.memory_space<vmem>>, vector<1x16x16xf32>
    %32 = vector.shape_cast %31 : vector<1x16x16xf32> to vector<16x16xf32>
    %cst_25 = arith.constant dense<0.000000e+00> : vector<512x16xf32>
    %33 = tpu.matmul %30, %32, %cst_25 {dimension_numbers = #tpu.dot_dimension_numbers<[1], [0], [0], [1], [0, 0, 1, 1], [], []>} : vector<512x16xf32>, vector<16x16xf32>, vector<512x16xf32> -> vector<512x16xf32>
    %34 = arith.addf %29, %33 : vector<512x16xf32>
    %c41 = arith.constant 41 : index
    %c0_26 = arith.constant 0 : index
    %35 = vector.load %arg7[%c41, %c0_26] : memref<560x16xf32, #tpu.memory_space<vmem>>, vector<512x16xf32>
    %c6_27 = arith.constant 6 : index
    %c0_28 = arith.constant 0 : index
    %c0_29 = arith.constant 0 : index
    %36 = vector.load %arg3[%c6_27, %c0_28, %c0_29] : memref<9x16x16xf32, #tpu.memory_space<vmem>>, vector<1x16x16xf32>
    %37 = vector.shape_cast %36 : vector<1x16x16xf32> to vector<16x16xf32>
    %cst_30 = arith.constant dense<0.000000e+00> : vector<512x16xf32>
    %38 = tpu.matmul %35, %37, %cst_30 {dimension_numbers = #tpu.dot_dimension_numbers<[1], [0], [0], [1], [0, 0, 1, 1], [], []>} : vector<512x16xf32>, vector<16x16xf32>, vector<512x16xf32> -> vector<512x16xf32>
    %39 = arith.addf %34, %38 : vector<512x16xf32>
    %c42 = arith.constant 42 : index
    %c0_31 = arith.constant 0 : index
    %40 = vector.load %arg7[%c42, %c0_31] : memref<560x16xf32, #tpu.memory_space<vmem>>, vector<512x16xf32>
    %c7_32 = arith.constant 7 : index
    %c0_33 = arith.constant 0 : index
    %c0_34 = arith.constant 0 : index
    %41 = vector.load %arg3[%c7_32, %c0_33, %c0_34] : memref<9x16x16xf32, #tpu.memory_space<vmem>>, vector<1x16x16xf32>
    %42 = vector.shape_cast %41 : vector<1x16x16xf32> to vector<16x16xf32>
    %cst_35 = arith.constant dense<0.000000e+00> : vector<512x16xf32>
    %43 = tpu.matmul %40, %42, %cst_35 {dimension_numbers = #tpu.dot_dimension_numbers<[1], [0], [0], [1], [0, 0, 1, 1], [], []>} : vector<512x16xf32>, vector<16x16xf32>, vector<512x16xf32> -> vector<512x16xf32>
    %44 = arith.addf %39, %43 : vector<512x16xf32>
    %c43 = arith.constant 43 : index
    %c0_36 = arith.constant 0 : index
    %45 = vector.load %arg7[%c43, %c0_36] : memref<560x16xf32, #tpu.memory_space<vmem>>, vector<512x16xf32>
    %c8 = arith.constant 8 : index
    %c0_37 = arith.constant 0 : index
    %c0_38 = arith.constant 0 : index
    %46 = vector.load %arg3[%c8, %c0_37, %c0_38] : memref<9x16x16xf32, #tpu.memory_space<vmem>>, vector<1x16x16xf32>
    %47 = vector.shape_cast %46 : vector<1x16x16xf32> to vector<16x16xf32>
    %cst_39 = arith.constant dense<0.000000e+00> : vector<512x16xf32>
    %48 = tpu.matmul %45, %47, %cst_39 {dimension_numbers = #tpu.dot_dimension_numbers<[1], [0], [0], [1], [0, 0, 1, 1], [], []>} : vector<512x16xf32>, vector<16x16xf32>, vector<512x16xf32> -> vector<512x16xf32>
    %49 = arith.addf %44, %48 : vector<512x16xf32>
    %c0_40 = arith.constant 0 : index
    %c0_41 = arith.constant 0 : index
    %50 = vector.load %arg4[%c0_40, %c0_41] : memref<1x16xf32, #tpu.memory_space<vmem>>, vector<1x16xf32>
    %51 = vector.broadcast %50 : vector<1x16xf32> to vector<512x16xf32>
    %52 = arith.addf %49, %51 : vector<512x16xf32>
    %c0_42 = arith.constant 0 : index
    %c0_43 = arith.constant 0 : index
    %53 = vector.load %arg5[%c0_42, %c0_43] : memref<512x16xf32, #tpu.memory_space<vmem>>, vector<512x16xf32>
    tpu.vector_store %arg5[%c0_42, %c0_43], %52 {strides = array<i32>} : memref<512x16xf32, #tpu.memory_space<vmem>>, vector<512x16xf32>,
    %c0_44 = arith.constant 0 : index
    %c0_45 = arith.constant 0 : index
    %54 = vector.load %arg2[%c0_44, %c0_45] : memref<512x1xf32, #tpu.memory_space<vmem>>, vector<512x1xf32>
    %55 = vector.broadcast %54 : vector<512x1xf32> to vector<512x16xf32>
    %56 = arith.mulf %52, %55 : vector<512x16xf32>
    %cst_46 = arith.constant dense<0.000000e+00> : vector<16xf32>
    %57 = vector.multi_reduction <add>, %56, %cst_46 [0] : vector<512x16xf32> to vector<16xf32>
    %58 = vector.shape_cast %57 : vector<16xf32> to vector<1x16xf32>
    %59 = arith.mulf %56, %52 : vector<512x16xf32>
    %cst_47 = arith.constant dense<0.000000e+00> : vector<16xf32>
    %60 = vector.multi_reduction <add>, %59, %cst_47 [0] : vector<512x16xf32> to vector<16xf32>
    %61 = vector.shape_cast %60 : vector<16xf32> to vector<1x16xf32>
    %62 = tpu.iota {dimensions = array<i32: 0>} : vector<8x16xi32>
    %c0_i32_48 = arith.constant 0 : i32
    %63 = vector.broadcast %c0_i32_48 : i32 to vector<8x16xi32>
    %64 = arith.cmpi eq, %62, %63 : vector<8x16xi32>
    %cst_49 = arith.constant 0.000000e+00 : f32
    %65 = vector.shape_cast %58 : vector<1x16xf32> to vector<1x16xf32>
    %66 = vector.broadcast %65 : vector<1x16xf32> to vector<8x16xf32>
    %67 = vector.broadcast %cst_49 : f32 to vector<8x16xf32>
    %68 = arith.select %64, %66, %67 : vector<8x16xi1>, vector<8x16xf32>
    %c1_i32 = arith.constant 1 : i32
    %69 = vector.broadcast %c1_i32 : i32 to vector<8x16xi32>
    %70 = arith.cmpi eq, %62, %69 : vector<8x16xi32>
    %cst_50 = arith.constant 0.000000e+00 : f32
    %71 = vector.shape_cast %61 : vector<1x16xf32> to vector<1x16xf32>
    %72 = vector.broadcast %71 : vector<1x16xf32> to vector<8x16xf32>
    %73 = vector.broadcast %cst_50 : f32 to vector<8x16xf32>
    %74 = arith.select %70, %72, %73 : vector<8x16xi1>, vector<8x16xf32>
    %75 = arith.addf %68, %74 : vector<8x16xf32>
    %76 = vector.shape_cast %75 : vector<8x16xf32> to vector<1x8x16xf32>
    %c0_51 = arith.constant 0 : index
    %c0_52 = arith.constant 0 : index
    %c0_53 = arith.constant 0 : index
    %77 = vector.load %arg6[%c0_51, %c0_52, %c0_53] : memref<1x8x16xf32, #tpu.memory_space<vmem>>, vector<1x8x16xf32>
    tpu.vector_store %arg6[%c0_51, %c0_52, %c0_53], %76 {strides = array<i32>} : memref<1x8x16xf32, #tpu.memory_space<vmem>>, vector<1x8x16xf32>,
    return
  }
  func.func @transform_1(%arg0: i32) -> (i32, i32) {
    %c0_i32 = arith.constant 0 : i32
    %c0_i32_0 = arith.constant 0 : i32
    return %arg0, %c0_i32 : i32, i32
  }
  func.func @transform_2(%arg0: i32) -> (i32, i32, i32) {
    %c0_i32 = arith.constant 0 : i32
    %c0_i32_0 = arith.constant 0 : i32
    %c0_i32_1 = arith.constant 0 : i32
    %c0_i32_2 = arith.constant 0 : i32
    return %c0_i32, %c0_i32_0, %c0_i32_1 : i32, i32, i32
  }
  func.func @transform_3(%arg0: i32) -> (i32, i32) {
    %c0_i32 = arith.constant 0 : i32
    %c0_i32_0 = arith.constant 0 : i32
    %c0_i32_1 = arith.constant 0 : i32
    return %c0_i32, %c0_i32_0 : i32, i32
  }
  func.func @transform_4(%arg0: i32) -> (i32, i32) {
    %c0_i32 = arith.constant 0 : i32
    %c0_i32_0 = arith.constant 0 : i32
    return %arg0, %c0_i32 : i32, i32
  }
  func.func @transform_5(%arg0: i32) -> (i32, i32, i32) {
    %c0_i32 = arith.constant 0 : i32
    %c0_i32_0 = arith.constant 0 : i32
    %c0_i32_1 = arith.constant 0 : i32
    return %arg0, %c0_i32, %c0_i32_0 : i32, i32, i32
  }
}

</mosaic_0001>

<llo_original>
// kernel: tpu_custom_call.1
$region0: #{tpu_custom_call.1}
  #allocation0 [shape = 'u32[]', space=smem, size = 0x4, offset = 0x4, fixed_abs, tag = 'smem constant byte address 0x4 - core index']
  #allocation1 [shape = 'u32[144,128]{1,0:T(1,128)}', space=vmem, size = 0x12000, scoped, tag = 'internal scratch']
  #allocation2 [shape = 'f32[560,16]{1,0:T(8,128)}', space=vmem, size = 0x46000, scoped, tag = 'scratch operand']
  #allocation3 [shape = 's32[1]{0}', space=sflag, size = 0x4, scoped, tag = 'scratch operand']
  #allocation6 [shape = 's32[]', space=sflag, size = 0x4, offset = 0, fixed_abs, tag = 'sflag constant byte address 0x0 - dummy sync flag']
  %s0 = inlined_call_operand.vmem [shape: f32[1072,16], index: 0, kind: input, shape index: {}]
  %s1 = inlined_call_operand.vmem [shape: f32[1024,1], index: 1, kind: input, shape index: {}]
  %s2 = inlined_call_operand.vmem [shape: f32[9,16,16], index: 2, kind: input, shape index: {}]
  %s3 = inlined_call_operand.vmem [shape: f32[1,16], index: 3, kind: input, shape index: {}]
  %s4 = inlined_call_operand.vmem [shape: f32[1024,16], index: 4, kind: output, shape index: {0}]
  %s5 = inlined_call_operand.hbm [shape: f32[2,8,16], index: 5, kind: output, shape index: {1}]
  %6 = xla_tuple %s4, %s5
  %s7 = sld [smem:[#allocation0]]
  $region87: #{tpu_custom_call.1} parent=0
    _
  %s9 = ssub.s32 1, %s7
  %s10 = scalar_select 0, %s9, %s7
  $region1: #{tpu_custom_call.1} parent=0
    #allocation4 [shape = 'u8[8192]{0}', space=vmem, size = 0x2000, scoped, tag = 'output window, operand 1']
    #allocation5 [shape = 's32[2]{0}', space=sflag, size = 0x8, scoped, tag = 'scoped memory for tpu_custom_call.1']
    %11 = vsyncpa [#allocation5], 0
    %s12 = scalar_lea.sflag [#allocation5], 1
    %13 = vsyncpa %s12, 0
    loop: start=0, step=1, limit=4
    $region2: #{tpu_custom_call.1} parent=1 // loop_pre_header
      _
    $region3: #{tpu_custom_call.1} parent=1 // loop_header
      %s15 = sphi 0, %s19
      %p16 = scmp.ge.s32.totalorder %s15, 4
      %s25 = sphi 0, %s27
      %s28 = sphi 0, %s25
      %s29 = sphi 0, %s28
      %s45 = sphi 0, %s29
      %s49 = sphi 0, %s49
      %s51 = sphi 0, %s49
      %s52 = sphi 0, %s51
      %s66 = sphi 0, %s52
      %s70 = sphi 0, %s70
      %s72 = sphi 0, %s70
      %s73 = sphi 0, %s72
      %s87 = sphi 0, %s73
      %s93 = sphi 0, %s95
      %s96 = sphi 0, %s93
      %s97 = sphi 0, %s96
      %s113 = sphi 0, %s97
      %s119 = sphi 0, %s121
      %s122 = sphi 0, %s119
      %s123 = sphi 0, %s122
      %s139 = sphi 0, %s123
    $region4: #{tpu_custom_call.1} parent=1 // loop_header_branch
      %18 = sbr.rel (%p16) target = $region8
    $region5: #{tpu_custom_call.1} parent=1 // loop_body
      %s20 = ssub.s32 %s15, 1
      %s21 = ssub.s32 %s15, 2
      %s22 = sadd.s32 %s15, 1
      %s23 = ssub.s32 %s15, %s22
      %p24 = scmp.eq.s32.totalorder %s23, 0
      %s26 = sadd.s32 %s25, 1
      %s27 = scalar_select %p24, %s25, %s26
      %p30 = pneg %p24
      %p31 = scmp.eq.s32.totalorder %s15, 1
      %p32 = por %p30, %p31
      %p33 = scmp.ne.s32.totalorder %s25, %s28
      %p34 = scmp.eq.s32.totalorder %s15, 0
      %p35 = por %p33, %p34
      %p36 = scmp.ne.s32.totalorder %s25, %s28
      %p37 = scmp.eq.s32.totalorder %s20, 1
      %p38 = por %p36, %p37
      %p39 = scmp.ne.s32.totalorder %s28, %s29
      %p40 = scmp.eq.s32.totalorder %s20, 0
      %p41 = por %p39, %p40
      %p42 = scmp.ne.s32.totalorder %s28, %s29
      %p43 = scmp.eq.s32.totalorder %s21, 1
      %p44 = por %p42, %p43
      %p46 = scmp.ne.s32.totalorder %s29, %s45
      %p47 = scmp.eq.s32.totalorder %s21, 0
      %p48 = por %p46, %p47
      %s50 = sadd.s32 %s49, 1
      %p53 = scmp.eq.s32.totalorder %s15, 1
      %p54 = scmp.ne.s32.totalorder %s49, %s51
      %p55 = scmp.eq.s32.totalorder %s15, 0
      %p56 = por %p54, %p55
      %p57 = scmp.ne.s32.totalorder %s49, %s51
      %p58 = scmp.eq.s32.totalorder %s20, 1
      %p59 = por %p57, %p58
      %p60 = scmp.ne.s32.totalorder %s51, %s52
      %p61 = scmp.eq.s32.totalorder %s20, 0
      %p62 = por %p60, %p61
      %p63 = scmp.ne.s32.totalorder %s51, %s52
      %p64 = scmp.eq.s32.totalorder %s21, 1
      %p65 = por %p63, %p64
      %p67 = scmp.ne.s32.totalorder %s52, %s66
      %p68 = scmp.eq.s32.totalorder %s21, 0
      %p69 = por %p67, %p68
      %s71 = sadd.s32 %s70, 1
      %p74 = scmp.eq.s32.totalorder %s15, 1
      %p75 = scmp.ne.s32.totalorder %s70, %s72
      %p76 = scmp.eq.s32.totalorder %s15, 0
      %p77 = por %p75, %p76
      %p78 = scmp.ne.s32.totalorder %s70, %s72
      %p79 = scmp.eq.s32.totalorder %s20, 1
      %p80 = por %p78, %p79
      %p81 = scmp.ne.s32.totalorder %s72, %s73
      %p82 = scmp.eq.s32.totalorder %s20, 0
      %p83 = por %p81, %p82
      %p84 = scmp.ne.s32.totalorder %s72, %s73
      %p85 = scmp.eq.s32.totalorder %s21, 1
      %p86 = por %p84, %p85
      %p88 = scmp.ne.s32.totalorder %s73, %s87
      %p89 = scmp.eq.s32.totalorder %s21, 0
      %p90 = por %p88, %p89
      %s91 = ssub.s32 %s15, %s22
      %p92 = scmp.eq.s32.totalorder %s91, 0
      %s94 = sadd.s32 %s93, 1
      %s95 = scalar_select %p92, %s93, %s94
      %p98 = pneg %p92
      %p99 = scmp.eq.s32.totalorder %s15, 1
      %p100 = por %p98, %p99
      %p101 = scmp.ne.s32.totalorder %s93, %s96
      %p102 = scmp.eq.s32.totalorder %s15, 0
      %p103 = por %p101, %p102
      %p104 = scmp.ne.s32.totalorder %s93, %s96
      %p105 = scmp.eq.s32.totalorder %s20, 1
      %p106 = por %p104, %p105
      %p107 = scmp.ne.s32.totalorder %s96, %s97
      %p108 = scmp.eq.s32.totalorder %s20, 0
      %p109 = por %p107, %p108
      %p110 = scmp.ne.s32.totalorder %s96, %s97
      %p111 = scmp.eq.s32.totalorder %s21, 1
      %p112 = por %p110, %p111
      %p114 = scmp.ne.s32.totalorder %s97, %s113
      %p115 = scmp.eq.s32.totalorder %s21, 0
      %p116 = por %p114, %p115
      %s117 = ssub.s32 %s15, %s22
      %p118 = scmp.eq.s32.totalorder %s117, 0
      %s120 = sadd.s32 %s119, 1
      %s121 = scalar_select %p118, %s119, %s120
      %p124 = pneg %p118
      %p125 = scmp.eq.s32.totalorder %s15, 1
      %p126 = por %p124, %p125
      %p127 = scmp.ne.s32.totalorder %s119, %s122
      %p128 = scmp.eq.s32.totalorder %s15, 0
      %p129 = por %p127, %p128
      %p130 = scmp.ne.s32.totalorder %s119, %s122
      %p131 = scmp.eq.s32.totalorder %s20, 1
      %p132 = por %p130, %p131
      %p133 = scmp.ne.s32.totalorder %s122, %s123
      %p134 = scmp.eq.s32.totalorder %s20, 0
      %p135 = por %p133, %p134
      %p136 = scmp.ne.s32.totalorder %s122, %s123
      %p137 = scmp.eq.s32.totalorder %s21, 1
      %p138 = por %p136, %p137
      %p140 = scmp.ne.s32.totalorder %s123, %s139
      %p141 = scmp.eq.s32.totalorder %s21, 0
      %p142 = por %p140, %p141
      %p143 = scmp.le.s32.totalorder 1, %s15
      %p144 = scmp.lt.s32.totalorder %s15, 3
      %p145 = pnand %p143, %p144
      %p146 = pneg %p145
      // Predicated region
      $region9: #{tpu_custom_call.1} parent=5 // pred_check
        _
      $region10: #{tpu_custom_call.1} parent=5 // pred_check_branch
        %148 = sbr.rel (%p145) target = $region12
      $region11: #{tpu_custom_call.1} parent=5 // pred_region
        %s149 = ssub.s32 %s15, 1
        // Predicated region
        $region13: #{tpu_custom_call.1} parent=11 // pred_check
          %p150 = pneg %p62
        $region14: #{tpu_custom_call.1} parent=11 // pred_check_branch
          %152 = sbr.rel (%p150) target = $region16
        $region15: #{tpu_custom_call.1} parent=11 // pred_region
          _
        $region16: #{tpu_custom_call.1} parent=11 // pred_fallthru
          _
        // Predicated region
        $region17: #{tpu_custom_call.1} parent=11 // pred_check
          %p153 = pneg %p83
        $region18: #{tpu_custom_call.1} parent=11 // pred_check_branch
          %155 = sbr.rel (%p153) target = $region20
        $region19: #{tpu_custom_call.1} parent=11 // pred_region
          _
        $region20: #{tpu_custom_call.1} parent=11 // pred_fallthru
          _
      $region12: #{tpu_custom_call.1} parent=5 // pred_fallthru
        _
      %p156 = scmp.lt.s32.totalorder %s15, 2
      // Predicated region
      $region21: #{tpu_custom_call.1} parent=5 // pred_check
        %p157 = pneg %p156
      $region22: #{tpu_custom_call.1} parent=5 // pred_check_branch
        %159 = sbr.rel (%p157) target = $region24
      $region23: #{tpu_custom_call.1} parent=5 // pred_region
        // Predicated region
        $region25: #{tpu_custom_call.1} parent=23 // pred_check
          %p160 = pneg %p35
        $region26: #{tpu_custom_call.1} parent=23 // pred_check_branch
          %162 = sbr.rel (%p160) target = $region28
        $region27: #{tpu_custom_call.1} parent=23 // pred_region
          %s163 = smul.u32 64, %s15
          %p164 = scmp.lt.s32.totalorder %s163, 127
          %s165 = scalar_select %p164, %s163, 127
          %s166 = smul.addr %s165, 8
          %s167 = scalar_lea.vmem %s1, %s166
          %s168 = smul.u32 64, %s15
        $region28: #{tpu_custom_call.1} parent=23 // pred_fallthru
          _
      $region24: #{tpu_custom_call.1} parent=5 // pred_fallthru
        _
      %p169 = scmp.le.s32.totalorder 1, %s15
      %p170 = scmp.lt.s32.totalorder %s15, 3
      %p171 = pnand %p169, %p170
      %p172 = pneg %p171
      // Predicated region
      $region29: #{tpu_custom_call.1} parent=5 // pred_check
        _
      $region30: #{tpu_custom_call.1} parent=5 // pred_check_branch
        %174 = sbr.rel (%p171) target = $region32
      $region31: #{tpu_custom_call.1} parent=5 // pred_region
        %s175 = ssub.s32 %s15, 1
        %s176 = smul.u32 64, %s20
        %p177 = scmp.lt.s32.totalorder %s176, 127
        %s178 = scalar_select %p177, %s176, 127
        %s179 = smul.addr %s178, 8
        %s180 = scalar_lea.vmem %s1, %s179
        %p181 = pneg %p41
        %p182 = pneg %p38
        %p183 = pneg %p62
        %p184 = pneg %p59
        %p185 = pneg %p83
        %p186 = pneg %p80
        %p187 = pneg %p109
        %p188 = pneg %p106
        %s189 = smul.u32 64, %s20
        %p190 = scmp.lt.s32.totalorder %s189, 127
        %s191 = scalar_select %p190, %s189, 127
        %s192 = smul.addr %s191, 8
        %s193 = scalar_lea.vmem %s4, %s192
        %p194 = pneg %p135
        %p195 = pneg %p132
        %s196 = sand.u32 %s122, 1
        %s197 = scalar_lea.sflag [#allocation5], %s196
        %s198 = sand.u32 %s122, 1
        %s199 = smul.addr %s198, 8
        %s200 = scalar_lea.vmem [#allocation4], %s199
        %s201 = smul.u32 64, %s20
        %p202 = scmp.lt.s32.totalorder %s201, 127
        %s203 = scalar_select %p202, %s201, 127
        %s204 = smul.addr %s203, 8
        %s205 = scalar_lea.vmem %s1, %s204
        %s206 = smul.u32 64, %s20
        %s207 = smul.u32 64, %s20
        %p208 = scmp.lt.s32.totalorder %s207, 127
        %s209 = scalar_select %p208, %s207, 127
        %s210 = smul.addr %s209, 8
        %s211 = scalar_lea.vmem %s4, %s210
        %s212 = smul.u32 64, %s20
        %s213 = smul.u32 %s20, 512
        %s214 = scalar_lea.vmem %s0, %s213
        %p216 = scmp.lt.u32.totalorder 560, 8
        %p217 = pneg %p216
        // Predicated region
        $region33: #{tpu_custom_call.1} parent=31 // pred_check
          _
        $region34: #{tpu_custom_call.1} parent=31 // pred_check_branch
          %219 = sbr.rel (%p216) target = $region36
        $region35: #{tpu_custom_call.1} parent=31 // pred_region
          %s235 = sand.u32 560, 7
          %p236 = scmp.eq.s32.totalorder %s235, 0
          // Predicated region
          $region48: #{tpu_custom_call.1} parent=35 // pred_check
            %p237 = pneg %p236
          $region49: #{tpu_custom_call.1} parent=35 // pred_check_branch
            %239 = sbr.rel (%p237) target = $region51
          $region50: #{tpu_custom_call.1} parent=35 // pred_region
            loop: start=0, step=1, limit=1
            $region52: #{tpu_custom_call.1} parent=50 // loop_pre_header
              _
            $region53: #{tpu_custom_call.1} parent=50 // loop_header
              %s241 = sphi 0, %s245
              %p242 = scmp.ge.s32.totalorder %s241, 1
              %s246 = sphi %s214, %s214
              %s247 = sphi [#allocation2], [#allocation2]
            $region54: #{tpu_custom_call.1} parent=50 // loop_header_branch
              %244 = sbr.rel (%p242) target = $region58
            $region55: #{tpu_custom_call.1} parent=50 // loop_body
              %v248 = vld [vmem:[%s246] sm:$0xff]
              %249 = vst [vmem:[%s247] sm:$0xff] %v248
              %v250 = vld [vmem:[%s246 + $0x8] sm:$0xff]
              %251 = vst [vmem:[%s247 + $0x8] sm:$0xff] %v250
              %v252 = vld [vmem:[%s246 + $0x10] sm:$0xff]
              %253 = vst [vmem:[%s247 + $0x10] sm:$0xff] %v252
              %v254 = vld [vmem:[%s246 + $0x18] sm:$0xff]
              %255 = vst [vmem:[%s247 + $0x18] sm:$0xff] %v254
              %v256 = vld [vmem:[%s246 + $0x20] sm:$0xff]
              %257 = vst [vmem:[%s247 + $0x20] sm:$0xff] %v256
              %v258 = vld [vmem:[%s246 + $0x28] sm:$0xff]
              %259 = vst [vmem:[%s247 + $0x28] sm:$0xff] %v258
              %v260 = vld [vmem:[%s246 + $0x30] sm:$0xff]
              %261 = vst [vmem:[%s247 + $0x30] sm:$0xff] %v260
              %v262 = vld [vmem:[%s246 + $0x38] sm:$0xff]
              %263 = vst [vmem:[%s247 + $0x38] sm:$0xff] %v262
              %v264 = vld [vmem:[%s246 + $0x40] sm:$0xff]
              %265 = vst [vmem:[%s247 + $0x40] sm:$0xff] %v264
              %v266 = vld [vmem:[%s246 + $0x48] sm:$0xff]
              %267 = vst [vmem:[%s247 + $0x48] sm:$0xff] %v266
              %v268 = vld [vmem:[%s246 + $0x50] sm:$0xff]
              %269 = vst [vmem:[%s247 + $0x50] sm:$0xff] %v268
              %v270 = vld [vmem:[%s246 + $0x58] sm:$0xff]
              %271 = vst [vmem:[%s247 + $0x58] sm:$0xff] %v270
              %v272 = vld [vmem:[%s246 + $0x60] sm:$0xff]
              %273 = vst [vmem:[%s247 + $0x60] sm:$0xff] %v272
              %v274 = vld [vmem:[%s246 + $0x68] sm:$0xff]
              %275 = vst [vmem:[%s247 + $0x68] sm:$0xff] %v274
              %v276 = vld [vmem:[%s246 + $0x70] sm:$0xff]
              %277 = vst [vmem:[%s247 + $0x70] sm:$0xff] %v276
              %v278 = vld [vmem:[%s246 + $0x78] sm:$0xff]
              %279 = vst [vmem:[%s247 + $0x78] sm:$0xff] %v278
              %v280 = vld [vmem:[%s246 + $0x80] sm:$0xff]
              %281 = vst [vmem:[%s247 + $0x80] sm:$0xff] %v280
              %v282 = vld [vmem:[%s246 + $0x88] sm:$0xff]
              %283 = vst [vmem:[%s247 + $0x88] sm:$0xff] %v282
              %v284 = vld [vmem:[%s246 + $0x90] sm:$0xff]
              %285 = vst [vmem:[%s247 + $0x90] sm:$0xff] %v284
              %v286 = vld [vmem:[%s246 + $0x98] sm:$0xff]
              %287 = vst [vmem:[%s247 + $0x98] sm:$0xff] %v286
              %v288 = vld [vmem:[%s246 + $0xa0] sm:$0xff]
              %289 = vst [vmem:[%s247 + $0xa0] sm:$0xff] %v288
              %v290 = vld [vmem:[%s246 + $0xa8] sm:$0xff]
              %291 = vst [vmem:[%s247 + $0xa8] sm:$0xff] %v290
              %v292 = vld [vmem:[%s246 + $0xb0] sm:$0xff]
              %293 = vst [vmem:[%s247 + $0xb0] sm:$0xff] %v292
              %v294 = vld [vmem:[%s246 + $0xb8] sm:$0xff]
              %295 = vst [vmem:[%s247 + $0xb8] sm:$0xff] %v294
              %v296 = vld [vmem:[%s246 + $0xc0] sm:$0xff]
              %297 = vst [vmem:[%s247 + $0xc0] sm:$0xff] %v296
              %v298 = vld [vmem:[%s246 + $0xc8] sm:$0xff]
              %299 = vst [vmem:[%s247 + $0xc8] sm:$0xff] %v298
              %v300 = vld [vmem:[%s246 + $0xd0] sm:$0xff]
              %301 = vst [vmem:[%s247 + $0xd0] sm:$0xff] %v300
              %v302 = vld [vmem:[%s246 + $0xd8] sm:$0xff]
              %303 = vst [vmem:[%s247 + $0xd8] sm:$0xff] %v302
              %v304 = vld [vmem:[%s246 + $0xe0] sm:$0xff]
              %305 = vst [vmem:[%s247 + $0xe0] sm:$0xff] %v304
              %v306 = vld [vmem:[%s246 + $0xe8] sm:$0xff]
              %307 = vst [vmem:[%s247 + $0xe8] sm:$0xff] %v306
              %v308 = vld [vmem:[%s246 + $0xf0] sm:$0xff]
              %309 = vst [vmem:[%s247 + $0xf0] sm:$0xff] %v308
              %v310 = vld [vmem:[%s246 + $0xf8] sm:$0xff]
              %311 = vst [vmem:[%s247 + $0xf8] sm:$0xff] %v310
              %v312 = vld [vmem:[%s246 + $0x100] sm:$0xff]
              %313 = vst [vmem:[%s247 + $0x100] sm:$0xff] %v312
              %v314 = vld [vmem:[%s246 + $0x108] sm:$0xff]
              %315 = vst [vmem:[%s247 + $0x108] sm:$0xff] %v314
              %v316 = vld [vmem:[%s246 + $0x110] sm:$0xff]
              %317 = vst [vmem:[%s247 + $0x110] sm:$0xff] %v316
              %v318 = vld [vmem:[%s246 + $0x118] sm:$0xff]
              %319 = vst [vmem:[%s247 + $0x118] sm:$0xff] %v318
              %v320 = vld [vmem:[%s246 + $0x120] sm:$0xff]
              %321 = vst [vmem:[%s247 + $0x120] sm:$0xff] %v320
              %v322 = vld [vmem:[%s246 + $0x128] sm:$0xff]
              %323 = vst [vmem:[%s247 + $0x128] sm:$0xff] %v322
              %v324 = vld [vmem:[%s246 + $0x130] sm:$0xff]
              %325 = vst [vmem:[%s247 + $0x130] sm:$0xff] %v324
              %v326 = vld [vmem:[%s246 + $0x138] sm:$0xff]
              %327 = vst [vmem:[%s247 + $0x138] sm:$0xff] %v326
              %v328 = vld [vmem:[%s246 + $0x140] sm:$0xff]
              %329 = vst [vmem:[%s247 + $0x140] sm:$0xff] %v328
              %v330 = vld [vmem:[%s246 + $0x148] sm:$0xff]
              %331 = vst [vmem:[%s247 + $0x148] sm:$0xff] %v330
              %v332 = vld [vmem:[%s246 + $0x150] sm:$0xff]
              %333 = vst [vmem:[%s247 + $0x150] sm:$0xff] %v332
              %v334 = vld [vmem:[%s246 + $0x158] sm:$0xff]
              %335 = vst [vmem:[%s247 + $0x158] sm:$0xff] %v334
              %v336 = vld [vmem:[%s246 + $0x160] sm:$0xff]
              %337 = vst [vmem:[%s247 + $0x160] sm:$0xff] %v336
              %v338 = vld [vmem:[%s246 + $0x168] sm:$0xff]
              %339 = vst [vmem:[%s247 + $0x168] sm:$0xff] %v338
              %v340 = vld [vmem:[%s246 + $0x170] sm:$0xff]
              %341 = vst [vmem:[%s247 + $0x170] sm:$0xff] %v340
              %v342 = vld [vmem:[%s246 + $0x178] sm:$0xff]
              %343 = vst [vmem:[%s247 + $0x178] sm:$0xff] %v342
              %v344 = vld [vmem:[%s246 + $0x180] sm:$0xff]
              %345 = vst [vmem:[%s247 + $0x180] sm:$0xff] %v344
              %v346 = vld [vmem:[%s246 + $0x188] sm:$0xff]
              %347 = vst [vmem:[%s247 + $0x188] sm:$0xff] %v346
              %v348 = vld [vmem:[%s246 + $0x190] sm:$0xff]
              %349 = vst [vmem:[%s247 + $0x190] sm:$0xff] %v348
              %v350 = vld [vmem:[%s246 + $0x198] sm:$0xff]
              %351 = vst [vmem:[%s247 + $0x198] sm:$0xff] %v350
              %v352 = vld [vmem:[%s246 + $0x1a0] sm:$0xff]
              %353 = vst [vmem:[%s247 + $0x1a0] sm:$0xff] %v352
              %v354 = vld [vmem:[%s246 + $0x1a8] sm:$0xff]
              %355 = vst [vmem:[%s247 + $0x1a8] sm:$0xff] %v354
              %v356 = vld [vmem:[%s246 + $0x1b0] sm:$0xff]
              %357 = vst [vmem:[%s247 + $0x1b0] sm:$0xff] %v356
              %v358 = vld [vmem:[%s246 + $0x1b8] sm:$0xff]
              %359 = vst [vmem:[%s247 + $0x1b8] sm:$0xff] %v358
              %v360 = vld [vmem:[%s246 + $0x1c0] sm:$0xff]
              %361 = vst [vmem:[%s247 + $0x1c0] sm:$0xff] %v360
              %v362 = vld [vmem:[%s246 + $0x1c8] sm:$0xff]
              %363 = vst [vmem:[%s247 + $0x1c8] sm:$0xff] %v362
              %v364 = vld [vmem:[%s246 + $0x1d0] sm:$0xff]
              %365 = vst [vmem:[%s247 + $0x1d0] sm:$0xff] %v364
              %v366 = vld [vmem:[%s246 + $0x1d8] sm:$0xff]
              %367 = vst [vmem:[%s247 + $0x1d8] sm:$0xff] %v366
              %v368 = vld [vmem:[%s246 + $0x1e0] sm:$0xff]
              %369 = vst [vmem:[%s247 + $0x1e0] sm:$0xff] %v368
              %v370 = vld [vmem:[%s246 + $0x1e8] sm:$0xff]
              %371 = vst [vmem:[%s247 + $0x1e8] sm:$0xff] %v370
              %v372 = vld [vmem:[%s246 + $0x1f0] sm:$0xff]
              %373 = vst [vmem:[%s247 + $0x1f0] sm:$0xff] %v372
              %v374 = vld [vmem:[%s246 + $0x1f8] sm:$0xff]
              %375 = vst [vmem:[%s247 + $0x1f8] sm:$0xff] %v374
              %v376 = vld [vmem:[%s246 + $0x200] sm:$0xff]
              %377 = vst [vmem:[%s247 + $0x200] sm:$0xff] %v376
              %v378 = vld [vmem:[%s246 + $0x208] sm:$0xff]
              %379 = vst [vmem:[%s247 + $0x208] sm:$0xff] %v378
              %v380 = vld [vmem:[%s246 + $0x210] sm:$0xff]
              %381 = vst [vmem:[%s247 + $0x210] sm:$0xff] %v380
              %v382 = vld [vmem:[%s246 + $0x218] sm:$0xff]
              %383 = vst [vmem:[%s247 + $0x218] sm:$0xff] %v382
              %v384 = vld [vmem:[%s246 + $0x220] sm:$0xff]
              %385 = vst [vmem:[%s247 + $0x220] sm:$0xff] %v384
              %v386 = vld [vmem:[%s246 + $0x228] sm:$0xff]
              %387 = vst [vmem:[%s247 + $0x228] sm:$0xff] %v386
            $region56: #{tpu_custom_call.1} parent=50 // loop_footer
              %s245 = sadd.s32 1, %s241
            $region57: #{tpu_custom_call.1} parent=50 // loop_footer_branch
              %240 = sbr.rel target = $region53
            $region58: #{tpu_custom_call.1} parent=50 // loop_exit
              _
          $region51: #{tpu_custom_call.1} parent=35 // pred_fallthru
            _
          %p388 = pneg %p236
          // Predicated region
          $region59: #{tpu_custom_call.1} parent=35 // pred_check
            _
          $region60: #{tpu_custom_call.1} parent=35 // pred_check_branch
            %390 = sbr.rel (%p236) target = $region62
          $region61: #{tpu_custom_call.1} parent=35 // pred_region
            %s391 = sand.u32 560, 7
          $region62: #{tpu_custom_call.1} parent=35 // pred_fallthru
            _
        $region36: #{tpu_custom_call.1} parent=31 // pred_fallthru
          _
        // Predicated region
        $region37: #{tpu_custom_call.1} parent=31 // pred_check
          %p220 = pneg %p216
        $region38: #{tpu_custom_call.1} parent=31 // pred_check_branch
          %222 = sbr.rel (%p220) target = $region40
        $region39: #{tpu_custom_call.1} parent=31 // pred_region
          %s223 = sshll.u32 1, 560
          %s224 = ssub.s32 %s223, 1
          loop: start=0, step=1, limit=1
          $region41: #{tpu_custom_call.1} parent=39 // loop_pre_header
            _
          $region42: #{tpu_custom_call.1} parent=39 // loop_header
            %s226 = sphi 0, %s230
            %p227 = scmp.ge.s32.totalorder %s226, 1
            %s231 = sphi %s214, %s214
            %s232 = sphi [#allocation2], [#allocation2]
          $region43: #{tpu_custom_call.1} parent=39 // loop_header_branch
            %229 = sbr.rel (%p227) target = $region47
          $region44: #{tpu_custom_call.1} parent=39 // loop_body
            %v233 = vld [vmem:[%s231] sm:%s224]
            %234 = vst [vmem:[%s232] sm:%s224] %v233
          $region45: #{tpu_custom_call.1} parent=39 // loop_footer
            %s230 = sadd.s32 1, %s226
          $region46: #{tpu_custom_call.1} parent=39 // loop_footer_branch
            %225 = sbr.rel target = $region42
          $region47: #{tpu_custom_call.1} parent=39 // loop_exit
            _
        $region40: #{tpu_custom_call.1} parent=31 // pred_fallthru
          _
        // Predicated region
        $region63: #{tpu_custom_call.1} parent=31 // pred_check
          _
        $region64: #{tpu_custom_call.1} parent=31 // pred_check_branch
          %394 = sbr.rel (0) target = $region66
        $region65: #{tpu_custom_call.1} parent=31 // pred_region
          %395 = vsyncadd [#allocation3], 8960
        $region66: #{tpu_custom_call.1} parent=31 // pred_fallthru
          _
        %s396 = smul.u32 560, 1
        %s397 = sshll.u32 %s396, 4
        %398 = dma.done [#allocation3], %s397
        %v399 = vld [vmem:[#allocation2 + $0x5] sm:$0xff]
        %v400 = vld [vmem:[#allocation2 + $0xd] sm:$0xff]
        %v401 = vld [vmem:[#allocation2 + $0x15] sm:$0xff]
        %v402 = vld [vmem:[#allocation2 + $0x1d] sm:$0xff]
        %v403 = vld [vmem:[#allocation2 + $0x25] sm:$0xff]
        %v404 = vld [vmem:[#allocation2 + $0x2d] sm:$0xff]
        %v405 = vld [vmem:[#allocation2 + $0x35] sm:$0xff]
        %v406 = vld [vmem:[#allocation2 + $0x3d] sm:$0xff]
        %v407 = vld [vmem:[#allocation2 + $0x45] sm:$0xff]
        %v408 = vld [vmem:[#allocation2 + $0x4d] sm:$0xff]
        %v409 = vld [vmem:[#allocation2 + $0x55] sm:$0xff]
        %v410 = vld [vmem:[#allocation2 + $0x5d] sm:$0xff]
        %v411 = vld [vmem:[#allocation2 + $0x65] sm:$0xff]
        %v412 = vld [vmem:[#allocation2 + $0x6d] sm:$0xff]
        %v413 = vld [vmem:[#allocation2 + $0x75] sm:$0xff]
        %v414 = vld [vmem:[#allocation2 + $0x7d] sm:$0xff]
        %v415 = vld [vmem:[#allocation2 + $0x85] sm:$0xff]
        %v416 = vld [vmem:[#allocation2 + $0x8d] sm:$0xff]
        %v417 = vld [vmem:[#allocation2 + $0x95] sm:$0xff]
        %v418 = vld [vmem:[#allocation2 + $0x9d] sm:$0xff]
        %v419 = vld [vmem:[#allocation2 + $0xa5] sm:$0xff]
        %v420 = vld [vmem:[#allocation2 + $0xad] sm:$0xff]
        %v421 = vld [vmem:[#allocation2 + $0xb5] sm:$0xff]
        %v422 = vld [vmem:[#allocation2 + $0xbd] sm:$0xff]
        %v423 = vld [vmem:[#allocation2 + $0xc5] sm:$0xff]
        %v424 = vld [vmem:[#allocation2 + $0xcd] sm:$0xff]
        %v425 = vld [vmem:[#allocation2 + $0xd5] sm:$0xff]
        %v426 = vld [vmem:[#allocation2 + $0xdd] sm:$0xff]
        %v427 = vld [vmem:[#allocation2 + $0xe5] sm:$0xff]
        %v428 = vld [vmem:[#allocation2 + $0xed] sm:$0xff]
        %v429 = vld [vmem:[#allocation2 + $0xf5] sm:$0xff]
        %v430 = vld [vmem:[#allocation2 + $0xfd] sm:$0xff]
        %v431 = vld [vmem:[#allocation2 + $0x105] sm:$0xff]
        %v432 = vld [vmem:[#allocation2 + $0x10d] sm:$0xff]
        %v433 = vld [vmem:[#allocation2 + $0x115] sm:$0xff]
        %v434 = vld [vmem:[#allocation2 + $0x11d] sm:$0xff]
        %v435 = vld [vmem:[#allocation2 + $0x125] sm:$0xff]
        %v436 = vld [vmem:[#allocation2 + $0x12d] sm:$0xff]
        %v437 = vld [vmem:[#allocation2 + $0x135] sm:$0xff]
        %v438 = vld [vmem:[#allocation2 + $0x13d] sm:$0xff]
        %v439 = vld [vmem:[#allocation2 + $0x145] sm:$0xff]
        %v440 = vld [vmem:[#allocation2 + $0x14d] sm:$0xff]
        %v441 = vld [vmem:[#allocation2 + $0x155] sm:$0xff]
        %v442 = vld [vmem:[#allocation2 + $0x15d] sm:$0xff]
        %v443 = vld [vmem:[#allocation2 + $0x165] sm:$0xff]
        %v444 = vld [vmem:[#allocation2 + $0x16d] sm:$0xff]
        %v445 = vld [vmem:[#allocation2 + $0x175] sm:$0xff]
        %v446 = vld [vmem:[#allocation2 + $0x17d] sm:$0xff]
        %v447 = vld [vmem:[#allocation2 + $0x185] sm:$0xff]
        %v448 = vld [vmem:[#allocation2 + $0x18d] sm:$0xff]
        %v449 = vld [vmem:[#allocation2 + $0x195] sm:$0xff]
        %v450 = vld [vmem:[#allocation2 + $0x19d] sm:$0xff]
        %v451 = vld [vmem:[#allocation2 + $0x1a5] sm:$0xff]
        %v452 = vld [vmem:[#allocation2 + $0x1ad] sm:$0xff]
        %v453 = vld [vmem:[#allocation2 + $0x1b5] sm:$0xff]
        %v454 = vld [vmem:[#allocation2 + $0x1bd] sm:$0xff]
        %v455 = vld [vmem:[#allocation2 + $0x1c5] sm:$0xff]
        %v456 = vld [vmem:[#allocation2 + $0x1cd] sm:$0xff]
        %v457 = vld [vmem:[#allocation2 + $0x1d5] sm:$0xff]
        %v458 = vld [vmem:[#allocation2 + $0x1dd] sm:$0xff]
        %v459 = vld [vmem:[#allocation2 + $0x1e5] sm:$0xff]
        %v460 = vld [vmem:[#allocation2 + $0x1ed] sm:$0xff]
        %v461 = vld [vmem:[#allocation2 + $0x1f5] sm:$0xff]
        %v462 = vld [vmem:[#allocation2 + $0x1fd] sm:$0xff]
        %v463 = vld [vmem:[%s2] sm:$0xff]
        %v464 = vld [vmem:[%s2 + $0x8] sm:$0xff]
        %v465 = vld [vmem:[#allocation2 + $0x6] sm:$0xff]
        %v466 = vld [vmem:[#allocation2 + $0xe] sm:$0xff]
        %v467 = vld [vmem:[#allocation2 + $0x16] sm:$0xff]
        %v468 = vld [vmem:[#allocation2 + $0x1e] sm:$0xff]
        %v469 = vld [vmem:[#allocation2 + $0x26] sm:$0xff]
        %v470 = vld [vmem:[#allocation2 + $0x2e] sm:$0xff]
        %v471 = vld [vmem:[#allocation2 + $0x36] sm:$0xff]
        %v472 = vld [vmem:[#allocation2 + $0x3e] sm:$0xff]
        %v473 = vld [vmem:[#allocation2 + $0x46] sm:$0xff]
        %v474 = vld [vmem:[#allocation2 + $0x4e] sm:$0xff]
        %v475 = vld [vmem:[#allocation2 + $0x56] sm:$0xff]
        %v476 = vld [vmem:[#allocation2 + $0x5e] sm:$0xff]
        %v477 = vld [vmem:[#allocation2 + $0x66] sm:$0xff]
        %v478 = vld [vmem:[#allocation2 + $0x6e] sm:$0xff]
        %v479 = vld [vmem:[#allocation2 + $0x76] sm:$0xff]
        %v480 = vld [vmem:[#allocation2 + $0x7e] sm:$0xff]
        %v481 = vld [vmem:[#allocation2 + $0x86] sm:$0xff]
        %v482 = vld [vmem:[#allocation2 + $0x8e] sm:$0xff]
        %v483 = vld [vmem:[#allocation2 + $0x96] sm:$0xff]
        %v484 = vld [vmem:[#allocation2 + $0x9e] sm:$0xff]
        %v485 = vld [vmem:[#allocation2 + $0xa6] sm:$0xff]
        %v486 = vld [vmem:[#allocation2 + $0xae] sm:$0xff]
        %v487 = vld [vmem:[#allocation2 + $0xb6] sm:$0xff]
        %v488 = vld [vmem:[#allocation2 + $0xbe] sm:$0xff]
        %v489 = vld [vmem:[#allocation2 + $0xc6] sm:$0xff]
        %v490 = vld [vmem:[#allocation2 + $0xce] sm:$0xff]
        %v491 = vld [vmem:[#allocation2 + $0xd6] sm:$0xff]
        %v492 = vld [vmem:[#allocation2 + $0xde] sm:$0xff]
        %v493 = vld [vmem:[#allocation2 + $0xe6] sm:$0xff]
        %v494 = vld [vmem:[#allocation2 + $0xee] sm:$0xff]
        %v495 = vld [vmem:[#allocation2 + $0xf6] sm:$0xff]
        %v496 = vld [vmem:[#allocation2 + $0xfe] sm:$0xff]
        %v497 = vld [vmem:[#allocation2 + $0x106] sm:$0xff]
        %v498 = vld [vmem:[#allocation2 + $0x10e] sm:$0xff]
        %v499 = vld [vmem:[#allocation2 + $0x116] sm:$0xff]
        %v500 = vld [vmem:[#allocation2 + $0x11e] sm:$0xff]
        %v501 = vld [vmem:[#allocation2 + $0x126] sm:$0xff]
        %v502 = vld [vmem:[#allocation2 + $0x12e] sm:$0xff]
        %v503 = vld [vmem:[#allocation2 + $0x136] sm:$0xff]
        %v504 = vld [vmem:[#allocation2 + $0x13e] sm:$0xff]
        %v505 = vld [vmem:[#allocation2 + $0x146] sm:$0xff]
        %v506 = vld [vmem:[#allocation2 + $0x14e] sm:$0xff]
        %v507 = vld [vmem:[#allocation2 + $0x156] sm:$0xff]
        %v508 = vld [vmem:[#allocation2 + $0x15e] sm:$0xff]
        %v509 = vld [vmem:[#allocation2 + $0x166] sm:$0xff]
        %v510 = vld [vmem:[#allocation2 + $0x16e] sm:$0xff]
        %v511 = vld [vmem:[#allocation2 + $0x176] sm:$0xff]
        %v512 = vld [vmem:[#allocation2 + $0x17e] sm:$0xff]
        %v513 = vld [vmem:[#allocation2 + $0x186] sm:$0xff]
        %v514 = vld [vmem:[#allocation2 + $0x18e] sm:$0xff]
        %v515 = vld [vmem:[#allocation2 + $0x196] sm:$0xff]
        %v516 = vld [vmem:[#allocation2 + $0x19e] sm:$0xff]
        %v517 = vld [vmem:[#allocation2 + $0x1a6] sm:$0xff]
        %v518 = vld [vmem:[#allocation2 + $0x1ae] sm:$0xff]
        %v519 = vld [vmem:[#allocation2 + $0x1b6] sm:$0xff]
        %v520 = vld [vmem:[#allocation2 + $0x1be] sm:$0xff]
        %v521 = vld [vmem:[#allocation2 + $0x1c6] sm:$0xff]
        %v522 = vld [vmem:[#allocation2 + $0x1ce] sm:$0xff]
        %v523 = vld [vmem:[#allocation2 + $0x1d6] sm:$0xff]
        %v524 = vld [vmem:[#allocation2 + $0x1de] sm:$0xff]
        %v525 = vld [vmem:[#allocation2 + $0x1e6] sm:$0xff]
        %v526 = vld [vmem:[#allocation2 + $0x1ee] sm:$0xff]
        %v527 = vld [vmem:[#allocation2 + $0x1f6] sm:$0xff]
        %v528 = vld [vmem:[#allocation2 + $0x1fe] sm:$0xff]
        %s529 = scalar_lea.vmem %s2, 16
        %v530 = vld [vmem:[%s529] sm:$0xff]
        %v531 = vld [vmem:[%s529 + $0x8] sm:$0xff]
        %vm532 = vcmask 130048
        %v534 = vsel %vm532, %v465, 0
        %v537 = vsel %vm532, %v466, 0
        %v540 = vsel %vm532, %v467, 0
        %v543 = vsel %vm532, %v468, 0
        %v546 = vsel %vm532, %v469, 0
        %v549 = vsel %vm532, %v470, 0
        %v552 = vsel %vm532, %v471, 0
        %v555 = vsel %vm532, %v472, 0
        %v558 = vsel %vm532, %v473, 0
        %v561 = vsel %vm532, %v474, 0
        %v564 = vsel %vm532, %v475, 0
        %v567 = vsel %vm532, %v476, 0
        %v570 = vsel %vm532, %v477, 0
        %v573 = vsel %vm532, %v478, 0
        %v576 = vsel %vm532, %v479, 0
        %v579 = vsel %vm532, %v480, 0
        %v582 = vsel %vm532, %v481, 0
        %v585 = vsel %vm532, %v482, 0
        %v588 = vsel %vm532, %v483, 0
        %v591 = vsel %vm532, %v484, 0
        %v594 = vsel %vm532, %v485, 0
        %v597 = vsel %vm532, %v486, 0
        %v600 = vsel %vm532, %v487, 0
        %v603 = vsel %vm532, %v488, 0
        %v606 = vsel %vm532, %v489, 0
        %v609 = vsel %vm532, %v490, 0
        %v612 = vsel %vm532, %v491, 0
        %v615 = vsel %vm532, %v492, 0
        %v618 = vsel %vm532, %v493, 0
        %v621 = vsel %vm532, %v494, 0
        %v624 = vsel %vm532, %v495, 0
        %v627 = vsel %vm532, %v496, 0
        %v630 = vsel %vm532, %v497, 0
        %v633 = vsel %vm532, %v498, 0
        %v636 = vsel %vm532, %v499, 0
        %v639 = vsel %vm532, %v500, 0
        %v642 = vsel %vm532, %v501, 0
        %v645 = vsel %vm532, %v502, 0
        %v648 = vsel %vm532, %v503, 0
        %v651 = vsel %vm532, %v504, 0
        %v654 = vsel %vm532, %v505, 0
        %v657 = vsel %vm532, %v506, 0
        %v660 = vsel %vm532, %v507, 0
        %v663 = vsel %vm532, %v508, 0
        %v666 = vsel %vm532, %v509, 0
        %v669 = vsel %vm532, %v510, 0
        %v672 = vsel %vm532, %v511, 0
        %v675 = vsel %vm532, %v512, 0
        %v678 = vsel %vm532, %v513, 0
        %v681 = vsel %vm532, %v514, 0
        %v684 = vsel %vm532, %v515, 0
        %v687 = vsel %vm532, %v516, 0
        %v690 = vsel %vm532, %v517, 0
        %v693 = vsel %vm532, %v518, 0
        %v696 = vsel %vm532, %v519, 0
        %v699 = vsel %vm532, %v520, 0
        %v702 = vsel %vm532, %v521, 0
        %v705 = vsel %vm532, %v522, 0
        %v708 = vsel %vm532, %v523, 0
        %v711 = vsel %vm532, %v524, 0
        %v714 = vsel %vm532, %v525, 0
        %v717 = vsel %vm532, %v526, 0
        %v720 = vsel %vm532, %v527, 0
        %v723 = vsel %vm532, %v528, 0
        %725 = vmatprep.subr.mxu0 0.0
        %726 = vmatpush1.msra.mxu0 0.0
        %727 = vmatprep.subr.mxu0 0.0
        %728 = vmatpush1.msra.mxu0 0.0
        %729 = vmatprep.subr.mxu0 0.0
        %730 = vmatpush1.msra.mxu0 0.0
        %731 = vmatprep.subr.mxu0 0.0
        %732 = vmatpush1.msra.mxu0 0.0
        %733 = vmatprep.subr.mxu0 0.0
        %734 = vmatpush1.msra.mxu0 0.0
        %735 = vmatprep.subr.mxu0 0.0
        %736 = vmatpush1.msra.mxu0 0.0
        %737 = vmatprep.subr.mxu0 0.0
        %738 = vmatpush1.msra.mxu0 0.0
        %739 = vmatprep.subr.mxu0 0.0
        %740 = vmatpush1.msra.mxu0 0.0
        %741 = vmatprep.subr.mxu0 0.0
        %742 = vmatpush1.msra.mxu0 0.0
        %743 = vmatprep.subr.mxu0 0.0
        %744 = vmatpush1.msra.mxu0 0.0
        %745 = vmatprep.subr.mxu0 0.0
        %746 = vmatpush1.msra.mxu0 0.0
        %747 = vmatprep.subr.mxu0 0.0
        %748 = vmatpush1.msra.mxu0 0.0
        %749 = vmatprep.subr.mxu0 0.0
        %750 = vmatpush1.msra.mxu0 0.0
        %751 = vmatprep.subr.mxu0 0.0
        %752 = vmatpush1.msra.mxu0 0.0
        %753 = vmatprep.subr.mxu0 0.0
        %754 = vmatpush1.msra.mxu0 %v531
        %755 = vmatprep.subr.mxu0 0.0
        %756 = vmatpush1.msra.mxu0 %v530
        %757 = vmatprep.subr.mxu0 0.0
        %758 = vmatpush2.msra.mxu0 0.0
        %759 = vmatprep.subr.mxu0 0.0
        %760 = vmatpush2.msra.mxu0 0.0
        %761 = vmatprep.subr.mxu0 0.0
        %762 = vmatpush2.msra.mxu0 0.0
        %763 = vmatprep.subr.mxu0 0.0
        %764 = vmatpush2.msra.mxu0 0.0
        %765 = vmatprep.subr.mxu0 0.0
        %766 = vmatpush2.msra.mxu0 0.0
        %767 = vmatprep.subr.mxu0 0.0
        %768 = vmatpush2.msra.mxu0 0.0
        %769 = vmatprep.subr.mxu0 0.0
        %770 = vmatpush2.msra.mxu0 0.0
        %771 = vmatprep.subr.mxu0 0.0
        %772 = vmatpush2.msra.mxu0 0.0
        %773 = vmatprep.subr.mxu0 0.0
        %774 = vmatpush2.msra.mxu0 0.0
        %775 = vmatprep.subr.mxu0 0.0
        %776 = vmatpush2.msra.mxu0 0.0
        %777 = vmatprep.subr.mxu0 0.0
        %778 = vmatpush2.msra.mxu0 0.0
        %779 = vmatprep.subr.mxu0 0.0
        %780 = vmatpush2.msra.mxu0 0.0
        %781 = vmatprep.subr.mxu0 0.0
        %782 = vmatpush2.msra.mxu0 0.0
        %783 = vmatprep.subr.mxu0 0.0
        %784 = vmatpush2.msra.mxu0 0.0
        %785 = vmatprep.subr.mxu0 0.0
        %786 = vmatpush2.msra.mxu0 0.0
        %787 = vmatprep.subr.mxu0 0.0
        %788 = vmatpush2.msra.mxu0 0.0
        %789 = vmatprep.mubr.f32.mxu0 0.0
        %790 = vmatmul.mubr.f32.gmra.mxu0 %v534
        %v791 = vpop.f32.mrf.mxu0
        %v792 = vadd.f32 0.0, %v791
        %v793 = vpop.f32.mrf.mxu0
        %794 = vmatprep.mubr.f32.mxu0 0.0
        %795 = vmatmul.mubr.f32.gmra.mxu0 %v537
        %v796 = vpop.f32.mrf.mxu0
        %v797 = vadd.f32 0.0, %v796
        %v798 = vpop.f32.mrf.mxu0
        %799 = vmatprep.mubr.f32.mxu0 0.0
        %800 = vmatmul.mubr.f32.gmra.mxu0 %v540
        %v801 = vpop.f32.mrf.mxu0
        %v802 = vadd.f32 0.0, %v801
        %v803 = vpop.f32.mrf.mxu0
        %804 = vmatprep.mubr.f32.mxu0 0.0
        %805 = vmatmul.mubr.f32.gmra.mxu0 %v543
        %v806 = vpop.f32.mrf.mxu0
        %v807 = vadd.f32 0.0, %v806
        %v808 = vpop.f32.mrf.mxu0
        %809 = vmatprep.mubr.f32.mxu0 0.0
        %810 = vmatmul.mubr.f32.gmra.mxu0 %v546
        %v811 = vpop.f32.mrf.mxu0
        %v812 = vadd.f32 0.0, %v811
        %v813 = vpop.f32.mrf.mxu0
        %814 = vmatprep.mubr.f32.mxu0 0.0
        %815 = vmatmul.mubr.f32.gmra.mxu0 %v549
        %v816 = vpop.f32.mrf.mxu0
        %v817 = vadd.f32 0.0, %v816
        %v818 = vpop.f32.mrf.mxu0
        %819 = vmatprep.mubr.f32.mxu0 0.0
        %820 = vmatmul.mubr.f32.gmra.mxu0 %v552
        %v821 = vpop.f32.mrf.mxu0
        %v822 = vadd.f32 0.0, %v821
        %v823 = vpop.f32.mrf.mxu0
        %824 = vmatprep.mubr.f32.mxu0 0.0
        %825 = vmatmul.mubr.f32.gmra.mxu0 %v555
        %v826 = vpop.f32.mrf.mxu0
        %v827 = vadd.f32 0.0, %v826
        %v828 = vpop.f32.mrf.mxu0
        %829 = vmatprep.mubr.f32.mxu0 0.0
        %830 = vmatmul.mubr.f32.gmra.mxu0 %v558
        %v831 = vpop.f32.mrf.mxu0
        %v832 = vadd.f32 0.0, %v831
        %v833 = vpop.f32.mrf.mxu0
        %834 = vmatprep.mubr.f32.mxu0 0.0
        %835 = vmatmul.mubr.f32.gmra.mxu0 %v561
        %v836 = vpop.f32.mrf.mxu0
        %v837 = vadd.f32 0.0, %v836
        %v838 = vpop.f32.mrf.mxu0
        %839 = vmatprep.mubr.f32.mxu0 0.0
        %840 = vmatmul.mubr.f32.gmra.mxu0 %v564
        %v841 = vpop.f32.mrf.mxu0
        %v842 = vadd.f32 0.0, %v841
        %v843 = vpop.f32.mrf.mxu0
        %844 = vmatprep.mubr.f32.mxu0 0.0
        %845 = vmatmul.mubr.f32.gmra.mxu0 %v567
        %v846 = vpop.f32.mrf.mxu0
        %v847 = vadd.f32 0.0, %v846
        %v848 = vpop.f32.mrf.mxu0
        %849 = vmatprep.mubr.f32.mxu0 0.0
        %850 = vmatmul.mubr.f32.gmra.mxu0 %v570
        %v851 = vpop.f32.mrf.mxu0
        %v852 = vadd.f32 0.0, %v851
        %v853 = vpop.f32.mrf.mxu0
        %854 = vmatprep.mubr.f32.mxu0 0.0
        %855 = vmatmul.mubr.f32.gmra.mxu0 %v573
        %v856 = vpop.f32.mrf.mxu0
        %v857 = vadd.f32 0.0, %v856
        %v858 = vpop.f32.mrf.mxu0
        %859 = vmatprep.mubr.f32.mxu0 0.0
        %860 = vmatmul.mubr.f32.gmra.mxu0 %v576
        %v861 = vpop.f32.mrf.mxu0
        %v862 = vadd.f32 0.0, %v861
        %v863 = vpop.f32.mrf.mxu0
        %864 = vmatprep.mubr.f32.mxu0 0.0
        %865 = vmatmul.mubr.f32.gmra.mxu0 %v579
        %v866 = vpop.f32.mrf.mxu0
        %v867 = vadd.f32 0.0, %v866
        %v868 = vpop.f32.mrf.mxu0
        %869 = vmatprep.mubr.f32.mxu0 0.0
        %870 = vmatmul.mubr.f32.gmra.mxu0 %v582
        %v871 = vpop.f32.mrf.mxu0
        %v872 = vadd.f32 0.0, %v871
        %v873 = vpop.f32.mrf.mxu0
        %874 = vmatprep.mubr.f32.mxu0 0.0
        %875 = vmatmul.mubr.f32.gmra.mxu0 %v585
        %v876 = vpop.f32.mrf.mxu0
        %v877 = vadd.f32 0.0, %v876
        %v878 = vpop.f32.mrf.mxu0
        %879 = vmatprep.mubr.f32.mxu0 0.0
        %880 = vmatmul.mubr.f32.gmra.mxu0 %v588
        %v881 = vpop.f32.mrf.mxu0
        %v882 = vadd.f32 0.0, %v881
        %v883 = vpop.f32.mrf.mxu0
        %884 = vmatprep.mubr.f32.mxu0 0.0
        %885 = vmatmul.mubr.f32.gmra.mxu0 %v591
        %v886 = vpop.f32.mrf.mxu0
        %v887 = vadd.f32 0.0, %v886
        %v888 = vpop.f32.mrf.mxu0
        %889 = vmatprep.mubr.f32.mxu0 0.0
        %890 = vmatmul.mubr.f32.gmra.mxu0 %v594
        %v891 = vpop.f32.mrf.mxu0
        %v892 = vadd.f32 0.0, %v891
        %v893 = vpop.f32.mrf.mxu0
        %894 = vmatprep.mubr.f32.mxu0 0.0
        %895 = vmatmul.mubr.f32.gmra.mxu0 %v597
        %v896 = vpop.f32.mrf.mxu0
        %v897 = vadd.f32 0.0, %v896
        %v898 = vpop.f32.mrf.mxu0
        %899 = vmatprep.mubr.f32.mxu0 0.0
        %900 = vmatmul.mubr.f32.gmra.mxu0 %v600
        %v901 = vpop.f32.mrf.mxu0
        %v902 = vadd.f32 0.0, %v901
        %v903 = vpop.f32.mrf.mxu0
        %904 = vmatprep.mubr.f32.mxu0 0.0
        %905 = vmatmul.mubr.f32.gmra.mxu0 %v603
        %v906 = vpop.f32.mrf.mxu0
        %v907 = vadd.f32 0.0, %v906
        %v908 = vpop.f32.mrf.mxu0
        %909 = vmatprep.mubr.f32.mxu0 0.0
        %910 = vmatmul.mubr.f32.gmra.mxu0 %v606
        %v911 = vpop.f32.mrf.mxu0
        %v912 = vadd.f32 0.0, %v911
        %v913 = vpop.f32.mrf.mxu0
        %914 = vmatprep.mubr.f32.mxu0 0.0
        %915 = vmatmul.mubr.f32.gmra.mxu0 %v609
        %v916 = vpop.f32.mrf.mxu0
        %v917 = vadd.f32 0.0, %v916
        %v918 = vpop.f32.mrf.mxu0
        %919 = vmatprep.mubr.f32.mxu0 0.0
        %920 = vmatmul.mubr.f32.gmra.mxu0 %v612
        %v921 = vpop.f32.mrf.mxu0
        %v922 = vadd.f32 0.0, %v921
        %v923 = vpop.f32.mrf.mxu0
        %924 = vmatprep.mubr.f32.mxu0 0.0
        %925 = vmatmul.mubr.f32.gmra.mxu0 %v615
        %v926 = vpop.f32.mrf.mxu0
        %v927 = vadd.f32 0.0, %v926
        %v928 = vpop.f32.mrf.mxu0
        %929 = vmatprep.mubr.f32.mxu0 0.0
        %930 = vmatmul.mubr.f32.gmra.mxu0 %v618
        %v931 = vpop.f32.mrf.mxu0
        %v932 = vadd.f32 0.0, %v931
        %v933 = vpop.f32.mrf.mxu0
        %934 = vmatprep.mubr.f32.mxu0 0.0
        %935 = vmatmul.mubr.f32.gmra.mxu0 %v621
        %v936 = vpop.f32.mrf.mxu0
        %v937 = vadd.f32 0.0, %v936
        %v938 = vpop.f32.mrf.mxu0
        %939 = vmatprep.mubr.f32.mxu0 0.0
        %940 = vmatmul.mubr.f32.gmra.mxu0 %v624
        %v941 = vpop.f32.mrf.mxu0
        %v942 = vadd.f32 0.0, %v941
        %v943 = vpop.f32.mrf.mxu0
        %944 = vmatprep.mubr.f32.mxu0 0.0
        %945 = vmatmul.mubr.f32.gmra.mxu0 %v627
        %v946 = vpop.f32.mrf.mxu0
        %v947 = vadd.f32 0.0, %v946
        %v948 = vpop.f32.mrf.mxu0
        %949 = vmatprep.mubr.f32.mxu0 0.0
        %950 = vmatmul.mubr.f32.gmra.mxu0 %v630
        %v951 = vpop.f32.mrf.mxu0
        %v952 = vadd.f32 0.0, %v951
        %v953 = vpop.f32.mrf.mxu0
        %954 = vmatprep.mubr.f32.mxu0 0.0
        %955 = vmatmul.mubr.f32.gmra.mxu0 %v633
        %v956 = vpop.f32.mrf.mxu0
        %v957 = vadd.f32 0.0, %v956
        %v958 = vpop.f32.mrf.mxu0
        %959 = vmatprep.mubr.f32.mxu0 0.0
        %960 = vmatmul.mubr.f32.gmra.mxu0 %v636
        %v961 = vpop.f32.mrf.mxu0
        %v962 = vadd.f32 0.0, %v961
        %v963 = vpop.f32.mrf.mxu0
        %964 = vmatprep.mubr.f32.mxu0 0.0
        %965 = vmatmul.mubr.f32.gmra.mxu0 %v639
        %v966 = vpop.f32.mrf.mxu0
        %v967 = vadd.f32 0.0, %v966
        %v968 = vpop.f32.mrf.mxu0
        %969 = vmatprep.mubr.f32.mxu0 0.0
        %970 = vmatmul.mubr.f32.gmra.mxu0 %v642
        %v971 = vpop.f32.mrf.mxu0
        %v972 = vadd.f32 0.0, %v971
        %v973 = vpop.f32.mrf.mxu0
        %974 = vmatprep.mubr.f32.mxu0 0.0
        %975 = vmatmul.mubr.f32.gmra.mxu0 %v645
        %v976 = vpop.f32.mrf.mxu0
        %v977 = vadd.f32 0.0, %v976
        %v978 = vpop.f32.mrf.mxu0
        %979 = vmatprep.mubr.f32.mxu0 0.0
        %980 = vmatmul.mubr.f32.gmra.mxu0 %v648
        %v981 = vpop.f32.mrf.mxu0
        %v982 = vadd.f32 0.0, %v981
        %v983 = vpop.f32.mrf.mxu0
        %984 = vmatprep.mubr.f32.mxu0 0.0
        %985 = vmatmul.mubr.f32.gmra.mxu0 %v651
        %v986 = vpop.f32.mrf.mxu0
        %v987 = vadd.f32 0.0, %v986
        %v988 = vpop.f32.mrf.mxu0
        %989 = vmatprep.mubr.f32.mxu0 0.0
        %990 = vmatmul.mubr.f32.gmra.mxu0 %v654
        %v991 = vpop.f32.mrf.mxu0
        %v992 = vadd.f32 0.0, %v991
        %v993 = vpop.f32.mrf.mxu0
        %994 = vmatprep.mubr.f32.mxu0 0.0
        %995 = vmatmul.mubr.f32.gmra.mxu0 %v657
        %v996 = vpop.f32.mrf.mxu0
        %v997 = vadd.f32 0.0, %v996
        %v998 = vpop.f32.mrf.mxu0
        %999 = vmatprep.mubr.f32.mxu0 0.0
        %1000 = vmatmul.mubr.f32.gmra.mxu0 %v660
        %v1001 = vpop.f32.mrf.mxu0
        %v1002 = vadd.f32 0.0, %v1001
        %v1003 = vpop.f32.mrf.mxu0
        %1004 = vmatprep.mubr.f32.mxu0 0.0
        %1005 = vmatmul.mubr.f32.gmra.mxu0 %v663
        %v1006 = vpop.f32.mrf.mxu0
        %v1007 = vadd.f32 0.0, %v1006
        %v1008 = vpop.f32.mrf.mxu0
        %1009 = vmatprep.mubr.f32.mxu0 0.0
        %1010 = vmatmul.mubr.f32.gmra.mxu0 %v666
        %v1011 = vpop.f32.mrf.mxu0
        %v1012 = vadd.f32 0.0, %v1011
        %v1013 = vpop.f32.mrf.mxu0
        %1014 = vmatprep.mubr.f32.mxu0 0.0
        %1015 = vmatmul.mubr.f32.gmra.mxu0 %v669
        %v1016 = vpop.f32.mrf.mxu0
        %v1017 = vadd.f32 0.0, %v1016
        %v1018 = vpop.f32.mrf.mxu0
        %1019 = vmatprep.mubr.f32.mxu0 0.0
        %1020 = vmatmul.mubr.f32.gmra.mxu0 %v672
        %v1021 = vpop.f32.mrf.mxu0
        %v1022 = vadd.f32 0.0, %v1021
        %v1023 = vpop.f32.mrf.mxu0
        %1024 = vmatprep.mubr.f32.mxu0 0.0
        %1025 = vmatmul.mubr.f32.gmra.mxu0 %v675
        %v1026 = vpop.f32.mrf.mxu0
        %v1027 = vadd.f32 0.0, %v1026
        %v1028 = vpop.f32.mrf.mxu0
        %1029 = vmatprep.mubr.f32.mxu0 0.0
        %1030 = vmatmul.mubr.f32.gmra.mxu0 %v678
        %v1031 = vpop.f32.mrf.mxu0
        %v1032 = vadd.f32 0.0, %v1031
        %v1033 = vpop.f32.mrf.mxu0
        %1034 = vmatprep.mubr.f32.mxu0 0.0
        %1035 = vmatmul.mubr.f32.gmra.mxu0 %v681
        %v1036 = vpop.f32.mrf.mxu0
        %v1037 = vadd.f32 0.0, %v1036
        %v1038 = vpop.f32.mrf.mxu0
        %1039 = vmatprep.mubr.f32.mxu0 0.0
        %1040 = vmatmul.mubr.f32.gmra.mxu0 %v684
        %v1041 = vpop.f32.mrf.mxu0
        %v1042 = vadd.f32 0.0, %v1041
        %v1043 = vpop.f32.mrf.mxu0
        %1044 = vmatprep.mubr.f32.mxu0 0.0
        %1045 = vmatmul.mubr.f32.gmra.mxu0 %v687
        %v1046 = vpop.f32.mrf.mxu0
        %v1047 = vadd.f32 0.0, %v1046
        %v1048 = vpop.f32.mrf.mxu0
        %1049 = vmatprep.mubr.f32.mxu0 0.0
        %1050 = vmatmul.mubr.f32.gmra.mxu0 %v690
        %v1051 = vpop.f32.mrf.mxu0
        %v1052 = vadd.f32 0.0, %v1051
        %v1053 = vpop.f32.mrf.mxu0
        %1054 = vmatprep.mubr.f32.mxu0 0.0
        %1055 = vmatmul.mubr.f32.gmra.mxu0 %v693
        %v1056 = vpop.f32.mrf.mxu0
        %v1057 = vadd.f32 0.0, %v1056
        %v1058 = vpop.f32.mrf.mxu0
        %1059 = vmatprep.mubr.f32.mxu0 0.0
        %1060 = vmatmul.mubr.f32.gmra.mxu0 %v696
        %v1061 = vpop.f32.mrf.mxu0
        %v1062 = vadd.f32 0.0, %v1061
        %v1063 = vpop.f32.mrf.mxu0
        %1064 = vmatprep.mubr.f32.mxu0 0.0
        %1065 = vmatmul.mubr.f32.gmra.mxu0 %v699
        %v1066 = vpop.f32.mrf.mxu0
        %v1067 = vadd.f32 0.0, %v1066
        %v1068 = vpop.f32.mrf.mxu0
        %1069 = vmatprep.mubr.f32.mxu0 0.0
        %1070 = vmatmul.mubr.f32.gmra.mxu0 %v702
        %v1071 = vpop.f32.mrf.mxu0
        %v1072 = vadd.f32 0.0, %v1071
        %v1073 = vpop.f32.mrf.mxu0
        %1074 = vmatprep.mubr.f32.mxu0 0.0
        %1075 = vmatmul.mubr.f32.gmra.mxu0 %v705
        %v1076 = vpop.f32.mrf.mxu0
        %v1077 = vadd.f32 0.0, %v1076
        %v1078 = vpop.f32.mrf.mxu0
        %1079 = vmatprep.mubr.f32.mxu0 0.0
        %1080 = vmatmul.mubr.f32.gmra.mxu0 %v708
        %v1081 = vpop.f32.mrf.mxu0
        %v1082 = vadd.f32 0.0, %v1081
        %v1083 = vpop.f32.mrf.mxu0
        %1084 = vmatprep.mubr.f32.mxu0 0.0
        %1085 = vmatmul.mubr.f32.gmra.mxu0 %v711
        %v1086 = vpop.f32.mrf.mxu0
        %v1087 = vadd.f32 0.0, %v1086
        %v1088 = vpop.f32.mrf.mxu0
        %1089 = vmatprep.mubr.f32.mxu0 0.0
        %1090 = vmatmul.mubr.f32.gmra.mxu0 %v714
        %v1091 = vpop.f32.mrf.mxu0
        %v1092 = vadd.f32 0.0, %v1091
        %v1093 = vpop.f32.mrf.mxu0
        %1094 = vmatprep.mubr.f32.mxu0 0.0
        %1095 = vmatmul.mubr.f32.gmra.mxu0 %v717
        %v1096 = vpop.f32.mrf.mxu0
        %v1097 = vadd.f32 0.0, %v1096
        %v1098 = vpop.f32.mrf.mxu0
        %1099 = vmatprep.mubr.f32.mxu0 0.0
        %1100 = vmatmul.mubr.f32.gmra.mxu0 %v720
        %v1101 = vpop.f32.mrf.mxu0
        %v1102 = vadd.f32 0.0, %v1101
        %v1103 = vpop.f32.mrf.mxu0
        %1104 = vmatprep.mubr.f32.mxu0 0.0
        %1105 = vmatmul.mubr.f32.gmra.mxu0 %v723
        %v1106 = vpop.f32.mrf.mxu0
        %v1107 = vadd.f32 0.0, %v1106
        %v1108 = vpop.f32.mrf.mxu0
        %1109 = vdwg.mxu0
        %v1111 = vsel %vm532, %v399, 0
        %v1114 = vsel %vm532, %v400, 0
        %v1117 = vsel %vm532, %v401, 0
        %v1120 = vsel %vm532, %v402, 0
        %v1123 = vsel %vm532, %v403, 0
        %v1126 = vsel %vm532, %v404, 0
        %v1129 = vsel %vm532, %v405, 0
        %v1132 = vsel %vm532, %v406, 0
        %v1135 = vsel %vm532, %v407, 0
        %v1138 = vsel %vm532, %v408, 0
        %v1141 = vsel %vm532, %v409, 0
        %v1144 = vsel %vm532, %v410, 0
        %v1147 = vsel %vm532, %v411, 0
        %v1150 = vsel %vm532, %v412, 0
        %v1153 = vsel %vm532, %v413, 0
        %v1156 = vsel %vm532, %v414, 0
        %v1159 = vsel %vm532, %v415, 0
        %v1162 = vsel %vm532, %v416, 0
        %v1165 = vsel %vm532, %v417, 0
        %v1168 = vsel %vm532, %v418, 0
        %v1171 = vsel %vm532, %v419, 0
        %v1174 = vsel %vm532, %v420, 0
        %v1177 = vsel %vm532, %v421, 0
        %v1180 = vsel %vm532, %v422, 0
        %v1183 = vsel %vm532, %v423, 0
        %v1186 = vsel %vm532, %v424, 0
        %v1189 = vsel %vm532, %v425, 0
        %v1192 = vsel %vm532, %v426, 0
        %v1195 = vsel %vm532, %v427, 0
        %v1198 = vsel %vm532, %v428, 0
        %v1201 = vsel %vm532, %v429, 0
        %v1204 = vsel %vm532, %v430, 0
        %v1207 = vsel %vm532, %v431, 0
        %v1210 = vsel %vm532, %v432, 0
        %v1213 = vsel %vm532, %v433, 0
        %v1216 = vsel %vm532, %v434, 0
        %v1219 = vsel %vm532, %v435, 0
        %v1222 = vsel %vm532, %v436, 0
        %v1225 = vsel %vm532, %v437, 0
        %v1228 = vsel %vm532, %v438, 0
        %v1231 = vsel %vm532, %v439, 0
        %v1234 = vsel %vm532, %v440, 0
        %v1237 = vsel %vm532, %v441, 0
        %v1240 = vsel %vm532, %v442, 0
        %v1243 = vsel %vm532, %v443, 0
        %v1246 = vsel %vm532, %v444, 0
        %v1249 = vsel %vm532, %v445, 0
        %v1252 = vsel %vm532, %v446, 0
        %v1255 = vsel %vm532, %v447, 0
        %v1258 = vsel %vm532, %v448, 0
        %v1261 = vsel %vm532, %v449, 0
        %v1264 = vsel %vm532, %v450, 0
        %v1267 = vsel %vm532, %v451, 0
        %v1270 = vsel %vm532, %v452, 0
        %v1273 = vsel %vm532, %v453, 0
        %v1276 = vsel %vm532, %v454, 0
        %v1279 = vsel %vm532, %v455, 0
        %v1282 = vsel %vm532, %v456, 0
        %v1285 = vsel %vm532, %v457, 0
        %v1288 = vsel %vm532, %v458, 0
        %v1291 = vsel %vm532, %v459, 0
        %v1294 = vsel %vm532, %v460, 0
        %v1297 = vsel %vm532, %v461, 0
        %v1300 = vsel %vm532, %v462, 0
        %1302 = vmatprep.subr.mxu0 0.0
        %1303 = vmatpush1.msra.mxu0 0.0
        %1304 = vmatprep.subr.mxu0 0.0
        %1305 = vmatpush1.msra.mxu0 0.0
        %1306 = vmatprep.subr.mxu0 0.0
        %1307 = vmatpush1.msra.mxu0 0.0
        %1308 = vmatprep.subr.mxu0 0.0
        %1309 = vmatpush1.msra.mxu0 0.0
        %1310 = vmatprep.subr.mxu0 0.0
        %1311 = vmatpush1.msra.mxu0 0.0
        %1312 = vmatprep.subr.mxu0 0.0
        %1313 = vmatpush1.msra.mxu0 0.0
        %1314 = vmatprep.subr.mxu0 0.0
        %1315 = vmatpush1.msra.mxu0 0.0
        %1316 = vmatprep.subr.mxu0 0.0
        %1317 = vmatpush1.msra.mxu0 0.0
        %1318 = vmatprep.subr.mxu0 0.0
        %1319 = vmatpush1.msra.mxu0 0.0
        %1320 = vmatprep.subr.mxu0 0.0
        %1321 = vmatpush1.msra.mxu0 0.0
        %1322 = vmatprep.subr.mxu0 0.0
        %1323 = vmatpush1.msra.mxu0 0.0
        %1324 = vmatprep.subr.mxu0 0.0
        %1325 = vmatpush1.msra.mxu0 0.0
        %1326 = vmatprep.subr.mxu0 0.0
        %1327 = vmatpush1.msra.mxu0 0.0
        %1328 = vmatprep.subr.mxu0 0.0
        %1329 = vmatpush1.msra.mxu0 0.0
        %1330 = vmatprep.subr.mxu0 0.0
        %1331 = vmatpush1.msra.mxu0 %v464
        %1332 = vmatprep.subr.mxu0 0.0
        %1333 = vmatpush1.msra.mxu0 %v463
        %1334 = vmatprep.subr.mxu0 0.0
        %1335 = vmatpush2.msra.mxu0 0.0
        %1336 = vmatprep.subr.mxu0 0.0
        %1337 = vmatpush2.msra.mxu0 0.0
        %1338 = vmatprep.subr.mxu0 0.0
        %1339 = vmatpush2.msra.mxu0 0.0
        %1340 = vmatprep.subr.mxu0 0.0
        %1341 = vmatpush2.msra.mxu0 0.0
        %1342 = vmatprep.subr.mxu0 0.0
        %1343 = vmatpush2.msra.mxu0 0.0
        %1344 = vmatprep.subr.mxu0 0.0
        %1345 = vmatpush2.msra.mxu0 0.0
        %1346 = vmatprep.subr.mxu0 0.0
        %1347 = vmatpush2.msra.mxu0 0.0
        %1348 = vmatprep.subr.mxu0 0.0
        %1349 = vmatpush2.msra.mxu0 0.0
        %1350 = vmatprep.subr.mxu0 0.0
        %1351 = vmatpush2.msra.mxu0 0.0
        %1352 = vmatprep.subr.mxu0 0.0
        %1353 = vmatpush2.msra.mxu0 0.0
        %1354 = vmatprep.subr.mxu0 0.0
        %1355 = vmatpush2.msra.mxu0 0.0
        %1356 = vmatprep.subr.mxu0 0.0
        %1357 = vmatpush2.msra.mxu0 0.0
        %1358 = vmatprep.subr.mxu0 0.0
        %1359 = vmatpush2.msra.mxu0 0.0
        %1360 = vmatprep.subr.mxu0 0.0
        %1361 = vmatpush2.msra.mxu0 0.0
        %1362 = vmatprep.subr.mxu0 0.0
        %1363 = vmatpush2.msra.mxu0 0.0
        %1364 = vmatprep.subr.mxu0 0.0
        %1365 = vmatpush2.msra.mxu0 0.0
        %1366 = vmatprep.mubr.f32.mxu0 0.0
        %1367 = vmatmul.mubr.f32.gmra.mxu0 %v1111
        %v1368 = vpop.f32.mrf.mxu0
        %v1369 = vadd.f32 %v792, %v1368
        %v1370 = vpop.f32.mrf.mxu0
        %1371 = vmatprep.mubr.f32.mxu0 0.0
        %1372 = vmatmul.mubr.f32.gmra.mxu0 %v1114
        %v1373 = vpop.f32.mrf.mxu0
        %v1374 = vadd.f32 %v797, %v1373
        %v1375 = vpop.f32.mrf.mxu0
        %1376 = vmatprep.mubr.f32.mxu0 0.0
        %1377 = vmatmul.mubr.f32.gmra.mxu0 %v1117
        %v1378 = vpop.f32.mrf.mxu0
        %v1379 = vadd.f32 %v802, %v1378
        %v1380 = vpop.f32.mrf.mxu0
        %1381 = vmatprep.mubr.f32.mxu0 0.0
        %1382 = vmatmul.mubr.f32.gmra.mxu0 %v1120
        %v1383 = vpop.f32.mrf.mxu0
        %v1384 = vadd.f32 %v807, %v1383
        %v1385 = vpop.f32.mrf.mxu0
        %1386 = vmatprep.mubr.f32.mxu0 0.0
        %1387 = vmatmul.mubr.f32.gmra.mxu0 %v1123
        %v1388 = vpop.f32.mrf.mxu0
        %v1389 = vadd.f32 %v812, %v1388
        %v1390 = vpop.f32.mrf.mxu0
        %1391 = vmatprep.mubr.f32.mxu0 0.0
        %1392 = vmatmul.mubr.f32.gmra.mxu0 %v1126
        %v1393 = vpop.f32.mrf.mxu0
        %v1394 = vadd.f32 %v817, %v1393
        %v1395 = vpop.f32.mrf.mxu0
        %1396 = vmatprep.mubr.f32.mxu0 0.0
        %1397 = vmatmul.mubr.f32.gmra.mxu0 %v1129
        %v1398 = vpop.f32.mrf.mxu0
        %v1399 = vadd.f32 %v822, %v1398
        %v1400 = vpop.f32.mrf.mxu0
        %1401 = vmatprep.mubr.f32.mxu0 0.0
        %1402 = vmatmul.mubr.f32.gmra.mxu0 %v1132
        %v1403 = vpop.f32.mrf.mxu0
        %v1404 = vadd.f32 %v827, %v1403
        %v1405 = vpop.f32.mrf.mxu0
        %1406 = vmatprep.mubr.f32.mxu0 0.0
        %1407 = vmatmul.mubr.f32.gmra.mxu0 %v1135
        %v1408 = vpop.f32.mrf.mxu0
        %v1409 = vadd.f32 %v832, %v1408
        %v1410 = vpop.f32.mrf.mxu0
        %1411 = vmatprep.mubr.f32.mxu0 0.0
        %1412 = vmatmul.mubr.f32.gmra.mxu0 %v1138
        %v1413 = vpop.f32.mrf.mxu0
        %v1414 = vadd.f32 %v837, %v1413
        %v1415 = vpop.f32.mrf.mxu0
        %1416 = vmatprep.mubr.f32.mxu0 0.0
        %1417 = vmatmul.mubr.f32.gmra.mxu0 %v1141
        %v1418 = vpop.f32.mrf.mxu0
        %v1419 = vadd.f32 %v842, %v1418
        %v1420 = vpop.f32.mrf.mxu0
        %1421 = vmatprep.mubr.f32.mxu0 0.0
        %1422 = vmatmul.mubr.f32.gmra.mxu0 %v1144
        %v1423 = vpop.f32.mrf.mxu0
        %v1424 = vadd.f32 %v847, %v1423
        %v1425 = vpop.f32.mrf.mxu0
        %1426 = vmatprep.mubr.f32.mxu0 0.0
        %1427 = vmatmul.mubr.f32.gmra.mxu0 %v1147
        %v1428 = vpop.f32.mrf.mxu0
        %v1429 = vadd.f32 %v852, %v1428
        %v1430 = vpop.f32.mrf.mxu0
        %1431 = vmatprep.mubr.f32.mxu0 0.0
        %1432 = vmatmul.mubr.f32.gmra.mxu0 %v1150
        %v1433 = vpop.f32.mrf.mxu0
        %v1434 = vadd.f32 %v857, %v1433
        %v1435 = vpop.f32.mrf.mxu0
        %1436 = vmatprep.mubr.f32.mxu0 0.0
        %1437 = vmatmul.mubr.f32.gmra.mxu0 %v1153
        %v1438 = vpop.f32.mrf.mxu0
        %v1439 = vadd.f32 %v862, %v1438
        %v1440 = vpop.f32.mrf.mxu0
        %1441 = vmatprep.mubr.f32.mxu0 0.0
        %1442 = vmatmul.mubr.f32.gmra.mxu0 %v1156
        %v1443 = vpop.f32.mrf.mxu0
        %v1444 = vadd.f32 %v867, %v1443
        %v1445 = vpop.f32.mrf.mxu0
        %1446 = vmatprep.mubr.f32.mxu0 0.0
        %1447 = vmatmul.mubr.f32.gmra.mxu0 %v1159
        %v1448 = vpop.f32.mrf.mxu0
        %v1449 = vadd.f32 %v872, %v1448
        %v1450 = vpop.f32.mrf.mxu0
        %1451 = vmatprep.mubr.f32.mxu0 0.0
        %1452 = vmatmul.mubr.f32.gmra.mxu0 %v1162
        %v1453 = vpop.f32.mrf.mxu0
        %v1454 = vadd.f32 %v877, %v1453
        %v1455 = vpop.f32.mrf.mxu0
        %1456 = vmatprep.mubr.f32.mxu0 0.0
        %1457 = vmatmul.mubr.f32.gmra.mxu0 %v1165
        %v1458 = vpop.f32.mrf.mxu0
        %v1459 = vadd.f32 %v882, %v1458
        %v1460 = vpop.f32.mrf.mxu0
        %1461 = vmatprep.mubr.f32.mxu0 0.0
        %1462 = vmatmul.mubr.f32.gmra.mxu0 %v1168
        %v1463 = vpop.f32.mrf.mxu0
        %v1464 = vadd.f32 %v887, %v1463
        %v1465 = vpop.f32.mrf.mxu0
        %1466 = vmatprep.mubr.f32.mxu0 0.0
        %1467 = vmatmul.mubr.f32.gmra.mxu0 %v1171
        %v1468 = vpop.f32.mrf.mxu0
        %v1469 = vadd.f32 %v892, %v1468
        %v1470 = vpop.f32.mrf.mxu0
        %1471 = vmatprep.mubr.f32.mxu0 0.0
        %1472 = vmatmul.mubr.f32.gmra.mxu0 %v1174
        %v1473 = vpop.f32.mrf.mxu0
        %v1474 = vadd.f32 %v897, %v1473
        %v1475 = vpop.f32.mrf.mxu0
        %1476 = vmatprep.mubr.f32.mxu0 0.0
        %1477 = vmatmul.mubr.f32.gmra.mxu0 %v1177
        %v1478 = vpop.f32.mrf.mxu0
        %v1479 = vadd.f32 %v902, %v1478
        %v1480 = vpop.f32.mrf.mxu0
        %1481 = vmatprep.mubr.f32.mxu0 0.0
        %1482 = vmatmul.mubr.f32.gmra.mxu0 %v1180
        %v1483 = vpop.f32.mrf.mxu0
        %v1484 = vadd.f32 %v907, %v1483
        %v1485 = vpop.f32.mrf.mxu0
        %1486 = vmatprep.mubr.f32.mxu0 0.0
        %1487 = vmatmul.mubr.f32.gmra.mxu0 %v1183
        %v1488 = vpop.f32.mrf.mxu0
        %v1489 = vadd.f32 %v912, %v1488
        %v1490 = vpop.f32.mrf.mxu0
        %1491 = vmatprep.mubr.f32.mxu0 0.0
        %1492 = vmatmul.mubr.f32.gmra.mxu0 %v1186
        %v1493 = vpop.f32.mrf.mxu0
        %v1494 = vadd.f32 %v917, %v1493
        %v1495 = vpop.f32.mrf.mxu0
        %1496 = vmatprep.mubr.f32.mxu0 0.0
        %1497 = vmatmul.mubr.f32.gmra.mxu0 %v1189
        %v1498 = vpop.f32.mrf.mxu0
        %v1499 = vadd.f32 %v922, %v1498
        %v1500 = vpop.f32.mrf.mxu0
        %1501 = vmatprep.mubr.f32.mxu0 0.0
        %1502 = vmatmul.mubr.f32.gmra.mxu0 %v1192
        %v1503 = vpop.f32.mrf.mxu0
        %v1504 = vadd.f32 %v927, %v1503
        %v1505 = vpop.f32.mrf.mxu0
        %1506 = vmatprep.mubr.f32.mxu0 0.0
        %1507 = vmatmul.mubr.f32.gmra.mxu0 %v1195
        %v1508 = vpop.f32.mrf.mxu0
        %v1509 = vadd.f32 %v932, %v1508
        %v1510 = vpop.f32.mrf.mxu0
        %1511 = vmatprep.mubr.f32.mxu0 0.0
        %1512 = vmatmul.mubr.f32.gmra.mxu0 %v1198
        %v1513 = vpop.f32.mrf.mxu0
        %v1514 = vadd.f32 %v937, %v1513
        %v1515 = vpop.f32.mrf.mxu0
        %1516 = vmatprep.mubr.f32.mxu0 0.0
        %1517 = vmatmul.mubr.f32.gmra.mxu0 %v1201
        %v1518 = vpop.f32.mrf.mxu0
        %v1519 = vadd.f32 %v942, %v1518
        %v1520 = vpop.f32.mrf.mxu0
        %1521 = vmatprep.mubr.f32.mxu0 0.0
        %1522 = vmatmul.mubr.f32.gmra.mxu0 %v1204
        %v1523 = vpop.f32.mrf.mxu0
        %v1524 = vadd.f32 %v947, %v1523
        %v1525 = vpop.f32.mrf.mxu0
        %1526 = vmatprep.mubr.f32.mxu0 0.0
        %1527 = vmatmul.mubr.f32.gmra.mxu0 %v1207
        %v1528 = vpop.f32.mrf.mxu0
        %v1529 = vadd.f32 %v952, %v1528
        %v1530 = vpop.f32.mrf.mxu0
        %1531 = vmatprep.mubr.f32.mxu0 0.0
        %1532 = vmatmul.mubr.f32.gmra.mxu0 %v1210
        %v1533 = vpop.f32.mrf.mxu0
        %v1534 = vadd.f32 %v957, %v1533
        %v1535 = vpop.f32.mrf.mxu0
        %1536 = vmatprep.mubr.f32.mxu0 0.0
        %1537 = vmatmul.mubr.f32.gmra.mxu0 %v1213
        %v1538 = vpop.f32.mrf.mxu0
        %v1539 = vadd.f32 %v962, %v1538
        %v1540 = vpop.f32.mrf.mxu0
        %1541 = vmatprep.mubr.f32.mxu0 0.0
        %1542 = vmatmul.mubr.f32.gmra.mxu0 %v1216
        %v1543 = vpop.f32.mrf.mxu0
        %v1544 = vadd.f32 %v967, %v1543
        %v1545 = vpop.f32.mrf.mxu0
        %1546 = vmatprep.mubr.f32.mxu0 0.0
        %1547 = vmatmul.mubr.f32.gmra.mxu0 %v1219
        %v1548 = vpop.f32.mrf.mxu0
        %v1549 = vadd.f32 %v972, %v1548
        %v1550 = vpop.f32.mrf.mxu0
        %1551 = vmatprep.mubr.f32.mxu0 0.0
        %1552 = vmatmul.mubr.f32.gmra.mxu0 %v1222
        %v1553 = vpop.f32.mrf.mxu0
        %v1554 = vadd.f32 %v977, %v1553
        %v1555 = vpop.f32.mrf.mxu0
        %1556 = vmatprep.mubr.f32.mxu0 0.0
        %1557 = vmatmul.mubr.f32.gmra.mxu0 %v1225
        %v1558 = vpop.f32.mrf.mxu0
        %v1559 = vadd.f32 %v982, %v1558
        %v1560 = vpop.f32.mrf.mxu0
        %1561 = vmatprep.mubr.f32.mxu0 0.0
        %1562 = vmatmul.mubr.f32.gmra.mxu0 %v1228
        %v1563 = vpop.f32.mrf.mxu0
        %v1564 = vadd.f32 %v987, %v1563
        %v1565 = vpop.f32.mrf.mxu0
        %1566 = vmatprep.mubr.f32.mxu0 0.0
        %1567 = vmatmul.mubr.f32.gmra.mxu0 %v1231
        %v1568 = vpop.f32.mrf.mxu0
        %v1569 = vadd.f32 %v992, %v1568
        %v1570 = vpop.f32.mrf.mxu0
        %1571 = vmatprep.mubr.f32.mxu0 0.0
        %1572 = vmatmul.mubr.f32.gmra.mxu0 %v1234
        %v1573 = vpop.f32.mrf.mxu0
        %v1574 = vadd.f32 %v997, %v1573
        %v1575 = vpop.f32.mrf.mxu0
        %1576 = vmatprep.mubr.f32.mxu0 0.0
        %1577 = vmatmul.mubr.f32.gmra.mxu0 %v1237
        %v1578 = vpop.f32.mrf.mxu0
        %v1579 = vadd.f32 %v1002, %v1578
        %v1580 = vpop.f32.mrf.mxu0
        %1581 = vmatprep.mubr.f32.mxu0 0.0
        %1582 = vmatmul.mubr.f32.gmra.mxu0 %v1240
        %v1583 = vpop.f32.mrf.mxu0
        %v1584 = vadd.f32 %v1007, %v1583
        %v1585 = vpop.f32.mrf.mxu0
        %1586 = vmatprep.mubr.f32.mxu0 0.0
        %1587 = vmatmul.mubr.f32.gmra.mxu0 %v1243
        %v1588 = vpop.f32.mrf.mxu0
        %v1589 = vadd.f32 %v1012, %v1588
        %v1590 = vpop.f32.mrf.mxu0
        %1591 = vmatprep.mubr.f32.mxu0 0.0
        %1592 = vmatmul.mubr.f32.gmra.mxu0 %v1246
        %v1593 = vpop.f32.mrf.mxu0
        %v1594 = vadd.f32 %v1017, %v1593
        %v1595 = vpop.f32.mrf.mxu0
        %1596 = vmatprep.mubr.f32.mxu0 0.0
        %1597 = vmatmul.mubr.f32.gmra.mxu0 %v1249
        %v1598 = vpop.f32.mrf.mxu0
        %v1599 = vadd.f32 %v1022, %v1598
        %v1600 = vpop.f32.mrf.mxu0
        %1601 = vmatprep.mubr.f32.mxu0 0.0
        %1602 = vmatmul.mubr.f32.gmra.mxu0 %v1252
        %v1603 = vpop.f32.mrf.mxu0
        %v1604 = vadd.f32 %v1027, %v1603
        %v1605 = vpop.f32.mrf.mxu0
        %1606 = vmatprep.mubr.f32.mxu0 0.0
        %1607 = vmatmul.mubr.f32.gmra.mxu0 %v1255
        %v1608 = vpop.f32.mrf.mxu0
        %v1609 = vadd.f32 %v1032, %v1608
        %v1610 = vpop.f32.mrf.mxu0
        %1611 = vmatprep.mubr.f32.mxu0 0.0
        %1612 = vmatmul.mubr.f32.gmra.mxu0 %v1258
        %v1613 = vpop.f32.mrf.mxu0
        %v1614 = vadd.f32 %v1037, %v1613
        %v1615 = vpop.f32.mrf.mxu0
        %1616 = vmatprep.mubr.f32.mxu0 0.0
        %1617 = vmatmul.mubr.f32.gmra.mxu0 %v1261
        %v1618 = vpop.f32.mrf.mxu0
        %v1619 = vadd.f32 %v1042, %v1618
        %v1620 = vpop.f32.mrf.mxu0
        %1621 = vmatprep.mubr.f32.mxu0 0.0
        %1622 = vmatmul.mubr.f32.gmra.mxu0 %v1264
        %v1623 = vpop.f32.mrf.mxu0
        %v1624 = vadd.f32 %v1047, %v1623
        %v1625 = vpop.f32.mrf.mxu0
        %1626 = vmatprep.mubr.f32.mxu0 0.0
        %1627 = vmatmul.mubr.f32.gmra.mxu0 %v1267
        %v1628 = vpop.f32.mrf.mxu0
        %v1629 = vadd.f32 %v1052, %v1628
        %v1630 = vpop.f32.mrf.mxu0
        %1631 = vmatprep.mubr.f32.mxu0 0.0
        %1632 = vmatmul.mubr.f32.gmra.mxu0 %v1270
        %v1633 = vpop.f32.mrf.mxu0
        %v1634 = vadd.f32 %v1057, %v1633
        %v1635 = vpop.f32.mrf.mxu0
        %1636 = vmatprep.mubr.f32.mxu0 0.0
        %1637 = vmatmul.mubr.f32.gmra.mxu0 %v1273
        %v1638 = vpop.f32.mrf.mxu0
        %v1639 = vadd.f32 %v1062, %v1638
        %v1640 = vpop.f32.mrf.mxu0
        %1641 = vmatprep.mubr.f32.mxu0 0.0
        %1642 = vmatmul.mubr.f32.gmra.mxu0 %v1276
        %v1643 = vpop.f32.mrf.mxu0
        %v1644 = vadd.f32 %v1067, %v1643
        %v1645 = vpop.f32.mrf.mxu0
        %1646 = vmatprep.mubr.f32.mxu0 0.0
        %1647 = vmatmul.mubr.f32.gmra.mxu0 %v1279
        %v1648 = vpop.f32.mrf.mxu0
        %v1649 = vadd.f32 %v1072, %v1648
        %v1650 = vpop.f32.mrf.mxu0
        %1651 = vmatprep.mubr.f32.mxu0 0.0
        %1652 = vmatmul.mubr.f32.gmra.mxu0 %v1282
        %v1653 = vpop.f32.mrf.mxu0
        %v1654 = vadd.f32 %v1077, %v1653
        %v1655 = vpop.f32.mrf.mxu0
        %1656 = vmatprep.mubr.f32.mxu0 0.0
        %1657 = vmatmul.mubr.f32.gmra.mxu0 %v1285
        %v1658 = vpop.f32.mrf.mxu0
        %v1659 = vadd.f32 %v1082, %v1658
        %v1660 = vpop.f32.mrf.mxu0
        %1661 = vmatprep.mubr.f32.mxu0 0.0
        %1662 = vmatmul.mubr.f32.gmra.mxu0 %v1288
        %v1663 = vpop.f32.mrf.mxu0
        %v1664 = vadd.f32 %v1087, %v1663
        %v1665 = vpop.f32.mrf.mxu0
        %1666 = vmatprep.mubr.f32.mxu0 0.0
        %1667 = vmatmul.mubr.f32.gmra.mxu0 %v1291
        %v1668 = vpop.f32.mrf.mxu0
        %v1669 = vadd.f32 %v1092, %v1668
        %v1670 = vpop.f32.mrf.mxu0
        %1671 = vmatprep.mubr.f32.mxu0 0.0
        %1672 = vmatmul.mubr.f32.gmra.mxu0 %v1294
        %v1673 = vpop.f32.mrf.mxu0
        %v1674 = vadd.f32 %v1097, %v1673
        %v1675 = vpop.f32.mrf.mxu0
        %1676 = vmatprep.mubr.f32.mxu0 0.0
        %1677 = vmatmul.mubr.f32.gmra.mxu0 %v1297
        %v1678 = vpop.f32.mrf.mxu0
        %v1679 = vadd.f32 %v1102, %v1678
        %v1680 = vpop.f32.mrf.mxu0
        %1681 = vmatprep.mubr.f32.mxu0 0.0
        %1682 = vmatmul.mubr.f32.gmra.mxu0 %v1300
        %v1683 = vpop.f32.mrf.mxu0
        %v1684 = vadd.f32 %v1107, %v1683
        %v1685 = vpop.f32.mrf.mxu0
        %1686 = vdwg.mxu0
        %v1687 = vld [vmem:[#allocation2 + $0x7] sm:$0xff]
        %v1688 = vld [vmem:[#allocation2 + $0xf] sm:$0xff]
        %v1689 = vld [vmem:[#allocation2 + $0x17] sm:$0xff]
        %v1690 = vld [vmem:[#allocation2 + $0x1f] sm:$0xff]
        %v1691 = vld [vmem:[#allocation2 + $0x27] sm:$0xff]
        %v1692 = vld [vmem:[#allocation2 + $0x2f] sm:$0xff]
        %v1693 = vld [vmem:[#allocation2 + $0x37] sm:$0xff]
        %v1694 = vld [vmem:[#allocation2 + $0x3f] sm:$0xff]
        %v1695 = vld [vmem:[#allocation2 + $0x47] sm:$0xff]
        %v1696 = vld [vmem:[#allocation2 + $0x4f] sm:$0xff]
        %v1697 = vld [vmem:[#allocation2 + $0x57] sm:$0xff]
        %v1698 = vld [vmem:[#allocation2 + $0x5f] sm:$0xff]
        %v1699 = vld [vmem:[#allocation2 + $0x67] sm:$0xff]
        %v1700 = vld [vmem:[#allocation2 + $0x6f] sm:$0xff]
        %v1701 = vld [vmem:[#allocation2 + $0x77] sm:$0xff]
        %v1702 = vld [vmem:[#allocation2 + $0x7f] sm:$0xff]
        %v1703 = vld [vmem:[#allocation2 + $0x87] sm:$0xff]
        %v1704 = vld [vmem:[#allocation2 + $0x8f] sm:$0xff]
        %v1705 = vld [vmem:[#allocation2 + $0x97] sm:$0xff]
        %v1706 = vld [vmem:[#allocation2 + $0x9f] sm:$0xff]
        %v1707 = vld [vmem:[#allocation2 + $0xa7] sm:$0xff]
        %v1708 = vld [vmem:[#allocation2 + $0xaf] sm:$0xff]
        %v1709 = vld [vmem:[#allocation2 + $0xb7] sm:$0xff]
        %v1710 = vld [vmem:[#allocation2 + $0xbf] sm:$0xff]
        %v1711 = vld [vmem:[#allocation2 + $0xc7] sm:$0xff]
        %v1712 = vld [vmem:[#allocation2 + $0xcf] sm:$0xff]
        %v1713 = vld [vmem:[#allocation2 + $0xd7] sm:$0xff]
        %v1714 = vld [vmem:[#allocation2 + $0xdf] sm:$0xff]
        %v1715 = vld [vmem:[#allocation2 + $0xe7] sm:$0xff]
        %v1716 = vld [vmem:[#allocation2 + $0xef] sm:$0xff]
        %v1717 = vld [vmem:[#allocation2 + $0xf7] sm:$0xff]
        %v1718 = vld [vmem:[#allocation2 + $0xff] sm:$0xff]
        %v1719 = vld [vmem:[#allocation2 + $0x107] sm:$0xff]
        %v1720 = vld [vmem:[#allocation2 + $0x10f] sm:$0xff]
        %v1721 = vld [vmem:[#allocation2 + $0x117] sm:$0xff]
        %v1722 = vld [vmem:[#allocation2 + $0x11f] sm:$0xff]
        %v1723 = vld [vmem:[#allocation2 + $0x127] sm:$0xff]
        %v1724 = vld [vmem:[#allocation2 + $0x12f] sm:$0xff]
        %v1725 = vld [vmem:[#allocation2 + $0x137] sm:$0xff]
        %v1726 = vld [vmem:[#allocation2 + $0x13f] sm:$0xff]
        %v1727 = vld [vmem:[#allocation2 + $0x147] sm:$0xff]
        %v1728 = vld [vmem:[#allocation2 + $0x14f] sm:$0xff]
        %v1729 = vld [vmem:[#allocation2 + $0x157] sm:$0xff]
        %v1730 = vld [vmem:[#allocation2 + $0x15f] sm:$0xff]
        %v1731 = vld [vmem:[#allocation2 + $0x167] sm:$0xff]
        %v1732 = vld [vmem:[#allocation2 + $0x16f] sm:$0xff]
        %v1733 = vld [vmem:[#allocation2 + $0x177] sm:$0xff]
        %v1734 = vld [vmem:[#allocation2 + $0x17f] sm:$0xff]
        %v1735 = vld [vmem:[#allocation2 + $0x187] sm:$0xff]
        %v1736 = vld [vmem:[#allocation2 + $0x18f] sm:$0xff]
        %v1737 = vld [vmem:[#allocation2 + $0x197] sm:$0xff]
        %v1738 = vld [vmem:[#allocation2 + $0x19f] sm:$0xff]
        %v1739 = vld [vmem:[#allocation2 + $0x1a7] sm:$0xff]
        %v1740 = vld [vmem:[#allocation2 + $0x1af] sm:$0xff]
        %v1741 = vld [vmem:[#allocation2 + $0x1b7] sm:$0xff]
        %v1742 = vld [vmem:[#allocation2 + $0x1bf] sm:$0xff]
        %v1743 = vld [vmem:[#allocation2 + $0x1c7] sm:$0xff]
        %v1744 = vld [vmem:[#allocation2 + $0x1cf] sm:$0xff]
        %v1745 = vld [vmem:[#allocation2 + $0x1d7] sm:$0xff]
        %v1746 = vld [vmem:[#allocation2 + $0x1df] sm:$0xff]
        %v1747 = vld [vmem:[#allocation2 + $0x1e7] sm:$0xff]
        %v1748 = vld [vmem:[#allocation2 + $0x1ef] sm:$0xff]
        %v1749 = vld [vmem:[#allocation2 + $0x1f7] sm:$0xff]
        %v1750 = vld [vmem:[#allocation2 + $0x1ff] sm:$0xff]
        %s1751 = scalar_lea.vmem %s2, 32
        %v1752 = vld [vmem:[%s1751] sm:$0xff]
        %v1753 = vld [vmem:[%s1751 + $0x8] sm:$0xff]
        %v1755 = vsel %vm532, %v1687, 0
        %v1758 = vsel %vm532, %v1688, 0
        %v1761 = vsel %vm532, %v1689, 0
        %v1764 = vsel %vm532, %v1690, 0
        %v1767 = vsel %vm532, %v1691, 0
        %v1770 = vsel %vm532, %v1692, 0
        %v1773 = vsel %vm532, %v1693, 0
        %v1776 = vsel %vm532, %v1694, 0
        %v1779 = vsel %vm532, %v1695, 0
        %v1782 = vsel %vm532, %v1696, 0
        %v1785 = vsel %vm532, %v1697, 0
        %v1788 = vsel %vm532, %v1698, 0
        %v1791 = vsel %vm532, %v1699, 0
        %v1794 = vsel %vm532, %v1700, 0
        %v1797 = vsel %vm532, %v1701, 0
        %v1800 = vsel %vm532, %v1702, 0
        %v1803 = vsel %vm532, %v1703, 0
        %v1806 = vsel %vm532, %v1704, 0
        %v1809 = vsel %vm532, %v1705, 0
        %v1812 = vsel %vm532, %v1706, 0
        %v1815 = vsel %vm532, %v1707, 0
        %v1818 = vsel %vm532, %v1708, 0
        %v1821 = vsel %vm532, %v1709, 0
        %v1824 = vsel %vm532, %v1710, 0
        %v1827 = vsel %vm532, %v1711, 0
        %v1830 = vsel %vm532, %v1712, 0
        %v1833 = vsel %vm532, %v1713, 0
        %v1836 = vsel %vm532, %v1714, 0
        %v1839 = vsel %vm532, %v1715, 0
        %v1842 = vsel %vm532, %v1716, 0
        %v1845 = vsel %vm532, %v1717, 0
        %v1848 = vsel %vm532, %v1718, 0
        %v1851 = vsel %vm532, %v1719, 0
        %v1854 = vsel %vm532, %v1720, 0
        %v1857 = vsel %vm532, %v1721, 0
        %v1860 = vsel %vm532, %v1722, 0
        %v1863 = vsel %vm532, %v1723, 0
        %v1866 = vsel %vm532, %v1724, 0
        %v1869 = vsel %vm532, %v1725, 0
        %v1872 = vsel %vm532, %v1726, 0
        %v1875 = vsel %vm532, %v1727, 0
        %v1878 = vsel %vm532, %v1728, 0
        %v1881 = vsel %vm532, %v1729, 0
        %v1884 = vsel %vm532, %v1730, 0
        %v1887 = vsel %vm532, %v1731, 0
        %v1890 = vsel %vm532, %v1732, 0
        %v1893 = vsel %vm532, %v1733, 0
        %v1896 = vsel %vm532, %v1734, 0
        %v1899 = vsel %vm532, %v1735, 0
        %v1902 = vsel %vm532, %v1736, 0
        %v1905 = vsel %vm532, %v1737, 0
        %v1908 = vsel %vm532, %v1738, 0
        %v1911 = vsel %vm532, %v1739, 0
        %v1914 = vsel %vm532, %v1740, 0
        %v1917 = vsel %vm532, %v1741, 0
        %v1920 = vsel %vm532, %v1742, 0
        %v1923 = vsel %vm532, %v1743, 0
        %v1926 = vsel %vm532, %v1744, 0
        %v1929 = vsel %vm532, %v1745, 0
        %v1932 = vsel %vm532, %v1746, 0
        %v1935 = vsel %vm532, %v1747, 0
        %v1938 = vsel %vm532, %v1748, 0
        %v1941 = vsel %vm532, %v1749, 0
        %v1944 = vsel %vm532, %v1750, 0
        %1946 = vmatprep.subr.mxu0 0.0
        %1947 = vmatpush1.msra.mxu0 0.0
        %1948 = vmatprep.subr.mxu0 0.0
        %1949 = vmatpush1.msra.mxu0 0.0
        %1950 = vmatprep.subr.mxu0 0.0
        %1951 = vmatpush1.msra.mxu0 0.0
        %1952 = vmatprep.subr.mxu0 0.0
        %1953 = vmatpush1.msra.mxu0 0.0
        %1954 = vmatprep.subr.mxu0 0.0
        %1955 = vmatpush1.msra.mxu0 0.0
        %1956 = vmatprep.subr.mxu0 0.0
        %1957 = vmatpush1.msra.mxu0 0.0
        %1958 = vmatprep.subr.mxu0 0.0
        %1959 = vmatpush1.msra.mxu0 0.0
        %1960 = vmatprep.subr.mxu0 0.0
        %1961 = vmatpush1.msra.mxu0 0.0
        %1962 = vmatprep.subr.mxu0 0.0
        %1963 = vmatpush1.msra.mxu0 0.0
        %1964 = vmatprep.subr.mxu0 0.0
        %1965 = vmatpush1.msra.mxu0 0.0
        %1966 = vmatprep.subr.mxu0 0.0
        %1967 = vmatpush1.msra.mxu0 0.0
        %1968 = vmatprep.subr.mxu0 0.0
        %1969 = vmatpush1.msra.mxu0 0.0
        %1970 = vmatprep.subr.mxu0 0.0
        %1971 = vmatpush1.msra.mxu0 0.0
        %1972 = vmatprep.subr.mxu0 0.0
        %1973 = vmatpush1.msra.mxu0 0.0
        %1974 = vmatprep.subr.mxu0 0.0
        %1975 = vmatpush1.msra.mxu0 %v1753
        %1976 = vmatprep.subr.mxu0 0.0
        %1977 = vmatpush1.msra.mxu0 %v1752
        %1978 = vmatprep.subr.mxu0 0.0
        %1979 = vmatpush2.msra.mxu0 0.0
        %1980 = vmatprep.subr.mxu0 0.0
        %1981 = vmatpush2.msra.mxu0 0.0
        %1982 = vmatprep.subr.mxu0 0.0
        %1983 = vmatpush2.msra.mxu0 0.0
        %1984 = vmatprep.subr.mxu0 0.0
        %1985 = vmatpush2.msra.mxu0 0.0
        %1986 = vmatprep.subr.mxu0 0.0
        %1987 = vmatpush2.msra.mxu0 0.0
        %1988 = vmatprep.subr.mxu0 0.0
        %1989 = vmatpush2.msra.mxu0 0.0
        %1990 = vmatprep.subr.mxu0 0.0
        %1991 = vmatpush2.msra.mxu0 0.0
        %1992 = vmatprep.subr.mxu0 0.0
        %1993 = vmatpush2.msra.mxu0 0.0
        %1994 = vmatprep.subr.mxu0 0.0
        %1995 = vmatpush2.msra.mxu0 0.0
        %1996 = vmatprep.subr.mxu0 0.0
        %1997 = vmatpush2.msra.mxu0 0.0
        %1998 = vmatprep.subr.mxu0 0.0
        %1999 = vmatpush2.msra.mxu0 0.0
        %2000 = vmatprep.subr.mxu0 0.0
        %2001 = vmatpush2.msra.mxu0 0.0
        %2002 = vmatprep.subr.mxu0 0.0
        %2003 = vmatpush2.msra.mxu0 0.0
        %2004 = vmatprep.subr.mxu0 0.0
        %2005 = vmatpush2.msra.mxu0 0.0
        %2006 = vmatprep.subr.mxu0 0.0
        %2007 = vmatpush2.msra.mxu0 0.0
        %2008 = vmatprep.subr.mxu0 0.0
        %2009 = vmatpush2.msra.mxu0 0.0
        %2010 = vmatprep.mubr.f32.mxu0 0.0
        %2011 = vmatmul.mubr.f32.gmra.mxu0 %v1755
        %v2012 = vpop.f32.mrf.mxu0
        %v2013 = vadd.f32 0.0, %v2012
        %v2014 = vpop.f32.mrf.mxu0
        %2015 = vmatprep.mubr.f32.mxu0 0.0
        %2016 = vmatmul.mubr.f32.gmra.mxu0 %v1758
        %v2017 = vpop.f32.mrf.mxu0
        %v2018 = vadd.f32 0.0, %v2017
        %v2019 = vpop.f32.mrf.mxu0
        %2020 = vmatprep.mubr.f32.mxu0 0.0
        %2021 = vmatmul.mubr.f32.gmra.mxu0 %v1761
        %v2022 = vpop.f32.mrf.mxu0
        %v2023 = vadd.f32 0.0, %v2022
        %v2024 = vpop.f32.mrf.mxu0
        %2025 = vmatprep.mubr.f32.mxu0 0.0
        %2026 = vmatmul.mubr.f32.gmra.mxu0 %v1764
        %v2027 = vpop.f32.mrf.mxu0
        %v2028 = vadd.f32 0.0, %v2027
        %v2029 = vpop.f32.mrf.mxu0
        %2030 = vmatprep.mubr.f32.mxu0 0.0
        %2031 = vmatmul.mubr.f32.gmra.mxu0 %v1767
        %v2032 = vpop.f32.mrf.mxu0
        %v2033 = vadd.f32 0.0, %v2032
        %v2034 = vpop.f32.mrf.mxu0
        %2035 = vmatprep.mubr.f32.mxu0 0.0
        %2036 = vmatmul.mubr.f32.gmra.mxu0 %v1770
        %v2037 = vpop.f32.mrf.mxu0
        %v2038 = vadd.f32 0.0, %v2037
        %v2039 = vpop.f32.mrf.mxu0
        %2040 = vmatprep.mubr.f32.mxu0 0.0
        %2041 = vmatmul.mubr.f32.gmra.mxu0 %v1773
        %v2042 = vpop.f32.mrf.mxu0
        %v2043 = vadd.f32 0.0, %v2042
        %v2044 = vpop.f32.mrf.mxu0
        %2045 = vmatprep.mubr.f32.mxu0 0.0
        %2046 = vmatmul.mubr.f32.gmra.mxu0 %v1776
        %v2047 = vpop.f32.mrf.mxu0
        %v2048 = vadd.f32 0.0, %v2047
        %v2049 = vpop.f32.mrf.mxu0
        %2050 = vmatprep.mubr.f32.mxu0 0.0
        %2051 = vmatmul.mubr.f32.gmra.mxu0 %v1779
        %v2052 = vpop.f32.mrf.mxu0
        %v2053 = vadd.f32 0.0, %v2052
        %v2054 = vpop.f32.mrf.mxu0
        %2055 = vmatprep.mubr.f32.mxu0 0.0
        %2056 = vmatmul.mubr.f32.gmra.mxu0 %v1782
        %v2057 = vpop.f32.mrf.mxu0
        %v2058 = vadd.f32 0.0, %v2057
        %v2059 = vpop.f32.mrf.mxu0
        %2060 = vmatprep.mubr.f32.mxu0 0.0
        %2061 = vmatmul.mubr.f32.gmra.mxu0 %v1785
        %v2062 = vpop.f32.mrf.mxu0
        %v2063 = vadd.f32 0.0, %v2062
        %v2064 = vpop.f32.mrf.mxu0
        %2065 = vmatprep.mubr.f32.mxu0 0.0
        %2066 = vmatmul.mubr.f32.gmra.mxu0 %v1788
        %v2067 = vpop.f32.mrf.mxu0
        %v2068 = vadd.f32 0.0, %v2067
        %v2069 = vpop.f32.mrf.mxu0
        %2070 = vmatprep.mubr.f32.mxu0 0.0
        %2071 = vmatmul.mubr.f32.gmra.mxu0 %v1791
        %v2072 = vpop.f32.mrf.mxu0
        %v2073 = vadd.f32 0.0, %v2072
        %v2074 = vpop.f32.mrf.mxu0
        %2075 = vmatprep.mubr.f32.mxu0 0.0
        %2076 = vmatmul.mubr.f32.gmra.mxu0 %v1794
        %v2077 = vpop.f32.mrf.mxu0
        %v2078 = vadd.f32 0.0, %v2077
        %v2079 = vpop.f32.mrf.mxu0
        %2080 = vmatprep.mubr.f32.mxu0 0.0
        %2081 = vmatmul.mubr.f32.gmra.mxu0 %v1797
        %v2082 = vpop.f32.mrf.mxu0
        %v2083 = vadd.f32 0.0, %v2082
        %v2084 = vpop.f32.mrf.mxu0
        %2085 = vmatprep.mubr.f32.mxu0 0.0
        %2086 = vmatmul.mubr.f32.gmra.mxu0 %v1800
        %v2087 = vpop.f32.mrf.mxu0
        %v2088 = vadd.f32 0.0, %v2087
        %v2089 = vpop.f32.mrf.mxu0
        %2090 = vmatprep.mubr.f32.mxu0 0.0
        %2091 = vmatmul.mubr.f32.gmra.mxu0 %v1803
        %v2092 = vpop.f32.mrf.mxu0
        %v2093 = vadd.f32 0.0, %v2092
        %v2094 = vpop.f32.mrf.mxu0
        %2095 = vmatprep.mubr.f32.mxu0 0.0
        %2096 = vmatmul.mubr.f32.gmra.mxu0 %v1806
        %v2097 = vpop.f32.mrf.mxu0
        %v2098 = vadd.f32 0.0, %v2097
        %v2099 = vpop.f32.mrf.mxu0
        %2100 = vmatprep.mubr.f32.mxu0 0.0
        %2101 = vmatmul.mubr.f32.gmra.mxu0 %v1809
        %v2102 = vpop.f32.mrf.mxu0
        %v2103 = vadd.f32 0.0, %v2102
        %v2104 = vpop.f32.mrf.mxu0
        %2105 = vmatprep.mubr.f32.mxu0 0.0
        %2106 = vmatmul.mubr.f32.gmra.mxu0 %v1812
        %v2107 = vpop.f32.mrf.mxu0
        %v2108 = vadd.f32 0.0, %v2107
        %v2109 = vpop.f32.mrf.mxu0
        %2110 = vmatprep.mubr.f32.mxu0 0.0
        %2111 = vmatmul.mubr.f32.gmra.mxu0 %v1815
        %v2112 = vpop.f32.mrf.mxu0
        %v2113 = vadd.f32 0.0, %v2112
        %v2114 = vpop.f32.mrf.mxu0
        %2115 = vmatprep.mubr.f32.mxu0 0.0
        %2116 = vmatmul.mubr.f32.gmra.mxu0 %v1818
        %v2117 = vpop.f32.mrf.mxu0
        %v2118 = vadd.f32 0.0, %v2117
        %v2119 = vpop.f32.mrf.mxu0
        %2120 = vmatprep.mubr.f32.mxu0 0.0
        %2121 = vmatmul.mubr.f32.gmra.mxu0 %v1821
        %v2122 = vpop.f32.mrf.mxu0
        %v2123 = vadd.f32 0.0, %v2122
        %v2124 = vpop.f32.mrf.mxu0
        %2125 = vmatprep.mubr.f32.mxu0 0.0
        %2126 = vmatmul.mubr.f32.gmra.mxu0 %v1824
        %v2127 = vpop.f32.mrf.mxu0
        %v2128 = vadd.f32 0.0, %v2127
        %v2129 = vpop.f32.mrf.mxu0
        %2130 = vmatprep.mubr.f32.mxu0 0.0
        %2131 = vmatmul.mubr.f32.gmra.mxu0 %v1827
        %v2132 = vpop.f32.mrf.mxu0
        %v2133 = vadd.f32 0.0, %v2132
        %v2134 = vpop.f32.mrf.mxu0
        %2135 = vmatprep.mubr.f32.mxu0 0.0
        %2136 = vmatmul.mubr.f32.gmra.mxu0 %v1830
        %v2137 = vpop.f32.mrf.mxu0
        %v2138 = vadd.f32 0.0, %v2137
        %v2139 = vpop.f32.mrf.mxu0
        %2140 = vmatprep.mubr.f32.mxu0 0.0
        %2141 = vmatmul.mubr.f32.gmra.mxu0 %v1833
        %v2142 = vpop.f32.mrf.mxu0
        %v2143 = vadd.f32 0.0, %v2142
        %v2144 = vpop.f32.mrf.mxu0
        %2145 = vmatprep.mubr.f32.mxu0 0.0
        %2146 = vmatmul.mubr.f32.gmra.mxu0 %v1836
        %v2147 = vpop.f32.mrf.mxu0
        %v2148 = vadd.f32 0.0, %v2147
        %v2149 = vpop.f32.mrf.mxu0
        %2150 = vmatprep.mubr.f32.mxu0 0.0
        %2151 = vmatmul.mubr.f32.gmra.mxu0 %v1839
        %v2152 = vpop.f32.mrf.mxu0
        %v2153 = vadd.f32 0.0, %v2152
        %v2154 = vpop.f32.mrf.mxu0
        %2155 = vmatprep.mubr.f32.mxu0 0.0
        %2156 = vmatmul.mubr.f32.gmra.mxu0 %v1842
        %v2157 = vpop.f32.mrf.mxu0
        %v2158 = vadd.f32 0.0, %v2157
        %v2159 = vpop.f32.mrf.mxu0
        %2160 = vmatprep.mubr.f32.mxu0 0.0
        %2161 = vmatmul.mubr.f32.gmra.mxu0 %v1845
        %v2162 = vpop.f32.mrf.mxu0
        %v2163 = vadd.f32 0.0, %v2162
        %v2164 = vpop.f32.mrf.mxu0
        %2165 = vmatprep.mubr.f32.mxu0 0.0
        %2166 = vmatmul.mubr.f32.gmra.mxu0 %v1848
        %v2167 = vpop.f32.mrf.mxu0
        %v2168 = vadd.f32 0.0, %v2167
        %v2169 = vpop.f32.mrf.mxu0
        %2170 = vmatprep.mubr.f32.mxu0 0.0
        %2171 = vmatmul.mubr.f32.gmra.mxu0 %v1851
        %v2172 = vpop.f32.mrf.mxu0
        %v2173 = vadd.f32 0.0, %v2172
        %v2174 = vpop.f32.mrf.mxu0
        %2175 = vmatprep.mubr.f32.mxu0 0.0
        %2176 = vmatmul.mubr.f32.gmra.mxu0 %v1854
        %v2177 = vpop.f32.mrf.mxu0
        %v2178 = vadd.f32 0.0, %v2177
        %v2179 = vpop.f32.mrf.mxu0
        %2180 = vmatprep.mubr.f32.mxu0 0.0
        %2181 = vmatmul.mubr.f32.gmra.mxu0 %v1857
        %v2182 = vpop.f32.mrf.mxu0
        %v2183 = vadd.f32 0.0, %v2182
        %v2184 = vpop.f32.mrf.mxu0
        %2185 = vmatprep.mubr.f32.mxu0 0.0
        %2186 = vmatmul.mubr.f32.gmra.mxu0 %v1860
        %v2187 = vpop.f32.mrf.mxu0
        %v2188 = vadd.f32 0.0, %v2187
        %v2189 = vpop.f32.mrf.mxu0
        %2190 = vmatprep.mubr.f32.mxu0 0.0
        %2191 = vmatmul.mubr.f32.gmra.mxu0 %v1863
        %v2192 = vpop.f32.mrf.mxu0
        %v2193 = vadd.f32 0.0, %v2192
        %v2194 = vpop.f32.mrf.mxu0
        %2195 = vmatprep.mubr.f32.mxu0 0.0
        %2196 = vmatmul.mubr.f32.gmra.mxu0 %v1866
        %v2197 = vpop.f32.mrf.mxu0
        %v2198 = vadd.f32 0.0, %v2197
        %v2199 = vpop.f32.mrf.mxu0
        %2200 = vmatprep.mubr.f32.mxu0 0.0
        %2201 = vmatmul.mubr.f32.gmra.mxu0 %v1869
        %v2202 = vpop.f32.mrf.mxu0
        %v2203 = vadd.f32 0.0, %v2202
        %v2204 = vpop.f32.mrf.mxu0
        %2205 = vmatprep.mubr.f32.mxu0 0.0
        %2206 = vmatmul.mubr.f32.gmra.mxu0 %v1872
        %v2207 = vpop.f32.mrf.mxu0
        %v2208 = vadd.f32 0.0, %v2207
        %v2209 = vpop.f32.mrf.mxu0
        %2210 = vmatprep.mubr.f32.mxu0 0.0
        %2211 = vmatmul.mubr.f32.gmra.mxu0 %v1875
        %v2212 = vpop.f32.mrf.mxu0
        %v2213 = vadd.f32 0.0, %v2212
        %v2214 = vpop.f32.mrf.mxu0
        %2215 = vmatprep.mubr.f32.mxu0 0.0
        %2216 = vmatmul.mubr.f32.gmra.mxu0 %v1878
        %v2217 = vpop.f32.mrf.mxu0
        %v2218 = vadd.f32 0.0, %v2217
        %v2219 = vpop.f32.mrf.mxu0
        %2220 = vmatprep.mubr.f32.mxu0 0.0
        %2221 = vmatmul.mubr.f32.gmra.mxu0 %v1881
        %v2222 = vpop.f32.mrf.mxu0
        %v2223 = vadd.f32 0.0, %v2222
        %v2224 = vpop.f32.mrf.mxu0
        %2225 = vmatprep.mubr.f32.mxu0 0.0
        %2226 = vmatmul.mubr.f32.gmra.mxu0 %v1884
        %v2227 = vpop.f32.mrf.mxu0
        %v2228 = vadd.f32 0.0, %v2227
        %v2229 = vpop.f32.mrf.mxu0
        %2230 = vmatprep.mubr.f32.mxu0 0.0
        %2231 = vmatmul.mubr.f32.gmra.mxu0 %v1887
        %v2232 = vpop.f32.mrf.mxu0
        %v2233 = vadd.f32 0.0, %v2232
        %v2234 = vpop.f32.mrf.mxu0
        %2235 = vmatprep.mubr.f32.mxu0 0.0
        %2236 = vmatmul.mubr.f32.gmra.mxu0 %v1890
        %v2237 = vpop.f32.mrf.mxu0
        %v2238 = vadd.f32 0.0, %v2237
        %v2239 = vpop.f32.mrf.mxu0
        %2240 = vmatprep.mubr.f32.mxu0 0.0
        %2241 = vmatmul.mubr.f32.gmra.mxu0 %v1893
        %v2242 = vpop.f32.mrf.mxu0
        %v2243 = vadd.f32 0.0, %v2242
        %v2244 = vpop.f32.mrf.mxu0
        %2245 = vmatprep.mubr.f32.mxu0 0.0
        %2246 = vmatmul.mubr.f32.gmra.mxu0 %v1896
        %v2247 = vpop.f32.mrf.mxu0
        %v2248 = vadd.f32 0.0, %v2247
        %v2249 = vpop.f32.mrf.mxu0
        %2250 = vmatprep.mubr.f32.mxu0 0.0
        %2251 = vmatmul.mubr.f32.gmra.mxu0 %v1899
        %v2252 = vpop.f32.mrf.mxu0
        %v2253 = vadd.f32 0.0, %v2252
        %v2254 = vpop.f32.mrf.mxu0
        %2255 = vmatprep.mubr.f32.mxu0 0.0
        %2256 = vmatmul.mubr.f32.gmra.mxu0 %v1902
        %v2257 = vpop.f32.mrf.mxu0
        %v2258 = vadd.f32 0.0, %v2257
        %v2259 = vpop.f32.mrf.mxu0
        %2260 = vmatprep.mubr.f32.mxu0 0.0
        %2261 = vmatmul.mubr.f32.gmra.mxu0 %v1905
        %v2262 = vpop.f32.mrf.mxu0
        %v2263 = vadd.f32 0.0, %v2262
        %v2264 = vpop.f32.mrf.mxu0
        %2265 = vmatprep.mubr.f32.mxu0 0.0
        %2266 = vmatmul.mubr.f32.gmra.mxu0 %v1908
        %v2267 = vpop.f32.mrf.mxu0
        %v2268 = vadd.f32 0.0, %v2267
        %v2269 = vpop.f32.mrf.mxu0
        %2270 = vmatprep.mubr.f32.mxu0 0.0
        %2271 = vmatmul.mubr.f32.gmra.mxu0 %v1911
        %v2272 = vpop.f32.mrf.mxu0
        %v2273 = vadd.f32 0.0, %v2272
        %v2274 = vpop.f32.mrf.mxu0
        %2275 = vmatprep.mubr.f32.mxu0 0.0
        %2276 = vmatmul.mubr.f32.gmra.mxu0 %v1914
        %v2277 = vpop.f32.mrf.mxu0
        %v2278 = vadd.f32 0.0, %v2277
        %v2279 = vpop.f32.mrf.mxu0
        %2280 = vmatprep.mubr.f32.mxu0 0.0
        %2281 = vmatmul.mubr.f32.gmra.mxu0 %v1917
        %v2282 = vpop.f32.mrf.mxu0
        %v2283 = vadd.f32 0.0, %v2282
        %v2284 = vpop.f32.mrf.mxu0
        %2285 = vmatprep.mubr.f32.mxu0 0.0
        %2286 = vmatmul.mubr.f32.gmra.mxu0 %v1920
        %v2287 = vpop.f32.mrf.mxu0
        %v2288 = vadd.f32 0.0, %v2287
        %v2289 = vpop.f32.mrf.mxu0
        %2290 = vmatprep.mubr.f32.mxu0 0.0
        %2291 = vmatmul.mubr.f32.gmra.mxu0 %v1923
        %v2292 = vpop.f32.mrf.mxu0
        %v2293 = vadd.f32 0.0, %v2292
        %v2294 = vpop.f32.mrf.mxu0
        %2295 = vmatprep.mubr.f32.mxu0 0.0
        %2296 = vmatmul.mubr.f32.gmra.mxu0 %v1926
        %v2297 = vpop.f32.mrf.mxu0
        %v2298 = vadd.f32 0.0, %v2297
        %v2299 = vpop.f32.mrf.mxu0
        %2300 = vmatprep.mubr.f32.mxu0 0.0
        %2301 = vmatmul.mubr.f32.gmra.mxu0 %v1929
        %v2302 = vpop.f32.mrf.mxu0
        %v2303 = vadd.f32 0.0, %v2302
        %v2304 = vpop.f32.mrf.mxu0
        %2305 = vmatprep.mubr.f32.mxu0 0.0
        %2306 = vmatmul.mubr.f32.gmra.mxu0 %v1932
        %v2307 = vpop.f32.mrf.mxu0
        %v2308 = vadd.f32 0.0, %v2307
        %v2309 = vpop.f32.mrf.mxu0
        %2310 = vmatprep.mubr.f32.mxu0 0.0
        %2311 = vmatmul.mubr.f32.gmra.mxu0 %v1935
        %v2312 = vpop.f32.mrf.mxu0
        %v2313 = vadd.f32 0.0, %v2312
        %v2314 = vpop.f32.mrf.mxu0
        %2315 = vmatprep.mubr.f32.mxu0 0.0
        %2316 = vmatmul.mubr.f32.gmra.mxu0 %v1938
        %v2317 = vpop.f32.mrf.mxu0
        %v2318 = vadd.f32 0.0, %v2317
        %v2319 = vpop.f32.mrf.mxu0
        %2320 = vmatprep.mubr.f32.mxu0 0.0
        %2321 = vmatmul.mubr.f32.gmra.mxu0 %v1941
        %v2322 = vpop.f32.mrf.mxu0
        %v2323 = vadd.f32 0.0, %v2322
        %v2324 = vpop.f32.mrf.mxu0
        %2325 = vmatprep.mubr.f32.mxu0 0.0
        %2326 = vmatmul.mubr.f32.gmra.mxu0 %v1944
        %v2327 = vpop.f32.mrf.mxu0
        %v2328 = vadd.f32 0.0, %v2327
        %v2329 = vpop.f32.mrf.mxu0
        %2330 = vdwg.mxu0
        %v2331 = vadd.f32 %v1369, %v2013
        %v2332 = vadd.f32 %v1374, %v2018
        %v2333 = vadd.f32 %v1379, %v2023
        %v2334 = vadd.f32 %v1384, %v2028
        %v2335 = vadd.f32 %v1389, %v2033
        %v2336 = vadd.f32 %v1394, %v2038
        %v2337 = vadd.f32 %v1399, %v2043
        %v2338 = vadd.f32 %v1404, %v2048
        %v2339 = vadd.f32 %v1409, %v2053
        %v2340 = vadd.f32 %v1414, %v2058
        %v2341 = vadd.f32 %v1419, %v2063
        %v2342 = vadd.f32 %v1424, %v2068
        %v2343 = vadd.f32 %v1429, %v2073
        %v2344 = vadd.f32 %v1434, %v2078
        %v2345 = vadd.f32 %v1439, %v2083
        %v2346 = vadd.f32 %v1444, %v2088
        %v2347 = vadd.f32 %v1449, %v2093
        %v2348 = vadd.f32 %v1454, %v2098
        %v2349 = vadd.f32 %v1459, %v2103
        %v2350 = vadd.f32 %v1464, %v2108
        %v2351 = vadd.f32 %v1469, %v2113
        %v2352 = vadd.f32 %v1474, %v2118
        %v2353 = vadd.f32 %v1479, %v2123
        %v2354 = vadd.f32 %v1484, %v2128
        %v2355 = vadd.f32 %v1489, %v2133
        %v2356 = vadd.f32 %v1494, %v2138
        %v2357 = vadd.f32 %v1499, %v2143
        %v2358 = vadd.f32 %v1504, %v2148
        %v2359 = vadd.f32 %v1509, %v2153
        %v2360 = vadd.f32 %v1514, %v2158
        %v2361 = vadd.f32 %v1519, %v2163
        %v2362 = vadd.f32 %v1524, %v2168
        %v2363 = vadd.f32 %v1529, %v2173
        %v2364 = vadd.f32 %v1534, %v2178
        %v2365 = vadd.f32 %v1539, %v2183
        %v2366 = vadd.f32 %v1544, %v2188
        %v2367 = vadd.f32 %v1549, %v2193
        %v2368 = vadd.f32 %v1554, %v2198
        %v2369 = vadd.f32 %v1559, %v2203
        %v2370 = vadd.f32 %v1564, %v2208
        %v2371 = vadd.f32 %v1569, %v2213
        %v2372 = vadd.f32 %v1574, %v2218
        %v2373 = vadd.f32 %v1579, %v2223
        %v2374 = vadd.f32 %v1584, %v2228
        %v2375 = vadd.f32 %v1589, %v2233
        %v2376 = vadd.f32 %v1594, %v2238
        %v2377 = vadd.f32 %v1599, %v2243
        %v2378 = vadd.f32 %v1604, %v2248
        %v2379 = vadd.f32 %v1609, %v2253
        %v2380 = vadd.f32 %v1614, %v2258
        %v2381 = vadd.f32 %v1619, %v2263
        %v2382 = vadd.f32 %v1624, %v2268
        %v2383 = vadd.f32 %v1629, %v2273
        %v2384 = vadd.f32 %v1634, %v2278
        %v2385 = vadd.f32 %v1639, %v2283
        %v2386 = vadd.f32 %v1644, %v2288
        %v2387 = vadd.f32 %v1649, %v2293
        %v2388 = vadd.f32 %v1654, %v2298
        %v2389 = vadd.f32 %v1659, %v2303
        %v2390 = vadd.f32 %v1664, %v2308
        %v2391 = vadd.f32 %v1669, %v2313
        %v2392 = vadd.f32 %v1674, %v2318
        %v2393 = vadd.f32 %v1679, %v2323
        %v2394 = vadd.f32 %v1684, %v2328
        %v2395 = vld [vmem:[#allocation2 + $0x17] sm:$0xff]
        %v2396 = vld [vmem:[#allocation2 + $0x1f] sm:$0xff]
        %v2397 = vld [vmem:[#allocation2 + $0x27] sm:$0xff]
        %v2398 = vld [vmem:[#allocation2 + $0x2f] sm:$0xff]
        %v2399 = vld [vmem:[#allocation2 + $0x37] sm:$0xff]
        %v2400 = vld [vmem:[#allocation2 + $0x3f] sm:$0xff]
        %v2401 = vld [vmem:[#allocation2 + $0x47] sm:$0xff]
        %v2402 = vld [vmem:[#allocation2 + $0x4f] sm:$0xff]
        %v2403 = vld [vmem:[#allocation2 + $0x57] sm:$0xff]
        %v2404 = vld [vmem:[#allocation2 + $0x5f] sm:$0xff]
        %v2405 = vld [vmem:[#allocation2 + $0x67] sm:$0xff]
        %v2406 = vld [vmem:[#allocation2 + $0x6f] sm:$0xff]
        %v2407 = vld [vmem:[#allocation2 + $0x77] sm:$0xff]
        %v2408 = vld [vmem:[#allocation2 + $0x7f] sm:$0xff]
        %v2409 = vld [vmem:[#allocation2 + $0x87] sm:$0xff]
        %v2410 = vld [vmem:[#allocation2 + $0x8f] sm:$0xff]
        %v2411 = vld [vmem:[#allocation2 + $0x97] sm:$0xff]
        %v2412 = vld [vmem:[#allocation2 + $0x9f] sm:$0xff]
        %v2413 = vld [vmem:[#allocation2 + $0xa7] sm:$0xff]
        %v2414 = vld [vmem:[#allocation2 + $0xaf] sm:$0xff]
        %v2415 = vld [vmem:[#allocation2 + $0xb7] sm:$0xff]
        %v2416 = vld [vmem:[#allocation2 + $0xbf] sm:$0xff]
        %v2417 = vld [vmem:[#allocation2 + $0xc7] sm:$0xff]
        %v2418 = vld [vmem:[#allocation2 + $0xcf] sm:$0xff]
        %v2419 = vld [vmem:[#allocation2 + $0xd7] sm:$0xff]
        %v2420 = vld [vmem:[#allocation2 + $0xdf] sm:$0xff]
        %v2421 = vld [vmem:[#allocation2 + $0xe7] sm:$0xff]
        %v2422 = vld [vmem:[#allocation2 + $0xef] sm:$0xff]
        %v2423 = vld [vmem:[#allocation2 + $0xf7] sm:$0xff]
        %v2424 = vld [vmem:[#allocation2 + $0xff] sm:$0xff]
        %v2425 = vld [vmem:[#allocation2 + $0x107] sm:$0xff]
        %v2426 = vld [vmem:[#allocation2 + $0x10f] sm:$0xff]
        %v2427 = vld [vmem:[#allocation2 + $0x117] sm:$0xff]
        %v2428 = vld [vmem:[#allocation2 + $0x11f] sm:$0xff]
        %v2429 = vld [vmem:[#allocation2 + $0x127] sm:$0xff]
        %v2430 = vld [vmem:[#allocation2 + $0x12f] sm:$0xff]
        %v2431 = vld [vmem:[#allocation2 + $0x137] sm:$0xff]
        %v2432 = vld [vmem:[#allocation2 + $0x13f] sm:$0xff]
        %v2433 = vld [vmem:[#allocation2 + $0x147] sm:$0xff]
        %v2434 = vld [vmem:[#allocation2 + $0x14f] sm:$0xff]
        %v2435 = vld [vmem:[#allocation2 + $0x157] sm:$0xff]
        %v2436 = vld [vmem:[#allocation2 + $0x15f] sm:$0xff]
        %v2437 = vld [vmem:[#allocation2 + $0x167] sm:$0xff]
        %v2438 = vld [vmem:[#allocation2 + $0x16f] sm:$0xff]
        %v2439 = vld [vmem:[#allocation2 + $0x177] sm:$0xff]
        %v2440 = vld [vmem:[#allocation2 + $0x17f] sm:$0xff]
        %v2441 = vld [vmem:[#allocation2 + $0x187] sm:$0xff]
        %v2442 = vld [vmem:[#allocation2 + $0x18f] sm:$0xff]
        %v2443 = vld [vmem:[#allocation2 + $0x197] sm:$0xff]
        %v2444 = vld [vmem:[#allocation2 + $0x19f] sm:$0xff]
        %v2445 = vld [vmem:[#allocation2 + $0x1a7] sm:$0xff]
        %v2446 = vld [vmem:[#allocation2 + $0x1af] sm:$0xff]
        %v2447 = vld [vmem:[#allocation2 + $0x1b7] sm:$0xff]
        %v2448 = vld [vmem:[#allocation2 + $0x1bf] sm:$0xff]
        %v2449 = vld [vmem:[#allocation2 + $0x1c7] sm:$0xff]
        %v2450 = vld [vmem:[#allocation2 + $0x1cf] sm:$0xff]
        %v2451 = vld [vmem:[#allocation2 + $0x1d7] sm:$0xff]
        %v2452 = vld [vmem:[#allocation2 + $0x1df] sm:$0xff]
        %v2453 = vld [vmem:[#allocation2 + $0x1e7] sm:$0xff]
        %v2454 = vld [vmem:[#allocation2 + $0x1ef] sm:$0xff]
        %v2455 = vld [vmem:[#allocation2 + $0x1f7] sm:$0xff]
        %v2456 = vld [vmem:[#allocation2 + $0x1ff] sm:$0xff]
        %v2457 = vld [vmem:[#allocation2 + $0x207] sm:$0xff]
        %v2458 = vld [vmem:[#allocation2 + $0x20f] sm:$0xff]
        %s2459 = scalar_lea.vmem %s2, 48
        %v2460 = vld [vmem:[%s2459] sm:$0xff]
        %v2461 = vld [vmem:[%s2459 + $0x8] sm:$0xff]
        %v2463 = vsel %vm532, %v2395, 0
        %v2466 = vsel %vm532, %v2396, 0
        %v2469 = vsel %vm532, %v2397, 0
        %v2472 = vsel %vm532, %v2398, 0
        %v2475 = vsel %vm532, %v2399, 0
        %v2478 = vsel %vm532, %v2400, 0
        %v2481 = vsel %vm532, %v2401, 0
        %v2484 = vsel %vm532, %v2402, 0
        %v2487 = vsel %vm532, %v2403, 0
        %v2490 = vsel %vm532, %v2404, 0
        %v2493 = vsel %vm532, %v2405, 0
        %v2496 = vsel %vm532, %v2406, 0
        %v2499 = vsel %vm532, %v2407, 0
        %v2502 = vsel %vm532, %v2408, 0
        %v2505 = vsel %vm532, %v2409, 0
        %v2508 = vsel %vm532, %v2410, 0
        %v2511 = vsel %vm532, %v2411, 0
        %v2514 = vsel %vm532, %v2412, 0
        %v2517 = vsel %vm532, %v2413, 0
        %v2520 = vsel %vm532, %v2414, 0
        %v2523 = vsel %vm532, %v2415, 0
        %v2526 = vsel %vm532, %v2416, 0
        %v2529 = vsel %vm532, %v2417, 0
        %v2532 = vsel %vm532, %v2418, 0
        %v2535 = vsel %vm532, %v2419, 0
        %v2538 = vsel %vm532, %v2420, 0
        %v2541 = vsel %vm532, %v2421, 0
        %v2544 = vsel %vm532, %v2422, 0
        %v2547 = vsel %vm532, %v2423, 0
        %v2550 = vsel %vm532, %v2424, 0
        %v2553 = vsel %vm532, %v2425, 0
        %v2556 = vsel %vm532, %v2426, 0
        %v2559 = vsel %vm532, %v2427, 0
        %v2562 = vsel %vm532, %v2428, 0
        %v2565 = vsel %vm532, %v2429, 0
        %v2568 = vsel %vm532, %v2430, 0
        %v2571 = vsel %vm532, %v2431, 0
        %v2574 = vsel %vm532, %v2432, 0
        %v2577 = vsel %vm532, %v2433, 0
        %v2580 = vsel %vm532, %v2434, 0
        %v2583 = vsel %vm532, %v2435, 0
        %v2586 = vsel %vm532, %v2436, 0
        %v2589 = vsel %vm532, %v2437, 0
        %v2592 = vsel %vm532, %v2438, 0
        %v2595 = vsel %vm532, %v2439, 0
        %v2598 = vsel %vm532, %v2440, 0
        %v2601 = vsel %vm532, %v2441, 0
        %v2604 = vsel %vm532, %v2442, 0
        %v2607 = vsel %vm532, %v2443, 0
        %v2610 = vsel %vm532, %v2444, 0
        %v2613 = vsel %vm532, %v2445, 0
        %v2616 = vsel %vm532, %v2446, 0
        %v2619 = vsel %vm532, %v2447, 0
        %v2622 = vsel %vm532, %v2448, 0
        %v2625 = vsel %vm532, %v2449, 0
        %v2628 = vsel %vm532, %v2450, 0
        %v2631 = vsel %vm532, %v2451, 0
        %v2634 = vsel %vm532, %v2452, 0
        %v2637 = vsel %vm532, %v2453, 0
        %v2640 = vsel %vm532, %v2454, 0
        %v2643 = vsel %vm532, %v2455, 0
        %v2646 = vsel %vm532, %v2456, 0
        %v2649 = vsel %vm532, %v2457, 0
        %v2652 = vsel %vm532, %v2458, 0
        %2654 = vmatprep.subr.mxu0 0.0
        %2655 = vmatpush1.msra.mxu0 0.0
        %2656 = vmatprep.subr.mxu0 0.0
        %2657 = vmatpush1.msra.mxu0 0.0
        %2658 = vmatprep.subr.mxu0 0.0
        %2659 = vmatpush1.msra.mxu0 0.0
        %2660 = vmatprep.subr.mxu0 0.0
        %2661 = vmatpush1.msra.mxu0 0.0
        %2662 = vmatprep.subr.mxu0 0.0
        %2663 = vmatpush1.msra.mxu0 0.0
        %2664 = vmatprep.subr.mxu0 0.0
        %2665 = vmatpush1.msra.mxu0 0.0
        %2666 = vmatprep.subr.mxu0 0.0
        %2667 = vmatpush1.msra.mxu0 0.0
        %2668 = vmatprep.subr.mxu0 0.0
        %2669 = vmatpush1.msra.mxu0 0.0
        %2670 = vmatprep.subr.mxu0 0.0
        %2671 = vmatpush1.msra.mxu0 0.0
        %2672 = vmatprep.subr.mxu0 0.0
        %2673 = vmatpush1.msra.mxu0 0.0
        %2674 = vmatprep.subr.mxu0 0.0
        %2675 = vmatpush1.msra.mxu0 0.0
        %2676 = vmatprep.subr.mxu0 0.0
        %2677 = vmatpush1.msra.mxu0 0.0
        %2678 = vmatprep.subr.mxu0 0.0
        %2679 = vmatpush1.msra.mxu0 0.0
        %2680 = vmatprep.subr.mxu0 0.0
        %2681 = vmatpush1.msra.mxu0 0.0
        %2682 = vmatprep.subr.mxu0 0.0
        %2683 = vmatpush1.msra.mxu0 %v2461
        %2684 = vmatprep.subr.mxu0 0.0
        %2685 = vmatpush1.msra.mxu0 %v2460
        %2686 = vmatprep.subr.mxu0 0.0
        %2687 = vmatpush2.msra.mxu0 0.0
        %2688 = vmatprep.subr.mxu0 0.0
        %2689 = vmatpush2.msra.mxu0 0.0
        %2690 = vmatprep.subr.mxu0 0.0
        %2691 = vmatpush2.msra.mxu0 0.0
        %2692 = vmatprep.subr.mxu0 0.0
        %2693 = vmatpush2.msra.mxu0 0.0
        %2694 = vmatprep.subr.mxu0 0.0
        %2695 = vmatpush2.msra.mxu0 0.0
        %2696 = vmatprep.subr.mxu0 0.0
        %2697 = vmatpush2.msra.mxu0 0.0
        %2698 = vmatprep.subr.mxu0 0.0
        %2699 = vmatpush2.msra.mxu0 0.0
        %2700 = vmatprep.subr.mxu0 0.0
        %2701 = vmatpush2.msra.mxu0 0.0
        %2702 = vmatprep.subr.mxu0 0.0
        %2703 = vmatpush2.msra.mxu0 0.0
        %2704 = vmatprep.subr.mxu0 0.0
        %2705 = vmatpush2.msra.mxu0 0.0
        %2706 = vmatprep.subr.mxu0 0.0
        %2707 = vmatpush2.msra.mxu0 0.0
        %2708 = vmatprep.subr.mxu0 0.0
        %2709 = vmatpush2.msra.mxu0 0.0
        %2710 = vmatprep.subr.mxu0 0.0
        %2711 = vmatpush2.msra.mxu0 0.0
        %2712 = vmatprep.subr.mxu0 0.0
        %2713 = vmatpush2.msra.mxu0 0.0
        %2714 = vmatprep.subr.mxu0 0.0
        %2715 = vmatpush2.msra.mxu0 0.0
        %2716 = vmatprep.subr.mxu0 0.0
        %2717 = vmatpush2.msra.mxu0 0.0
        %2718 = vmatprep.mubr.f32.mxu0 0.0
        %2719 = vmatmul.mubr.f32.gmra.mxu0 %v2463
        %v2720 = vpop.f32.mrf.mxu0
        %v2721 = vadd.f32 0.0, %v2720
        %v2722 = vpop.f32.mrf.mxu0
        %2723 = vmatprep.mubr.f32.mxu0 0.0
        %2724 = vmatmul.mubr.f32.gmra.mxu0 %v2466
        %v2725 = vpop.f32.mrf.mxu0
        %v2726 = vadd.f32 0.0, %v2725
        %v2727 = vpop.f32.mrf.mxu0
        %2728 = vmatprep.mubr.f32.mxu0 0.0
        %2729 = vmatmul.mubr.f32.gmra.mxu0 %v2469
        %v2730 = vpop.f32.mrf.mxu0
        %v2731 = vadd.f32 0.0, %v2730
        %v2732 = vpop.f32.mrf.mxu0
        %2733 = vmatprep.mubr.f32.mxu0 0.0
        %2734 = vmatmul.mubr.f32.gmra.mxu0 %v2472
        %v2735 = vpop.f32.mrf.mxu0
        %v2736 = vadd.f32 0.0, %v2735
        %v2737 = vpop.f32.mrf.mxu0
        %2738 = vmatprep.mubr.f32.mxu0 0.0
        %2739 = vmatmul.mubr.f32.gmra.mxu0 %v2475
        %v2740 = vpop.f32.mrf.mxu0
        %v2741 = vadd.f32 0.0, %v2740
        %v2742 = vpop.f32.mrf.mxu0
        %2743 = vmatprep.mubr.f32.mxu0 0.0
        %2744 = vmatmul.mubr.f32.gmra.mxu0 %v2478
        %v2745 = vpop.f32.mrf.mxu0
        %v2746 = vadd.f32 0.0, %v2745
        %v2747 = vpop.f32.mrf.mxu0
        %2748 = vmatprep.mubr.f32.mxu0 0.0
        %2749 = vmatmul.mubr.f32.gmra.mxu0 %v2481
        %v2750 = vpop.f32.mrf.mxu0
        %v2751 = vadd.f32 0.0, %v2750
        %v2752 = vpop.f32.mrf.mxu0
        %2753 = vmatprep.mubr.f32.mxu0 0.0
        %2754 = vmatmul.mubr.f32.gmra.mxu0 %v2484
        %v2755 = vpop.f32.mrf.mxu0
        %v2756 = vadd.f32 0.0, %v2755
        %v2757 = vpop.f32.mrf.mxu0
        %2758 = vmatprep.mubr.f32.mxu0 0.0
        %2759 = vmatmul.mubr.f32.gmra.mxu0 %v2487
        %v2760 = vpop.f32.mrf.mxu0
        %v2761 = vadd.f32 0.0, %v2760
        %v2762 = vpop.f32.mrf.mxu0
        %2763 = vmatprep.mubr.f32.mxu0 0.0
        %2764 = vmatmul.mubr.f32.gmra.mxu0 %v2490
        %v2765 = vpop.f32.mrf.mxu0
        %v2766 = vadd.f32 0.0, %v2765
        %v2767 = vpop.f32.mrf.mxu0
        %2768 = vmatprep.mubr.f32.mxu0 0.0
        %2769 = vmatmul.mubr.f32.gmra.mxu0 %v2493
        %v2770 = vpop.f32.mrf.mxu0
        %v2771 = vadd.f32 0.0, %v2770
        %v2772 = vpop.f32.mrf.mxu0
        %2773 = vmatprep.mubr.f32.mxu0 0.0
        %2774 = vmatmul.mubr.f32.gmra.mxu0 %v2496
        %v2775 = vpop.f32.mrf.mxu0
        %v2776 = vadd.f32 0.0, %v2775
        %v2777 = vpop.f32.mrf.mxu0
        %2778 = vmatprep.mubr.f32.mxu0 0.0
        %2779 = vmatmul.mubr.f32.gmra.mxu0 %v2499
        %v2780 = vpop.f32.mrf.mxu0
        %v2781 = vadd.f32 0.0, %v2780
        %v2782 = vpop.f32.mrf.mxu0
        %2783 = vmatprep.mubr.f32.mxu0 0.0
        %2784 = vmatmul.mubr.f32.gmra.mxu0 %v2502
        %v2785 = vpop.f32.mrf.mxu0
        %v2786 = vadd.f32 0.0, %v2785
        %v2787 = vpop.f32.mrf.mxu0
        %2788 = vmatprep.mubr.f32.mxu0 0.0
        %2789 = vmatmul.mubr.f32.gmra.mxu0 %v2505
        %v2790 = vpop.f32.mrf.mxu0
        %v2791 = vadd.f32 0.0, %v2790
        %v2792 = vpop.f32.mrf.mxu0
        %2793 = vmatprep.mubr.f32.mxu0 0.0
        %2794 = vmatmul.mubr.f32.gmra.mxu0 %v2508
        %v2795 = vpop.f32.mrf.mxu0
        %v2796 = vadd.f32 0.0, %v2795
        %v2797 = vpop.f32.mrf.mxu0
        %2798 = vmatprep.mubr.f32.mxu0 0.0
        %2799 = vmatmul.mubr.f32.gmra.mxu0 %v2511
        %v2800 = vpop.f32.mrf.mxu0
        %v2801 = vadd.f32 0.0, %v2800
        %v2802 = vpop.f32.mrf.mxu0
        %2803 = vmatprep.mubr.f32.mxu0 0.0
        %2804 = vmatmul.mubr.f32.gmra.mxu0 %v2514
        %v2805 = vpop.f32.mrf.mxu0
        %v2806 = vadd.f32 0.0, %v2805
        %v2807 = vpop.f32.mrf.mxu0
        %2808 = vmatprep.mubr.f32.mxu0 0.0
        %2809 = vmatmul.mubr.f32.gmra.mxu0 %v2517
        %v2810 = vpop.f32.mrf.mxu0
        %v2811 = vadd.f32 0.0, %v2810
        %v2812 = vpop.f32.mrf.mxu0
        %2813 = vmatprep.mubr.f32.mxu0 0.0
        %2814 = vmatmul.mubr.f32.gmra.mxu0 %v2520
        %v2815 = vpop.f32.mrf.mxu0
        %v2816 = vadd.f32 0.0, %v2815
        %v2817 = vpop.f32.mrf.mxu0
        %2818 = vmatprep.mubr.f32.mxu0 0.0
        %2819 = vmatmul.mubr.f32.gmra.mxu0 %v2523
        %v2820 = vpop.f32.mrf.mxu0
        %v2821 = vadd.f32 0.0, %v2820
        %v2822 = vpop.f32.mrf.mxu0
        %2823 = vmatprep.mubr.f32.mxu0 0.0
        %2824 = vmatmul.mubr.f32.gmra.mxu0 %v2526
        %v2825 = vpop.f32.mrf.mxu0
        %v2826 = vadd.f32 0.0, %v2825
        %v2827 = vpop.f32.mrf.mxu0
        %2828 = vmatprep.mubr.f32.mxu0 0.0
        %2829 = vmatmul.mubr.f32.gmra.mxu0 %v2529
        %v2830 = vpop.f32.mrf.mxu0
        %v2831 = vadd.f32 0.0, %v2830
        %v2832 = vpop.f32.mrf.mxu0
        %2833 = vmatprep.mubr.f32.mxu0 0.0
        %2834 = vmatmul.mubr.f32.gmra.mxu0 %v2532
        %v2835 = vpop.f32.mrf.mxu0
        %v2836 = vadd.f32 0.0, %v2835
        %v2837 = vpop.f32.mrf.mxu0
        %2838 = vmatprep.mubr.f32.mxu0 0.0
        %2839 = vmatmul.mubr.f32.gmra.mxu0 %v2535
        %v2840 = vpop.f32.mrf.mxu0
        %v2841 = vadd.f32 0.0, %v2840
        %v2842 = vpop.f32.mrf.mxu0
        %2843 = vmatprep.mubr.f32.mxu0 0.0
        %2844 = vmatmul.mubr.f32.gmra.mxu0 %v2538
        %v2845 = vpop.f32.mrf.mxu0
        %v2846 = vadd.f32 0.0, %v2845
        %v2847 = vpop.f32.mrf.mxu0
        %2848 = vmatprep.mubr.f32.mxu0 0.0
        %2849 = vmatmul.mubr.f32.gmra.mxu0 %v2541
        %v2850 = vpop.f32.mrf.mxu0
        %v2851 = vadd.f32 0.0, %v2850
        %v2852 = vpop.f32.mrf.mxu0
        %2853 = vmatprep.mubr.f32.mxu0 0.0
        %2854 = vmatmul.mubr.f32.gmra.mxu0 %v2544
        %v2855 = vpop.f32.mrf.mxu0
        %v2856 = vadd.f32 0.0, %v2855
        %v2857 = vpop.f32.mrf.mxu0
        %2858 = vmatprep.mubr.f32.mxu0 0.0
        %2859 = vmatmul.mubr.f32.gmra.mxu0 %v2547
        %v2860 = vpop.f32.mrf.mxu0
        %v2861 = vadd.f32 0.0, %v2860
        %v2862 = vpop.f32.mrf.mxu0
        %2863 = vmatprep.mubr.f32.mxu0 0.0
        %2864 = vmatmul.mubr.f32.gmra.mxu0 %v2550
        %v2865 = vpop.f32.mrf.mxu0
        %v2866 = vadd.f32 0.0, %v2865
        %v2867 = vpop.f32.mrf.mxu0
        %2868 = vmatprep.mubr.f32.mxu0 0.0
        %2869 = vmatmul.mubr.f32.gmra.mxu0 %v2553
        %v2870 = vpop.f32.mrf.mxu0
        %v2871 = vadd.f32 0.0, %v2870
        %v2872 = vpop.f32.mrf.mxu0
        %2873 = vmatprep.mubr.f32.mxu0 0.0
        %2874 = vmatmul.mubr.f32.gmra.mxu0 %v2556
        %v2875 = vpop.f32.mrf.mxu0
        %v2876 = vadd.f32 0.0, %v2875
        %v2877 = vpop.f32.mrf.mxu0
        %2878 = vmatprep.mubr.f32.mxu0 0.0
        %2879 = vmatmul.mubr.f32.gmra.mxu0 %v2559
        %v2880 = vpop.f32.mrf.mxu0
        %v2881 = vadd.f32 0.0, %v2880
        %v2882 = vpop.f32.mrf.mxu0
        %2883 = vmatprep.mubr.f32.mxu0 0.0
        %2884 = vmatmul.mubr.f32.gmra.mxu0 %v2562
        %v2885 = vpop.f32.mrf.mxu0
        %v2886 = vadd.f32 0.0, %v2885
        %v2887 = vpop.f32.mrf.mxu0
        %2888 = vmatprep.mubr.f32.mxu0 0.0
        %2889 = vmatmul.mubr.f32.gmra.mxu0 %v2565
        %v2890 = vpop.f32.mrf.mxu0
        %v2891 = vadd.f32 0.0, %v2890
        %v2892 = vpop.f32.mrf.mxu0
        %2893 = vmatprep.mubr.f32.mxu0 0.0
        %2894 = vmatmul.mubr.f32.gmra.mxu0 %v2568
        %v2895 = vpop.f32.mrf.mxu0
        %v2896 = vadd.f32 0.0, %v2895
        %v2897 = vpop.f32.mrf.mxu0
        %2898 = vmatprep.mubr.f32.mxu0 0.0
        %2899 = vmatmul.mubr.f32.gmra.mxu0 %v2571
        %v2900 = vpop.f32.mrf.mxu0
        %v2901 = vadd.f32 0.0, %v2900
        %v2902 = vpop.f32.mrf.mxu0
        %2903 = vmatprep.mubr.f32.mxu0 0.0
        %2904 = vmatmul.mubr.f32.gmra.mxu0 %v2574
        %v2905 = vpop.f32.mrf.mxu0
        %v2906 = vadd.f32 0.0, %v2905
        %v2907 = vpop.f32.mrf.mxu0
        %2908 = vmatprep.mubr.f32.mxu0 0.0
        %2909 = vmatmul.mubr.f32.gmra.mxu0 %v2577
        %v2910 = vpop.f32.mrf.mxu0
        %v2911 = vadd.f32 0.0, %v2910
        %v2912 = vpop.f32.mrf.mxu0
        %2913 = vmatprep.mubr.f32.mxu0 0.0
        %2914 = vmatmul.mubr.f32.gmra.mxu0 %v2580
        %v2915 = vpop.f32.mrf.mxu0
        %v2916 = vadd.f32 0.0, %v2915
        %v2917 = vpop.f32.mrf.mxu0
        %2918 = vmatprep.mubr.f32.mxu0 0.0
        %2919 = vmatmul.mubr.f32.gmra.mxu0 %v2583
        %v2920 = vpop.f32.mrf.mxu0
        %v2921 = vadd.f32 0.0, %v2920
        %v2922 = vpop.f32.mrf.mxu0
        %2923 = vmatprep.mubr.f32.mxu0 0.0
        %2924 = vmatmul.mubr.f32.gmra.mxu0 %v2586
        %v2925 = vpop.f32.mrf.mxu0
        %v2926 = vadd.f32 0.0, %v2925
        %v2927 = vpop.f32.mrf.mxu0
        %2928 = vmatprep.mubr.f32.mxu0 0.0
        %2929 = vmatmul.mubr.f32.gmra.mxu0 %v2589
        %v2930 = vpop.f32.mrf.mxu0
        %v2931 = vadd.f32 0.0, %v2930
        %v2932 = vpop.f32.mrf.mxu0
        %2933 = vmatprep.mubr.f32.mxu0 0.0
        %2934 = vmatmul.mubr.f32.gmra.mxu0 %v2592
        %v2935 = vpop.f32.mrf.mxu0
        %v2936 = vadd.f32 0.0, %v2935
        %v2937 = vpop.f32.mrf.mxu0
        %2938 = vmatprep.mubr.f32.mxu0 0.0
        %2939 = vmatmul.mubr.f32.gmra.mxu0 %v2595
        %v2940 = vpop.f32.mrf.mxu0
        %v2941 = vadd.f32 0.0, %v2940
        %v2942 = vpop.f32.mrf.mxu0
        %2943 = vmatprep.mubr.f32.mxu0 0.0
        %2944 = vmatmul.mubr.f32.gmra.mxu0 %v2598
        %v2945 = vpop.f32.mrf.mxu0
        %v2946 = vadd.f32 0.0, %v2945
        %v2947 = vpop.f32.mrf.mxu0
        %2948 = vmatprep.mubr.f32.mxu0 0.0
        %2949 = vmatmul.mubr.f32.gmra.mxu0 %v2601
        %v2950 = vpop.f32.mrf.mxu0
        %v2951 = vadd.f32 0.0, %v2950
        %v2952 = vpop.f32.mrf.mxu0
        %2953 = vmatprep.mubr.f32.mxu0 0.0
        %2954 = vmatmul.mubr.f32.gmra.mxu0 %v2604
        %v2955 = vpop.f32.mrf.mxu0
        %v2956 = vadd.f32 0.0, %v2955
        %v2957 = vpop.f32.mrf.mxu0
        %2958 = vmatprep.mubr.f32.mxu0 0.0
        %2959 = vmatmul.mubr.f32.gmra.mxu0 %v2607
        %v2960 = vpop.f32.mrf.mxu0
        %v2961 = vadd.f32 0.0, %v2960
        %v2962 = vpop.f32.mrf.mxu0
        %2963 = vmatprep.mubr.f32.mxu0 0.0
        %2964 = vmatmul.mubr.f32.gmra.mxu0 %v2610
        %v2965 = vpop.f32.mrf.mxu0
        %v2966 = vadd.f32 0.0, %v2965
        %v2967 = vpop.f32.mrf.mxu0
        %2968 = vmatprep.mubr.f32.mxu0 0.0
        %2969 = vmatmul.mubr.f32.gmra.mxu0 %v2613
        %v2970 = vpop.f32.mrf.mxu0
        %v2971 = vadd.f32 0.0, %v2970
        %v2972 = vpop.f32.mrf.mxu0
        %2973 = vmatprep.mubr.f32.mxu0 0.0
        %2974 = vmatmul.mubr.f32.gmra.mxu0 %v2616
        %v2975 = vpop.f32.mrf.mxu0
        %v2976 = vadd.f32 0.0, %v2975
        %v2977 = vpop.f32.mrf.mxu0
        %2978 = vmatprep.mubr.f32.mxu0 0.0
        %2979 = vmatmul.mubr.f32.gmra.mxu0 %v2619
        %v2980 = vpop.f32.mrf.mxu0
        %v2981 = vadd.f32 0.0, %v2980
        %v2982 = vpop.f32.mrf.mxu0
        %2983 = vmatprep.mubr.f32.mxu0 0.0
        %2984 = vmatmul.mubr.f32.gmra.mxu0 %v2622
        %v2985 = vpop.f32.mrf.mxu0
        %v2986 = vadd.f32 0.0, %v2985
        %v2987 = vpop.f32.mrf.mxu0
        %2988 = vmatprep.mubr.f32.mxu0 0.0
        %2989 = vmatmul.mubr.f32.gmra.mxu0 %v2625
        %v2990 = vpop.f32.mrf.mxu0
        %v2991 = vadd.f32 0.0, %v2990
        %v2992 = vpop.f32.mrf.mxu0
        %2993 = vmatprep.mubr.f32.mxu0 0.0
        %2994 = vmatmul.mubr.f32.gmra.mxu0 %v2628
        %v2995 = vpop.f32.mrf.mxu0
        %v2996 = vadd.f32 0.0, %v2995
        %v2997 = vpop.f32.mrf.mxu0
        %2998 = vmatprep.mubr.f32.mxu0 0.0
        %2999 = vmatmul.mubr.f32.gmra.mxu0 %v2631
        %v3000 = vpop.f32.mrf.mxu0
        %v3001 = vadd.f32 0.0, %v3000
        %v3002 = vpop.f32.mrf.mxu0
        %3003 = vmatprep.mubr.f32.mxu0 0.0
        %3004 = vmatmul.mubr.f32.gmra.mxu0 %v2634
        %v3005 = vpop.f32.mrf.mxu0
        %v3006 = vadd.f32 0.0, %v3005
        %v3007 = vpop.f32.mrf.mxu0
        %3008 = vmatprep.mubr.f32.mxu0 0.0
        %3009 = vmatmul.mubr.f32.gmra.mxu0 %v2637
        %v3010 = vpop.f32.mrf.mxu0
        %v3011 = vadd.f32 0.0, %v3010
        %v3012 = vpop.f32.mrf.mxu0
        %3013 = vmatprep.mubr.f32.mxu0 0.0
        %3014 = vmatmul.mubr.f32.gmra.mxu0 %v2640
        %v3015 = vpop.f32.mrf.mxu0
        %v3016 = vadd.f32 0.0, %v3015
        %v3017 = vpop.f32.mrf.mxu0
        %3018 = vmatprep.mubr.f32.mxu0 0.0
        %3019 = vmatmul.mubr.f32.gmra.mxu0 %v2643
        %v3020 = vpop.f32.mrf.mxu0
        %v3021 = vadd.f32 0.0, %v3020
        %v3022 = vpop.f32.mrf.mxu0
        %3023 = vmatprep.mubr.f32.mxu0 0.0
        %3024 = vmatmul.mubr.f32.gmra.mxu0 %v2646
        %v3025 = vpop.f32.mrf.mxu0
        %v3026 = vadd.f32 0.0, %v3025
        %v3027 = vpop.f32.mrf.mxu0
        %3028 = vmatprep.mubr.f32.mxu0 0.0
        %3029 = vmatmul.mubr.f32.gmra.mxu0 %v2649
        %v3030 = vpop.f32.mrf.mxu0
        %v3031 = vadd.f32 0.0, %v3030
        %v3032 = vpop.f32.mrf.mxu0
        %3033 = vmatprep.mubr.f32.mxu0 0.0
        %3034 = vmatmul.mubr.f32.gmra.mxu0 %v2652
        %v3035 = vpop.f32.mrf.mxu0
        %v3036 = vadd.f32 0.0, %v3035
        %v3037 = vpop.f32.mrf.mxu0
        %3038 = vdwg.mxu0
        %v3039 = vadd.f32 %v2331, %v2721
        %v3040 = vadd.f32 %v2332, %v2726
        %v3041 = vadd.f32 %v2333, %v2731
        %v3042 = vadd.f32 %v2334, %v2736
        %v3043 = vadd.f32 %v2335, %v2741
        %v3044 = vadd.f32 %v2336, %v2746
        %v3045 = vadd.f32 %v2337, %v2751
        %v3046 = vadd.f32 %v2338, %v2756
        %v3047 = vadd.f32 %v2339, %v2761
        %v3048 = vadd.f32 %v2340, %v2766
        %v3049 = vadd.f32 %v2341, %v2771
        %v3050 = vadd.f32 %v2342, %v2776
        %v3051 = vadd.f32 %v2343, %v2781
        %v3052 = vadd.f32 %v2344, %v2786
        %v3053 = vadd.f32 %v2345, %v2791
        %v3054 = vadd.f32 %v2346, %v2796
        %v3055 = vadd.f32 %v2347, %v2801
        %v3056 = vadd.f32 %v2348, %v2806
        %v3057 = vadd.f32 %v2349, %v2811
        %v3058 = vadd.f32 %v2350, %v2816
        %v3059 = vadd.f32 %v2351, %v2821
        %v3060 = vadd.f32 %v2352, %v2826
        %v3061 = vadd.f32 %v2353, %v2831
        %v3062 = vadd.f32 %v2354, %v2836
        %v3063 = vadd.f32 %v2355, %v2841
        %v3064 = vadd.f32 %v2356, %v2846
        %v3065 = vadd.f32 %v2357, %v2851
        %v3066 = vadd.f32 %v2358, %v2856
        %v3067 = vadd.f32 %v2359, %v2861
        %v3068 = vadd.f32 %v2360, %v2866
        %v3069 = vadd.f32 %v2361, %v2871
        %v3070 = vadd.f32 %v2362, %v2876
        %v3071 = vadd.f32 %v2363, %v2881
        %v3072 = vadd.f32 %v2364, %v2886
        %v3073 = vadd.f32 %v2365, %v2891
        %v3074 = vadd.f32 %v2366, %v2896
        %v3075 = vadd.f32 %v2367, %v2901
        %v3076 = vadd.f32 %v2368, %v2906
        %v3077 = vadd.f32 %v2369, %v2911
        %v3078 = vadd.f32 %v2370, %v2916
        %v3079 = vadd.f32 %v2371, %v2921
        %v3080 = vadd.f32 %v2372, %v2926
        %v3081 = vadd.f32 %v2373, %v2931
        %v3082 = vadd.f32 %v2374, %v2936
        %v3083 = vadd.f32 %v2375, %v2941
        %v3084 = vadd.f32 %v2376, %v2946
        %v3085 = vadd.f32 %v2377, %v2951
        %v3086 = vadd.f32 %v2378, %v2956
        %v3087 = vadd.f32 %v2379, %v2961
        %v3088 = vadd.f32 %v2380, %v2966
        %v3089 = vadd.f32 %v2381, %v2971
        %v3090 = vadd.f32 %v2382, %v2976
        %v3091 = vadd.f32 %v2383, %v2981
        %v3092 = vadd.f32 %v2384, %v2986
        %v3093 = vadd.f32 %v2385, %v2991
        %v3094 = vadd.f32 %v2386, %v2996
        %v3095 = vadd.f32 %v2387, %v3001
        %v3096 = vadd.f32 %v2388, %v3006
        %v3097 = vadd.f32 %v2389, %v3011
        %v3098 = vadd.f32 %v2390, %v3016
        %v3099 = vadd.f32 %v2391, %v3021
        %v3100 = vadd.f32 %v2392, %v3026
        %v3101 = vadd.f32 %v2393, %v3031
        %v3102 = vadd.f32 %v2394, %v3036
        %v3103 = vld [vmem:[#allocation2 + $0x18] sm:$0xff]
        %v3104 = vld [vmem:[#allocation2 + $0x20] sm:$0xff]
        %v3105 = vld [vmem:[#allocation2 + $0x28] sm:$0xff]
        %v3106 = vld [vmem:[#allocation2 + $0x30] sm:$0xff]
        %v3107 = vld [vmem:[#allocation2 + $0x38] sm:$0xff]
        %v3108 = vld [vmem:[#allocation2 + $0x40] sm:$0xff]
        %v3109 = vld [vmem:[#allocation2 + $0x48] sm:$0xff]
        %v3110 = vld [vmem:[#allocation2 + $0x50] sm:$0xff]
        %v3111 = vld [vmem:[#allocation2 + $0x58] sm:$0xff]
        %v3112 = vld [vmem:[#allocation2 + $0x60] sm:$0xff]
        %v3113 = vld [vmem:[#allocation2 + $0x68] sm:$0xff]
        %v3114 = vld [vmem:[#allocation2 + $0x70] sm:$0xff]
        %v3115 = vld [vmem:[#allocation2 + $0x78] sm:$0xff]
        %v3116 = vld [vmem:[#allocation2 + $0x80] sm:$0xff]
        %v3117 = vld [vmem:[#allocation2 + $0x88] sm:$0xff]
        %v3118 = vld [vmem:[#allocation2 + $0x90] sm:$0xff]
        %v3119 = vld [vmem:[#allocation2 + $0x98] sm:$0xff]
        %v3120 = vld [vmem:[#allocation2 + $0xa0] sm:$0xff]
        %v3121 = vld [vmem:[#allocation2 + $0xa8] sm:$0xff]
        %v3122 = vld [vmem:[#allocation2 + $0xb0] sm:$0xff]
        %v3123 = vld [vmem:[#allocation2 + $0xb8] sm:$0xff]
        %v3124 = vld [vmem:[#allocation2 + $0xc0] sm:$0xff]
        %v3125 = vld [vmem:[#allocation2 + $0xc8] sm:$0xff]
        %v3126 = vld [vmem:[#allocation2 + $0xd0] sm:$0xff]
        %v3127 = vld [vmem:[#allocation2 + $0xd8] sm:$0xff]
        %v3128 = vld [vmem:[#allocation2 + $0xe0] sm:$0xff]
        %v3129 = vld [vmem:[#allocation2 + $0xe8] sm:$0xff]
        %v3130 = vld [vmem:[#allocation2 + $0xf0] sm:$0xff]
        %v3131 = vld [vmem:[#allocation2 + $0xf8] sm:$0xff]
        %v3132 = vld [vmem:[#allocation2 + $0x100] sm:$0xff]
        %v3133 = vld [vmem:[#allocation2 + $0x108] sm:$0xff]
        %v3134 = vld [vmem:[#allocation2 + $0x110] sm:$0xff]
        %v3135 = vld [vmem:[#allocation2 + $0x118] sm:$0xff]
        %v3136 = vld [vmem:[#allocation2 + $0x120] sm:$0xff]
        %v3137 = vld [vmem:[#allocation2 + $0x128] sm:$0xff]
        %v3138 = vld [vmem:[#allocation2 + $0x130] sm:$0xff]
        %v3139 = vld [vmem:[#allocation2 + $0x138] sm:$0xff]
        %v3140 = vld [vmem:[#allocation2 + $0x140] sm:$0xff]
        %v3141 = vld [vmem:[#allocation2 + $0x148] sm:$0xff]
        %v3142 = vld [vmem:[#allocation2 + $0x150] sm:$0xff]
        %v3143 = vld [vmem:[#allocation2 + $0x158] sm:$0xff]
        %v3144 = vld [vmem:[#allocation2 + $0x160] sm:$0xff]
        %v3145 = vld [vmem:[#allocation2 + $0x168] sm:$0xff]
        %v3146 = vld [vmem:[#allocation2 + $0x170] sm:$0xff]
        %v3147 = vld [vmem:[#allocation2 + $0x178] sm:$0xff]
        %v3148 = vld [vmem:[#allocation2 + $0x180] sm:$0xff]
        %v3149 = vld [vmem:[#allocation2 + $0x188] sm:$0xff]
        %v3150 = vld [vmem:[#allocation2 + $0x190] sm:$0xff]
        %v3151 = vld [vmem:[#allocation2 + $0x198] sm:$0xff]
        %v3152 = vld [vmem:[#allocation2 + $0x1a0] sm:$0xff]
        %v3153 = vld [vmem:[#allocation2 + $0x1a8] sm:$0xff]
        %v3154 = vld [vmem:[#allocation2 + $0x1b0] sm:$0xff]
        %v3155 = vld [vmem:[#allocation2 + $0x1b8] sm:$0xff]
        %v3156 = vld [vmem:[#allocation2 + $0x1c0] sm:$0xff]
        %v3157 = vld [vmem:[#allocation2 + $0x1c8] sm:$0xff]
        %v3158 = vld [vmem:[#allocation2 + $0x1d0] sm:$0xff]
        %v3159 = vld [vmem:[#allocation2 + $0x1d8] sm:$0xff]
        %v3160 = vld [vmem:[#allocation2 + $0x1e0] sm:$0xff]
        %v3161 = vld [vmem:[#allocation2 + $0x1e8] sm:$0xff]
        %v3162 = vld [vmem:[#allocation2 + $0x1f0] sm:$0xff]
        %v3163 = vld [vmem:[#allocation2 + $0x1f8] sm:$0xff]
        %v3164 = vld [vmem:[#allocation2 + $0x200] sm:$0xff]
        %v3165 = vld [vmem:[#allocation2 + $0x208] sm:$0xff]
        %v3166 = vld [vmem:[#allocation2 + $0x210] sm:$0xff]
        %s3167 = scalar_lea.vmem %s2, 64
        %v3168 = vld [vmem:[%s3167] sm:$0xff]
        %v3169 = vld [vmem:[%s3167 + $0x8] sm:$0xff]
        %v3171 = vsel %vm532, %v3103, 0
        %v3174 = vsel %vm532, %v3104, 0
        %v3177 = vsel %vm532, %v3105, 0
        %v3180 = vsel %vm532, %v3106, 0
        %v3183 = vsel %vm532, %v3107, 0
        %v3186 = vsel %vm532, %v3108, 0
        %v3189 = vsel %vm532, %v3109, 0
        %v3192 = vsel %vm532, %v3110, 0
        %v3195 = vsel %vm532, %v3111, 0
        %v3198 = vsel %vm532, %v3112, 0
        %v3201 = vsel %vm532, %v3113, 0
        %v3204 = vsel %vm532, %v3114, 0
        %v3207 = vsel %vm532, %v3115, 0
        %v3210 = vsel %vm532, %v3116, 0
        %v3213 = vsel %vm532, %v3117, 0
        %v3216 = vsel %vm532, %v3118, 0
        %v3219 = vsel %vm532, %v3119, 0
        %v3222 = vsel %vm532, %v3120, 0
        %v3225 = vsel %vm532, %v3121, 0
        %v3228 = vsel %vm532, %v3122, 0
        %v3231 = vsel %vm532, %v3123, 0
        %v3234 = vsel %vm532, %v3124, 0
        %v3237 = vsel %vm532, %v3125, 0
        %v3240 = vsel %vm532, %v3126, 0
        %v3243 = vsel %vm532, %v3127, 0
        %v3246 = vsel %vm532, %v3128, 0
        %v3249 = vsel %vm532, %v3129, 0
        %v3252 = vsel %vm532, %v3130, 0
        %v3255 = vsel %vm532, %v3131, 0
        %v3258 = vsel %vm532, %v3132, 0
        %v3261 = vsel %vm532, %v3133, 0
        %v3264 = vsel %vm532, %v3134, 0
        %v3267 = vsel %vm532, %v3135, 0
        %v3270 = vsel %vm532, %v3136, 0
        %v3273 = vsel %vm532, %v3137, 0
        %v3276 = vsel %vm532, %v3138, 0
        %v3279 = vsel %vm532, %v3139, 0
        %v3282 = vsel %vm532, %v3140, 0
        %v3285 = vsel %vm532, %v3141, 0
        %v3288 = vsel %vm532, %v3142, 0
        %v3291 = vsel %vm532, %v3143, 0
        %v3294 = vsel %vm532, %v3144, 0
        %v3297 = vsel %vm532, %v3145, 0
        %v3300 = vsel %vm532, %v3146, 0
        %v3303 = vsel %vm532, %v3147, 0
        %v3306 = vsel %vm532, %v3148, 0
        %v3309 = vsel %vm532, %v3149, 0
        %v3312 = vsel %vm532, %v3150, 0
        %v3315 = vsel %vm532, %v3151, 0
        %v3318 = vsel %vm532, %v3152, 0
        %v3321 = vsel %vm532, %v3153, 0
        %v3324 = vsel %vm532, %v3154, 0
        %v3327 = vsel %vm532, %v3155, 0
        %v3330 = vsel %vm532, %v3156, 0
        %v3333 = vsel %vm532, %v3157, 0
        %v3336 = vsel %vm532, %v3158, 0
        %v3339 = vsel %vm532, %v3159, 0
        %v3342 = vsel %vm532, %v3160, 0
        %v3345 = vsel %vm532, %v3161, 0
        %v3348 = vsel %vm532, %v3162, 0
        %v3351 = vsel %vm532, %v3163, 0
        %v3354 = vsel %vm532, %v3164, 0
        %v3357 = vsel %vm532, %v3165, 0
        %v3360 = vsel %vm532, %v3166, 0
        %3362 = vmatprep.subr.mxu0 0.0
        %3363 = vmatpush1.msra.mxu0 0.0
        %3364 = vmatprep.subr.mxu0 0.0
        %3365 = vmatpush1.msra.mxu0 0.0
        %3366 = vmatprep.subr.mxu0 0.0
        %3367 = vmatpush1.msra.mxu0 0.0
        %3368 = vmatprep.subr.mxu0 0.0
        %3369 = vmatpush1.msra.mxu0 0.0
        %3370 = vmatprep.subr.mxu0 0.0
        %3371 = vmatpush1.msra.mxu0 0.0
        %3372 = vmatprep.subr.mxu0 0.0
        %3373 = vmatpush1.msra.mxu0 0.0
        %3374 = vmatprep.subr.mxu0 0.0
        %3375 = vmatpush1.msra.mxu0 0.0
        %3376 = vmatprep.subr.mxu0 0.0
        %3377 = vmatpush1.msra.mxu0 0.0
        %3378 = vmatprep.subr.mxu0 0.0
        %3379 = vmatpush1.msra.mxu0 0.0
        %3380 = vmatprep.subr.mxu0 0.0
        %3381 = vmatpush1.msra.mxu0 0.0
        %3382 = vmatprep.subr.mxu0 0.0
        %3383 = vmatpush1.msra.mxu0 0.0
        %3384 = vmatprep.subr.mxu0 0.0
        %3385 = vmatpush1.msra.mxu0 0.0
        %3386 = vmatprep.subr.mxu0 0.0
        %3387 = vmatpush1.msra.mxu0 0.0
        %3388 = vmatprep.subr.mxu0 0.0
        %3389 = vmatpush1.msra.mxu0 0.0
        %3390 = vmatprep.subr.mxu0 0.0
        %3391 = vmatpush1.msra.mxu0 %v3169
        %3392 = vmatprep.subr.mxu0 0.0
        %3393 = vmatpush1.msra.mxu0 %v3168
        %3394 = vmatprep.subr.mxu0 0.0
        %3395 = vmatpush2.msra.mxu0 0.0
        %3396 = vmatprep.subr.mxu0 0.0
        %3397 = vmatpush2.msra.mxu0 0.0
        %3398 = vmatprep.subr.mxu0 0.0
        %3399 = vmatpush2.msra.mxu0 0.0
        %3400 = vmatprep.subr.mxu0 0.0
        %3401 = vmatpush2.msra.mxu0 0.0
        %3402 = vmatprep.subr.mxu0 0.0
        %3403 = vmatpush2.msra.mxu0 0.0
        %3404 = vmatprep.subr.mxu0 0.0
        %3405 = vmatpush2.msra.mxu0 0.0
        %3406 = vmatprep.subr.mxu0 0.0
        %3407 = vmatpush2.msra.mxu0 0.0
        %3408 = vmatprep.subr.mxu0 0.0
        %3409 = vmatpush2.msra.mxu0 0.0
        %3410 = vmatprep.subr.mxu0 0.0
        %3411 = vmatpush2.msra.mxu0 0.0
        %3412 = vmatprep.subr.mxu0 0.0
        %3413 = vmatpush2.msra.mxu0 0.0
        %3414 = vmatprep.subr.mxu0 0.0
        %3415 = vmatpush2.msra.mxu0 0.0
        %3416 = vmatprep.subr.mxu0 0.0
        %3417 = vmatpush2.msra.mxu0 0.0
        %3418 = vmatprep.subr.mxu0 0.0
        %3419 = vmatpush2.msra.mxu0 0.0
        %3420 = vmatprep.subr.mxu0 0.0
        %3421 = vmatpush2.msra.mxu0 0.0
        %3422 = vmatprep.subr.mxu0 0.0
        %3423 = vmatpush2.msra.mxu0 0.0
        %3424 = vmatprep.subr.mxu0 0.0
        %3425 = vmatpush2.msra.mxu0 0.0
        %3426 = vmatprep.mubr.f32.mxu0 0.0
        %3427 = vmatmul.mubr.f32.gmra.mxu0 %v3171
        %v3428 = vpop.f32.mrf.mxu0
        %v3429 = vadd.f32 0.0, %v3428
        %v3430 = vpop.f32.mrf.mxu0
        %3431 = vmatprep.mubr.f32.mxu0 0.0
        %3432 = vmatmul.mubr.f32.gmra.mxu0 %v3174
        %v3433 = vpop.f32.mrf.mxu0
        %v3434 = vadd.f32 0.0, %v3433
        %v3435 = vpop.f32.mrf.mxu0
        %3436 = vmatprep.mubr.f32.mxu0 0.0
        %3437 = vmatmul.mubr.f32.gmra.mxu0 %v3177
        %v3438 = vpop.f32.mrf.mxu0
        %v3439 = vadd.f32 0.0, %v3438
        %v3440 = vpop.f32.mrf.mxu0
        %3441 = vmatprep.mubr.f32.mxu0 0.0
        %3442 = vmatmul.mubr.f32.gmra.mxu0 %v3180
        %v3443 = vpop.f32.mrf.mxu0
        %v3444 = vadd.f32 0.0, %v3443
        %v3445 = vpop.f32.mrf.mxu0
        %3446 = vmatprep.mubr.f32.mxu0 0.0
        %3447 = vmatmul.mubr.f32.gmra.mxu0 %v3183
        %v3448 = vpop.f32.mrf.mxu0
        %v3449 = vadd.f32 0.0, %v3448
        %v3450 = vpop.f32.mrf.mxu0
        %3451 = vmatprep.mubr.f32.mxu0 0.0
        %3452 = vmatmul.mubr.f32.gmra.mxu0 %v3186
        %v3453 = vpop.f32.mrf.mxu0
        %v3454 = vadd.f32 0.0, %v3453
        %v3455 = vpop.f32.mrf.mxu0
        %3456 = vmatprep.mubr.f32.mxu0 0.0
        %3457 = vmatmul.mubr.f32.gmra.mxu0 %v3189
        %v3458 = vpop.f32.mrf.mxu0
        %v3459 = vadd.f32 0.0, %v3458
        %v3460 = vpop.f32.mrf.mxu0
        %3461 = vmatprep.mubr.f32.mxu0 0.0
        %3462 = vmatmul.mubr.f32.gmra.mxu0 %v3192
        %v3463 = vpop.f32.mrf.mxu0
        %v3464 = vadd.f32 0.0, %v3463
        %v3465 = vpop.f32.mrf.mxu0
        %3466 = vmatprep.mubr.f32.mxu0 0.0
        %3467 = vmatmul.mubr.f32.gmra.mxu0 %v3195
        %v3468 = vpop.f32.mrf.mxu0
        %v3469 = vadd.f32 0.0, %v3468
        %v3470 = vpop.f32.mrf.mxu0
        %3471 = vmatprep.mubr.f32.mxu0 0.0
        %3472 = vmatmul.mubr.f32.gmra.mxu0 %v3198
        %v3473 = vpop.f32.mrf.mxu0
        %v3474 = vadd.f32 0.0, %v3473
        %v3475 = vpop.f32.mrf.mxu0
        %3476 = vmatprep.mubr.f32.mxu0 0.0
        %3477 = vmatmul.mubr.f32.gmra.mxu0 %v3201
        %v3478 = vpop.f32.mrf.mxu0
        %v3479 = vadd.f32 0.0, %v3478
        %v3480 = vpop.f32.mrf.mxu0
        %3481 = vmatprep.mubr.f32.mxu0 0.0
        %3482 = vmatmul.mubr.f32.gmra.mxu0 %v3204
        %v3483 = vpop.f32.mrf.mxu0
        %v3484 = vadd.f32 0.0, %v3483
        %v3485 = vpop.f32.mrf.mxu0
        %3486 = vmatprep.mubr.f32.mxu0 0.0
        %3487 = vmatmul.mubr.f32.gmra.mxu0 %v3207
        %v3488 = vpop.f32.mrf.mxu0
        %v3489 = vadd.f32 0.0, %v3488
        %v3490 = vpop.f32.mrf.mxu0
        %3491 = vmatprep.mubr.f32.mxu0 0.0
        %3492 = vmatmul.mubr.f32.gmra.mxu0 %v3210
        %v3493 = vpop.f32.mrf.mxu0
        %v3494 = vadd.f32 0.0, %v3493
        %v3495 = vpop.f32.mrf.mxu0
        %3496 = vmatprep.mubr.f32.mxu0 0.0
        %3497 = vmatmul.mubr.f32.gmra.mxu0 %v3213
        %v3498 = vpop.f32.mrf.mxu0
        %v3499 = vadd.f32 0.0, %v3498
        %v3500 = vpop.f32.mrf.mxu0
        %3501 = vmatprep.mubr.f32.mxu0 0.0
        %3502 = vmatmul.mubr.f32.gmra.mxu0 %v3216
        %v3503 = vpop.f32.mrf.mxu0
        %v3504 = vadd.f32 0.0, %v3503
        %v3505 = vpop.f32.mrf.mxu0
        %3506 = vmatprep.mubr.f32.mxu0 0.0
        %3507 = vmatmul.mubr.f32.gmra.mxu0 %v3219
        %v3508 = vpop.f32.mrf.mxu0
        %v3509 = vadd.f32 0.0, %v3508
        %v3510 = vpop.f32.mrf.mxu0
        %3511 = vmatprep.mubr.f32.mxu0 0.0
        %3512 = vmatmul.mubr.f32.gmra.mxu0 %v3222
        %v3513 = vpop.f32.mrf.mxu0
        %v3514 = vadd.f32 0.0, %v3513
        %v3515 = vpop.f32.mrf.mxu0
        %3516 = vmatprep.mubr.f32.mxu0 0.0
        %3517 = vmatmul.mubr.f32.gmra.mxu0 %v3225
        %v3518 = vpop.f32.mrf.mxu0
        %v3519 = vadd.f32 0.0, %v3518
        %v3520 = vpop.f32.mrf.mxu0
        %3521 = vmatprep.mubr.f32.mxu0 0.0
        %3522 = vmatmul.mubr.f32.gmra.mxu0 %v3228
        %v3523 = vpop.f32.mrf.mxu0
        %v3524 = vadd.f32 0.0, %v3523
        %v3525 = vpop.f32.mrf.mxu0
        %3526 = vmatprep.mubr.f32.mxu0 0.0
        %3527 = vmatmul.mubr.f32.gmra.mxu0 %v3231
        %v3528 = vpop.f32.mrf.mxu0
        %v3529 = vadd.f32 0.0, %v3528
        %v3530 = vpop.f32.mrf.mxu0
        %3531 = vmatprep.mubr.f32.mxu0 0.0
        %3532 = vmatmul.mubr.f32.gmra.mxu0 %v3234
        %v3533 = vpop.f32.mrf.mxu0
        %v3534 = vadd.f32 0.0, %v3533
        %v3535 = vpop.f32.mrf.mxu0
        %3536 = vmatprep.mubr.f32.mxu0 0.0
        %3537 = vmatmul.mubr.f32.gmra.mxu0 %v3237
        %v3538 = vpop.f32.mrf.mxu0
        %v3539 = vadd.f32 0.0, %v3538
        %v3540 = vpop.f32.mrf.mxu0
        %3541 = vmatprep.mubr.f32.mxu0 0.0
        %3542 = vmatmul.mubr.f32.gmra.mxu0 %v3240
        %v3543 = vpop.f32.mrf.mxu0
        %v3544 = vadd.f32 0.0, %v3543
        %v3545 = vpop.f32.mrf.mxu0
        %3546 = vmatprep.mubr.f32.mxu0 0.0
        %3547 = vmatmul.mubr.f32.gmra.mxu0 %v3243
        %v3548 = vpop.f32.mrf.mxu0
        %v3549 = vadd.f32 0.0, %v3548
        %v3550 = vpop.f32.mrf.mxu0
        %3551 = vmatprep.mubr.f32.mxu0 0.0
        %3552 = vmatmul.mubr.f32.gmra.mxu0 %v3246
        %v3553 = vpop.f32.mrf.mxu0
        %v3554 = vadd.f32 0.0, %v3553
        %v3555 = vpop.f32.mrf.mxu0
        %3556 = vmatprep.mubr.f32.mxu0 0.0
        %3557 = vmatmul.mubr.f32.gmra.mxu0 %v3249
        %v3558 = vpop.f32.mrf.mxu0
        %v3559 = vadd.f32 0.0, %v3558
        %v3560 = vpop.f32.mrf.mxu0
        %3561 = vmatprep.mubr.f32.mxu0 0.0
        %3562 = vmatmul.mubr.f32.gmra.mxu0 %v3252
        %v3563 = vpop.f32.mrf.mxu0
        %v3564 = vadd.f32 0.0, %v3563
        %v3565 = vpop.f32.mrf.mxu0
        %3566 = vmatprep.mubr.f32.mxu0 0.0
        %3567 = vmatmul.mubr.f32.gmra.mxu0 %v3255
        %v3568 = vpop.f32.mrf.mxu0
        %v3569 = vadd.f32 0.0, %v3568
        %v3570 = vpop.f32.mrf.mxu0
        %3571 = vmatprep.mubr.f32.mxu0 0.0
        %3572 = vmatmul.mubr.f32.gmra.mxu0 %v3258
        %v3573 = vpop.f32.mrf.mxu0
        %v3574 = vadd.f32 0.0, %v3573
        %v3575 = vpop.f32.mrf.mxu0
        %3576 = vmatprep.mubr.f32.mxu0 0.0
        %3577 = vmatmul.mubr.f32.gmra.mxu0 %v3261
        %v3578 = vpop.f32.mrf.mxu0
        %v3579 = vadd.f32 0.0, %v3578
        %v3580 = vpop.f32.mrf.mxu0
        %3581 = vmatprep.mubr.f32.mxu0 0.0
        %3582 = vmatmul.mubr.f32.gmra.mxu0 %v3264
        %v3583 = vpop.f32.mrf.mxu0
        %v3584 = vadd.f32 0.0, %v3583
        %v3585 = vpop.f32.mrf.mxu0
        %3586 = vmatprep.mubr.f32.mxu0 0.0
        %3587 = vmatmul.mubr.f32.gmra.mxu0 %v3267
        %v3588 = vpop.f32.mrf.mxu0
        %v3589 = vadd.f32 0.0, %v3588
        %v3590 = vpop.f32.mrf.mxu0
        %3591 = vmatprep.mubr.f32.mxu0 0.0
        %3592 = vmatmul.mubr.f32.gmra.mxu0 %v3270
        %v3593 = vpop.f32.mrf.mxu0
        %v3594 = vadd.f32 0.0, %v3593
        %v3595 = vpop.f32.mrf.mxu0
        %3596 = vmatprep.mubr.f32.mxu0 0.0
        %3597 = vmatmul.mubr.f32.gmra.mxu0 %v3273
        %v3598 = vpop.f32.mrf.mxu0
        %v3599 = vadd.f32 0.0, %v3598
        %v3600 = vpop.f32.mrf.mxu0
        %3601 = vmatprep.mubr.f32.mxu0 0.0
        %3602 = vmatmul.mubr.f32.gmra.mxu0 %v3276
        %v3603 = vpop.f32.mrf.mxu0
        %v3604 = vadd.f32 0.0, %v3603
        %v3605 = vpop.f32.mrf.mxu0
        %3606 = vmatprep.mubr.f32.mxu0 0.0
        %3607 = vmatmul.mubr.f32.gmra.mxu0 %v3279
        %v3608 = vpop.f32.mrf.mxu0
        %v3609 = vadd.f32 0.0, %v3608
        %v3610 = vpop.f32.mrf.mxu0
        %3611 = vmatprep.mubr.f32.mxu0 0.0
        %3612 = vmatmul.mubr.f32.gmra.mxu0 %v3282
        %v3613 = vpop.f32.mrf.mxu0
        %v3614 = vadd.f32 0.0, %v3613
        %v3615 = vpop.f32.mrf.mxu0
        %3616 = vmatprep.mubr.f32.mxu0 0.0
        %3617 = vmatmul.mubr.f32.gmra.mxu0 %v3285
        %v3618 = vpop.f32.mrf.mxu0
        %v3619 = vadd.f32 0.0, %v3618
        %v3620 = vpop.f32.mrf.mxu0
        %3621 = vmatprep.mubr.f32.mxu0 0.0
        %3622 = vmatmul.mubr.f32.gmra.mxu0 %v3288
        %v3623 = vpop.f32.mrf.mxu0
        %v3624 = vadd.f32 0.0, %v3623
        %v3625 = vpop.f32.mrf.mxu0
        %3626 = vmatprep.mubr.f32.mxu0 0.0
        %3627 = vmatmul.mubr.f32.gmra.mxu0 %v3291
        %v3628 = vpop.f32.mrf.mxu0
        %v3629 = vadd.f32 0.0, %v3628
        %v3630 = vpop.f32.mrf.mxu0
        %3631 = vmatprep.mubr.f32.mxu0 0.0
        %3632 = vmatmul.mubr.f32.gmra.mxu0 %v3294
        %v3633 = vpop.f32.mrf.mxu0
        %v3634 = vadd.f32 0.0, %v3633
        %v3635 = vpop.f32.mrf.mxu0
        %3636 = vmatprep.mubr.f32.mxu0 0.0
        %3637 = vmatmul.mubr.f32.gmra.mxu0 %v3297
        %v3638 = vpop.f32.mrf.mxu0
        %v3639 = vadd.f32 0.0, %v3638
        %v3640 = vpop.f32.mrf.mxu0
        %3641 = vmatprep.mubr.f32.mxu0 0.0
        %3642 = vmatmul.mubr.f32.gmra.mxu0 %v3300
        %v3643 = vpop.f32.mrf.mxu0
        %v3644 = vadd.f32 0.0, %v3643
        %v3645 = vpop.f32.mrf.mxu0
        %3646 = vmatprep.mubr.f32.mxu0 0.0
        %3647 = vmatmul.mubr.f32.gmra.mxu0 %v3303
        %v3648 = vpop.f32.mrf.mxu0
        %v3649 = vadd.f32 0.0, %v3648
        %v3650 = vpop.f32.mrf.mxu0
        %3651 = vmatprep.mubr.f32.mxu0 0.0
        %3652 = vmatmul.mubr.f32.gmra.mxu0 %v3306
        %v3653 = vpop.f32.mrf.mxu0
        %v3654 = vadd.f32 0.0, %v3653
        %v3655 = vpop.f32.mrf.mxu0
        %3656 = vmatprep.mubr.f32.mxu0 0.0
        %3657 = vmatmul.mubr.f32.gmra.mxu0 %v3309
        %v3658 = vpop.f32.mrf.mxu0
        %v3659 = vadd.f32 0.0, %v3658
        %v3660 = vpop.f32.mrf.mxu0
        %3661 = vmatprep.mubr.f32.mxu0 0.0
        %3662 = vmatmul.mubr.f32.gmra.mxu0 %v3312
        %v3663 = vpop.f32.mrf.mxu0
        %v3664 = vadd.f32 0.0, %v3663
        %v3665 = vpop.f32.mrf.mxu0
        %3666 = vmatprep.mubr.f32.mxu0 0.0
        %3667 = vmatmul.mubr.f32.gmra.mxu0 %v3315
        %v3668 = vpop.f32.mrf.mxu0
        %v3669 = vadd.f32 0.0, %v3668
        %v3670 = vpop.f32.mrf.mxu0
        %3671 = vmatprep.mubr.f32.mxu0 0.0
        %3672 = vmatmul.mubr.f32.gmra.mxu0 %v3318
        %v3673 = vpop.f32.mrf.mxu0
        %v3674 = vadd.f32 0.0, %v3673
        %v3675 = vpop.f32.mrf.mxu0
        %3676 = vmatprep.mubr.f32.mxu0 0.0
        %3677 = vmatmul.mubr.f32.gmra.mxu0 %v3321
        %v3678 = vpop.f32.mrf.mxu0
        %v3679 = vadd.f32 0.0, %v3678
        %v3680 = vpop.f32.mrf.mxu0
        %3681 = vmatprep.mubr.f32.mxu0 0.0
        %3682 = vmatmul.mubr.f32.gmra.mxu0 %v3324
        %v3683 = vpop.f32.mrf.mxu0
        %v3684 = vadd.f32 0.0, %v3683
        %v3685 = vpop.f32.mrf.mxu0
        %3686 = vmatprep.mubr.f32.mxu0 0.0
        %3687 = vmatmul.mubr.f32.gmra.mxu0 %v3327
        %v3688 = vpop.f32.mrf.mxu0
        %v3689 = vadd.f32 0.0, %v3688
        %v3690 = vpop.f32.mrf.mxu0
        %3691 = vmatprep.mubr.f32.mxu0 0.0
        %3692 = vmatmul.mubr.f32.gmra.mxu0 %v3330
        %v3693 = vpop.f32.mrf.mxu0
        %v3694 = vadd.f32 0.0, %v3693
        %v3695 = vpop.f32.mrf.mxu0
        %3696 = vmatprep.mubr.f32.mxu0 0.0
        %3697 = vmatmul.mubr.f32.gmra.mxu0 %v3333
        %v3698 = vpop.f32.mrf.mxu0
        %v3699 = vadd.f32 0.0, %v3698
        %v3700 = vpop.f32.mrf.mxu0
        %3701 = vmatprep.mubr.f32.mxu0 0.0
        %3702 = vmatmul.mubr.f32.gmra.mxu0 %v3336
        %v3703 = vpop.f32.mrf.mxu0
        %v3704 = vadd.f32 0.0, %v3703
        %v3705 = vpop.f32.mrf.mxu0
        %3706 = vmatprep.mubr.f32.mxu0 0.0
        %3707 = vmatmul.mubr.f32.gmra.mxu0 %v3339
        %v3708 = vpop.f32.mrf.mxu0
        %v3709 = vadd.f32 0.0, %v3708
        %v3710 = vpop.f32.mrf.mxu0
        %3711 = vmatprep.mubr.f32.mxu0 0.0
        %3712 = vmatmul.mubr.f32.gmra.mxu0 %v3342
        %v3713 = vpop.f32.mrf.mxu0
        %v3714 = vadd.f32 0.0, %v3713
        %v3715 = vpop.f32.mrf.mxu0
        %3716 = vmatprep.mubr.f32.mxu0 0.0
        %3717 = vmatmul.mubr.f32.gmra.mxu0 %v3345
        %v3718 = vpop.f32.mrf.mxu0
        %v3719 = vadd.f32 0.0, %v3718
        %v3720 = vpop.f32.mrf.mxu0
        %3721 = vmatprep.mubr.f32.mxu0 0.0
        %3722 = vmatmul.mubr.f32.gmra.mxu0 %v3348
        %v3723 = vpop.f32.mrf.mxu0
        %v3724 = vadd.f32 0.0, %v3723
        %v3725 = vpop.f32.mrf.mxu0
        %3726 = vmatprep.mubr.f32.mxu0 0.0
        %3727 = vmatmul.mubr.f32.gmra.mxu0 %v3351
        %v3728 = vpop.f32.mrf.mxu0
        %v3729 = vadd.f32 0.0, %v3728
        %v3730 = vpop.f32.mrf.mxu0
        %3731 = vmatprep.mubr.f32.mxu0 0.0
        %3732 = vmatmul.mubr.f32.gmra.mxu0 %v3354
        %v3733 = vpop.f32.mrf.mxu0
        %v3734 = vadd.f32 0.0, %v3733
        %v3735 = vpop.f32.mrf.mxu0
        %3736 = vmatprep.mubr.f32.mxu0 0.0
        %3737 = vmatmul.mubr.f32.gmra.mxu0 %v3357
        %v3738 = vpop.f32.mrf.mxu0
        %v3739 = vadd.f32 0.0, %v3738
        %v3740 = vpop.f32.mrf.mxu0
        %3741 = vmatprep.mubr.f32.mxu0 0.0
        %3742 = vmatmul.mubr.f32.gmra.mxu0 %v3360
        %v3743 = vpop.f32.mrf.mxu0
        %v3744 = vadd.f32 0.0, %v3743
        %v3745 = vpop.f32.mrf.mxu0
        %3746 = vdwg.mxu0
        %v3747 = vadd.f32 %v3039, %v3429
        %v3748 = vadd.f32 %v3040, %v3434
        %v3749 = vadd.f32 %v3041, %v3439
        %v3750 = vadd.f32 %v3042, %v3444
        %v3751 = vadd.f32 %v3043, %v3449
        %v3752 = vadd.f32 %v3044, %v3454
        %v3753 = vadd.f32 %v3045, %v3459
        %v3754 = vadd.f32 %v3046, %v3464
        %v3755 = vadd.f32 %v3047, %v3469
        %v3756 = vadd.f32 %v3048, %v3474
        %v3757 = vadd.f32 %v3049, %v3479
        %v3758 = vadd.f32 %v3050, %v3484
        %v3759 = vadd.f32 %v3051, %v3489
        %v3760 = vadd.f32 %v3052, %v3494
        %v3761 = vadd.f32 %v3053, %v3499
        %v3762 = vadd.f32 %v3054, %v3504
        %v3763 = vadd.f32 %v3055, %v3509
        %v3764 = vadd.f32 %v3056, %v3514
        %v3765 = vadd.f32 %v3057, %v3519
        %v3766 = vadd.f32 %v3058, %v3524
        %v3767 = vadd.f32 %v3059, %v3529
        %v3768 = vadd.f32 %v3060, %v3534
        %v3769 = vadd.f32 %v3061, %v3539
        %v3770 = vadd.f32 %v3062, %v3544
        %v3771 = vadd.f32 %v3063, %v3549
        %v3772 = vadd.f32 %v3064, %v3554
        %v3773 = vadd.f32 %v3065, %v3559
        %v3774 = vadd.f32 %v3066, %v3564
        %v3775 = vadd.f32 %v3067, %v3569
        %v3776 = vadd.f32 %v3068, %v3574
        %v3777 = vadd.f32 %v3069, %v3579
        %v3778 = vadd.f32 %v3070, %v3584
        %v3779 = vadd.f32 %v3071, %v3589
        %v3780 = vadd.f32 %v3072, %v3594
        %v3781 = vadd.f32 %v3073, %v3599
        %v3782 = vadd.f32 %v3074, %v3604
        %v3783 = vadd.f32 %v3075, %v3609
        %v3784 = vadd.f32 %v3076, %v3614
        %v3785 = vadd.f32 %v3077, %v3619
        %v3786 = vadd.f32 %v3078, %v3624
        %v3787 = vadd.f32 %v3079, %v3629
        %v3788 = vadd.f32 %v3080, %v3634
        %v3789 = vadd.f32 %v3081, %v3639
        %v3790 = vadd.f32 %v3082, %v3644
        %v3791 = vadd.f32 %v3083, %v3649
        %v3792 = vadd.f32 %v3084, %v3654
        %v3793 = vadd.f32 %v3085, %v3659
        %v3794 = vadd.f32 %v3086, %v3664
        %v3795 = vadd.f32 %v3087, %v3669
        %v3796 = vadd.f32 %v3088, %v3674
        %v3797 = vadd.f32 %v3089, %v3679
        %v3798 = vadd.f32 %v3090, %v3684
        %v3799 = vadd.f32 %v3091, %v3689
        %v3800 = vadd.f32 %v3092, %v3694
        %v3801 = vadd.f32 %v3093, %v3699
        %v3802 = vadd.f32 %v3094, %v3704
        %v3803 = vadd.f32 %v3095, %v3709
        %v3804 = vadd.f32 %v3096, %v3714
        %v3805 = vadd.f32 %v3097, %v3719
        %v3806 = vadd.f32 %v3098, %v3724
        %v3807 = vadd.f32 %v3099, %v3729
        %v3808 = vadd.f32 %v3100, %v3734
        %v3809 = vadd.f32 %v3101, %v3739
        %v3810 = vadd.f32 %v3102, %v3744
        %v3811 = vld [vmem:[#allocation2 + $0x19] sm:$0xff]
        %v3812 = vld [vmem:[#allocation2 + $0x21] sm:$0xff]
        %v3813 = vld [vmem:[#allocation2 + $0x29] sm:$0xff]
        %v3814 = vld [vmem:[#allocation2 + $0x31] sm:$0xff]
        %v3815 = vld [vmem:[#allocation2 + $0x39] sm:$0xff]
        %v3816 = vld [vmem:[#allocation2 + $0x41] sm:$0xff]
        %v3817 = vld [vmem:[#allocation2 + $0x49] sm:$0xff]
        %v3818 = vld [vmem:[#allocation2 + $0x51] sm:$0xff]
        %v3819 = vld [vmem:[#allocation2 + $0x59] sm:$0xff]
        %v3820 = vld [vmem:[#allocation2 + $0x61] sm:$0xff]
        %v3821 = vld [vmem:[#allocation2 + $0x69] sm:$0xff]
        %v3822 = vld [vmem:[#allocation2 + $0x71] sm:$0xff]
        %v3823 = vld [vmem:[#allocation2 + $0x79] sm:$0xff]
        %v3824 = vld [vmem:[#allocation2 + $0x81] sm:$0xff]
        %v3825 = vld [vmem:[#allocation2 + $0x89] sm:$0xff]
        %v3826 = vld [vmem:[#allocation2 + $0x91] sm:$0xff]
        %v3827 = vld [vmem:[#allocation2 + $0x99] sm:$0xff]
        %v3828 = vld [vmem:[#allocation2 + $0xa1] sm:$0xff]
        %v3829 = vld [vmem:[#allocation2 + $0xa9] sm:$0xff]
        %v3830 = vld [vmem:[#allocation2 + $0xb1] sm:$0xff]
        %v3831 = vld [vmem:[#allocation2 + $0xb9] sm:$0xff]
        %v3832 = vld [vmem:[#allocation2 + $0xc1] sm:$0xff]
        %v3833 = vld [vmem:[#allocation2 + $0xc9] sm:$0xff]
        %v3834 = vld [vmem:[#allocation2 + $0xd1] sm:$0xff]
        %v3835 = vld [vmem:[#allocation2 + $0xd9] sm:$0xff]
        %v3836 = vld [vmem:[#allocation2 + $0xe1] sm:$0xff]
        %v3837 = vld [vmem:[#allocation2 + $0xe9] sm:$0xff]
        %v3838 = vld [vmem:[#allocation2 + $0xf1] sm:$0xff]
        %v3839 = vld [vmem:[#allocation2 + $0xf9] sm:$0xff]
        %v3840 = vld [vmem:[#allocation2 + $0x101] sm:$0xff]
        %v3841 = vld [vmem:[#allocation2 + $0x109] sm:$0xff]
        %v3842 = vld [vmem:[#allocation2 + $0x111] sm:$0xff]
        %v3843 = vld [vmem:[#allocation2 + $0x119] sm:$0xff]
        %v3844 = vld [vmem:[#allocation2 + $0x121] sm:$0xff]
        %v3845 = vld [vmem:[#allocation2 + $0x129] sm:$0xff]
        %v3846 = vld [vmem:[#allocation2 + $0x131] sm:$0xff]
        %v3847 = vld [vmem:[#allocation2 + $0x139] sm:$0xff]
        %v3848 = vld [vmem:[#allocation2 + $0x141] sm:$0xff]
        %v3849 = vld [vmem:[#allocation2 + $0x149] sm:$0xff]
        %v3850 = vld [vmem:[#allocation2 + $0x151] sm:$0xff]
        %v3851 = vld [vmem:[#allocation2 + $0x159] sm:$0xff]
        %v3852 = vld [vmem:[#allocation2 + $0x161] sm:$0xff]
        %v3853 = vld [vmem:[#allocation2 + $0x169] sm:$0xff]
        %v3854 = vld [vmem:[#allocation2 + $0x171] sm:$0xff]
        %v3855 = vld [vmem:[#allocation2 + $0x179] sm:$0xff]
        %v3856 = vld [vmem:[#allocation2 + $0x181] sm:$0xff]
        %v3857 = vld [vmem:[#allocation2 + $0x189] sm:$0xff]
        %v3858 = vld [vmem:[#allocation2 + $0x191] sm:$0xff]
        %v3859 = vld [vmem:[#allocation2 + $0x199] sm:$0xff]
        %v3860 = vld [vmem:[#allocation2 + $0x1a1] sm:$0xff]
        %v3861 = vld [vmem:[#allocation2 + $0x1a9] sm:$0xff]
        %v3862 = vld [vmem:[#allocation2 + $0x1b1] sm:$0xff]
        %v3863 = vld [vmem:[#allocation2 + $0x1b9] sm:$0xff]
        %v3864 = vld [vmem:[#allocation2 + $0x1c1] sm:$0xff]
        %v3865 = vld [vmem:[#allocation2 + $0x1c9] sm:$0xff]
        %v3866 = vld [vmem:[#allocation2 + $0x1d1] sm:$0xff]
        %v3867 = vld [vmem:[#allocation2 + $0x1d9] sm:$0xff]
        %v3868 = vld [vmem:[#allocation2 + $0x1e1] sm:$0xff]
        %v3869 = vld [vmem:[#allocation2 + $0x1e9] sm:$0xff]
        %v3870 = vld [vmem:[#allocation2 + $0x1f1] sm:$0xff]
        %v3871 = vld [vmem:[#allocation2 + $0x1f9] sm:$0xff]
        %v3872 = vld [vmem:[#allocation2 + $0x201] sm:$0xff]
        %v3873 = vld [vmem:[#allocation2 + $0x209] sm:$0xff]
        %v3874 = vld [vmem:[#allocation2 + $0x211] sm:$0xff]
        %s3875 = scalar_lea.vmem %s2, 80
        %v3876 = vld [vmem:[%s3875] sm:$0xff]
        %v3877 = vld [vmem:[%s3875 + $0x8] sm:$0xff]
        %v3879 = vsel %vm532, %v3811, 0
        %v3882 = vsel %vm532, %v3812, 0
        %v3885 = vsel %vm532, %v3813, 0
        %v3888 = vsel %vm532, %v3814, 0
        %v3891 = vsel %vm532, %v3815, 0
        %v3894 = vsel %vm532, %v3816, 0
        %v3897 = vsel %vm532, %v3817, 0
        %v3900 = vsel %vm532, %v3818, 0
        %v3903 = vsel %vm532, %v3819, 0
        %v3906 = vsel %vm532, %v3820, 0
        %v3909 = vsel %vm532, %v3821, 0
        %v3912 = vsel %vm532, %v3822, 0
        %v3915 = vsel %vm532, %v3823, 0
        %v3918 = vsel %vm532, %v3824, 0
        %v3921 = vsel %vm532, %v3825, 0
        %v3924 = vsel %vm532, %v3826, 0
        %v3927 = vsel %vm532, %v3827, 0
        %v3930 = vsel %vm532, %v3828, 0
        %v3933 = vsel %vm532, %v3829, 0
        %v3936 = vsel %vm532, %v3830, 0
        %v3939 = vsel %vm532, %v3831, 0
        %v3942 = vsel %vm532, %v3832, 0
        %v3945 = vsel %vm532, %v3833, 0
        %v3948 = vsel %vm532, %v3834, 0
        %v3951 = vsel %vm532, %v3835, 0
        %v3954 = vsel %vm532, %v3836, 0
        %v3957 = vsel %vm532, %v3837, 0
        %v3960 = vsel %vm532, %v3838, 0
        %v3963 = vsel %vm532, %v3839, 0
        %v3966 = vsel %vm532, %v3840, 0
        %v3969 = vsel %vm532, %v3841, 0
        %v3972 = vsel %vm532, %v3842, 0
        %v3975 = vsel %vm532, %v3843, 0
        %v3978 = vsel %vm532, %v3844, 0
        %v3981 = vsel %vm532, %v3845, 0
        %v3984 = vsel %vm532, %v3846, 0
        %v3987 = vsel %vm532, %v3847, 0
        %v3990 = vsel %vm532, %v3848, 0
        %v3993 = vsel %vm532, %v3849, 0
        %v3996 = vsel %vm532, %v3850, 0
        %v3999 = vsel %vm532, %v3851, 0
        %v4002 = vsel %vm532, %v3852, 0
        %v4005 = vsel %vm532, %v3853, 0
        %v4008 = vsel %vm532, %v3854, 0
        %v4011 = vsel %vm532, %v3855, 0
        %v4014 = vsel %vm532, %v3856, 0
        %v4017 = vsel %vm532, %v3857, 0
        %v4020 = vsel %vm532, %v3858, 0
        %v4023 = vsel %vm532, %v3859, 0
        %v4026 = vsel %vm532, %v3860, 0
        %v4029 = vsel %vm532, %v3861, 0
        %v4032 = vsel %vm532, %v3862, 0
        %v4035 = vsel %vm532, %v3863, 0
        %v4038 = vsel %vm532, %v3864, 0
        %v4041 = vsel %vm532, %v3865, 0
        %v4044 = vsel %vm532, %v3866, 0
        %v4047 = vsel %vm532, %v3867, 0
        %v4050 = vsel %vm532, %v3868, 0
        %v4053 = vsel %vm532, %v3869, 0
        %v4056 = vsel %vm532, %v3870, 0
        %v4059 = vsel %vm532, %v3871, 0
        %v4062 = vsel %vm532, %v3872, 0
        %v4065 = vsel %vm532, %v3873, 0
        %v4068 = vsel %vm532, %v3874, 0
        %4070 = vmatprep.subr.mxu0 0.0
        %4071 = vmatpush1.msra.mxu0 0.0
        %4072 = vmatprep.subr.mxu0 0.0
        %4073 = vmatpush1.msra.mxu0 0.0
        %4074 = vmatprep.subr.mxu0 0.0
        %4075 = vmatpush1.msra.mxu0 0.0
        %4076 = vmatprep.subr.mxu0 0.0
        %4077 = vmatpush1.msra.mxu0 0.0
        %4078 = vmatprep.subr.mxu0 0.0
        %4079 = vmatpush1.msra.mxu0 0.0
        %4080 = vmatprep.subr.mxu0 0.0
        %4081 = vmatpush1.msra.mxu0 0.0
        %4082 = vmatprep.subr.mxu0 0.0
        %4083 = vmatpush1.msra.mxu0 0.0
        %4084 = vmatprep.subr.mxu0 0.0
        %4085 = vmatpush1.msra.mxu0 0.0
        %4086 = vmatprep.subr.mxu0 0.0
        %4087 = vmatpush1.msra.mxu0 0.0
        %4088 = vmatprep.subr.mxu0 0.0
        %4089 = vmatpush1.msra.mxu0 0.0
        %4090 = vmatprep.subr.mxu0 0.0
        %4091 = vmatpush1.msra.mxu0 0.0
        %4092 = vmatprep.subr.mxu0 0.0
        %4093 = vmatpush1.msra.mxu0 0.0
        %4094 = vmatprep.subr.mxu0 0.0
        %4095 = vmatpush1.msra.mxu0 0.0
        %4096 = vmatprep.subr.mxu0 0.0
        %4097 = vmatpush1.msra.mxu0 0.0
        %4098 = vmatprep.subr.mxu0 0.0
        %4099 = vmatpush1.msra.mxu0 %v3877
        %4100 = vmatprep.subr.mxu0 0.0
        %4101 = vmatpush1.msra.mxu0 %v3876
        %4102 = vmatprep.subr.mxu0 0.0
        %4103 = vmatpush2.msra.mxu0 0.0
        %4104 = vmatprep.subr.mxu0 0.0
        %4105 = vmatpush2.msra.mxu0 0.0
        %4106 = vmatprep.subr.mxu0 0.0
        %4107 = vmatpush2.msra.mxu0 0.0
        %4108 = vmatprep.subr.mxu0 0.0
        %4109 = vmatpush2.msra.mxu0 0.0
        %4110 = vmatprep.subr.mxu0 0.0
        %4111 = vmatpush2.msra.mxu0 0.0
        %4112 = vmatprep.subr.mxu0 0.0
        %4113 = vmatpush2.msra.mxu0 0.0
        %4114 = vmatprep.subr.mxu0 0.0
        %4115 = vmatpush2.msra.mxu0 0.0
        %4116 = vmatprep.subr.mxu0 0.0
        %4117 = vmatpush2.msra.mxu0 0.0
        %4118 = vmatprep.subr.mxu0 0.0
        %4119 = vmatpush2.msra.mxu0 0.0
        %4120 = vmatprep.subr.mxu0 0.0
        %4121 = vmatpush2.msra.mxu0 0.0
        %4122 = vmatprep.subr.mxu0 0.0
        %4123 = vmatpush2.msra.mxu0 0.0
        %4124 = vmatprep.subr.mxu0 0.0
        %4125 = vmatpush2.msra.mxu0 0.0
        %4126 = vmatprep.subr.mxu0 0.0
        %4127 = vmatpush2.msra.mxu0 0.0
        %4128 = vmatprep.subr.mxu0 0.0
        %4129 = vmatpush2.msra.mxu0 0.0
        %4130 = vmatprep.subr.mxu0 0.0
        %4131 = vmatpush2.msra.mxu0 0.0
        %4132 = vmatprep.subr.mxu0 0.0
        %4133 = vmatpush2.msra.mxu0 0.0
        %4134 = vmatprep.mubr.f32.mxu0 0.0
        %4135 = vmatmul.mubr.f32.gmra.mxu0 %v3879
        %v4136 = vpop.f32.mrf.mxu0
        %v4137 = vadd.f32 0.0, %v4136
        %v4138 = vpop.f32.mrf.mxu0
        %4139 = vmatprep.mubr.f32.mxu0 0.0
        %4140 = vmatmul.mubr.f32.gmra.mxu0 %v3882
        %v4141 = vpop.f32.mrf.mxu0
        %v4142 = vadd.f32 0.0, %v4141
        %v4143 = vpop.f32.mrf.mxu0
        %4144 = vmatprep.mubr.f32.mxu0 0.0
        %4145 = vmatmul.mubr.f32.gmra.mxu0 %v3885
        %v4146 = vpop.f32.mrf.mxu0
        %v4147 = vadd.f32 0.0, %v4146
        %v4148 = vpop.f32.mrf.mxu0
        %4149 = vmatprep.mubr.f32.mxu0 0.0
        %4150 = vmatmul.mubr.f32.gmra.mxu0 %v3888
        %v4151 = vpop.f32.mrf.mxu0
        %v4152 = vadd.f32 0.0, %v4151
        %v4153 = vpop.f32.mrf.mxu0
        %4154 = vmatprep.mubr.f32.mxu0 0.0
        %4155 = vmatmul.mubr.f32.gmra.mxu0 %v3891
        %v4156 = vpop.f32.mrf.mxu0
        %v4157 = vadd.f32 0.0, %v4156
        %v4158 = vpop.f32.mrf.mxu0
        %4159 = vmatprep.mubr.f32.mxu0 0.0
        %4160 = vmatmul.mubr.f32.gmra.mxu0 %v3894
        %v4161 = vpop.f32.mrf.mxu0
        %v4162 = vadd.f32 0.0, %v4161
        %v4163 = vpop.f32.mrf.mxu0
        %4164 = vmatprep.mubr.f32.mxu0 0.0
        %4165 = vmatmul.mubr.f32.gmra.mxu0 %v3897
        %v4166 = vpop.f32.mrf.mxu0
        %v4167 = vadd.f32 0.0, %v4166
        %v4168 = vpop.f32.mrf.mxu0
        %4169 = vmatprep.mubr.f32.mxu0 0.0
        %4170 = vmatmul.mubr.f32.gmra.mxu0 %v3900
        %v4171 = vpop.f32.mrf.mxu0
        %v4172 = vadd.f32 0.0, %v4171
        %v4173 = vpop.f32.mrf.mxu0
        %4174 = vmatprep.mubr.f32.mxu0 0.0
        %4175 = vmatmul.mubr.f32.gmra.mxu0 %v3903
        %v4176 = vpop.f32.mrf.mxu0
        %v4177 = vadd.f32 0.0, %v4176
        %v4178 = vpop.f32.mrf.mxu0
        %4179 = vmatprep.mubr.f32.mxu0 0.0
        %4180 = vmatmul.mubr.f32.gmra.mxu0 %v3906
        %v4181 = vpop.f32.mrf.mxu0
        %v4182 = vadd.f32 0.0, %v4181
        %v4183 = vpop.f32.mrf.mxu0
        %4184 = vmatprep.mubr.f32.mxu0 0.0
        %4185 = vmatmul.mubr.f32.gmra.mxu0 %v3909
        %v4186 = vpop.f32.mrf.mxu0
        %v4187 = vadd.f32 0.0, %v4186
        %v4188 = vpop.f32.mrf.mxu0
        %4189 = vmatprep.mubr.f32.mxu0 0.0
        %4190 = vmatmul.mubr.f32.gmra.mxu0 %v3912
        %v4191 = vpop.f32.mrf.mxu0
        %v4192 = vadd.f32 0.0, %v4191
        %v4193 = vpop.f32.mrf.mxu0
        %4194 = vmatprep.mubr.f32.mxu0 0.0
        %4195 = vmatmul.mubr.f32.gmra.mxu0 %v3915
        %v4196 = vpop.f32.mrf.mxu0
        %v4197 = vadd.f32 0.0, %v4196
        %v4198 = vpop.f32.mrf.mxu0
        %4199 = vmatprep.mubr.f32.mxu0 0.0
        %4200 = vmatmul.mubr.f32.gmra.mxu0 %v3918
        %v4201 = vpop.f32.mrf.mxu0
        %v4202 = vadd.f32 0.0, %v4201
        %v4203 = vpop.f32.mrf.mxu0
        %4204 = vmatprep.mubr.f32.mxu0 0.0
        %4205 = vmatmul.mubr.f32.gmra.mxu0 %v3921
        %v4206 = vpop.f32.mrf.mxu0
        %v4207 = vadd.f32 0.0, %v4206
        %v4208 = vpop.f32.mrf.mxu0
        %4209 = vmatprep.mubr.f32.mxu0 0.0
        %4210 = vmatmul.mubr.f32.gmra.mxu0 %v3924
        %v4211 = vpop.f32.mrf.mxu0
        %v4212 = vadd.f32 0.0, %v4211
        %v4213 = vpop.f32.mrf.mxu0
        %4214 = vmatprep.mubr.f32.mxu0 0.0
        %4215 = vmatmul.mubr.f32.gmra.mxu0 %v3927
        %v4216 = vpop.f32.mrf.mxu0
        %v4217 = vadd.f32 0.0, %v4216
        %v4218 = vpop.f32.mrf.mxu0
        %4219 = vmatprep.mubr.f32.mxu0 0.0
        %4220 = vmatmul.mubr.f32.gmra.mxu0 %v3930
        %v4221 = vpop.f32.mrf.mxu0
        %v4222 = vadd.f32 0.0, %v4221
        %v4223 = vpop.f32.mrf.mxu0
        %4224 = vmatprep.mubr.f32.mxu0 0.0
        %4225 = vmatmul.mubr.f32.gmra.mxu0 %v3933
        %v4226 = vpop.f32.mrf.mxu0
        %v4227 = vadd.f32 0.0, %v4226
        %v4228 = vpop.f32.mrf.mxu0
        %4229 = vmatprep.mubr.f32.mxu0 0.0
        %4230 = vmatmul.mubr.f32.gmra.mxu0 %v3936
        %v4231 = vpop.f32.mrf.mxu0
        %v4232 = vadd.f32 0.0, %v4231
        %v4233 = vpop.f32.mrf.mxu0
        %4234 = vmatprep.mubr.f32.mxu0 0.0
        %4235 = vmatmul.mubr.f32.gmra.mxu0 %v3939
        %v4236 = vpop.f32.mrf.mxu0
        %v4237 = vadd.f32 0.0, %v4236
        %v4238 = vpop.f32.mrf.mxu0
        %4239 = vmatprep.mubr.f32.mxu0 0.0
        %4240 = vmatmul.mubr.f32.gmra.mxu0 %v3942
        %v4241 = vpop.f32.mrf.mxu0
        %v4242 = vadd.f32 0.0, %v4241
        %v4243 = vpop.f32.mrf.mxu0
        %4244 = vmatprep.mubr.f32.mxu0 0.0
        %4245 = vmatmul.mubr.f32.gmra.mxu0 %v3945
        %v4246 = vpop.f32.mrf.mxu0
        %v4247 = vadd.f32 0.0, %v4246
        %v4248 = vpop.f32.mrf.mxu0
        %4249 = vmatprep.mubr.f32.mxu0 0.0
        %4250 = vmatmul.mubr.f32.gmra.mxu0 %v3948
        %v4251 = vpop.f32.mrf.mxu0
        %v4252 = vadd.f32 0.0, %v4251
        %v4253 = vpop.f32.mrf.mxu0
        %4254 = vmatprep.mubr.f32.mxu0 0.0
        %4255 = vmatmul.mubr.f32.gmra.mxu0 %v3951
        %v4256 = vpop.f32.mrf.mxu0
        %v4257 = vadd.f32 0.0, %v4256
        %v4258 = vpop.f32.mrf.mxu0
        %4259 = vmatprep.mubr.f32.mxu0 0.0
        %4260 = vmatmul.mubr.f32.gmra.mxu0 %v3954
        %v4261 = vpop.f32.mrf.mxu0
        %v4262 = vadd.f32 0.0, %v4261
        %v4263 = vpop.f32.mrf.mxu0
        %4264 = vmatprep.mubr.f32.mxu0 0.0
        %4265 = vmatmul.mubr.f32.gmra.mxu0 %v3957
        %v4266 = vpop.f32.mrf.mxu0
        %v4267 = vadd.f32 0.0, %v4266
        %v4268 = vpop.f32.mrf.mxu0
        %4269 = vmatprep.mubr.f32.mxu0 0.0
        %4270 = vmatmul.mubr.f32.gmra.mxu0 %v3960
        %v4271 = vpop.f32.mrf.mxu0
        %v4272 = vadd.f32 0.0, %v4271
        %v4273 = vpop.f32.mrf.mxu0
        %4274 = vmatprep.mubr.f32.mxu0 0.0
        %4275 = vmatmul.mubr.f32.gmra.mxu0 %v3963
        %v4276 = vpop.f32.mrf.mxu0
        %v4277 = vadd.f32 0.0, %v4276
        %v4278 = vpop.f32.mrf.mxu0
        %4279 = vmatprep.mubr.f32.mxu0 0.0
        %4280 = vmatmul.mubr.f32.gmra.mxu0 %v3966
        %v4281 = vpop.f32.mrf.mxu0
        %v4282 = vadd.f32 0.0, %v4281
        %v4283 = vpop.f32.mrf.mxu0
        %4284 = vmatprep.mubr.f32.mxu0 0.0
        %4285 = vmatmul.mubr.f32.gmra.mxu0 %v3969
        %v4286 = vpop.f32.mrf.mxu0
        %v4287 = vadd.f32 0.0, %v4286
        %v4288 = vpop.f32.mrf.mxu0
        %4289 = vmatprep.mubr.f32.mxu0 0.0
        %4290 = vmatmul.mubr.f32.gmra.mxu0 %v3972
        %v4291 = vpop.f32.mrf.mxu0
        %v4292 = vadd.f32 0.0, %v4291
        %v4293 = vpop.f32.mrf.mxu0
        %4294 = vmatprep.mubr.f32.mxu0 0.0
        %4295 = vmatmul.mubr.f32.gmra.mxu0 %v3975
        %v4296 = vpop.f32.mrf.mxu0
        %v4297 = vadd.f32 0.0, %v4296
        %v4298 = vpop.f32.mrf.mxu0
        %4299 = vmatprep.mubr.f32.mxu0 0.0
        %4300 = vmatmul.mubr.f32.gmra.mxu0 %v3978
        %v4301 = vpop.f32.mrf.mxu0
        %v4302 = vadd.f32 0.0, %v4301
        %v4303 = vpop.f32.mrf.mxu0
        %4304 = vmatprep.mubr.f32.mxu0 0.0
        %4305 = vmatmul.mubr.f32.gmra.mxu0 %v3981
        %v4306 = vpop.f32.mrf.mxu0
        %v4307 = vadd.f32 0.0, %v4306
        %v4308 = vpop.f32.mrf.mxu0
        %4309 = vmatprep.mubr.f32.mxu0 0.0
        %4310 = vmatmul.mubr.f32.gmra.mxu0 %v3984
        %v4311 = vpop.f32.mrf.mxu0
        %v4312 = vadd.f32 0.0, %v4311
        %v4313 = vpop.f32.mrf.mxu0
        %4314 = vmatprep.mubr.f32.mxu0 0.0
        %4315 = vmatmul.mubr.f32.gmra.mxu0 %v3987
        %v4316 = vpop.f32.mrf.mxu0
        %v4317 = vadd.f32 0.0, %v4316
        %v4318 = vpop.f32.mrf.mxu0
        %4319 = vmatprep.mubr.f32.mxu0 0.0
        %4320 = vmatmul.mubr.f32.gmra.mxu0 %v3990
        %v4321 = vpop.f32.mrf.mxu0
        %v4322 = vadd.f32 0.0, %v4321
        %v4323 = vpop.f32.mrf.mxu0
        %4324 = vmatprep.mubr.f32.mxu0 0.0
        %4325 = vmatmul.mubr.f32.gmra.mxu0 %v3993
        %v4326 = vpop.f32.mrf.mxu0
        %v4327 = vadd.f32 0.0, %v4326
        %v4328 = vpop.f32.mrf.mxu0
        %4329 = vmatprep.mubr.f32.mxu0 0.0
        %4330 = vmatmul.mubr.f32.gmra.mxu0 %v3996
        %v4331 = vpop.f32.mrf.mxu0
        %v4332 = vadd.f32 0.0, %v4331
        %v4333 = vpop.f32.mrf.mxu0
        %4334 = vmatprep.mubr.f32.mxu0 0.0
        %4335 = vmatmul.mubr.f32.gmra.mxu0 %v3999
        %v4336 = vpop.f32.mrf.mxu0
        %v4337 = vadd.f32 0.0, %v4336
        %v4338 = vpop.f32.mrf.mxu0
        %4339 = vmatprep.mubr.f32.mxu0 0.0
        %4340 = vmatmul.mubr.f32.gmra.mxu0 %v4002
        %v4341 = vpop.f32.mrf.mxu0
        %v4342 = vadd.f32 0.0, %v4341
        %v4343 = vpop.f32.mrf.mxu0
        %4344 = vmatprep.mubr.f32.mxu0 0.0
        %4345 = vmatmul.mubr.f32.gmra.mxu0 %v4005
        %v4346 = vpop.f32.mrf.mxu0
        %v4347 = vadd.f32 0.0, %v4346
        %v4348 = vpop.f32.mrf.mxu0
        %4349 = vmatprep.mubr.f32.mxu0 0.0
        %4350 = vmatmul.mubr.f32.gmra.mxu0 %v4008
        %v4351 = vpop.f32.mrf.mxu0
        %v4352 = vadd.f32 0.0, %v4351
        %v4353 = vpop.f32.mrf.mxu0
        %4354 = vmatprep.mubr.f32.mxu0 0.0
        %4355 = vmatmul.mubr.f32.gmra.mxu0 %v4011
        %v4356 = vpop.f32.mrf.mxu0
        %v4357 = vadd.f32 0.0, %v4356
        %v4358 = vpop.f32.mrf.mxu0
        %4359 = vmatprep.mubr.f32.mxu0 0.0
        %4360 = vmatmul.mubr.f32.gmra.mxu0 %v4014
        %v4361 = vpop.f32.mrf.mxu0
        %v4362 = vadd.f32 0.0, %v4361
        %v4363 = vpop.f32.mrf.mxu0
        %4364 = vmatprep.mubr.f32.mxu0 0.0
        %4365 = vmatmul.mubr.f32.gmra.mxu0 %v4017
        %v4366 = vpop.f32.mrf.mxu0
        %v4367 = vadd.f32 0.0, %v4366
        %v4368 = vpop.f32.mrf.mxu0
        %4369 = vmatprep.mubr.f32.mxu0 0.0
        %4370 = vmatmul.mubr.f32.gmra.mxu0 %v4020
        %v4371 = vpop.f32.mrf.mxu0
        %v4372 = vadd.f32 0.0, %v4371
        %v4373 = vpop.f32.mrf.mxu0
        %4374 = vmatprep.mubr.f32.mxu0 0.0
        %4375 = vmatmul.mubr.f32.gmra.mxu0 %v4023
        %v4376 = vpop.f32.mrf.mxu0
        %v4377 = vadd.f32 0.0, %v4376
        %v4378 = vpop.f32.mrf.mxu0
        %4379 = vmatprep.mubr.f32.mxu0 0.0
        %4380 = vmatmul.mubr.f32.gmra.mxu0 %v4026
        %v4381 = vpop.f32.mrf.mxu0
        %v4382 = vadd.f32 0.0, %v4381
        %v4383 = vpop.f32.mrf.mxu0
        %4384 = vmatprep.mubr.f32.mxu0 0.0
        %4385 = vmatmul.mubr.f32.gmra.mxu0 %v4029
        %v4386 = vpop.f32.mrf.mxu0
        %v4387 = vadd.f32 0.0, %v4386
        %v4388 = vpop.f32.mrf.mxu0
        %4389 = vmatprep.mubr.f32.mxu0 0.0
        %4390 = vmatmul.mubr.f32.gmra.mxu0 %v4032
        %v4391 = vpop.f32.mrf.mxu0
        %v4392 = vadd.f32 0.0, %v4391
        %v4393 = vpop.f32.mrf.mxu0
        %4394 = vmatprep.mubr.f32.mxu0 0.0
        %4395 = vmatmul.mubr.f32.gmra.mxu0 %v4035
        %v4396 = vpop.f32.mrf.mxu0
        %v4397 = vadd.f32 0.0, %v4396
        %v4398 = vpop.f32.mrf.mxu0
        %4399 = vmatprep.mubr.f32.mxu0 0.0
        %4400 = vmatmul.mubr.f32.gmra.mxu0 %v4038
        %v4401 = vpop.f32.mrf.mxu0
        %v4402 = vadd.f32 0.0, %v4401
        %v4403 = vpop.f32.mrf.mxu0
        %4404 = vmatprep.mubr.f32.mxu0 0.0
        %4405 = vmatmul.mubr.f32.gmra.mxu0 %v4041
        %v4406 = vpop.f32.mrf.mxu0
        %v4407 = vadd.f32 0.0, %v4406
        %v4408 = vpop.f32.mrf.mxu0
        %4409 = vmatprep.mubr.f32.mxu0 0.0
        %4410 = vmatmul.mubr.f32.gmra.mxu0 %v4044
        %v4411 = vpop.f32.mrf.mxu0
        %v4412 = vadd.f32 0.0, %v4411
        %v4413 = vpop.f32.mrf.mxu0
        %4414 = vmatprep.mubr.f32.mxu0 0.0
        %4415 = vmatmul.mubr.f32.gmra.mxu0 %v4047
        %v4416 = vpop.f32.mrf.mxu0
        %v4417 = vadd.f32 0.0, %v4416
        %v4418 = vpop.f32.mrf.mxu0
        %4419 = vmatprep.mubr.f32.mxu0 0.0
        %4420 = vmatmul.mubr.f32.gmra.mxu0 %v4050
        %v4421 = vpop.f32.mrf.mxu0
        %v4422 = vadd.f32 0.0, %v4421
        %v4423 = vpop.f32.mrf.mxu0
        %4424 = vmatprep.mubr.f32.mxu0 0.0
        %4425 = vmatmul.mubr.f32.gmra.mxu0 %v4053
        %v4426 = vpop.f32.mrf.mxu0
        %v4427 = vadd.f32 0.0, %v4426
        %v4428 = vpop.f32.mrf.mxu0
        %4429 = vmatprep.mubr.f32.mxu0 0.0
        %4430 = vmatmul.mubr.f32.gmra.mxu0 %v4056
        %v4431 = vpop.f32.mrf.mxu0
        %v4432 = vadd.f32 0.0, %v4431
        %v4433 = vpop.f32.mrf.mxu0
        %4434 = vmatprep.mubr.f32.mxu0 0.0
        %4435 = vmatmul.mubr.f32.gmra.mxu0 %v4059
        %v4436 = vpop.f32.mrf.mxu0
        %v4437 = vadd.f32 0.0, %v4436
        %v4438 = vpop.f32.mrf.mxu0
        %4439 = vmatprep.mubr.f32.mxu0 0.0
        %4440 = vmatmul.mubr.f32.gmra.mxu0 %v4062
        %v4441 = vpop.f32.mrf.mxu0
        %v4442 = vadd.f32 0.0, %v4441
        %v4443 = vpop.f32.mrf.mxu0
        %4444 = vmatprep.mubr.f32.mxu0 0.0
        %4445 = vmatmul.mubr.f32.gmra.mxu0 %v4065
        %v4446 = vpop.f32.mrf.mxu0
        %v4447 = vadd.f32 0.0, %v4446
        %v4448 = vpop.f32.mrf.mxu0
        %4449 = vmatprep.mubr.f32.mxu0 0.0
        %4450 = vmatmul.mubr.f32.gmra.mxu0 %v4068
        %v4451 = vpop.f32.mrf.mxu0
        %v4452 = vadd.f32 0.0, %v4451
        %v4453 = vpop.f32.mrf.mxu0
        %4454 = vdwg.mxu0
        %v4455 = vadd.f32 %v3747, %v4137
        %v4456 = vadd.f32 %v3748, %v4142
        %v4457 = vadd.f32 %v3749, %v4147
        %v4458 = vadd.f32 %v3750, %v4152
        %v4459 = vadd.f32 %v3751, %v4157
        %v4460 = vadd.f32 %v3752, %v4162
        %v4461 = vadd.f32 %v3753, %v4167
        %v4462 = vadd.f32 %v3754, %v4172
        %v4463 = vadd.f32 %v3755, %v4177
        %v4464 = vadd.f32 %v3756, %v4182
        %v4465 = vadd.f32 %v3757, %v4187
        %v4466 = vadd.f32 %v3758, %v4192
        %v4467 = vadd.f32 %v3759, %v4197
        %v4468 = vadd.f32 %v3760, %v4202
        %v4469 = vadd.f32 %v3761, %v4207
        %v4470 = vadd.f32 %v3762, %v4212
        %v4471 = vadd.f32 %v3763, %v4217
        %v4472 = vadd.f32 %v3764, %v4222
        %v4473 = vadd.f32 %v3765, %v4227
        %v4474 = vadd.f32 %v3766, %v4232
        %v4475 = vadd.f32 %v3767, %v4237
        %v4476 = vadd.f32 %v3768, %v4242
        %v4477 = vadd.f32 %v3769, %v4247
        %v4478 = vadd.f32 %v3770, %v4252
        %v4479 = vadd.f32 %v3771, %v4257
        %v4480 = vadd.f32 %v3772, %v4262
        %v4481 = vadd.f32 %v3773, %v4267
        %v4482 = vadd.f32 %v3774, %v4272
        %v4483 = vadd.f32 %v3775, %v4277
        %v4484 = vadd.f32 %v3776, %v4282
        %v4485 = vadd.f32 %v3777, %v4287
        %v4486 = vadd.f32 %v3778, %v4292
        %v4487 = vadd.f32 %v3779, %v4297
        %v4488 = vadd.f32 %v3780, %v4302
        %v4489 = vadd.f32 %v3781, %v4307
        %v4490 = vadd.f32 %v3782, %v4312
        %v4491 = vadd.f32 %v3783, %v4317
        %v4492 = vadd.f32 %v3784, %v4322
        %v4493 = vadd.f32 %v3785, %v4327
        %v4494 = vadd.f32 %v3786, %v4332
        %v4495 = vadd.f32 %v3787, %v4337
        %v4496 = vadd.f32 %v3788, %v4342
        %v4497 = vadd.f32 %v3789, %v4347
        %v4498 = vadd.f32 %v3790, %v4352
        %v4499 = vadd.f32 %v3791, %v4357
        %v4500 = vadd.f32 %v3792, %v4362
        %v4501 = vadd.f32 %v3793, %v4367
        %v4502 = vadd.f32 %v3794, %v4372
        %v4503 = vadd.f32 %v3795, %v4377
        %v4504 = vadd.f32 %v3796, %v4382
        %v4505 = vadd.f32 %v3797, %v4387
        %v4506 = vadd.f32 %v3798, %v4392
        %v4507 = vadd.f32 %v3799, %v4397
        %v4508 = vadd.f32 %v3800, %v4402
        %v4509 = vadd.f32 %v3801, %v4407
        %v4510 = vadd.f32 %v3802, %v4412
        %v4511 = vadd.f32 %v3803, %v4417
        %v4512 = vadd.f32 %v3804, %v4422
        %v4513 = vadd.f32 %v3805, %v4427
        %v4514 = vadd.f32 %v3806, %v4432
        %v4515 = vadd.f32 %v3807, %v4437
        %v4516 = vadd.f32 %v3808, %v4442
        %v4517 = vadd.f32 %v3809, %v4447
        %v4518 = vadd.f32 %v3810, %v4452
        %v4519 = vld [vmem:[#allocation2 + $0x29] sm:$0xff]
        %v4520 = vld [vmem:[#allocation2 + $0x31] sm:$0xff]
        %v4521 = vld [vmem:[#allocation2 + $0x39] sm:$0xff]
        %v4522 = vld [vmem:[#allocation2 + $0x41] sm:$0xff]
        %v4523 = vld [vmem:[#allocation2 + $0x49] sm:$0xff]
        %v4524 = vld [vmem:[#allocation2 + $0x51] sm:$0xff]
        %v4525 = vld [vmem:[#allocation2 + $0x59] sm:$0xff]
        %v4526 = vld [vmem:[#allocation2 + $0x61] sm:$0xff]
        %v4527 = vld [vmem:[#allocation2 + $0x69] sm:$0xff]
        %v4528 = vld [vmem:[#allocation2 + $0x71] sm:$0xff]
        %v4529 = vld [vmem:[#allocation2 + $0x79] sm:$0xff]
        %v4530 = vld [vmem:[#allocation2 + $0x81] sm:$0xff]
        %v4531 = vld [vmem:[#allocation2 + $0x89] sm:$0xff]
        %v4532 = vld [vmem:[#allocation2 + $0x91] sm:$0xff]
        %v4533 = vld [vmem:[#allocation2 + $0x99] sm:$0xff]
        %v4534 = vld [vmem:[#allocation2 + $0xa1] sm:$0xff]
        %v4535 = vld [vmem:[#allocation2 + $0xa9] sm:$0xff]
        %v4536 = vld [vmem:[#allocation2 + $0xb1] sm:$0xff]
        %v4537 = vld [vmem:[#allocation2 + $0xb9] sm:$0xff]
        %v4538 = vld [vmem:[#allocation2 + $0xc1] sm:$0xff]
        %v4539 = vld [vmem:[#allocation2 + $0xc9] sm:$0xff]
        %v4540 = vld [vmem:[#allocation2 + $0xd1] sm:$0xff]
        %v4541 = vld [vmem:[#allocation2 + $0xd9] sm:$0xff]
        %v4542 = vld [vmem:[#allocation2 + $0xe1] sm:$0xff]
        %v4543 = vld [vmem:[#allocation2 + $0xe9] sm:$0xff]
        %v4544 = vld [vmem:[#allocation2 + $0xf1] sm:$0xff]
        %v4545 = vld [vmem:[#allocation2 + $0xf9] sm:$0xff]
        %v4546 = vld [vmem:[#allocation2 + $0x101] sm:$0xff]
        %v4547 = vld [vmem:[#allocation2 + $0x109] sm:$0xff]
        %v4548 = vld [vmem:[#allocation2 + $0x111] sm:$0xff]
        %v4549 = vld [vmem:[#allocation2 + $0x119] sm:$0xff]
        %v4550 = vld [vmem:[#allocation2 + $0x121] sm:$0xff]
        %v4551 = vld [vmem:[#allocation2 + $0x129] sm:$0xff]
        %v4552 = vld [vmem:[#allocation2 + $0x131] sm:$0xff]
        %v4553 = vld [vmem:[#allocation2 + $0x139] sm:$0xff]
        %v4554 = vld [vmem:[#allocation2 + $0x141] sm:$0xff]
        %v4555 = vld [vmem:[#allocation2 + $0x149] sm:$0xff]
        %v4556 = vld [vmem:[#allocation2 + $0x151] sm:$0xff]
        %v4557 = vld [vmem:[#allocation2 + $0x159] sm:$0xff]
        %v4558 = vld [vmem:[#allocation2 + $0x161] sm:$0xff]
        %v4559 = vld [vmem:[#allocation2 + $0x169] sm:$0xff]
        %v4560 = vld [vmem:[#allocation2 + $0x171] sm:$0xff]
        %v4561 = vld [vmem:[#allocation2 + $0x179] sm:$0xff]
        %v4562 = vld [vmem:[#allocation2 + $0x181] sm:$0xff]
        %v4563 = vld [vmem:[#allocation2 + $0x189] sm:$0xff]
        %v4564 = vld [vmem:[#allocation2 + $0x191] sm:$0xff]
        %v4565 = vld [vmem:[#allocation2 + $0x199] sm:$0xff]
        %v4566 = vld [vmem:[#allocation2 + $0x1a1] sm:$0xff]
        %v4567 = vld [vmem:[#allocation2 + $0x1a9] sm:$0xff]
        %v4568 = vld [vmem:[#allocation2 + $0x1b1] sm:$0xff]
        %v4569 = vld [vmem:[#allocation2 + $0x1b9] sm:$0xff]
        %v4570 = vld [vmem:[#allocation2 + $0x1c1] sm:$0xff]
        %v4571 = vld [vmem:[#allocation2 + $0x1c9] sm:$0xff]
        %v4572 = vld [vmem:[#allocation2 + $0x1d1] sm:$0xff]
        %v4573 = vld [vmem:[#allocation2 + $0x1d9] sm:$0xff]
        %v4574 = vld [vmem:[#allocation2 + $0x1e1] sm:$0xff]
        %v4575 = vld [vmem:[#allocation2 + $0x1e9] sm:$0xff]
        %v4576 = vld [vmem:[#allocation2 + $0x1f1] sm:$0xff]
        %v4577 = vld [vmem:[#allocation2 + $0x1f9] sm:$0xff]
        %v4578 = vld [vmem:[#allocation2 + $0x201] sm:$0xff]
        %v4579 = vld [vmem:[#allocation2 + $0x209] sm:$0xff]
        %v4580 = vld [vmem:[#allocation2 + $0x211] sm:$0xff]
        %v4581 = vld [vmem:[#allocation2 + $0x219] sm:$0xff]
        %v4582 = vld [vmem:[#allocation2 + $0x221] sm:$0xff]
        %s4583 = scalar_lea.vmem %s2, 96
        %v4584 = vld [vmem:[%s4583] sm:$0xff]
        %v4585 = vld [vmem:[%s4583 + $0x8] sm:$0xff]
        %v4587 = vsel %vm532, %v4519, 0
        %v4590 = vsel %vm532, %v4520, 0
        %v4593 = vsel %vm532, %v4521, 0
        %v4596 = vsel %vm532, %v4522, 0
        %v4599 = vsel %vm532, %v4523, 0
        %v4602 = vsel %vm532, %v4524, 0
        %v4605 = vsel %vm532, %v4525, 0
        %v4608 = vsel %vm532, %v4526, 0
        %v4611 = vsel %vm532, %v4527, 0
        %v4614 = vsel %vm532, %v4528, 0
        %v4617 = vsel %vm532, %v4529, 0
        %v4620 = vsel %vm532, %v4530, 0
        %v4623 = vsel %vm532, %v4531, 0
        %v4626 = vsel %vm532, %v4532, 0
        %v4629 = vsel %vm532, %v4533, 0
        %v4632 = vsel %vm532, %v4534, 0
        %v4635 = vsel %vm532, %v4535, 0
        %v4638 = vsel %vm532, %v4536, 0
        %v4641 = vsel %vm532, %v4537, 0
        %v4644 = vsel %vm532, %v4538, 0
        %v4647 = vsel %vm532, %v4539, 0
        %v4650 = vsel %vm532, %v4540, 0
        %v4653 = vsel %vm532, %v4541, 0
        %v4656 = vsel %vm532, %v4542, 0
        %v4659 = vsel %vm532, %v4543, 0
        %v4662 = vsel %vm532, %v4544, 0
        %v4665 = vsel %vm532, %v4545, 0
        %v4668 = vsel %vm532, %v4546, 0
        %v4671 = vsel %vm532, %v4547, 0
        %v4674 = vsel %vm532, %v4548, 0
        %v4677 = vsel %vm532, %v4549, 0
        %v4680 = vsel %vm532, %v4550, 0
        %v4683 = vsel %vm532, %v4551, 0
        %v4686 = vsel %vm532, %v4552, 0
        %v4689 = vsel %vm532, %v4553, 0
        %v4692 = vsel %vm532, %v4554, 0
        %v4695 = vsel %vm532, %v4555, 0
        %v4698 = vsel %vm532, %v4556, 0
        %v4701 = vsel %vm532, %v4557, 0
        %v4704 = vsel %vm532, %v4558, 0
        %v4707 = vsel %vm532, %v4559, 0
        %v4710 = vsel %vm532, %v4560, 0
        %v4713 = vsel %vm532, %v4561, 0
        %v4716 = vsel %vm532, %v4562, 0
        %v4719 = vsel %vm532, %v4563, 0
        %v4722 = vsel %vm532, %v4564, 0
        %v4725 = vsel %vm532, %v4565, 0
        %v4728 = vsel %vm532, %v4566, 0
        %v4731 = vsel %vm532, %v4567, 0
        %v4734 = vsel %vm532, %v4568, 0
        %v4737 = vsel %vm532, %v4569, 0
        %v4740 = vsel %vm532, %v4570, 0
        %v4743 = vsel %vm532, %v4571, 0
        %v4746 = vsel %vm532, %v4572, 0
        %v4749 = vsel %vm532, %v4573, 0
        %v4752 = vsel %vm532, %v4574, 0
        %v4755 = vsel %vm532, %v4575, 0
        %v4758 = vsel %vm532, %v4576, 0
        %v4761 = vsel %vm532, %v4577, 0
        %v4764 = vsel %vm532, %v4578, 0
        %v4767 = vsel %vm532, %v4579, 0
        %v4770 = vsel %vm532, %v4580, 0
        %v4773 = vsel %vm532, %v4581, 0
        %v4776 = vsel %vm532, %v4582, 0
        %4778 = vmatprep.subr.mxu0 0.0
        %4779 = vmatpush1.msra.mxu0 0.0
        %4780 = vmatprep.subr.mxu0 0.0
        %4781 = vmatpush1.msra.mxu0 0.0
        %4782 = vmatprep.subr.mxu0 0.0
        %4783 = vmatpush1.msra.mxu0 0.0
        %4784 = vmatprep.subr.mxu0 0.0
        %4785 = vmatpush1.msra.mxu0 0.0
        %4786 = vmatprep.subr.mxu0 0.0
        %4787 = vmatpush1.msra.mxu0 0.0
        %4788 = vmatprep.subr.mxu0 0.0
        %4789 = vmatpush1.msra.mxu0 0.0
        %4790 = vmatprep.subr.mxu0 0.0
        %4791 = vmatpush1.msra.mxu0 0.0
        %4792 = vmatprep.subr.mxu0 0.0
        %4793 = vmatpush1.msra.mxu0 0.0
        %4794 = vmatprep.subr.mxu0 0.0
        %4795 = vmatpush1.msra.mxu0 0.0
        %4796 = vmatprep.subr.mxu0 0.0
        %4797 = vmatpush1.msra.mxu0 0.0
        %4798 = vmatprep.subr.mxu0 0.0
        %4799 = vmatpush1.msra.mxu0 0.0
        %4800 = vmatprep.subr.mxu0 0.0
        %4801 = vmatpush1.msra.mxu0 0.0
        %4802 = vmatprep.subr.mxu0 0.0
        %4803 = vmatpush1.msra.mxu0 0.0
        %4804 = vmatprep.subr.mxu0 0.0
        %4805 = vmatpush1.msra.mxu0 0.0
        %4806 = vmatprep.subr.mxu0 0.0
        %4807 = vmatpush1.msra.mxu0 %v4585
        %4808 = vmatprep.subr.mxu0 0.0
        %4809 = vmatpush1.msra.mxu0 %v4584
        %4810 = vmatprep.subr.mxu0 0.0
        %4811 = vmatpush2.msra.mxu0 0.0
        %4812 = vmatprep.subr.mxu0 0.0
        %4813 = vmatpush2.msra.mxu0 0.0
        %4814 = vmatprep.subr.mxu0 0.0
        %4815 = vmatpush2.msra.mxu0 0.0
        %4816 = vmatprep.subr.mxu0 0.0
        %4817 = vmatpush2.msra.mxu0 0.0
        %4818 = vmatprep.subr.mxu0 0.0
        %4819 = vmatpush2.msra.mxu0 0.0
        %4820 = vmatprep.subr.mxu0 0.0
        %4821 = vmatpush2.msra.mxu0 0.0
        %4822 = vmatprep.subr.mxu0 0.0
        %4823 = vmatpush2.msra.mxu0 0.0
        %4824 = vmatprep.subr.mxu0 0.0
        %4825 = vmatpush2.msra.mxu0 0.0
        %4826 = vmatprep.subr.mxu0 0.0
        %4827 = vmatpush2.msra.mxu0 0.0
        %4828 = vmatprep.subr.mxu0 0.0
        %4829 = vmatpush2.msra.mxu0 0.0
        %4830 = vmatprep.subr.mxu0 0.0
        %4831 = vmatpush2.msra.mxu0 0.0
        %4832 = vmatprep.subr.mxu0 0.0
        %4833 = vmatpush2.msra.mxu0 0.0
        %4834 = vmatprep.subr.mxu0 0.0
        %4835 = vmatpush2.msra.mxu0 0.0
        %4836 = vmatprep.subr.mxu0 0.0
        %4837 = vmatpush2.msra.mxu0 0.0
        %4838 = vmatprep.subr.mxu0 0.0
        %4839 = vmatpush2.msra.mxu0 0.0
        %4840 = vmatprep.subr.mxu0 0.0
        %4841 = vmatpush2.msra.mxu0 0.0
        %4842 = vmatprep.mubr.f32.mxu0 0.0
        %4843 = vmatmul.mubr.f32.gmra.mxu0 %v4587
        %v4844 = vpop.f32.mrf.mxu0
        %v4845 = vadd.f32 0.0, %v4844
        %v4846 = vpop.f32.mrf.mxu0
        %4847 = vmatprep.mubr.f32.mxu0 0.0
        %4848 = vmatmul.mubr.f32.gmra.mxu0 %v4590
        %v4849 = vpop.f32.mrf.mxu0
        %v4850 = vadd.f32 0.0, %v4849
        %v4851 = vpop.f32.mrf.mxu0
        %4852 = vmatprep.mubr.f32.mxu0 0.0
        %4853 = vmatmul.mubr.f32.gmra.mxu0 %v4593
        %v4854 = vpop.f32.mrf.mxu0
        %v4855 = vadd.f32 0.0, %v4854
        %v4856 = vpop.f32.mrf.mxu0
        %4857 = vmatprep.mubr.f32.mxu0 0.0
        %4858 = vmatmul.mubr.f32.gmra.mxu0 %v4596
        %v4859 = vpop.f32.mrf.mxu0
        %v4860 = vadd.f32 0.0, %v4859
        %v4861 = vpop.f32.mrf.mxu0
        %4862 = vmatprep.mubr.f32.mxu0 0.0
        %4863 = vmatmul.mubr.f32.gmra.mxu0 %v4599
        %v4864 = vpop.f32.mrf.mxu0
        %v4865 = vadd.f32 0.0, %v4864
        %v4866 = vpop.f32.mrf.mxu0
        %4867 = vmatprep.mubr.f32.mxu0 0.0
        %4868 = vmatmul.mubr.f32.gmra.mxu0 %v4602
        %v4869 = vpop.f32.mrf.mxu0
        %v4870 = vadd.f32 0.0, %v4869
        %v4871 = vpop.f32.mrf.mxu0
        %4872 = vmatprep.mubr.f32.mxu0 0.0
        %4873 = vmatmul.mubr.f32.gmra.mxu0 %v4605
        %v4874 = vpop.f32.mrf.mxu0
        %v4875 = vadd.f32 0.0, %v4874
        %v4876 = vpop.f32.mrf.mxu0
        %4877 = vmatprep.mubr.f32.mxu0 0.0
        %4878 = vmatmul.mubr.f32.gmra.mxu0 %v4608
        %v4879 = vpop.f32.mrf.mxu0
        %v4880 = vadd.f32 0.0, %v4879
        %v4881 = vpop.f32.mrf.mxu0
        %4882 = vmatprep.mubr.f32.mxu0 0.0
        %4883 = vmatmul.mubr.f32.gmra.mxu0 %v4611
        %v4884 = vpop.f32.mrf.mxu0
        %v4885 = vadd.f32 0.0, %v4884
        %v4886 = vpop.f32.mrf.mxu0
        %4887 = vmatprep.mubr.f32.mxu0 0.0
        %4888 = vmatmul.mubr.f32.gmra.mxu0 %v4614
        %v4889 = vpop.f32.mrf.mxu0
        %v4890 = vadd.f32 0.0, %v4889
        %v4891 = vpop.f32.mrf.mxu0
        %4892 = vmatprep.mubr.f32.mxu0 0.0
        %4893 = vmatmul.mubr.f32.gmra.mxu0 %v4617
        %v4894 = vpop.f32.mrf.mxu0
        %v4895 = vadd.f32 0.0, %v4894
        %v4896 = vpop.f32.mrf.mxu0
        %4897 = vmatprep.mubr.f32.mxu0 0.0
        %4898 = vmatmul.mubr.f32.gmra.mxu0 %v4620
        %v4899 = vpop.f32.mrf.mxu0
        %v4900 = vadd.f32 0.0, %v4899
        %v4901 = vpop.f32.mrf.mxu0
        %4902 = vmatprep.mubr.f32.mxu0 0.0
        %4903 = vmatmul.mubr.f32.gmra.mxu0 %v4623
        %v4904 = vpop.f32.mrf.mxu0
        %v4905 = vadd.f32 0.0, %v4904
        %v4906 = vpop.f32.mrf.mxu0
        %4907 = vmatprep.mubr.f32.mxu0 0.0
        %4908 = vmatmul.mubr.f32.gmra.mxu0 %v4626
        %v4909 = vpop.f32.mrf.mxu0
        %v4910 = vadd.f32 0.0, %v4909
        %v4911 = vpop.f32.mrf.mxu0
        %4912 = vmatprep.mubr.f32.mxu0 0.0
        %4913 = vmatmul.mubr.f32.gmra.mxu0 %v4629
        %v4914 = vpop.f32.mrf.mxu0
        %v4915 = vadd.f32 0.0, %v4914
        %v4916 = vpop.f32.mrf.mxu0
        %4917 = vmatprep.mubr.f32.mxu0 0.0
        %4918 = vmatmul.mubr.f32.gmra.mxu0 %v4632
        %v4919 = vpop.f32.mrf.mxu0
        %v4920 = vadd.f32 0.0, %v4919
        %v4921 = vpop.f32.mrf.mxu0
        %4922 = vmatprep.mubr.f32.mxu0 0.0
        %4923 = vmatmul.mubr.f32.gmra.mxu0 %v4635
        %v4924 = vpop.f32.mrf.mxu0
        %v4925 = vadd.f32 0.0, %v4924
        %v4926 = vpop.f32.mrf.mxu0
        %4927 = vmatprep.mubr.f32.mxu0 0.0
        %4928 = vmatmul.mubr.f32.gmra.mxu0 %v4638
        %v4929 = vpop.f32.mrf.mxu0
        %v4930 = vadd.f32 0.0, %v4929
        %v4931 = vpop.f32.mrf.mxu0
        %4932 = vmatprep.mubr.f32.mxu0 0.0
        %4933 = vmatmul.mubr.f32.gmra.mxu0 %v4641
        %v4934 = vpop.f32.mrf.mxu0
        %v4935 = vadd.f32 0.0, %v4934
        %v4936 = vpop.f32.mrf.mxu0
        %4937 = vmatprep.mubr.f32.mxu0 0.0
        %4938 = vmatmul.mubr.f32.gmra.mxu0 %v4644
        %v4939 = vpop.f32.mrf.mxu0
        %v4940 = vadd.f32 0.0, %v4939
        %v4941 = vpop.f32.mrf.mxu0
        %4942 = vmatprep.mubr.f32.mxu0 0.0
        %4943 = vmatmul.mubr.f32.gmra.mxu0 %v4647
        %v4944 = vpop.f32.mrf.mxu0
        %v4945 = vadd.f32 0.0, %v4944
        %v4946 = vpop.f32.mrf.mxu0
        %4947 = vmatprep.mubr.f32.mxu0 0.0
        %4948 = vmatmul.mubr.f32.gmra.mxu0 %v4650
        %v4949 = vpop.f32.mrf.mxu0
        %v4950 = vadd.f32 0.0, %v4949
        %v4951 = vpop.f32.mrf.mxu0
        %4952 = vmatprep.mubr.f32.mxu0 0.0
        %4953 = vmatmul.mubr.f32.gmra.mxu0 %v4653
        %v4954 = vpop.f32.mrf.mxu0
        %v4955 = vadd.f32 0.0, %v4954
        %v4956 = vpop.f32.mrf.mxu0
        %4957 = vmatprep.mubr.f32.mxu0 0.0
        %4958 = vmatmul.mubr.f32.gmra.mxu0 %v4656
        %v4959 = vpop.f32.mrf.mxu0
        %v4960 = vadd.f32 0.0, %v4959
        %v4961 = vpop.f32.mrf.mxu0
        %4962 = vmatprep.mubr.f32.mxu0 0.0
        %4963 = vmatmul.mubr.f32.gmra.mxu0 %v4659
        %v4964 = vpop.f32.mrf.mxu0
        %v4965 = vadd.f32 0.0, %v4964
        %v4966 = vpop.f32.mrf.mxu0
        %4967 = vmatprep.mubr.f32.mxu0 0.0
        %4968 = vmatmul.mubr.f32.gmra.mxu0 %v4662
        %v4969 = vpop.f32.mrf.mxu0
        %v4970 = vadd.f32 0.0, %v4969
        %v4971 = vpop.f32.mrf.mxu0
        %4972 = vmatprep.mubr.f32.mxu0 0.0
        %4973 = vmatmul.mubr.f32.gmra.mxu0 %v4665
        %v4974 = vpop.f32.mrf.mxu0
        %v4975 = vadd.f32 0.0, %v4974
        %v4976 = vpop.f32.mrf.mxu0
        %4977 = vmatprep.mubr.f32.mxu0 0.0
        %4978 = vmatmul.mubr.f32.gmra.mxu0 %v4668
        %v4979 = vpop.f32.mrf.mxu0
        %v4980 = vadd.f32 0.0, %v4979
        %v4981 = vpop.f32.mrf.mxu0
        %4982 = vmatprep.mubr.f32.mxu0 0.0
        %4983 = vmatmul.mubr.f32.gmra.mxu0 %v4671
        %v4984 = vpop.f32.mrf.mxu0
        %v4985 = vadd.f32 0.0, %v4984
        %v4986 = vpop.f32.mrf.mxu0
        %4987 = vmatprep.mubr.f32.mxu0 0.0
        %4988 = vmatmul.mubr.f32.gmra.mxu0 %v4674
        %v4989 = vpop.f32.mrf.mxu0
        %v4990 = vadd.f32 0.0, %v4989
        %v4991 = vpop.f32.mrf.mxu0
        %4992 = vmatprep.mubr.f32.mxu0 0.0
        %4993 = vmatmul.mubr.f32.gmra.mxu0 %v4677
        %v4994 = vpop.f32.mrf.mxu0
        %v4995 = vadd.f32 0.0, %v4994
        %v4996 = vpop.f32.mrf.mxu0
        %4997 = vmatprep.mubr.f32.mxu0 0.0
        %4998 = vmatmul.mubr.f32.gmra.mxu0 %v4680
        %v4999 = vpop.f32.mrf.mxu0
        %v5000 = vadd.f32 0.0, %v4999
        %v5001 = vpop.f32.mrf.mxu0
        %5002 = vmatprep.mubr.f32.mxu0 0.0
        %5003 = vmatmul.mubr.f32.gmra.mxu0 %v4683
        %v5004 = vpop.f32.mrf.mxu0
        %v5005 = vadd.f32 0.0, %v5004
        %v5006 = vpop.f32.mrf.mxu0
        %5007 = vmatprep.mubr.f32.mxu0 0.0
        %5008 = vmatmul.mubr.f32.gmra.mxu0 %v4686
        %v5009 = vpop.f32.mrf.mxu0
        %v5010 = vadd.f32 0.0, %v5009
        %v5011 = vpop.f32.mrf.mxu0
        %5012 = vmatprep.mubr.f32.mxu0 0.0
        %5013 = vmatmul.mubr.f32.gmra.mxu0 %v4689
        %v5014 = vpop.f32.mrf.mxu0
        %v5015 = vadd.f32 0.0, %v5014
        %v5016 = vpop.f32.mrf.mxu0
        %5017 = vmatprep.mubr.f32.mxu0 0.0
        %5018 = vmatmul.mubr.f32.gmra.mxu0 %v4692
        %v5019 = vpop.f32.mrf.mxu0
        %v5020 = vadd.f32 0.0, %v5019
        %v5021 = vpop.f32.mrf.mxu0
        %5022 = vmatprep.mubr.f32.mxu0 0.0
        %5023 = vmatmul.mubr.f32.gmra.mxu0 %v4695
        %v5024 = vpop.f32.mrf.mxu0
        %v5025 = vadd.f32 0.0, %v5024
        %v5026 = vpop.f32.mrf.mxu0
        %5027 = vmatprep.mubr.f32.mxu0 0.0
        %5028 = vmatmul.mubr.f32.gmra.mxu0 %v4698
        %v5029 = vpop.f32.mrf.mxu0
        %v5030 = vadd.f32 0.0, %v5029
        %v5031 = vpop.f32.mrf.mxu0
        %5032 = vmatprep.mubr.f32.mxu0 0.0
        %5033 = vmatmul.mubr.f32.gmra.mxu0 %v4701
        %v5034 = vpop.f32.mrf.mxu0
        %v5035 = vadd.f32 0.0, %v5034
        %v5036 = vpop.f32.mrf.mxu0
        %5037 = vmatprep.mubr.f32.mxu0 0.0
        %5038 = vmatmul.mubr.f32.gmra.mxu0 %v4704
        %v5039 = vpop.f32.mrf.mxu0
        %v5040 = vadd.f32 0.0, %v5039
        %v5041 = vpop.f32.mrf.mxu0
        %5042 = vmatprep.mubr.f32.mxu0 0.0
        %5043 = vmatmul.mubr.f32.gmra.mxu0 %v4707
        %v5044 = vpop.f32.mrf.mxu0
        %v5045 = vadd.f32 0.0, %v5044
        %v5046 = vpop.f32.mrf.mxu0
        %5047 = vmatprep.mubr.f32.mxu0 0.0
        %5048 = vmatmul.mubr.f32.gmra.mxu0 %v4710
        %v5049 = vpop.f32.mrf.mxu0
        %v5050 = vadd.f32 0.0, %v5049
        %v5051 = vpop.f32.mrf.mxu0
        %5052 = vmatprep.mubr.f32.mxu0 0.0
        %5053 = vmatmul.mubr.f32.gmra.mxu0 %v4713
        %v5054 = vpop.f32.mrf.mxu0
        %v5055 = vadd.f32 0.0, %v5054
        %v5056 = vpop.f32.mrf.mxu0
        %5057 = vmatprep.mubr.f32.mxu0 0.0
        %5058 = vmatmul.mubr.f32.gmra.mxu0 %v4716
        %v5059 = vpop.f32.mrf.mxu0
        %v5060 = vadd.f32 0.0, %v5059
        %v5061 = vpop.f32.mrf.mxu0
        %5062 = vmatprep.mubr.f32.mxu0 0.0
        %5063 = vmatmul.mubr.f32.gmra.mxu0 %v4719
        %v5064 = vpop.f32.mrf.mxu0
        %v5065 = vadd.f32 0.0, %v5064
        %v5066 = vpop.f32.mrf.mxu0
        %5067 = vmatprep.mubr.f32.mxu0 0.0
        %5068 = vmatmul.mubr.f32.gmra.mxu0 %v4722
        %v5069 = vpop.f32.mrf.mxu0
        %v5070 = vadd.f32 0.0, %v5069
        %v5071 = vpop.f32.mrf.mxu0
        %5072 = vmatprep.mubr.f32.mxu0 0.0
        %5073 = vmatmul.mubr.f32.gmra.mxu0 %v4725
        %v5074 = vpop.f32.mrf.mxu0
        %v5075 = vadd.f32 0.0, %v5074
        %v5076 = vpop.f32.mrf.mxu0
        %5077 = vmatprep.mubr.f32.mxu0 0.0
        %5078 = vmatmul.mubr.f32.gmra.mxu0 %v4728
        %v5079 = vpop.f32.mrf.mxu0
        %v5080 = vadd.f32 0.0, %v5079
        %v5081 = vpop.f32.mrf.mxu0
        %5082 = vmatprep.mubr.f32.mxu0 0.0
        %5083 = vmatmul.mubr.f32.gmra.mxu0 %v4731
        %v5084 = vpop.f32.mrf.mxu0
        %v5085 = vadd.f32 0.0, %v5084
        %v5086 = vpop.f32.mrf.mxu0
        %5087 = vmatprep.mubr.f32.mxu0 0.0
        %5088 = vmatmul.mubr.f32.gmra.mxu0 %v4734
        %v5089 = vpop.f32.mrf.mxu0
        %v5090 = vadd.f32 0.0, %v5089
        %v5091 = vpop.f32.mrf.mxu0
        %5092 = vmatprep.mubr.f32.mxu0 0.0
        %5093 = vmatmul.mubr.f32.gmra.mxu0 %v4737
        %v5094 = vpop.f32.mrf.mxu0
        %v5095 = vadd.f32 0.0, %v5094
        %v5096 = vpop.f32.mrf.mxu0
        %5097 = vmatprep.mubr.f32.mxu0 0.0
        %5098 = vmatmul.mubr.f32.gmra.mxu0 %v4740
        %v5099 = vpop.f32.mrf.mxu0
        %v5100 = vadd.f32 0.0, %v5099
        %v5101 = vpop.f32.mrf.mxu0
        %5102 = vmatprep.mubr.f32.mxu0 0.0
        %5103 = vmatmul.mubr.f32.gmra.mxu0 %v4743
        %v5104 = vpop.f32.mrf.mxu0
        %v5105 = vadd.f32 0.0, %v5104
        %v5106 = vpop.f32.mrf.mxu0
        %5107 = vmatprep.mubr.f32.mxu0 0.0
        %5108 = vmatmul.mubr.f32.gmra.mxu0 %v4746
        %v5109 = vpop.f32.mrf.mxu0
        %v5110 = vadd.f32 0.0, %v5109
        %v5111 = vpop.f32.mrf.mxu0
        %5112 = vmatprep.mubr.f32.mxu0 0.0
        %5113 = vmatmul.mubr.f32.gmra.mxu0 %v4749
        %v5114 = vpop.f32.mrf.mxu0
        %v5115 = vadd.f32 0.0, %v5114
        %v5116 = vpop.f32.mrf.mxu0
        %5117 = vmatprep.mubr.f32.mxu0 0.0
        %5118 = vmatmul.mubr.f32.gmra.mxu0 %v4752
        %v5119 = vpop.f32.mrf.mxu0
        %v5120 = vadd.f32 0.0, %v5119
        %v5121 = vpop.f32.mrf.mxu0
        %5122 = vmatprep.mubr.f32.mxu0 0.0
        %5123 = vmatmul.mubr.f32.gmra.mxu0 %v4755
        %v5124 = vpop.f32.mrf.mxu0
        %v5125 = vadd.f32 0.0, %v5124
        %v5126 = vpop.f32.mrf.mxu0
        %5127 = vmatprep.mubr.f32.mxu0 0.0
        %5128 = vmatmul.mubr.f32.gmra.mxu0 %v4758
        %v5129 = vpop.f32.mrf.mxu0
        %v5130 = vadd.f32 0.0, %v5129
        %v5131 = vpop.f32.mrf.mxu0
        %5132 = vmatprep.mubr.f32.mxu0 0.0
        %5133 = vmatmul.mubr.f32.gmra.mxu0 %v4761
        %v5134 = vpop.f32.mrf.mxu0
        %v5135 = vadd.f32 0.0, %v5134
        %v5136 = vpop.f32.mrf.mxu0
        %5137 = vmatprep.mubr.f32.mxu0 0.0
        %5138 = vmatmul.mubr.f32.gmra.mxu0 %v4764
        %v5139 = vpop.f32.mrf.mxu0
        %v5140 = vadd.f32 0.0, %v5139
        %v5141 = vpop.f32.mrf.mxu0
        %5142 = vmatprep.mubr.f32.mxu0 0.0
        %5143 = vmatmul.mubr.f32.gmra.mxu0 %v4767
        %v5144 = vpop.f32.mrf.mxu0
        %v5145 = vadd.f32 0.0, %v5144
        %v5146 = vpop.f32.mrf.mxu0
        %5147 = vmatprep.mubr.f32.mxu0 0.0
        %5148 = vmatmul.mubr.f32.gmra.mxu0 %v4770
        %v5149 = vpop.f32.mrf.mxu0
        %v5150 = vadd.f32 0.0, %v5149
        %v5151 = vpop.f32.mrf.mxu0
        %5152 = vmatprep.mubr.f32.mxu0 0.0
        %5153 = vmatmul.mubr.f32.gmra.mxu0 %v4773
        %v5154 = vpop.f32.mrf.mxu0
        %v5155 = vadd.f32 0.0, %v5154
        %v5156 = vpop.f32.mrf.mxu0
        %5157 = vmatprep.mubr.f32.mxu0 0.0
        %5158 = vmatmul.mubr.f32.gmra.mxu0 %v4776
        %v5159 = vpop.f32.mrf.mxu0
        %v5160 = vadd.f32 0.0, %v5159
        %v5161 = vpop.f32.mrf.mxu0
        %5162 = vdwg.mxu0
        %v5163 = vadd.f32 %v4455, %v4845
        %v5164 = vadd.f32 %v4456, %v4850
        %v5165 = vadd.f32 %v4457, %v4855
        %v5166 = vadd.f32 %v4458, %v4860
        %v5167 = vadd.f32 %v4459, %v4865
        %v5168 = vadd.f32 %v4460, %v4870
        %v5169 = vadd.f32 %v4461, %v4875
        %v5170 = vadd.f32 %v4462, %v4880
        %v5171 = vadd.f32 %v4463, %v4885
        %v5172 = vadd.f32 %v4464, %v4890
        %v5173 = vadd.f32 %v4465, %v4895
        %v5174 = vadd.f32 %v4466, %v4900
        %v5175 = vadd.f32 %v4467, %v4905
        %v5176 = vadd.f32 %v4468, %v4910
        %v5177 = vadd.f32 %v4469, %v4915
        %v5178 = vadd.f32 %v4470, %v4920
        %v5179 = vadd.f32 %v4471, %v4925
        %v5180 = vadd.f32 %v4472, %v4930
        %v5181 = vadd.f32 %v4473, %v4935
        %v5182 = vadd.f32 %v4474, %v4940
        %v5183 = vadd.f32 %v4475, %v4945
        %v5184 = vadd.f32 %v4476, %v4950
        %v5185 = vadd.f32 %v4477, %v4955
        %v5186 = vadd.f32 %v4478, %v4960
        %v5187 = vadd.f32 %v4479, %v4965
        %v5188 = vadd.f32 %v4480, %v4970
        %v5189 = vadd.f32 %v4481, %v4975
        %v5190 = vadd.f32 %v4482, %v4980
        %v5191 = vadd.f32 %v4483, %v4985
        %v5192 = vadd.f32 %v4484, %v4990
        %v5193 = vadd.f32 %v4485, %v4995
        %v5194 = vadd.f32 %v4486, %v5000
        %v5195 = vadd.f32 %v4487, %v5005
        %v5196 = vadd.f32 %v4488, %v5010
        %v5197 = vadd.f32 %v4489, %v5015
        %v5198 = vadd.f32 %v4490, %v5020
        %v5199 = vadd.f32 %v4491, %v5025
        %v5200 = vadd.f32 %v4492, %v5030
        %v5201 = vadd.f32 %v4493, %v5035
        %v5202 = vadd.f32 %v4494, %v5040
        %v5203 = vadd.f32 %v4495, %v5045
        %v5204 = vadd.f32 %v4496, %v5050
        %v5205 = vadd.f32 %v4497, %v5055
        %v5206 = vadd.f32 %v4498, %v5060
        %v5207 = vadd.f32 %v4499, %v5065
        %v5208 = vadd.f32 %v4500, %v5070
        %v5209 = vadd.f32 %v4501, %v5075
        %v5210 = vadd.f32 %v4502, %v5080
        %v5211 = vadd.f32 %v4503, %v5085
        %v5212 = vadd.f32 %v4504, %v5090
        %v5213 = vadd.f32 %v4505, %v5095
        %v5214 = vadd.f32 %v4506, %v5100
        %v5215 = vadd.f32 %v4507, %v5105
        %v5216 = vadd.f32 %v4508, %v5110
        %v5217 = vadd.f32 %v4509, %v5115
        %v5218 = vadd.f32 %v4510, %v5120
        %v5219 = vadd.f32 %v4511, %v5125
        %v5220 = vadd.f32 %v4512, %v5130
        %v5221 = vadd.f32 %v4513, %v5135
        %v5222 = vadd.f32 %v4514, %v5140
        %v5223 = vadd.f32 %v4515, %v5145
        %v5224 = vadd.f32 %v4516, %v5150
        %v5225 = vadd.f32 %v4517, %v5155
        %v5226 = vadd.f32 %v4518, %v5160
        %v5227 = vld [vmem:[#allocation2 + $0x2a] sm:$0xff]
        %v5228 = vld [vmem:[#allocation2 + $0x32] sm:$0xff]
        %v5229 = vld [vmem:[#allocation2 + $0x3a] sm:$0xff]
        %v5230 = vld [vmem:[#allocation2 + $0x42] sm:$0xff]
        %v5231 = vld [vmem:[#allocation2 + $0x4a] sm:$0xff]
        %v5232 = vld [vmem:[#allocation2 + $0x52] sm:$0xff]
        %v5233 = vld [vmem:[#allocation2 + $0x5a] sm:$0xff]
        %v5234 = vld [vmem:[#allocation2 + $0x62] sm:$0xff]
        %v5235 = vld [vmem:[#allocation2 + $0x6a] sm:$0xff]
        %v5236 = vld [vmem:[#allocation2 + $0x72] sm:$0xff]
        %v5237 = vld [vmem:[#allocation2 + $0x7a] sm:$0xff]
        %v5238 = vld [vmem:[#allocation2 + $0x82] sm:$0xff]
        %v5239 = vld [vmem:[#allocation2 + $0x8a] sm:$0xff]
        %v5240 = vld [vmem:[#allocation2 + $0x92] sm:$0xff]
        %v5241 = vld [vmem:[#allocation2 + $0x9a] sm:$0xff]
        %v5242 = vld [vmem:[#allocation2 + $0xa2] sm:$0xff]
        %v5243 = vld [vmem:[#allocation2 + $0xaa] sm:$0xff]
        %v5244 = vld [vmem:[#allocation2 + $0xb2] sm:$0xff]
        %v5245 = vld [vmem:[#allocation2 + $0xba] sm:$0xff]
        %v5246 = vld [vmem:[#allocation2 + $0xc2] sm:$0xff]
        %v5247 = vld [vmem:[#allocation2 + $0xca] sm:$0xff]
        %v5248 = vld [vmem:[#allocation2 + $0xd2] sm:$0xff]
        %v5249 = vld [vmem:[#allocation2 + $0xda] sm:$0xff]
        %v5250 = vld [vmem:[#allocation2 + $0xe2] sm:$0xff]
        %v5251 = vld [vmem:[#allocation2 + $0xea] sm:$0xff]
        %v5252 = vld [vmem:[#allocation2 + $0xf2] sm:$0xff]
        %v5253 = vld [vmem:[#allocation2 + $0xfa] sm:$0xff]
        %v5254 = vld [vmem:[#allocation2 + $0x102] sm:$0xff]
        %v5255 = vld [vmem:[#allocation2 + $0x10a] sm:$0xff]
        %v5256 = vld [vmem:[#allocation2 + $0x112] sm:$0xff]
        %v5257 = vld [vmem:[#allocation2 + $0x11a] sm:$0xff]
        %v5258 = vld [vmem:[#allocation2 + $0x122] sm:$0xff]
        %v5259 = vld [vmem:[#allocation2 + $0x12a] sm:$0xff]
        %v5260 = vld [vmem:[#allocation2 + $0x132] sm:$0xff]
        %v5261 = vld [vmem:[#allocation2 + $0x13a] sm:$0xff]
        %v5262 = vld [vmem:[#allocation2 + $0x142] sm:$0xff]
        %v5263 = vld [vmem:[#allocation2 + $0x14a] sm:$0xff]
        %v5264 = vld [vmem:[#allocation2 + $0x152] sm:$0xff]
        %v5265 = vld [vmem:[#allocation2 + $0x15a] sm:$0xff]
        %v5266 = vld [vmem:[#allocation2 + $0x162] sm:$0xff]
        %v5267 = vld [vmem:[#allocation2 + $0x16a] sm:$0xff]
        %v5268 = vld [vmem:[#allocation2 + $0x172] sm:$0xff]
        %v5269 = vld [vmem:[#allocation2 + $0x17a] sm:$0xff]
        %v5270 = vld [vmem:[#allocation2 + $0x182] sm:$0xff]
        %v5271 = vld [vmem:[#allocation2 + $0x18a] sm:$0xff]
        %v5272 = vld [vmem:[#allocation2 + $0x192] sm:$0xff]
        %v5273 = vld [vmem:[#allocation2 + $0x19a] sm:$0xff]
        %v5274 = vld [vmem:[#allocation2 + $0x1a2] sm:$0xff]
        %v5275 = vld [vmem:[#allocation2 + $0x1aa] sm:$0xff]
        %v5276 = vld [vmem:[#allocation2 + $0x1b2] sm:$0xff]
        %v5277 = vld [vmem:[#allocation2 + $0x1ba] sm:$0xff]
        %v5278 = vld [vmem:[#allocation2 + $0x1c2] sm:$0xff]
        %v5279 = vld [vmem:[#allocation2 + $0x1ca] sm:$0xff]
        %v5280 = vld [vmem:[#allocation2 + $0x1d2] sm:$0xff]
        %v5281 = vld [vmem:[#allocation2 + $0x1da] sm:$0xff]
        %v5282 = vld [vmem:[#allocation2 + $0x1e2] sm:$0xff]
        %v5283 = vld [vmem:[#allocation2 + $0x1ea] sm:$0xff]
        %v5284 = vld [vmem:[#allocation2 + $0x1f2] sm:$0xff]
        %v5285 = vld [vmem:[#allocation2 + $0x1fa] sm:$0xff]
        %v5286 = vld [vmem:[#allocation2 + $0x202] sm:$0xff]
        %v5287 = vld [vmem:[#allocation2 + $0x20a] sm:$0xff]
        %v5288 = vld [vmem:[#allocation2 + $0x212] sm:$0xff]
        %v5289 = vld [vmem:[#allocation2 + $0x21a] sm:$0xff]
        %v5290 = vld [vmem:[#allocation2 + $0x222] sm:$0xff]
        %s5291 = scalar_lea.vmem %s2, 112
        %v5292 = vld [vmem:[%s5291] sm:$0xff]
        %v5293 = vld [vmem:[%s5291 + $0x8] sm:$0xff]
        %v5295 = vsel %vm532, %v5227, 0
        %v5298 = vsel %vm532, %v5228, 0
        %v5301 = vsel %vm532, %v5229, 0
        %v5304 = vsel %vm532, %v5230, 0
        %v5307 = vsel %vm532, %v5231, 0
        %v5310 = vsel %vm532, %v5232, 0
        %v5313 = vsel %vm532, %v5233, 0
        %v5316 = vsel %vm532, %v5234, 0
        %v5319 = vsel %vm532, %v5235, 0
        %v5322 = vsel %vm532, %v5236, 0
        %v5325 = vsel %vm532, %v5237, 0
        %v5328 = vsel %vm532, %v5238, 0
        %v5331 = vsel %vm532, %v5239, 0
        %v5334 = vsel %vm532, %v5240, 0
        %v5337 = vsel %vm532, %v5241, 0
        %v5340 = vsel %vm532, %v5242, 0
        %v5343 = vsel %vm532, %v5243, 0
        %v5346 = vsel %vm532, %v5244, 0
        %v5349 = vsel %vm532, %v5245, 0
        %v5352 = vsel %vm532, %v5246, 0
        %v5355 = vsel %vm532, %v5247, 0
        %v5358 = vsel %vm532, %v5248, 0
        %v5361 = vsel %vm532, %v5249, 0
        %v5364 = vsel %vm532, %v5250, 0
        %v5367 = vsel %vm532, %v5251, 0
        %v5370 = vsel %vm532, %v5252, 0
        %v5373 = vsel %vm532, %v5253, 0
        %v5376 = vsel %vm532, %v5254, 0
        %v5379 = vsel %vm532, %v5255, 0
        %v5382 = vsel %vm532, %v5256, 0
        %v5385 = vsel %vm532, %v5257, 0
        %v5388 = vsel %vm532, %v5258, 0
        %v5391 = vsel %vm532, %v5259, 0
        %v5394 = vsel %vm532, %v5260, 0
        %v5397 = vsel %vm532, %v5261, 0
        %v5400 = vsel %vm532, %v5262, 0
        %v5403 = vsel %vm532, %v5263, 0
        %v5406 = vsel %vm532, %v5264, 0
        %v5409 = vsel %vm532, %v5265, 0
        %v5412 = vsel %vm532, %v5266, 0
        %v5415 = vsel %vm532, %v5267, 0
        %v5418 = vsel %vm532, %v5268, 0
        %v5421 = vsel %vm532, %v5269, 0
        %v5424 = vsel %vm532, %v5270, 0
        %v5427 = vsel %vm532, %v5271, 0
        %v5430 = vsel %vm532, %v5272, 0
        %v5433 = vsel %vm532, %v5273, 0
        %v5436 = vsel %vm532, %v5274, 0
        %v5439 = vsel %vm532, %v5275, 0
        %v5442 = vsel %vm532, %v5276, 0
        %v5445 = vsel %vm532, %v5277, 0
        %v5448 = vsel %vm532, %v5278, 0
        %v5451 = vsel %vm532, %v5279, 0
        %v5454 = vsel %vm532, %v5280, 0
        %v5457 = vsel %vm532, %v5281, 0
        %v5460 = vsel %vm532, %v5282, 0
        %v5463 = vsel %vm532, %v5283, 0
        %v5466 = vsel %vm532, %v5284, 0
        %v5469 = vsel %vm532, %v5285, 0
        %v5472 = vsel %vm532, %v5286, 0
        %v5475 = vsel %vm532, %v5287, 0
        %v5478 = vsel %vm532, %v5288, 0
        %v5481 = vsel %vm532, %v5289, 0
        %v5484 = vsel %vm532, %v5290, 0
        %5486 = vmatprep.subr.mxu0 0.0
        %5487 = vmatpush1.msra.mxu0 0.0
        %5488 = vmatprep.subr.mxu0 0.0
        %5489 = vmatpush1.msra.mxu0 0.0
        %5490 = vmatprep.subr.mxu0 0.0
        %5491 = vmatpush1.msra.mxu0 0.0
        %5492 = vmatprep.subr.mxu0 0.0
        %5493 = vmatpush1.msra.mxu0 0.0
        %5494 = vmatprep.subr.mxu0 0.0
        %5495 = vmatpush1.msra.mxu0 0.0
        %5496 = vmatprep.subr.mxu0 0.0
        %5497 = vmatpush1.msra.mxu0 0.0
        %5498 = vmatprep.subr.mxu0 0.0
        %5499 = vmatpush1.msra.mxu0 0.0
        %5500 = vmatprep.subr.mxu0 0.0
        %5501 = vmatpush1.msra.mxu0 0.0
        %5502 = vmatprep.subr.mxu0 0.0
        %5503 = vmatpush1.msra.mxu0 0.0
        %5504 = vmatprep.subr.mxu0 0.0
        %5505 = vmatpush1.msra.mxu0 0.0
        %5506 = vmatprep.subr.mxu0 0.0
        %5507 = vmatpush1.msra.mxu0 0.0
        %5508 = vmatprep.subr.mxu0 0.0
        %5509 = vmatpush1.msra.mxu0 0.0
        %5510 = vmatprep.subr.mxu0 0.0
        %5511 = vmatpush1.msra.mxu0 0.0
        %5512 = vmatprep.subr.mxu0 0.0
        %5513 = vmatpush1.msra.mxu0 0.0
        %5514 = vmatprep.subr.mxu0 0.0
        %5515 = vmatpush1.msra.mxu0 %v5293
        %5516 = vmatprep.subr.mxu0 0.0
        %5517 = vmatpush1.msra.mxu0 %v5292
        %5518 = vmatprep.subr.mxu0 0.0
        %5519 = vmatpush2.msra.mxu0 0.0
        %5520 = vmatprep.subr.mxu0 0.0
        %5521 = vmatpush2.msra.mxu0 0.0
        %5522 = vmatprep.subr.mxu0 0.0
        %5523 = vmatpush2.msra.mxu0 0.0
        %5524 = vmatprep.subr.mxu0 0.0
        %5525 = vmatpush2.msra.mxu0 0.0
        %5526 = vmatprep.subr.mxu0 0.0
        %5527 = vmatpush2.msra.mxu0 0.0
        %5528 = vmatprep.subr.mxu0 0.0
        %5529 = vmatpush2.msra.mxu0 0.0
        %5530 = vmatprep.subr.mxu0 0.0
        %5531 = vmatpush2.msra.mxu0 0.0
        %5532 = vmatprep.subr.mxu0 0.0
        %5533 = vmatpush2.msra.mxu0 0.0
        %5534 = vmatprep.subr.mxu0 0.0
        %5535 = vmatpush2.msra.mxu0 0.0
        %5536 = vmatprep.subr.mxu0 0.0
        %5537 = vmatpush2.msra.mxu0 0.0
        %5538 = vmatprep.subr.mxu0 0.0
        %5539 = vmatpush2.msra.mxu0 0.0
        %5540 = vmatprep.subr.mxu0 0.0
        %5541 = vmatpush2.msra.mxu0 0.0
        %5542 = vmatprep.subr.mxu0 0.0
        %5543 = vmatpush2.msra.mxu0 0.0
        %5544 = vmatprep.subr.mxu0 0.0
        %5545 = vmatpush2.msra.mxu0 0.0
        %5546 = vmatprep.subr.mxu0 0.0
        %5547 = vmatpush2.msra.mxu0 0.0
        %5548 = vmatprep.subr.mxu0 0.0
        %5549 = vmatpush2.msra.mxu0 0.0
        %5550 = vmatprep.mubr.f32.mxu0 0.0
        %5551 = vmatmul.mubr.f32.gmra.mxu0 %v5295
        %v5552 = vpop.f32.mrf.mxu0
        %v5553 = vadd.f32 0.0, %v5552
        %v5554 = vpop.f32.mrf.mxu0
        %5555 = vmatprep.mubr.f32.mxu0 0.0
        %5556 = vmatmul.mubr.f32.gmra.mxu0 %v5298
        %v5557 = vpop.f32.mrf.mxu0
        %v5558 = vadd.f32 0.0, %v5557
        %v5559 = vpop.f32.mrf.mxu0
        %5560 = vmatprep.mubr.f32.mxu0 0.0
        %5561 = vmatmul.mubr.f32.gmra.mxu0 %v5301
        %v5562 = vpop.f32.mrf.mxu0
        %v5563 = vadd.f32 0.0, %v5562
        %v5564 = vpop.f32.mrf.mxu0
        %5565 = vmatprep.mubr.f32.mxu0 0.0
        %5566 = vmatmul.mubr.f32.gmra.mxu0 %v5304
        %v5567 = vpop.f32.mrf.mxu0
        %v5568 = vadd.f32 0.0, %v5567
        %v5569 = vpop.f32.mrf.mxu0
        %5570 = vmatprep.mubr.f32.mxu0 0.0
        %5571 = vmatmul.mubr.f32.gmra.mxu0 %v5307
        %v5572 = vpop.f32.mrf.mxu0
        %v5573 = vadd.f32 0.0, %v5572
        %v5574 = vpop.f32.mrf.mxu0
        %5575 = vmatprep.mubr.f32.mxu0 0.0
        %5576 = vmatmul.mubr.f32.gmra.mxu0 %v5310
        %v5577 = vpop.f32.mrf.mxu0
        %v5578 = vadd.f32 0.0, %v5577
        %v5579 = vpop.f32.mrf.mxu0
        %5580 = vmatprep.mubr.f32.mxu0 0.0
        %5581 = vmatmul.mubr.f32.gmra.mxu0 %v5313
        %v5582 = vpop.f32.mrf.mxu0
        %v5583 = vadd.f32 0.0, %v5582
        %v5584 = vpop.f32.mrf.mxu0
        %5585 = vmatprep.mubr.f32.mxu0 0.0
        %5586 = vmatmul.mubr.f32.gmra.mxu0 %v5316
        %v5587 = vpop.f32.mrf.mxu0
        %v5588 = vadd.f32 0.0, %v5587
        %v5589 = vpop.f32.mrf.mxu0
        %5590 = vmatprep.mubr.f32.mxu0 0.0
        %5591 = vmatmul.mubr.f32.gmra.mxu0 %v5319
        %v5592 = vpop.f32.mrf.mxu0
        %v5593 = vadd.f32 0.0, %v5592
        %v5594 = vpop.f32.mrf.mxu0
        %5595 = vmatprep.mubr.f32.mxu0 0.0
        %5596 = vmatmul.mubr.f32.gmra.mxu0 %v5322
        %v5597 = vpop.f32.mrf.mxu0
        %v5598 = vadd.f32 0.0, %v5597
        %v5599 = vpop.f32.mrf.mxu0
        %5600 = vmatprep.mubr.f32.mxu0 0.0
        %5601 = vmatmul.mubr.f32.gmra.mxu0 %v5325
        %v5602 = vpop.f32.mrf.mxu0
        %v5603 = vadd.f32 0.0, %v5602
        %v5604 = vpop.f32.mrf.mxu0
        %5605 = vmatprep.mubr.f32.mxu0 0.0
        %5606 = vmatmul.mubr.f32.gmra.mxu0 %v5328
        %v5607 = vpop.f32.mrf.mxu0
        %v5608 = vadd.f32 0.0, %v5607
        %v5609 = vpop.f32.mrf.mxu0
        %5610 = vmatprep.mubr.f32.mxu0 0.0
        %5611 = vmatmul.mubr.f32.gmra.mxu0 %v5331
        %v5612 = vpop.f32.mrf.mxu0
        %v5613 = vadd.f32 0.0, %v5612
        %v5614 = vpop.f32.mrf.mxu0
        %5615 = vmatprep.mubr.f32.mxu0 0.0
        %5616 = vmatmul.mubr.f32.gmra.mxu0 %v5334
        %v5617 = vpop.f32.mrf.mxu0
        %v5618 = vadd.f32 0.0, %v5617
        %v5619 = vpop.f32.mrf.mxu0
        %5620 = vmatprep.mubr.f32.mxu0 0.0
        %5621 = vmatmul.mubr.f32.gmra.mxu0 %v5337
        %v5622 = vpop.f32.mrf.mxu0
        %v5623 = vadd.f32 0.0, %v5622
        %v5624 = vpop.f32.mrf.mxu0
        %5625 = vmatprep.mubr.f32.mxu0 0.0
        %5626 = vmatmul.mubr.f32.gmra.mxu0 %v5340
        %v5627 = vpop.f32.mrf.mxu0
        %v5628 = vadd.f32 0.0, %v5627
        %v5629 = vpop.f32.mrf.mxu0
        %5630 = vmatprep.mubr.f32.mxu0 0.0
        %5631 = vmatmul.mubr.f32.gmra.mxu0 %v5343
        %v5632 = vpop.f32.mrf.mxu0
        %v5633 = vadd.f32 0.0, %v5632
        %v5634 = vpop.f32.mrf.mxu0
        %5635 = vmatprep.mubr.f32.mxu0 0.0
        %5636 = vmatmul.mubr.f32.gmra.mxu0 %v5346
        %v5637 = vpop.f32.mrf.mxu0
        %v5638 = vadd.f32 0.0, %v5637
        %v5639 = vpop.f32.mrf.mxu0
        %5640 = vmatprep.mubr.f32.mxu0 0.0
        %5641 = vmatmul.mubr.f32.gmra.mxu0 %v5349
        %v5642 = vpop.f32.mrf.mxu0
        %v5643 = vadd.f32 0.0, %v5642
        %v5644 = vpop.f32.mrf.mxu0
        %5645 = vmatprep.mubr.f32.mxu0 0.0
        %5646 = vmatmul.mubr.f32.gmra.mxu0 %v5352
        %v5647 = vpop.f32.mrf.mxu0
        %v5648 = vadd.f32 0.0, %v5647
        %v5649 = vpop.f32.mrf.mxu0
        %5650 = vmatprep.mubr.f32.mxu0 0.0
        %5651 = vmatmul.mubr.f32.gmra.mxu0 %v5355
        %v5652 = vpop.f32.mrf.mxu0
        %v5653 = vadd.f32 0.0, %v5652
        %v5654 = vpop.f32.mrf.mxu0
        %5655 = vmatprep.mubr.f32.mxu0 0.0
        %5656 = vmatmul.mubr.f32.gmra.mxu0 %v5358
        %v5657 = vpop.f32.mrf.mxu0
        %v5658 = vadd.f32 0.0, %v5657
        %v5659 = vpop.f32.mrf.mxu0
        %5660 = vmatprep.mubr.f32.mxu0 0.0
        %5661 = vmatmul.mubr.f32.gmra.mxu0 %v5361
        %v5662 = vpop.f32.mrf.mxu0
        %v5663 = vadd.f32 0.0, %v5662
        %v5664 = vpop.f32.mrf.mxu0
        %5665 = vmatprep.mubr.f32.mxu0 0.0
        %5666 = vmatmul.mubr.f32.gmra.mxu0 %v5364
        %v5667 = vpop.f32.mrf.mxu0
        %v5668 = vadd.f32 0.0, %v5667
        %v5669 = vpop.f32.mrf.mxu0
        %5670 = vmatprep.mubr.f32.mxu0 0.0
        %5671 = vmatmul.mubr.f32.gmra.mxu0 %v5367
        %v5672 = vpop.f32.mrf.mxu0
        %v5673 = vadd.f32 0.0, %v5672
        %v5674 = vpop.f32.mrf.mxu0
        %5675 = vmatprep.mubr.f32.mxu0 0.0
        %5676 = vmatmul.mubr.f32.gmra.mxu0 %v5370
        %v5677 = vpop.f32.mrf.mxu0
        %v5678 = vadd.f32 0.0, %v5677
        %v5679 = vpop.f32.mrf.mxu0
        %5680 = vmatprep.mubr.f32.mxu0 0.0
        %5681 = vmatmul.mubr.f32.gmra.mxu0 %v5373
        %v5682 = vpop.f32.mrf.mxu0
        %v5683 = vadd.f32 0.0, %v5682
        %v5684 = vpop.f32.mrf.mxu0
        %5685 = vmatprep.mubr.f32.mxu0 0.0
        %5686 = vmatmul.mubr.f32.gmra.mxu0 %v5376
        %v5687 = vpop.f32.mrf.mxu0
        %v5688 = vadd.f32 0.0, %v5687
        %v5689 = vpop.f32.mrf.mxu0
        %5690 = vmatprep.mubr.f32.mxu0 0.0
        %5691 = vmatmul.mubr.f32.gmra.mxu0 %v5379
        %v5692 = vpop.f32.mrf.mxu0
        %v5693 = vadd.f32 0.0, %v5692
        %v5694 = vpop.f32.mrf.mxu0
        %5695 = vmatprep.mubr.f32.mxu0 0.0
        %5696 = vmatmul.mubr.f32.gmra.mxu0 %v5382
        %v5697 = vpop.f32.mrf.mxu0
        %v5698 = vadd.f32 0.0, %v5697
        %v5699 = vpop.f32.mrf.mxu0
        %5700 = vmatprep.mubr.f32.mxu0 0.0
        %5701 = vmatmul.mubr.f32.gmra.mxu0 %v5385
        %v5702 = vpop.f32.mrf.mxu0
        %v5703 = vadd.f32 0.0, %v5702
        %v5704 = vpop.f32.mrf.mxu0
        %5705 = vmatprep.mubr.f32.mxu0 0.0
        %5706 = vmatmul.mubr.f32.gmra.mxu0 %v5388
        %v5707 = vpop.f32.mrf.mxu0
        %v5708 = vadd.f32 0.0, %v5707
        %v5709 = vpop.f32.mrf.mxu0
        %5710 = vmatprep.mubr.f32.mxu0 0.0
        %5711 = vmatmul.mubr.f32.gmra.mxu0 %v5391
        %v5712 = vpop.f32.mrf.mxu0
        %v5713 = vadd.f32 0.0, %v5712
        %v5714 = vpop.f32.mrf.mxu0
        %5715 = vmatprep.mubr.f32.mxu0 0.0
        %5716 = vmatmul.mubr.f32.gmra.mxu0 %v5394
        %v5717 = vpop.f32.mrf.mxu0
        %v5718 = vadd.f32 0.0, %v5717
        %v5719 = vpop.f32.mrf.mxu0
        %5720 = vmatprep.mubr.f32.mxu0 0.0
        %5721 = vmatmul.mubr.f32.gmra.mxu0 %v5397
        %v5722 = vpop.f32.mrf.mxu0
        %v5723 = vadd.f32 0.0, %v5722
        %v5724 = vpop.f32.mrf.mxu0
        %5725 = vmatprep.mubr.f32.mxu0 0.0
        %5726 = vmatmul.mubr.f32.gmra.mxu0 %v5400
        %v5727 = vpop.f32.mrf.mxu0
        %v5728 = vadd.f32 0.0, %v5727
        %v5729 = vpop.f32.mrf.mxu0
        %5730 = vmatprep.mubr.f32.mxu0 0.0
        %5731 = vmatmul.mubr.f32.gmra.mxu0 %v5403
        %v5732 = vpop.f32.mrf.mxu0
        %v5733 = vadd.f32 0.0, %v5732
        %v5734 = vpop.f32.mrf.mxu0
        %5735 = vmatprep.mubr.f32.mxu0 0.0
        %5736 = vmatmul.mubr.f32.gmra.mxu0 %v5406
        %v5737 = vpop.f32.mrf.mxu0
        %v5738 = vadd.f32 0.0, %v5737
        %v5739 = vpop.f32.mrf.mxu0
        %5740 = vmatprep.mubr.f32.mxu0 0.0
        %5741 = vmatmul.mubr.f32.gmra.mxu0 %v5409
        %v5742 = vpop.f32.mrf.mxu0
        %v5743 = vadd.f32 0.0, %v5742
        %v5744 = vpop.f32.mrf.mxu0
        %5745 = vmatprep.mubr.f32.mxu0 0.0
        %5746 = vmatmul.mubr.f32.gmra.mxu0 %v5412
        %v5747 = vpop.f32.mrf.mxu0
        %v5748 = vadd.f32 0.0, %v5747
        %v5749 = vpop.f32.mrf.mxu0
        %5750 = vmatprep.mubr.f32.mxu0 0.0
        %5751 = vmatmul.mubr.f32.gmra.mxu0 %v5415
        %v5752 = vpop.f32.mrf.mxu0
        %v5753 = vadd.f32 0.0, %v5752
        %v5754 = vpop.f32.mrf.mxu0
        %5755 = vmatprep.mubr.f32.mxu0 0.0
        %5756 = vmatmul.mubr.f32.gmra.mxu0 %v5418
        %v5757 = vpop.f32.mrf.mxu0
        %v5758 = vadd.f32 0.0, %v5757
        %v5759 = vpop.f32.mrf.mxu0
        %5760 = vmatprep.mubr.f32.mxu0 0.0
        %5761 = vmatmul.mubr.f32.gmra.mxu0 %v5421
        %v5762 = vpop.f32.mrf.mxu0
        %v5763 = vadd.f32 0.0, %v5762
        %v5764 = vpop.f32.mrf.mxu0
        %5765 = vmatprep.mubr.f32.mxu0 0.0
        %5766 = vmatmul.mubr.f32.gmra.mxu0 %v5424
        %v5767 = vpop.f32.mrf.mxu0
        %v5768 = vadd.f32 0.0, %v5767
        %v5769 = vpop.f32.mrf.mxu0
        %5770 = vmatprep.mubr.f32.mxu0 0.0
        %5771 = vmatmul.mubr.f32.gmra.mxu0 %v5427
        %v5772 = vpop.f32.mrf.mxu0
        %v5773 = vadd.f32 0.0, %v5772
        %v5774 = vpop.f32.mrf.mxu0
        %5775 = vmatprep.mubr.f32.mxu0 0.0
        %5776 = vmatmul.mubr.f32.gmra.mxu0 %v5430
        %v5777 = vpop.f32.mrf.mxu0
        %v5778 = vadd.f32 0.0, %v5777
        %v5779 = vpop.f32.mrf.mxu0
        %5780 = vmatprep.mubr.f32.mxu0 0.0
        %5781 = vmatmul.mubr.f32.gmra.mxu0 %v5433
        %v5782 = vpop.f32.mrf.mxu0
        %v5783 = vadd.f32 0.0, %v5782
        %v5784 = vpop.f32.mrf.mxu0
        %5785 = vmatprep.mubr.f32.mxu0 0.0
        %5786 = vmatmul.mubr.f32.gmra.mxu0 %v5436
        %v5787 = vpop.f32.mrf.mxu0
        %v5788 = vadd.f32 0.0, %v5787
        %v5789 = vpop.f32.mrf.mxu0
        %5790 = vmatprep.mubr.f32.mxu0 0.0
        %5791 = vmatmul.mubr.f32.gmra.mxu0 %v5439
        %v5792 = vpop.f32.mrf.mxu0
        %v5793 = vadd.f32 0.0, %v5792
        %v5794 = vpop.f32.mrf.mxu0
        %5795 = vmatprep.mubr.f32.mxu0 0.0
        %5796 = vmatmul.mubr.f32.gmra.mxu0 %v5442
        %v5797 = vpop.f32.mrf.mxu0
        %v5798 = vadd.f32 0.0, %v5797
        %v5799 = vpop.f32.mrf.mxu0
        %5800 = vmatprep.mubr.f32.mxu0 0.0
        %5801 = vmatmul.mubr.f32.gmra.mxu0 %v5445
        %v5802 = vpop.f32.mrf.mxu0
        %v5803 = vadd.f32 0.0, %v5802
        %v5804 = vpop.f32.mrf.mxu0
        %5805 = vmatprep.mubr.f32.mxu0 0.0
        %5806 = vmatmul.mubr.f32.gmra.mxu0 %v5448
        %v5807 = vpop.f32.mrf.mxu0
        %v5808 = vadd.f32 0.0, %v5807
        %v5809 = vpop.f32.mrf.mxu0
        %5810 = vmatprep.mubr.f32.mxu0 0.0
        %5811 = vmatmul.mubr.f32.gmra.mxu0 %v5451
        %v5812 = vpop.f32.mrf.mxu0
        %v5813 = vadd.f32 0.0, %v5812
        %v5814 = vpop.f32.mrf.mxu0
        %5815 = vmatprep.mubr.f32.mxu0 0.0
        %5816 = vmatmul.mubr.f32.gmra.mxu0 %v5454
        %v5817 = vpop.f32.mrf.mxu0
        %v5818 = vadd.f32 0.0, %v5817
        %v5819 = vpop.f32.mrf.mxu0
        %5820 = vmatprep.mubr.f32.mxu0 0.0
        %5821 = vmatmul.mubr.f32.gmra.mxu0 %v5457
        %v5822 = vpop.f32.mrf.mxu0
        %v5823 = vadd.f32 0.0, %v5822
        %v5824 = vpop.f32.mrf.mxu0
        %5825 = vmatprep.mubr.f32.mxu0 0.0
        %5826 = vmatmul.mubr.f32.gmra.mxu0 %v5460
        %v5827 = vpop.f32.mrf.mxu0
        %v5828 = vadd.f32 0.0, %v5827
        %v5829 = vpop.f32.mrf.mxu0
        %5830 = vmatprep.mubr.f32.mxu0 0.0
        %5831 = vmatmul.mubr.f32.gmra.mxu0 %v5463
        %v5832 = vpop.f32.mrf.mxu0
        %v5833 = vadd.f32 0.0, %v5832
        %v5834 = vpop.f32.mrf.mxu0
        %5835 = vmatprep.mubr.f32.mxu0 0.0
        %5836 = vmatmul.mubr.f32.gmra.mxu0 %v5466
        %v5837 = vpop.f32.mrf.mxu0
        %v5838 = vadd.f32 0.0, %v5837
        %v5839 = vpop.f32.mrf.mxu0
        %5840 = vmatprep.mubr.f32.mxu0 0.0
        %5841 = vmatmul.mubr.f32.gmra.mxu0 %v5469
        %v5842 = vpop.f32.mrf.mxu0
        %v5843 = vadd.f32 0.0, %v5842
        %v5844 = vpop.f32.mrf.mxu0
        %5845 = vmatprep.mubr.f32.mxu0 0.0
        %5846 = vmatmul.mubr.f32.gmra.mxu0 %v5472
        %v5847 = vpop.f32.mrf.mxu0
        %v5848 = vadd.f32 0.0, %v5847
        %v5849 = vpop.f32.mrf.mxu0
        %5850 = vmatprep.mubr.f32.mxu0 0.0
        %5851 = vmatmul.mubr.f32.gmra.mxu0 %v5475
        %v5852 = vpop.f32.mrf.mxu0
        %v5853 = vadd.f32 0.0, %v5852
        %v5854 = vpop.f32.mrf.mxu0
        %5855 = vmatprep.mubr.f32.mxu0 0.0
        %5856 = vmatmul.mubr.f32.gmra.mxu0 %v5478
        %v5857 = vpop.f32.mrf.mxu0
        %v5858 = vadd.f32 0.0, %v5857
        %v5859 = vpop.f32.mrf.mxu0
        %5860 = vmatprep.mubr.f32.mxu0 0.0
        %5861 = vmatmul.mubr.f32.gmra.mxu0 %v5481
        %v5862 = vpop.f32.mrf.mxu0
        %v5863 = vadd.f32 0.0, %v5862
        %v5864 = vpop.f32.mrf.mxu0
        %5865 = vmatprep.mubr.f32.mxu0 0.0
        %5866 = vmatmul.mubr.f32.gmra.mxu0 %v5484
        %v5867 = vpop.f32.mrf.mxu0
        %v5868 = vadd.f32 0.0, %v5867
        %v5869 = vpop.f32.mrf.mxu0
        %5870 = vdwg.mxu0
        %v5871 = vadd.f32 %v5163, %v5553
        %v5872 = vadd.f32 %v5164, %v5558
        %v5873 = vadd.f32 %v5165, %v5563
        %v5874 = vadd.f32 %v5166, %v5568
        %v5875 = vadd.f32 %v5167, %v5573
        %v5876 = vadd.f32 %v5168, %v5578
        %v5877 = vadd.f32 %v5169, %v5583
        %v5878 = vadd.f32 %v5170, %v5588
        %v5879 = vadd.f32 %v5171, %v5593
        %v5880 = vadd.f32 %v5172, %v5598
        %v5881 = vadd.f32 %v5173, %v5603
        %v5882 = vadd.f32 %v5174, %v5608
        %v5883 = vadd.f32 %v5175, %v5613
        %v5884 = vadd.f32 %v5176, %v5618
        %v5885 = vadd.f32 %v5177, %v5623
        %v5886 = vadd.f32 %v5178, %v5628
        %v5887 = vadd.f32 %v5179, %v5633
        %v5888 = vadd.f32 %v5180, %v5638
        %v5889 = vadd.f32 %v5181, %v5643
        %v5890 = vadd.f32 %v5182, %v5648
        %v5891 = vadd.f32 %v5183, %v5653
        %v5892 = vadd.f32 %v5184, %v5658
        %v5893 = vadd.f32 %v5185, %v5663
        %v5894 = vadd.f32 %v5186, %v5668
        %v5895 = vadd.f32 %v5187, %v5673
        %v5896 = vadd.f32 %v5188, %v5678
        %v5897 = vadd.f32 %v5189, %v5683
        %v5898 = vadd.f32 %v5190, %v5688
        %v5899 = vadd.f32 %v5191, %v5693
        %v5900 = vadd.f32 %v5192, %v5698
        %v5901 = vadd.f32 %v5193, %v5703
        %v5902 = vadd.f32 %v5194, %v5708
        %v5903 = vadd.f32 %v5195, %v5713
        %v5904 = vadd.f32 %v5196, %v5718
        %v5905 = vadd.f32 %v5197, %v5723
        %v5906 = vadd.f32 %v5198, %v5728
        %v5907 = vadd.f32 %v5199, %v5733
        %v5908 = vadd.f32 %v5200, %v5738
        %v5909 = vadd.f32 %v5201, %v5743
        %v5910 = vadd.f32 %v5202, %v5748
        %v5911 = vadd.f32 %v5203, %v5753
        %v5912 = vadd.f32 %v5204, %v5758
        %v5913 = vadd.f32 %v5205, %v5763
        %v5914 = vadd.f32 %v5206, %v5768
        %v5915 = vadd.f32 %v5207, %v5773
        %v5916 = vadd.f32 %v5208, %v5778
        %v5917 = vadd.f32 %v5209, %v5783
        %v5918 = vadd.f32 %v5210, %v5788
        %v5919 = vadd.f32 %v5211, %v5793
        %v5920 = vadd.f32 %v5212, %v5798
        %v5921 = vadd.f32 %v5213, %v5803
        %v5922 = vadd.f32 %v5214, %v5808
        %v5923 = vadd.f32 %v5215, %v5813
        %v5924 = vadd.f32 %v5216, %v5818
        %v5925 = vadd.f32 %v5217, %v5823
        %v5926 = vadd.f32 %v5218, %v5828
        %v5927 = vadd.f32 %v5219, %v5833
        %v5928 = vadd.f32 %v5220, %v5838
        %v5929 = vadd.f32 %v5221, %v5843
        %v5930 = vadd.f32 %v5222, %v5848
        %v5931 = vadd.f32 %v5223, %v5853
        %v5932 = vadd.f32 %v5224, %v5858
        %v5933 = vadd.f32 %v5225, %v5863
        %v5934 = vadd.f32 %v5226, %v5868
        %v5935 = vld [vmem:[#allocation2 + $0x2b] sm:$0xff]
        %v5936 = vld [vmem:[#allocation2 + $0x33] sm:$0xff]
        %v5937 = vld [vmem:[#allocation2 + $0x3b] sm:$0xff]
        %v5938 = vld [vmem:[#allocation2 + $0x43] sm:$0xff]
        %v5939 = vld [vmem:[#allocation2 + $0x4b] sm:$0xff]
        %v5940 = vld [vmem:[#allocation2 + $0x53] sm:$0xff]
        %v5941 = vld [vmem:[#allocation2 + $0x5b] sm:$0xff]
        %v5942 = vld [vmem:[#allocation2 + $0x63] sm:$0xff]
        %v5943 = vld [vmem:[#allocation2 + $0x6b] sm:$0xff]
        %v5944 = vld [vmem:[#allocation2 + $0x73] sm:$0xff]
        %v5945 = vld [vmem:[#allocation2 + $0x7b] sm:$0xff]
        %v5946 = vld [vmem:[#allocation2 + $0x83] sm:$0xff]
        %v5947 = vld [vmem:[#allocation2 + $0x8b] sm:$0xff]
        %v5948 = vld [vmem:[#allocation2 + $0x93] sm:$0xff]
        %v5949 = vld [vmem:[#allocation2 + $0x9b] sm:$0xff]
        %v5950 = vld [vmem:[#allocation2 + $0xa3] sm:$0xff]
        %v5951 = vld [vmem:[#allocation2 + $0xab] sm:$0xff]
        %v5952 = vld [vmem:[#allocation2 + $0xb3] sm:$0xff]
        %v5953 = vld [vmem:[#allocation2 + $0xbb] sm:$0xff]
        %v5954 = vld [vmem:[#allocation2 + $0xc3] sm:$0xff]
        %v5955 = vld [vmem:[#allocation2 + $0xcb] sm:$0xff]
        %v5956 = vld [vmem:[#allocation2 + $0xd3] sm:$0xff]
        %v5957 = vld [vmem:[#allocation2 + $0xdb] sm:$0xff]
        %v5958 = vld [vmem:[#allocation2 + $0xe3] sm:$0xff]
        %v5959 = vld [vmem:[#allocation2 + $0xeb] sm:$0xff]
        %v5960 = vld [vmem:[#allocation2 + $0xf3] sm:$0xff]
        %v5961 = vld [vmem:[#allocation2 + $0xfb] sm:$0xff]
        %v5962 = vld [vmem:[#allocation2 + $0x103] sm:$0xff]
        %v5963 = vld [vmem:[#allocation2 + $0x10b] sm:$0xff]
        %v5964 = vld [vmem:[#allocation2 + $0x113] sm:$0xff]
        %v5965 = vld [vmem:[#allocation2 + $0x11b] sm:$0xff]
        %v5966 = vld [vmem:[#allocation2 + $0x123] sm:$0xff]
        %v5967 = vld [vmem:[#allocation2 + $0x12b] sm:$0xff]
        %v5968 = vld [vmem:[#allocation2 + $0x133] sm:$0xff]
        %v5969 = vld [vmem:[#allocation2 + $0x13b] sm:$0xff]
        %v5970 = vld [vmem:[#allocation2 + $0x143] sm:$0xff]
        %v5971 = vld [vmem:[#allocation2 + $0x14b] sm:$0xff]
        %v5972 = vld [vmem:[#allocation2 + $0x153] sm:$0xff]
        %v5973 = vld [vmem:[#allocation2 + $0x15b] sm:$0xff]
        %v5974 = vld [vmem:[#allocation2 + $0x163] sm:$0xff]
        %v5975 = vld [vmem:[#allocation2 + $0x16b] sm:$0xff]
        %v5976 = vld [vmem:[#allocation2 + $0x173] sm:$0xff]
        %v5977 = vld [vmem:[#allocation2 + $0x17b] sm:$0xff]
        %v5978 = vld [vmem:[#allocation2 + $0x183] sm:$0xff]
        %v5979 = vld [vmem:[#allocation2 + $0x18b] sm:$0xff]
        %v5980 = vld [vmem:[#allocation2 + $0x193] sm:$0xff]
        %v5981 = vld [vmem:[#allocation2 + $0x19b] sm:$0xff]
        %v5982 = vld [vmem:[#allocation2 + $0x1a3] sm:$0xff]
        %v5983 = vld [vmem:[#allocation2 + $0x1ab] sm:$0xff]
        %v5984 = vld [vmem:[#allocation2 + $0x1b3] sm:$0xff]
        %v5985 = vld [vmem:[#allocation2 + $0x1bb] sm:$0xff]
        %v5986 = vld [vmem:[#allocation2 + $0x1c3] sm:$0xff]
        %v5987 = vld [vmem:[#allocation2 + $0x1cb] sm:$0xff]
        %v5988 = vld [vmem:[#allocation2 + $0x1d3] sm:$0xff]
        %v5989 = vld [vmem:[#allocation2 + $0x1db] sm:$0xff]
        %v5990 = vld [vmem:[#allocation2 + $0x1e3] sm:$0xff]
        %v5991 = vld [vmem:[#allocation2 + $0x1eb] sm:$0xff]
        %v5992 = vld [vmem:[#allocation2 + $0x1f3] sm:$0xff]
        %v5993 = vld [vmem:[#allocation2 + $0x1fb] sm:$0xff]
        %v5994 = vld [vmem:[#allocation2 + $0x203] sm:$0xff]
        %v5995 = vld [vmem:[#allocation2 + $0x20b] sm:$0xff]
        %v5996 = vld [vmem:[#allocation2 + $0x213] sm:$0xff]
        %v5997 = vld [vmem:[#allocation2 + $0x21b] sm:$0xff]
        %v5998 = vld [vmem:[#allocation2 + $0x223] sm:$0xff]
        %s5999 = scalar_lea.vmem %s2, 128
        %v6000 = vld [vmem:[%s5999] sm:$0xff]
        %v6001 = vld [vmem:[%s5999 + $0x8] sm:$0xff]
        %v6003 = vsel %vm532, %v5935, 0
        %v6006 = vsel %vm532, %v5936, 0
        %v6009 = vsel %vm532, %v5937, 0
        %v6012 = vsel %vm532, %v5938, 0
        %v6015 = vsel %vm532, %v5939, 0
        %v6018 = vsel %vm532, %v5940, 0
        %v6021 = vsel %vm532, %v5941, 0
        %v6024 = vsel %vm532, %v5942, 0
        %v6027 = vsel %vm532, %v5943, 0
        %v6030 = vsel %vm532, %v5944, 0
        %v6033 = vsel %vm532, %v5945, 0
        %v6036 = vsel %vm532, %v5946, 0
        %v6039 = vsel %vm532, %v5947, 0
        %v6042 = vsel %vm532, %v5948, 0
        %v6045 = vsel %vm532, %v5949, 0
        %v6048 = vsel %vm532, %v5950, 0
        %v6051 = vsel %vm532, %v5951, 0
        %v6054 = vsel %vm532, %v5952, 0
        %v6057 = vsel %vm532, %v5953, 0
        %v6060 = vsel %vm532, %v5954, 0
        %v6063 = vsel %vm532, %v5955, 0
        %v6066 = vsel %vm532, %v5956, 0
        %v6069 = vsel %vm532, %v5957, 0
        %v6072 = vsel %vm532, %v5958, 0
        %v6075 = vsel %vm532, %v5959, 0
        %v6078 = vsel %vm532, %v5960, 0
        %v6081 = vsel %vm532, %v5961, 0
        %v6084 = vsel %vm532, %v5962, 0
        %v6087 = vsel %vm532, %v5963, 0
        %v6090 = vsel %vm532, %v5964, 0
        %v6093 = vsel %vm532, %v5965, 0
        %v6096 = vsel %vm532, %v5966, 0
        %v6099 = vsel %vm532, %v5967, 0
        %v6102 = vsel %vm532, %v5968, 0
        %v6105 = vsel %vm532, %v5969, 0
        %v6108 = vsel %vm532, %v5970, 0
        %v6111 = vsel %vm532, %v5971, 0
        %v6114 = vsel %vm532, %v5972, 0
        %v6117 = vsel %vm532, %v5973, 0
        %v6120 = vsel %vm532, %v5974, 0
        %v6123 = vsel %vm532, %v5975, 0
        %v6126 = vsel %vm532, %v5976, 0
        %v6129 = vsel %vm532, %v5977, 0
        %v6132 = vsel %vm532, %v5978, 0
        %v6135 = vsel %vm532, %v5979, 0
        %v6138 = vsel %vm532, %v5980, 0
        %v6141 = vsel %vm532, %v5981, 0
        %v6144 = vsel %vm532, %v5982, 0
        %v6147 = vsel %vm532, %v5983, 0
        %v6150 = vsel %vm532, %v5984, 0
        %v6153 = vsel %vm532, %v5985, 0
        %v6156 = vsel %vm532, %v5986, 0
        %v6159 = vsel %vm532, %v5987, 0
        %v6162 = vsel %vm532, %v5988, 0
        %v6165 = vsel %vm532, %v5989, 0
        %v6168 = vsel %vm532, %v5990, 0
        %v6171 = vsel %vm532, %v5991, 0
        %v6174 = vsel %vm532, %v5992, 0
        %v6177 = vsel %vm532, %v5993, 0
        %v6180 = vsel %vm532, %v5994, 0
        %v6183 = vsel %vm532, %v5995, 0
        %v6186 = vsel %vm532, %v5996, 0
        %v6189 = vsel %vm532, %v5997, 0
        %v6192 = vsel %vm532, %v5998, 0
        %6194 = vmatprep.subr.mxu0 0.0
        %6195 = vmatpush1.msra.mxu0 0.0
        %6196 = vmatprep.subr.mxu0 0.0
        %6197 = vmatpush1.msra.mxu0 0.0
        %6198 = vmatprep.subr.mxu0 0.0
        %6199 = vmatpush1.msra.mxu0 0.0
        %6200 = vmatprep.subr.mxu0 0.0
        %6201 = vmatpush1.msra.mxu0 0.0
        %6202 = vmatprep.subr.mxu0 0.0
        %6203 = vmatpush1.msra.mxu0 0.0
        %6204 = vmatprep.subr.mxu0 0.0
        %6205 = vmatpush1.msra.mxu0 0.0
        %6206 = vmatprep.subr.mxu0 0.0
        %6207 = vmatpush1.msra.mxu0 0.0
        %6208 = vmatprep.subr.mxu0 0.0
        %6209 = vmatpush1.msra.mxu0 0.0
        %6210 = vmatprep.subr.mxu0 0.0
        %6211 = vmatpush1.msra.mxu0 0.0
        %6212 = vmatprep.subr.mxu0 0.0
        %6213 = vmatpush1.msra.mxu0 0.0
        %6214 = vmatprep.subr.mxu0 0.0
        %6215 = vmatpush1.msra.mxu0 0.0
        %6216 = vmatprep.subr.mxu0 0.0
        %6217 = vmatpush1.msra.mxu0 0.0
        %6218 = vmatprep.subr.mxu0 0.0
        %6219 = vmatpush1.msra.mxu0 0.0
        %6220 = vmatprep.subr.mxu0 0.0
        %6221 = vmatpush1.msra.mxu0 0.0
        %6222 = vmatprep.subr.mxu0 0.0
        %6223 = vmatpush1.msra.mxu0 %v6001
        %6224 = vmatprep.subr.mxu0 0.0
        %6225 = vmatpush1.msra.mxu0 %v6000
        %6226 = vmatprep.subr.mxu0 0.0
        %6227 = vmatpush2.msra.mxu0 0.0
        %6228 = vmatprep.subr.mxu0 0.0
        %6229 = vmatpush2.msra.mxu0 0.0
        %6230 = vmatprep.subr.mxu0 0.0
        %6231 = vmatpush2.msra.mxu0 0.0
        %6232 = vmatprep.subr.mxu0 0.0
        %6233 = vmatpush2.msra.mxu0 0.0
        %6234 = vmatprep.subr.mxu0 0.0
        %6235 = vmatpush2.msra.mxu0 0.0
        %6236 = vmatprep.subr.mxu0 0.0
        %6237 = vmatpush2.msra.mxu0 0.0
        %6238 = vmatprep.subr.mxu0 0.0
        %6239 = vmatpush2.msra.mxu0 0.0
        %6240 = vmatprep.subr.mxu0 0.0
        %6241 = vmatpush2.msra.mxu0 0.0
        %6242 = vmatprep.subr.mxu0 0.0
        %6243 = vmatpush2.msra.mxu0 0.0
        %6244 = vmatprep.subr.mxu0 0.0
        %6245 = vmatpush2.msra.mxu0 0.0
        %6246 = vmatprep.subr.mxu0 0.0
        %6247 = vmatpush2.msra.mxu0 0.0
        %6248 = vmatprep.subr.mxu0 0.0
        %6249 = vmatpush2.msra.mxu0 0.0
        %6250 = vmatprep.subr.mxu0 0.0
        %6251 = vmatpush2.msra.mxu0 0.0
        %6252 = vmatprep.subr.mxu0 0.0
        %6253 = vmatpush2.msra.mxu0 0.0
        %6254 = vmatprep.subr.mxu0 0.0
        %6255 = vmatpush2.msra.mxu0 0.0
        %6256 = vmatprep.subr.mxu0 0.0
        %6257 = vmatpush2.msra.mxu0 0.0
        %6258 = vmatprep.mubr.f32.mxu0 0.0
        %6259 = vmatmul.mubr.f32.gmra.mxu0 %v6003
        %v6260 = vpop.f32.mrf.mxu0
        %v6261 = vadd.f32 0.0, %v6260
        %v6262 = vpop.f32.mrf.mxu0
        %6263 = vmatprep.mubr.f32.mxu0 0.0
        %6264 = vmatmul.mubr.f32.gmra.mxu0 %v6006
        %v6265 = vpop.f32.mrf.mxu0
        %v6266 = vadd.f32 0.0, %v6265
        %v6267 = vpop.f32.mrf.mxu0
        %6268 = vmatprep.mubr.f32.mxu0 0.0
        %6269 = vmatmul.mubr.f32.gmra.mxu0 %v6009
        %v6270 = vpop.f32.mrf.mxu0
        %v6271 = vadd.f32 0.0, %v6270
        %v6272 = vpop.f32.mrf.mxu0
        %6273 = vmatprep.mubr.f32.mxu0 0.0
        %6274 = vmatmul.mubr.f32.gmra.mxu0 %v6012
        %v6275 = vpop.f32.mrf.mxu0
        %v6276 = vadd.f32 0.0, %v6275
        %v6277 = vpop.f32.mrf.mxu0
        %6278 = vmatprep.mubr.f32.mxu0 0.0
        %6279 = vmatmul.mubr.f32.gmra.mxu0 %v6015
        %v6280 = vpop.f32.mrf.mxu0
        %v6281 = vadd.f32 0.0, %v6280
        %v6282 = vpop.f32.mrf.mxu0
        %6283 = vmatprep.mubr.f32.mxu0 0.0
        %6284 = vmatmul.mubr.f32.gmra.mxu0 %v6018
        %v6285 = vpop.f32.mrf.mxu0
        %v6286 = vadd.f32 0.0, %v6285
        %v6287 = vpop.f32.mrf.mxu0
        %6288 = vmatprep.mubr.f32.mxu0 0.0
        %6289 = vmatmul.mubr.f32.gmra.mxu0 %v6021
        %v6290 = vpop.f32.mrf.mxu0
        %v6291 = vadd.f32 0.0, %v6290
        %v6292 = vpop.f32.mrf.mxu0
        %6293 = vmatprep.mubr.f32.mxu0 0.0
        %6294 = vmatmul.mubr.f32.gmra.mxu0 %v6024
        %v6295 = vpop.f32.mrf.mxu0
        %v6296 = vadd.f32 0.0, %v6295
        %v6297 = vpop.f32.mrf.mxu0
        %6298 = vmatprep.mubr.f32.mxu0 0.0
        %6299 = vmatmul.mubr.f32.gmra.mxu0 %v6027
        %v6300 = vpop.f32.mrf.mxu0
        %v6301 = vadd.f32 0.0, %v6300
        %v6302 = vpop.f32.mrf.mxu0
        %6303 = vmatprep.mubr.f32.mxu0 0.0
        %6304 = vmatmul.mubr.f32.gmra.mxu0 %v6030
        %v6305 = vpop.f32.mrf.mxu0
        %v6306 = vadd.f32 0.0, %v6305
        %v6307 = vpop.f32.mrf.mxu0
        %6308 = vmatprep.mubr.f32.mxu0 0.0
        %6309 = vmatmul.mubr.f32.gmra.mxu0 %v6033
        %v6310 = vpop.f32.mrf.mxu0
        %v6311 = vadd.f32 0.0, %v6310
        %v6312 = vpop.f32.mrf.mxu0
        %6313 = vmatprep.mubr.f32.mxu0 0.0
        %6314 = vmatmul.mubr.f32.gmra.mxu0 %v6036
        %v6315 = vpop.f32.mrf.mxu0
        %v6316 = vadd.f32 0.0, %v6315
        %v6317 = vpop.f32.mrf.mxu0
        %6318 = vmatprep.mubr.f32.mxu0 0.0
        %6319 = vmatmul.mubr.f32.gmra.mxu0 %v6039
        %v6320 = vpop.f32.mrf.mxu0
        %v6321 = vadd.f32 0.0, %v6320
        %v6322 = vpop.f32.mrf.mxu0
        %6323 = vmatprep.mubr.f32.mxu0 0.0
        %6324 = vmatmul.mubr.f32.gmra.mxu0 %v6042
        %v6325 = vpop.f32.mrf.mxu0
        %v6326 = vadd.f32 0.0, %v6325
        %v6327 = vpop.f32.mrf.mxu0
        %6328 = vmatprep.mubr.f32.mxu0 0.0
        %6329 = vmatmul.mubr.f32.gmra.mxu0 %v6045
        %v6330 = vpop.f32.mrf.mxu0
        %v6331 = vadd.f32 0.0, %v6330
        %v6332 = vpop.f32.mrf.mxu0
        %6333 = vmatprep.mubr.f32.mxu0 0.0
        %6334 = vmatmul.mubr.f32.gmra.mxu0 %v6048
        %v6335 = vpop.f32.mrf.mxu0
        %v6336 = vadd.f32 0.0, %v6335
        %v6337 = vpop.f32.mrf.mxu0
        %6338 = vmatprep.mubr.f32.mxu0 0.0
        %6339 = vmatmul.mubr.f32.gmra.mxu0 %v6051
        %v6340 = vpop.f32.mrf.mxu0
        %v6341 = vadd.f32 0.0, %v6340
        %v6342 = vpop.f32.mrf.mxu0
        %6343 = vmatprep.mubr.f32.mxu0 0.0
        %6344 = vmatmul.mubr.f32.gmra.mxu0 %v6054
        %v6345 = vpop.f32.mrf.mxu0
        %v6346 = vadd.f32 0.0, %v6345
        %v6347 = vpop.f32.mrf.mxu0
        %6348 = vmatprep.mubr.f32.mxu0 0.0
        %6349 = vmatmul.mubr.f32.gmra.mxu0 %v6057
        %v6350 = vpop.f32.mrf.mxu0
        %v6351 = vadd.f32 0.0, %v6350
        %v6352 = vpop.f32.mrf.mxu0
        %6353 = vmatprep.mubr.f32.mxu0 0.0
        %6354 = vmatmul.mubr.f32.gmra.mxu0 %v6060
        %v6355 = vpop.f32.mrf.mxu0
        %v6356 = vadd.f32 0.0, %v6355
        %v6357 = vpop.f32.mrf.mxu0
        %6358 = vmatprep.mubr.f32.mxu0 0.0
        %6359 = vmatmul.mubr.f32.gmra.mxu0 %v6063
        %v6360 = vpop.f32.mrf.mxu0
        %v6361 = vadd.f32 0.0, %v6360
        %v6362 = vpop.f32.mrf.mxu0
        %6363 = vmatprep.mubr.f32.mxu0 0.0
        %6364 = vmatmul.mubr.f32.gmra.mxu0 %v6066
        %v6365 = vpop.f32.mrf.mxu0
        %v6366 = vadd.f32 0.0, %v6365
        %v6367 = vpop.f32.mrf.mxu0
        %6368 = vmatprep.mubr.f32.mxu0 0.0
        %6369 = vmatmul.mubr.f32.gmra.mxu0 %v6069
        %v6370 = vpop.f32.mrf.mxu0
        %v6371 = vadd.f32 0.0, %v6370
        %v6372 = vpop.f32.mrf.mxu0
        %6373 = vmatprep.mubr.f32.mxu0 0.0
        %6374 = vmatmul.mubr.f32.gmra.mxu0 %v6072
        %v6375 = vpop.f32.mrf.mxu0
        %v6376 = vadd.f32 0.0, %v6375
        %v6377 = vpop.f32.mrf.mxu0
        %6378 = vmatprep.mubr.f32.mxu0 0.0
        %6379 = vmatmul.mubr.f32.gmra.mxu0 %v6075
        %v6380 = vpop.f32.mrf.mxu0
        %v6381 = vadd.f32 0.0, %v6380
        %v6382 = vpop.f32.mrf.mxu0
        %6383 = vmatprep.mubr.f32.mxu0 0.0
        %6384 = vmatmul.mubr.f32.gmra.mxu0 %v6078
        %v6385 = vpop.f32.mrf.mxu0
        %v6386 = vadd.f32 0.0, %v6385
        %v6387 = vpop.f32.mrf.mxu0
        %6388 = vmatprep.mubr.f32.mxu0 0.0
        %6389 = vmatmul.mubr.f32.gmra.mxu0 %v6081
        %v6390 = vpop.f32.mrf.mxu0
        %v6391 = vadd.f32 0.0, %v6390
        %v6392 = vpop.f32.mrf.mxu0
        %6393 = vmatprep.mubr.f32.mxu0 0.0
        %6394 = vmatmul.mubr.f32.gmra.mxu0 %v6084
        %v6395 = vpop.f32.mrf.mxu0
        %v6396 = vadd.f32 0.0, %v6395
        %v6397 = vpop.f32.mrf.mxu0
        %6398 = vmatprep.mubr.f32.mxu0 0.0
        %6399 = vmatmul.mubr.f32.gmra.mxu0 %v6087
        %v6400 = vpop.f32.mrf.mxu0
        %v6401 = vadd.f32 0.0, %v6400
        %v6402 = vpop.f32.mrf.mxu0
        %6403 = vmatprep.mubr.f32.mxu0 0.0
        %6404 = vmatmul.mubr.f32.gmra.mxu0 %v6090
        %v6405 = vpop.f32.mrf.mxu0
        %v6406 = vadd.f32 0.0, %v6405
        %v6407 = vpop.f32.mrf.mxu0
        %6408 = vmatprep.mubr.f32.mxu0 0.0
        %6409 = vmatmul.mubr.f32.gmra.mxu0 %v6093
        %v6410 = vpop.f32.mrf.mxu0
        %v6411 = vadd.f32 0.0, %v6410
        %v6412 = vpop.f32.mrf.mxu0
        %6413 = vmatprep.mubr.f32.mxu0 0.0
        %6414 = vmatmul.mubr.f32.gmra.mxu0 %v6096
        %v6415 = vpop.f32.mrf.mxu0
        %v6416 = vadd.f32 0.0, %v6415
        %v6417 = vpop.f32.mrf.mxu0
        %6418 = vmatprep.mubr.f32.mxu0 0.0
        %6419 = vmatmul.mubr.f32.gmra.mxu0 %v6099
        %v6420 = vpop.f32.mrf.mxu0
        %v6421 = vadd.f32 0.0, %v6420
        %v6422 = vpop.f32.mrf.mxu0
        %6423 = vmatprep.mubr.f32.mxu0 0.0
        %6424 = vmatmul.mubr.f32.gmra.mxu0 %v6102
        %v6425 = vpop.f32.mrf.mxu0
        %v6426 = vadd.f32 0.0, %v6425
        %v6427 = vpop.f32.mrf.mxu0
        %6428 = vmatprep.mubr.f32.mxu0 0.0
        %6429 = vmatmul.mubr.f32.gmra.mxu0 %v6105
        %v6430 = vpop.f32.mrf.mxu0
        %v6431 = vadd.f32 0.0, %v6430
        %v6432 = vpop.f32.mrf.mxu0
        %6433 = vmatprep.mubr.f32.mxu0 0.0
        %6434 = vmatmul.mubr.f32.gmra.mxu0 %v6108
        %v6435 = vpop.f32.mrf.mxu0
        %v6436 = vadd.f32 0.0, %v6435
        %v6437 = vpop.f32.mrf.mxu0
        %6438 = vmatprep.mubr.f32.mxu0 0.0
        %6439 = vmatmul.mubr.f32.gmra.mxu0 %v6111
        %v6440 = vpop.f32.mrf.mxu0
        %v6441 = vadd.f32 0.0, %v6440
        %v6442 = vpop.f32.mrf.mxu0
        %6443 = vmatprep.mubr.f32.mxu0 0.0
        %6444 = vmatmul.mubr.f32.gmra.mxu0 %v6114
        %v6445 = vpop.f32.mrf.mxu0
        %v6446 = vadd.f32 0.0, %v6445
        %v6447 = vpop.f32.mrf.mxu0
        %6448 = vmatprep.mubr.f32.mxu0 0.0
        %6449 = vmatmul.mubr.f32.gmra.mxu0 %v6117
        %v6450 = vpop.f32.mrf.mxu0
        %v6451 = vadd.f32 0.0, %v6450
        %v6452 = vpop.f32.mrf.mxu0
        %6453 = vmatprep.mubr.f32.mxu0 0.0
        %6454 = vmatmul.mubr.f32.gmra.mxu0 %v6120
        %v6455 = vpop.f32.mrf.mxu0
        %v6456 = vadd.f32 0.0, %v6455
        %v6457 = vpop.f32.mrf.mxu0
        %6458 = vmatprep.mubr.f32.mxu0 0.0
        %6459 = vmatmul.mubr.f32.gmra.mxu0 %v6123
        %v6460 = vpop.f32.mrf.mxu0
        %v6461 = vadd.f32 0.0, %v6460
        %v6462 = vpop.f32.mrf.mxu0
        %6463 = vmatprep.mubr.f32.mxu0 0.0
        %6464 = vmatmul.mubr.f32.gmra.mxu0 %v6126
        %v6465 = vpop.f32.mrf.mxu0
        %v6466 = vadd.f32 0.0, %v6465
        %v6467 = vpop.f32.mrf.mxu0
        %6468 = vmatprep.mubr.f32.mxu0 0.0
        %6469 = vmatmul.mubr.f32.gmra.mxu0 %v6129
        %v6470 = vpop.f32.mrf.mxu0
        %v6471 = vadd.f32 0.0, %v6470
        %v6472 = vpop.f32.mrf.mxu0
        %6473 = vmatprep.mubr.f32.mxu0 0.0
        %6474 = vmatmul.mubr.f32.gmra.mxu0 %v6132
        %v6475 = vpop.f32.mrf.mxu0
        %v6476 = vadd.f32 0.0, %v6475
        %v6477 = vpop.f32.mrf.mxu0
        %6478 = vmatprep.mubr.f32.mxu0 0.0
        %6479 = vmatmul.mubr.f32.gmra.mxu0 %v6135
        %v6480 = vpop.f32.mrf.mxu0
        %v6481 = vadd.f32 0.0, %v6480
        %v6482 = vpop.f32.mrf.mxu0
        %6483 = vmatprep.mubr.f32.mxu0 0.0
        %6484 = vmatmul.mubr.f32.gmra.mxu0 %v6138
        %v6485 = vpop.f32.mrf.mxu0
        %v6486 = vadd.f32 0.0, %v6485
        %v6487 = vpop.f32.mrf.mxu0
        %6488 = vmatprep.mubr.f32.mxu0 0.0
        %6489 = vmatmul.mubr.f32.gmra.mxu0 %v6141
        %v6490 = vpop.f32.mrf.mxu0
        %v6491 = vadd.f32 0.0, %v6490
        %v6492 = vpop.f32.mrf.mxu0
        %6493 = vmatprep.mubr.f32.mxu0 0.0
        %6494 = vmatmul.mubr.f32.gmra.mxu0 %v6144
        %v6495 = vpop.f32.mrf.mxu0
        %v6496 = vadd.f32 0.0, %v6495
        %v6497 = vpop.f32.mrf.mxu0
        %6498 = vmatprep.mubr.f32.mxu0 0.0
        %6499 = vmatmul.mubr.f32.gmra.mxu0 %v6147
        %v6500 = vpop.f32.mrf.mxu0
        %v6501 = vadd.f32 0.0, %v6500
        %v6502 = vpop.f32.mrf.mxu0
        %6503 = vmatprep.mubr.f32.mxu0 0.0
        %6504 = vmatmul.mubr.f32.gmra.mxu0 %v6150
        %v6505 = vpop.f32.mrf.mxu0
        %v6506 = vadd.f32 0.0, %v6505
        %v6507 = vpop.f32.mrf.mxu0
        %6508 = vmatprep.mubr.f32.mxu0 0.0
        %6509 = vmatmul.mubr.f32.gmra.mxu0 %v6153
        %v6510 = vpop.f32.mrf.mxu0
        %v6511 = vadd.f32 0.0, %v6510
        %v6512 = vpop.f32.mrf.mxu0
        %6513 = vmatprep.mubr.f32.mxu0 0.0
        %6514 = vmatmul.mubr.f32.gmra.mxu0 %v6156
        %v6515 = vpop.f32.mrf.mxu0
        %v6516 = vadd.f32 0.0, %v6515
        %v6517 = vpop.f32.mrf.mxu0
        %6518 = vmatprep.mubr.f32.mxu0 0.0
        %6519 = vmatmul.mubr.f32.gmra.mxu0 %v6159
        %v6520 = vpop.f32.mrf.mxu0
        %v6521 = vadd.f32 0.0, %v6520
        %v6522 = vpop.f32.mrf.mxu0
        %6523 = vmatprep.mubr.f32.mxu0 0.0
        %6524 = vmatmul.mubr.f32.gmra.mxu0 %v6162
        %v6525 = vpop.f32.mrf.mxu0
        %v6526 = vadd.f32 0.0, %v6525
        %v6527 = vpop.f32.mrf.mxu0
        %6528 = vmatprep.mubr.f32.mxu0 0.0
        %6529 = vmatmul.mubr.f32.gmra.mxu0 %v6165
        %v6530 = vpop.f32.mrf.mxu0
        %v6531 = vadd.f32 0.0, %v6530
        %v6532 = vpop.f32.mrf.mxu0
        %6533 = vmatprep.mubr.f32.mxu0 0.0
        %6534 = vmatmul.mubr.f32.gmra.mxu0 %v6168
        %v6535 = vpop.f32.mrf.mxu0
        %v6536 = vadd.f32 0.0, %v6535
        %v6537 = vpop.f32.mrf.mxu0
        %6538 = vmatprep.mubr.f32.mxu0 0.0
        %6539 = vmatmul.mubr.f32.gmra.mxu0 %v6171
        %v6540 = vpop.f32.mrf.mxu0
        %v6541 = vadd.f32 0.0, %v6540
        %v6542 = vpop.f32.mrf.mxu0
        %6543 = vmatprep.mubr.f32.mxu0 0.0
        %6544 = vmatmul.mubr.f32.gmra.mxu0 %v6174
        %v6545 = vpop.f32.mrf.mxu0
        %v6546 = vadd.f32 0.0, %v6545
        %v6547 = vpop.f32.mrf.mxu0
        %6548 = vmatprep.mubr.f32.mxu0 0.0
        %6549 = vmatmul.mubr.f32.gmra.mxu0 %v6177
        %v6550 = vpop.f32.mrf.mxu0
        %v6551 = vadd.f32 0.0, %v6550
        %v6552 = vpop.f32.mrf.mxu0
        %6553 = vmatprep.mubr.f32.mxu0 0.0
        %6554 = vmatmul.mubr.f32.gmra.mxu0 %v6180
        %v6555 = vpop.f32.mrf.mxu0
        %v6556 = vadd.f32 0.0, %v6555
        %v6557 = vpop.f32.mrf.mxu0
        %6558 = vmatprep.mubr.f32.mxu0 0.0
        %6559 = vmatmul.mubr.f32.gmra.mxu0 %v6183
        %v6560 = vpop.f32.mrf.mxu0
        %v6561 = vadd.f32 0.0, %v6560
        %v6562 = vpop.f32.mrf.mxu0
        %6563 = vmatprep.mubr.f32.mxu0 0.0
        %6564 = vmatmul.mubr.f32.gmra.mxu0 %v6186
        %v6565 = vpop.f32.mrf.mxu0
        %v6566 = vadd.f32 0.0, %v6565
        %v6567 = vpop.f32.mrf.mxu0
        %6568 = vmatprep.mubr.f32.mxu0 0.0
        %6569 = vmatmul.mubr.f32.gmra.mxu0 %v6189
        %v6570 = vpop.f32.mrf.mxu0
        %v6571 = vadd.f32 0.0, %v6570
        %v6572 = vpop.f32.mrf.mxu0
        %6573 = vmatprep.mubr.f32.mxu0 0.0
        %6574 = vmatmul.mubr.f32.gmra.mxu0 %v6192
        %v6575 = vpop.f32.mrf.mxu0
        %v6576 = vadd.f32 0.0, %v6575
        %v6577 = vpop.f32.mrf.mxu0
        %6578 = vdwg.mxu0
        %v6579 = vadd.f32 %v5871, %v6261
        %v6580 = vadd.f32 %v5872, %v6266
        %v6581 = vadd.f32 %v5873, %v6271
        %v6582 = vadd.f32 %v5874, %v6276
        %v6583 = vadd.f32 %v5875, %v6281
        %v6584 = vadd.f32 %v5876, %v6286
        %v6585 = vadd.f32 %v5877, %v6291
        %v6586 = vadd.f32 %v5878, %v6296
        %v6587 = vadd.f32 %v5879, %v6301
        %v6588 = vadd.f32 %v5880, %v6306
        %v6589 = vadd.f32 %v5881, %v6311
        %v6590 = vadd.f32 %v5882, %v6316
        %v6591 = vadd.f32 %v5883, %v6321
        %v6592 = vadd.f32 %v5884, %v6326
        %v6593 = vadd.f32 %v5885, %v6331
        %v6594 = vadd.f32 %v5886, %v6336
        %v6595 = vadd.f32 %v5887, %v6341
        %v6596 = vadd.f32 %v5888, %v6346
        %v6597 = vadd.f32 %v5889, %v6351
        %v6598 = vadd.f32 %v5890, %v6356
        %v6599 = vadd.f32 %v5891, %v6361
        %v6600 = vadd.f32 %v5892, %v6366
        %v6601 = vadd.f32 %v5893, %v6371
        %v6602 = vadd.f32 %v5894, %v6376
        %v6603 = vadd.f32 %v5895, %v6381
        %v6604 = vadd.f32 %v5896, %v6386
        %v6605 = vadd.f32 %v5897, %v6391
        %v6606 = vadd.f32 %v5898, %v6396
        %v6607 = vadd.f32 %v5899, %v6401
        %v6608 = vadd.f32 %v5900, %v6406
        %v6609 = vadd.f32 %v5901, %v6411
        %v6610 = vadd.f32 %v5902, %v6416
        %v6611 = vadd.f32 %v5903, %v6421
        %v6612 = vadd.f32 %v5904, %v6426
        %v6613 = vadd.f32 %v5905, %v6431
        %v6614 = vadd.f32 %v5906, %v6436
        %v6615 = vadd.f32 %v5907, %v6441
        %v6616 = vadd.f32 %v5908, %v6446
        %v6617 = vadd.f32 %v5909, %v6451
        %v6618 = vadd.f32 %v5910, %v6456
        %v6619 = vadd.f32 %v5911, %v6461
        %v6620 = vadd.f32 %v5912, %v6466
        %v6621 = vadd.f32 %v5913, %v6471
        %v6622 = vadd.f32 %v5914, %v6476
        %v6623 = vadd.f32 %v5915, %v6481
        %v6624 = vadd.f32 %v5916, %v6486
        %v6625 = vadd.f32 %v5917, %v6491
        %v6626 = vadd.f32 %v5918, %v6496
        %v6627 = vadd.f32 %v5919, %v6501
        %v6628 = vadd.f32 %v5920, %v6506
        %v6629 = vadd.f32 %v5921, %v6511
        %v6630 = vadd.f32 %v5922, %v6516
        %v6631 = vadd.f32 %v5923, %v6521
        %v6632 = vadd.f32 %v5924, %v6526
        %v6633 = vadd.f32 %v5925, %v6531
        %v6634 = vadd.f32 %v5926, %v6536
        %v6635 = vadd.f32 %v5927, %v6541
        %v6636 = vadd.f32 %v5928, %v6546
        %v6637 = vadd.f32 %v5929, %v6551
        %v6638 = vadd.f32 %v5930, %v6556
        %v6639 = vadd.f32 %v5931, %v6561
        %v6640 = vadd.f32 %v5932, %v6566
        %v6641 = vadd.f32 %v5933, %v6571
        %v6642 = vadd.f32 %v5934, %v6576
        %v6643 = vld [vmem:[%s3] sm:$0x1]
        %v6645 = vlaneseq
        %v6646 = vshrl.u32 %v6645, 7
        %v6647 = vsub.s32 0, %v6646
        %v6648 = vrot.slane %v6643, %v6647
        %v6650 = vadd.f32 %v6579, %v6648
        %v6651 = vadd.f32 %v6580, %v6648
        %v6652 = vadd.f32 %v6581, %v6648
        %v6653 = vadd.f32 %v6582, %v6648
        %v6654 = vadd.f32 %v6583, %v6648
        %v6655 = vadd.f32 %v6584, %v6648
        %v6656 = vadd.f32 %v6585, %v6648
        %v6657 = vadd.f32 %v6586, %v6648
        %v6658 = vadd.f32 %v6587, %v6648
        %v6659 = vadd.f32 %v6588, %v6648
        %v6660 = vadd.f32 %v6589, %v6648
        %v6661 = vadd.f32 %v6590, %v6648
        %v6662 = vadd.f32 %v6591, %v6648
        %v6663 = vadd.f32 %v6592, %v6648
        %v6664 = vadd.f32 %v6593, %v6648
        %v6665 = vadd.f32 %v6594, %v6648
        %v6666 = vadd.f32 %v6595, %v6648
        %v6667 = vadd.f32 %v6596, %v6648
        %v6668 = vadd.f32 %v6597, %v6648
        %v6669 = vadd.f32 %v6598, %v6648
        %v6670 = vadd.f32 %v6599, %v6648
        %v6671 = vadd.f32 %v6600, %v6648
        %v6672 = vadd.f32 %v6601, %v6648
        %v6673 = vadd.f32 %v6602, %v6648
        %v6674 = vadd.f32 %v6603, %v6648
        %v6675 = vadd.f32 %v6604, %v6648
        %v6676 = vadd.f32 %v6605, %v6648
        %v6677 = vadd.f32 %v6606, %v6648
        %v6678 = vadd.f32 %v6607, %v6648
        %v6679 = vadd.f32 %v6608, %v6648
        %v6680 = vadd.f32 %v6609, %v6648
        %v6681 = vadd.f32 %v6610, %v6648
        %v6682 = vadd.f32 %v6611, %v6648
        %v6683 = vadd.f32 %v6612, %v6648
        %v6684 = vadd.f32 %v6613, %v6648
        %v6685 = vadd.f32 %v6614, %v6648
        %v6686 = vadd.f32 %v6615, %v6648
        %v6687 = vadd.f32 %v6616, %v6648
        %v6688 = vadd.f32 %v6617, %v6648
        %v6689 = vadd.f32 %v6618, %v6648
        %v6690 = vadd.f32 %v6619, %v6648
        %v6691 = vadd.f32 %v6620, %v6648
        %v6692 = vadd.f32 %v6621, %v6648
        %v6693 = vadd.f32 %v6622, %v6648
        %v6694 = vadd.f32 %v6623, %v6648
        %v6695 = vadd.f32 %v6624, %v6648
        %v6696 = vadd.f32 %v6625, %v6648
        %v6697 = vadd.f32 %v6626, %v6648
        %v6698 = vadd.f32 %v6627, %v6648
        %v6699 = vadd.f32 %v6628, %v6648
        %v6700 = vadd.f32 %v6629, %v6648
        %v6701 = vadd.f32 %v6630, %v6648
        %v6702 = vadd.f32 %v6631, %v6648
        %v6703 = vadd.f32 %v6632, %v6648
        %v6704 = vadd.f32 %v6633, %v6648
        %v6705 = vadd.f32 %v6634, %v6648
        %v6706 = vadd.f32 %v6635, %v6648
        %v6707 = vadd.f32 %v6636, %v6648
        %v6708 = vadd.f32 %v6637, %v6648
        %v6709 = vadd.f32 %v6638, %v6648
        %v6710 = vadd.f32 %v6639, %v6648
        %v6711 = vadd.f32 %v6640, %v6648
        %v6712 = vadd.f32 %v6641, %v6648
        %v6713 = vadd.f32 %v6642, %v6648
        %6714 = vst.msk [vmem:[%s211] sm:$0xff] %vm532, %v6650
        %6715 = vst.msk [vmem:[%s211 + $0x8] sm:$0xff] %vm532, %v6651
        %6716 = vst.msk [vmem:[%s211 + $0x10] sm:$0xff] %vm532, %v6652
        %6717 = vst.msk [vmem:[%s211 + $0x18] sm:$0xff] %vm532, %v6653
        %6718 = vst.msk [vmem:[%s211 + $0x20] sm:$0xff] %vm532, %v6654
        %6719 = vst.msk [vmem:[%s211 + $0x28] sm:$0xff] %vm532, %v6655
        %6720 = vst.msk [vmem:[%s211 + $0x30] sm:$0xff] %vm532, %v6656
        %6721 = vst.msk [vmem:[%s211 + $0x38] sm:$0xff] %vm532, %v6657
        %6722 = vst.msk [vmem:[%s211 + $0x40] sm:$0xff] %vm532, %v6658
        %6723 = vst.msk [vmem:[%s211 + $0x48] sm:$0xff] %vm532, %v6659
        %6724 = vst.msk [vmem:[%s211 + $0x50] sm:$0xff] %vm532, %v6660
        %6725 = vst.msk [vmem:[%s211 + $0x58] sm:$0xff] %vm532, %v6661
        %6726 = vst.msk [vmem:[%s211 + $0x60] sm:$0xff] %vm532, %v6662
        %6727 = vst.msk [vmem:[%s211 + $0x68] sm:$0xff] %vm532, %v6663
        %6728 = vst.msk [vmem:[%s211 + $0x70] sm:$0xff] %vm532, %v6664
        %6729 = vst.msk [vmem:[%s211 + $0x78] sm:$0xff] %vm532, %v6665
        %6730 = vst.msk [vmem:[%s211 + $0x80] sm:$0xff] %vm532, %v6666
        %6731 = vst.msk [vmem:[%s211 + $0x88] sm:$0xff] %vm532, %v6667
        %6732 = vst.msk [vmem:[%s211 + $0x90] sm:$0xff] %vm532, %v6668
        %6733 = vst.msk [vmem:[%s211 + $0x98] sm:$0xff] %vm532, %v6669
        %6734 = vst.msk [vmem:[%s211 + $0xa0] sm:$0xff] %vm532, %v6670
        %6735 = vst.msk [vmem:[%s211 + $0xa8] sm:$0xff] %vm532, %v6671
        %6736 = vst.msk [vmem:[%s211 + $0xb0] sm:$0xff] %vm532, %v6672
        %6737 = vst.msk [vmem:[%s211 + $0xb8] sm:$0xff] %vm532, %v6673
        %6738 = vst.msk [vmem:[%s211 + $0xc0] sm:$0xff] %vm532, %v6674
        %6739 = vst.msk [vmem:[%s211 + $0xc8] sm:$0xff] %vm532, %v6675
        %6740 = vst.msk [vmem:[%s211 + $0xd0] sm:$0xff] %vm532, %v6676
        %6741 = vst.msk [vmem:[%s211 + $0xd8] sm:$0xff] %vm532, %v6677
        %6742 = vst.msk [vmem:[%s211 + $0xe0] sm:$0xff] %vm532, %v6678
        %6743 = vst.msk [vmem:[%s211 + $0xe8] sm:$0xff] %vm532, %v6679
        %6744 = vst.msk [vmem:[%s211 + $0xf0] sm:$0xff] %vm532, %v6680
        %6745 = vst.msk [vmem:[%s211 + $0xf8] sm:$0xff] %vm532, %v6681
        %6746 = vst.msk [vmem:[%s211 + $0x100] sm:$0xff] %vm532, %v6682
        %6747 = vst.msk [vmem:[%s211 + $0x108] sm:$0xff] %vm532, %v6683
        %6748 = vst.msk [vmem:[%s211 + $0x110] sm:$0xff] %vm532, %v6684
        %6749 = vst.msk [vmem:[%s211 + $0x118] sm:$0xff] %vm532, %v6685
        %6750 = vst.msk [vmem:[%s211 + $0x120] sm:$0xff] %vm532, %v6686
        %6751 = vst.msk [vmem:[%s211 + $0x128] sm:$0xff] %vm532, %v6687
        %6752 = vst.msk [vmem:[%s211 + $0x130] sm:$0xff] %vm532, %v6688
        %6753 = vst.msk [vmem:[%s211 + $0x138] sm:$0xff] %vm532, %v6689
        %6754 = vst.msk [vmem:[%s211 + $0x140] sm:$0xff] %vm532, %v6690
        %6755 = vst.msk [vmem:[%s211 + $0x148] sm:$0xff] %vm532, %v6691
        %6756 = vst.msk [vmem:[%s211 + $0x150] sm:$0xff] %vm532, %v6692
        %6757 = vst.msk [vmem:[%s211 + $0x158] sm:$0xff] %vm532, %v6693
        %6758 = vst.msk [vmem:[%s211 + $0x160] sm:$0xff] %vm532, %v6694
        %6759 = vst.msk [vmem:[%s211 + $0x168] sm:$0xff] %vm532, %v6695
        %6760 = vst.msk [vmem:[%s211 + $0x170] sm:$0xff] %vm532, %v6696
        %6761 = vst.msk [vmem:[%s211 + $0x178] sm:$0xff] %vm532, %v6697
        %6762 = vst.msk [vmem:[%s211 + $0x180] sm:$0xff] %vm532, %v6698
        %6763 = vst.msk [vmem:[%s211 + $0x188] sm:$0xff] %vm532, %v6699
        %6764 = vst.msk [vmem:[%s211 + $0x190] sm:$0xff] %vm532, %v6700
        %6765 = vst.msk [vmem:[%s211 + $0x198] sm:$0xff] %vm532, %v6701
        %6766 = vst.msk [vmem:[%s211 + $0x1a0] sm:$0xff] %vm532, %v6702
        %6767 = vst.msk [vmem:[%s211 + $0x1a8] sm:$0xff] %vm532, %v6703
        %6768 = vst.msk [vmem:[%s211 + $0x1b0] sm:$0xff] %vm532, %v6704
        %6769 = vst.msk [vmem:[%s211 + $0x1b8] sm:$0xff] %vm532, %v6705
        %6770 = vst.msk [vmem:[%s211 + $0x1c0] sm:$0xff] %vm532, %v6706
        %6771 = vst.msk [vmem:[%s211 + $0x1c8] sm:$0xff] %vm532, %v6707
        %6772 = vst.msk [vmem:[%s211 + $0x1d0] sm:$0xff] %vm532, %v6708
        %6773 = vst.msk [vmem:[%s211 + $0x1d8] sm:$0xff] %vm532, %v6709
        %6774 = vst.msk [vmem:[%s211 + $0x1e0] sm:$0xff] %vm532, %v6710
        %6775 = vst.msk [vmem:[%s211 + $0x1e8] sm:$0xff] %vm532, %v6711
        %6776 = vst.msk [vmem:[%s211 + $0x1f0] sm:$0xff] %vm532, %v6712
        %6777 = vst.msk [vmem:[%s211 + $0x1f8] sm:$0xff] %vm532, %v6713
        %v6778 = vld [vmem:[%s205] sm:$0xff]
        %v6779 = vld [vmem:[%s205 + $0x8] sm:$0xff]
        %v6780 = vld [vmem:[%s205 + $0x10] sm:$0xff]
        %v6781 = vld [vmem:[%s205 + $0x18] sm:$0xff]
        %v6782 = vld [vmem:[%s205 + $0x20] sm:$0xff]
        %v6783 = vld [vmem:[%s205 + $0x28] sm:$0xff]
        %v6784 = vld [vmem:[%s205 + $0x30] sm:$0xff]
        %v6785 = vld [vmem:[%s205 + $0x38] sm:$0xff]
        %v6786 = vld [vmem:[%s205 + $0x40] sm:$0xff]
        %v6787 = vld [vmem:[%s205 + $0x48] sm:$0xff]
        %v6788 = vld [vmem:[%s205 + $0x50] sm:$0xff]
        %v6789 = vld [vmem:[%s205 + $0x58] sm:$0xff]
        %v6790 = vld [vmem:[%s205 + $0x60] sm:$0xff]
        %v6791 = vld [vmem:[%s205 + $0x68] sm:$0xff]
        %v6792 = vld [vmem:[%s205 + $0x70] sm:$0xff]
        %v6793 = vld [vmem:[%s205 + $0x78] sm:$0xff]
        %v6794 = vld [vmem:[%s205 + $0x80] sm:$0xff]
        %v6795 = vld [vmem:[%s205 + $0x88] sm:$0xff]
        %v6796 = vld [vmem:[%s205 + $0x90] sm:$0xff]
        %v6797 = vld [vmem:[%s205 + $0x98] sm:$0xff]
        %v6798 = vld [vmem:[%s205 + $0xa0] sm:$0xff]
        %v6799 = vld [vmem:[%s205 + $0xa8] sm:$0xff]
        %v6800 = vld [vmem:[%s205 + $0xb0] sm:$0xff]
        %v6801 = vld [vmem:[%s205 + $0xb8] sm:$0xff]
        %v6802 = vld [vmem:[%s205 + $0xc0] sm:$0xff]
        %v6803 = vld [vmem:[%s205 + $0xc8] sm:$0xff]
        %v6804 = vld [vmem:[%s205 + $0xd0] sm:$0xff]
        %v6805 = vld [vmem:[%s205 + $0xd8] sm:$0xff]
        %v6806 = vld [vmem:[%s205 + $0xe0] sm:$0xff]
        %v6807 = vld [vmem:[%s205 + $0xe8] sm:$0xff]
        %v6808 = vld [vmem:[%s205 + $0xf0] sm:$0xff]
        %v6809 = vld [vmem:[%s205 + $0xf8] sm:$0xff]
        %v6810 = vld [vmem:[%s205 + $0x100] sm:$0xff]
        %v6811 = vld [vmem:[%s205 + $0x108] sm:$0xff]
        %v6812 = vld [vmem:[%s205 + $0x110] sm:$0xff]
        %v6813 = vld [vmem:[%s205 + $0x118] sm:$0xff]
        %v6814 = vld [vmem:[%s205 + $0x120] sm:$0xff]
        %v6815 = vld [vmem:[%s205 + $0x128] sm:$0xff]
        %v6816 = vld [vmem:[%s205 + $0x130] sm:$0xff]
        %v6817 = vld [vmem:[%s205 + $0x138] sm:$0xff]
        %v6818 = vld [vmem:[%s205 + $0x140] sm:$0xff]
        %v6819 = vld [vmem:[%s205 + $0x148] sm:$0xff]
        %v6820 = vld [vmem:[%s205 + $0x150] sm:$0xff]
        %v6821 = vld [vmem:[%s205 + $0x158] sm:$0xff]
        %v6822 = vld [vmem:[%s205 + $0x160] sm:$0xff]
        %v6823 = vld [vmem:[%s205 + $0x168] sm:$0xff]
        %v6824 = vld [vmem:[%s205 + $0x170] sm:$0xff]
        %v6825 = vld [vmem:[%s205 + $0x178] sm:$0xff]
        %v6826 = vld [vmem:[%s205 + $0x180] sm:$0xff]
        %v6827 = vld [vmem:[%s205 + $0x188] sm:$0xff]
        %v6828 = vld [vmem:[%s205 + $0x190] sm:$0xff]
        %v6829 = vld [vmem:[%s205 + $0x198] sm:$0xff]
        %v6830 = vld [vmem:[%s205 + $0x1a0] sm:$0xff]
        %v6831 = vld [vmem:[%s205 + $0x1a8] sm:$0xff]
        %v6832 = vld [vmem:[%s205 + $0x1b0] sm:$0xff]
        %v6833 = vld [vmem:[%s205 + $0x1b8] sm:$0xff]
        %v6834 = vld [vmem:[%s205 + $0x1c0] sm:$0xff]
        %v6835 = vld [vmem:[%s205 + $0x1c8] sm:$0xff]
        %v6836 = vld [vmem:[%s205 + $0x1d0] sm:$0xff]
        %v6837 = vld [vmem:[%s205 + $0x1d8] sm:$0xff]
        %v6838 = vld [vmem:[%s205 + $0x1e0] sm:$0xff]
        %v6839 = vld [vmem:[%s205 + $0x1e8] sm:$0xff]
        %v6840 = vld [vmem:[%s205 + $0x1f0] sm:$0xff]
        %v6841 = vld [vmem:[%s205 + $0x1f8] sm:$0xff]
        %6843 = vset.pattern.permute.xlu0 0
        %6844 = vperm.xlu0 %6843, %v6778
        %v6845 = vpop.permute.xlu0 %6844
        %6848 = vset.pattern.permute.xlu0 0
        %6849 = vperm.xlu0 %6848, %v6779
        %v6850 = vpop.permute.xlu0 %6849
        %6853 = vset.pattern.permute.xlu0 0
        %6854 = vperm.xlu0 %6853, %v6780
        %v6855 = vpop.permute.xlu0 %6854
        %6858 = vset.pattern.permute.xlu0 0
        %6859 = vperm.xlu0 %6858, %v6781
        %v6860 = vpop.permute.xlu0 %6859
        %6863 = vset.pattern.permute.xlu0 0
        %6864 = vperm.xlu0 %6863, %v6782
        %v6865 = vpop.permute.xlu0 %6864
        %6868 = vset.pattern.permute.xlu0 0
        %6869 = vperm.xlu0 %6868, %v6783
        %v6870 = vpop.permute.xlu0 %6869
        %6873 = vset.pattern.permute.xlu0 0
        %6874 = vperm.xlu0 %6873, %v6784
        %v6875 = vpop.permute.xlu0 %6874
        %6878 = vset.pattern.permute.xlu0 0
        %6879 = vperm.xlu0 %6878, %v6785
        %v6880 = vpop.permute.xlu0 %6879
        %6883 = vset.pattern.permute.xlu0 0
        %6884 = vperm.xlu0 %6883, %v6786
        %v6885 = vpop.permute.xlu0 %6884
        %6888 = vset.pattern.permute.xlu0 0
        %6889 = vperm.xlu0 %6888, %v6787
        %v6890 = vpop.permute.xlu0 %6889
        %6893 = vset.pattern.permute.xlu0 0
        %6894 = vperm.xlu0 %6893, %v6788
        %v6895 = vpop.permute.xlu0 %6894
        %6898 = vset.pattern.permute.xlu0 0
        %6899 = vperm.xlu0 %6898, %v6789
        %v6900 = vpop.permute.xlu0 %6899
        %6903 = vset.pattern.permute.xlu0 0
        %6904 = vperm.xlu0 %6903, %v6790
        %v6905 = vpop.permute.xlu0 %6904
        %6908 = vset.pattern.permute.xlu0 0
        %6909 = vperm.xlu0 %6908, %v6791
        %v6910 = vpop.permute.xlu0 %6909
        %6913 = vset.pattern.permute.xlu0 0
        %6914 = vperm.xlu0 %6913, %v6792
        %v6915 = vpop.permute.xlu0 %6914
        %6918 = vset.pattern.permute.xlu0 0
        %6919 = vperm.xlu0 %6918, %v6793
        %v6920 = vpop.permute.xlu0 %6919
        %6923 = vset.pattern.permute.xlu0 0
        %6924 = vperm.xlu0 %6923, %v6794
        %v6925 = vpop.permute.xlu0 %6924
        %6928 = vset.pattern.permute.xlu0 0
        %6929 = vperm.xlu0 %6928, %v6795
        %v6930 = vpop.permute.xlu0 %6929
        %6933 = vset.pattern.permute.xlu0 0
        %6934 = vperm.xlu0 %6933, %v6796
        %v6935 = vpop.permute.xlu0 %6934
        %6938 = vset.pattern.permute.xlu0 0
        %6939 = vperm.xlu0 %6938, %v6797
        %v6940 = vpop.permute.xlu0 %6939
        %6943 = vset.pattern.permute.xlu0 0
        %6944 = vperm.xlu0 %6943, %v6798
        %v6945 = vpop.permute.xlu0 %6944
        %6948 = vset.pattern.permute.xlu0 0
        %6949 = vperm.xlu0 %6948, %v6799
        %v6950 = vpop.permute.xlu0 %6949
        %6953 = vset.pattern.permute.xlu0 0
        %6954 = vperm.xlu0 %6953, %v6800
        %v6955 = vpop.permute.xlu0 %6954
        %6958 = vset.pattern.permute.xlu0 0
        %6959 = vperm.xlu0 %6958, %v6801
        %v6960 = vpop.permute.xlu0 %6959
        %6963 = vset.pattern.permute.xlu0 0
        %6964 = vperm.xlu0 %6963, %v6802
        %v6965 = vpop.permute.xlu0 %6964
        %6968 = vset.pattern.permute.xlu0 0
        %6969 = vperm.xlu0 %6968, %v6803
        %v6970 = vpop.permute.xlu0 %6969
        %6973 = vset.pattern.permute.xlu0 0
        %6974 = vperm.xlu0 %6973, %v6804
        %v6975 = vpop.permute.xlu0 %6974
        %6978 = vset.pattern.permute.xlu0 0
        %6979 = vperm.xlu0 %6978, %v6805
        %v6980 = vpop.permute.xlu0 %6979
        %6983 = vset.pattern.permute.xlu0 0
        %6984 = vperm.xlu0 %6983, %v6806
        %v6985 = vpop.permute.xlu0 %6984
        %6988 = vset.pattern.permute.xlu0 0
        %6989 = vperm.xlu0 %6988, %v6807
        %v6990 = vpop.permute.xlu0 %6989
        %6993 = vset.pattern.permute.xlu0 0
        %6994 = vperm.xlu0 %6993, %v6808
        %v6995 = vpop.permute.xlu0 %6994
        %6998 = vset.pattern.permute.xlu0 0
        %6999 = vperm.xlu0 %6998, %v6809
        %v7000 = vpop.permute.xlu0 %6999
        %7003 = vset.pattern.permute.xlu0 0
        %7004 = vperm.xlu0 %7003, %v6810
        %v7005 = vpop.permute.xlu0 %7004
        %7008 = vset.pattern.permute.xlu0 0
        %7009 = vperm.xlu0 %7008, %v6811
        %v7010 = vpop.permute.xlu0 %7009
        %7013 = vset.pattern.permute.xlu0 0
        %7014 = vperm.xlu0 %7013, %v6812
        %v7015 = vpop.permute.xlu0 %7014
        %7018 = vset.pattern.permute.xlu0 0
        %7019 = vperm.xlu0 %7018, %v6813
        %v7020 = vpop.permute.xlu0 %7019
        %7023 = vset.pattern.permute.xlu0 0
        %7024 = vperm.xlu0 %7023, %v6814
        %v7025 = vpop.permute.xlu0 %7024
        %7028 = vset.pattern.permute.xlu0 0
        %7029 = vperm.xlu0 %7028, %v6815
        %v7030 = vpop.permute.xlu0 %7029
        %7033 = vset.pattern.permute.xlu0 0
        %7034 = vperm.xlu0 %7033, %v6816
        %v7035 = vpop.permute.xlu0 %7034
        %7038 = vset.pattern.permute.xlu0 0
        %7039 = vperm.xlu0 %7038, %v6817
        %v7040 = vpop.permute.xlu0 %7039
        %7043 = vset.pattern.permute.xlu0 0
        %7044 = vperm.xlu0 %7043, %v6818
        %v7045 = vpop.permute.xlu0 %7044
        %7048 = vset.pattern.permute.xlu0 0
        %7049 = vperm.xlu0 %7048, %v6819
        %v7050 = vpop.permute.xlu0 %7049
        %7053 = vset.pattern.permute.xlu0 0
        %7054 = vperm.xlu0 %7053, %v6820
        %v7055 = vpop.permute.xlu0 %7054
        %7058 = vset.pattern.permute.xlu0 0
        %7059 = vperm.xlu0 %7058, %v6821
        %v7060 = vpop.permute.xlu0 %7059
        %7063 = vset.pattern.permute.xlu0 0
        %7064 = vperm.xlu0 %7063, %v6822
        %v7065 = vpop.permute.xlu0 %7064
        %7068 = vset.pattern.permute.xlu0 0
        %7069 = vperm.xlu0 %7068, %v6823
        %v7070 = vpop.permute.xlu0 %7069
        %7073 = vset.pattern.permute.xlu0 0
        %7074 = vperm.xlu0 %7073, %v6824
        %v7075 = vpop.permute.xlu0 %7074
        %7078 = vset.pattern.permute.xlu0 0
        %7079 = vperm.xlu0 %7078, %v6825
        %v7080 = vpop.permute.xlu0 %7079
        %7083 = vset.pattern.permute.xlu0 0
        %7084 = vperm.xlu0 %7083, %v6826
        %v7085 = vpop.permute.xlu0 %7084
        %7088 = vset.pattern.permute.xlu0 0
        %7089 = vperm.xlu0 %7088, %v6827
        %v7090 = vpop.permute.xlu0 %7089
        %7093 = vset.pattern.permute.xlu0 0
        %7094 = vperm.xlu0 %7093, %v6828
        %v7095 = vpop.permute.xlu0 %7094
        %7098 = vset.pattern.permute.xlu0 0
        %7099 = vperm.xlu0 %7098, %v6829
        %v7100 = vpop.permute.xlu0 %7099
        %7103 = vset.pattern.permute.xlu0 0
        %7104 = vperm.xlu0 %7103, %v6830
        %v7105 = vpop.permute.xlu0 %7104
        %7108 = vset.pattern.permute.xlu0 0
        %7109 = vperm.xlu0 %7108, %v6831
        %v7110 = vpop.permute.xlu0 %7109
        %7113 = vset.pattern.permute.xlu0 0
        %7114 = vperm.xlu0 %7113, %v6832
        %v7115 = vpop.permute.xlu0 %7114
        %7118 = vset.pattern.permute.xlu0 0
        %7119 = vperm.xlu0 %7118, %v6833
        %v7120 = vpop.permute.xlu0 %7119
        %7123 = vset.pattern.permute.xlu0 0
        %7124 = vperm.xlu0 %7123, %v6834
        %v7125 = vpop.permute.xlu0 %7124
        %7128 = vset.pattern.permute.xlu0 0
        %7129 = vperm.xlu0 %7128, %v6835
        %v7130 = vpop.permute.xlu0 %7129
        %7133 = vset.pattern.permute.xlu0 0
        %7134 = vperm.xlu0 %7133, %v6836
        %v7135 = vpop.permute.xlu0 %7134
        %7138 = vset.pattern.permute.xlu0 0
        %7139 = vperm.xlu0 %7138, %v6837
        %v7140 = vpop.permute.xlu0 %7139
        %7143 = vset.pattern.permute.xlu0 0
        %7144 = vperm.xlu0 %7143, %v6838
        %v7145 = vpop.permute.xlu0 %7144
        %7148 = vset.pattern.permute.xlu0 0
        %7149 = vperm.xlu0 %7148, %v6839
        %v7150 = vpop.permute.xlu0 %7149
        %7153 = vset.pattern.permute.xlu0 0
        %7154 = vperm.xlu0 %7153, %v6840
        %v7155 = vpop.permute.xlu0 %7154
        %7158 = vset.pattern.permute.xlu0 0
        %7159 = vperm.xlu0 %7158, %v6841
        %v7160 = vpop.permute.xlu0 %7159
        %v7162 = vmul.f32 %v6650, %v6845
        %v7163 = vmul.f32 %v6651, %v6850
        %v7164 = vmul.f32 %v6652, %v6855
        %v7165 = vmul.f32 %v6653, %v6860
        %v7166 = vmul.f32 %v6654, %v6865
        %v7167 = vmul.f32 %v6655, %v6870
        %v7168 = vmul.f32 %v6656, %v6875
        %v7169 = vmul.f32 %v6657, %v6880
        %v7170 = vmul.f32 %v6658, %v6885
        %v7171 = vmul.f32 %v6659, %v6890
        %v7172 = vmul.f32 %v6660, %v6895
        %v7173 = vmul.f32 %v6661, %v6900
        %v7174 = vmul.f32 %v6662, %v6905
        %v7175 = vmul.f32 %v6663, %v6910
        %v7176 = vmul.f32 %v6664, %v6915
        %v7177 = vmul.f32 %v6665, %v6920
        %v7178 = vmul.f32 %v6666, %v6925
        %v7179 = vmul.f32 %v6667, %v6930
        %v7180 = vmul.f32 %v6668, %v6935
        %v7181 = vmul.f32 %v6669, %v6940
        %v7182 = vmul.f32 %v6670, %v6945
        %v7183 = vmul.f32 %v6671, %v6950
        %v7184 = vmul.f32 %v6672, %v6955
        %v7185 = vmul.f32 %v6673, %v6960
        %v7186 = vmul.f32 %v6674, %v6965
        %v7187 = vmul.f32 %v6675, %v6970
        %v7188 = vmul.f32 %v6676, %v6975
        %v7189 = vmul.f32 %v6677, %v6980
        %v7190 = vmul.f32 %v6678, %v6985
        %v7191 = vmul.f32 %v6679, %v6990
        %v7192 = vmul.f32 %v6680, %v6995
        %v7193 = vmul.f32 %v6681, %v7000
        %v7194 = vmul.f32 %v6682, %v7005
        %v7195 = vmul.f32 %v6683, %v7010
        %v7196 = vmul.f32 %v6684, %v7015
        %v7197 = vmul.f32 %v6685, %v7020
        %v7198 = vmul.f32 %v6686, %v7025
        %v7199 = vmul.f32 %v6687, %v7030
        %v7200 = vmul.f32 %v6688, %v7035
        %v7201 = vmul.f32 %v6689, %v7040
        %v7202 = vmul.f32 %v6690, %v7045
        %v7203 = vmul.f32 %v6691, %v7050
        %v7204 = vmul.f32 %v6692, %v7055
        %v7205 = vmul.f32 %v6693, %v7060
        %v7206 = vmul.f32 %v6694, %v7065
        %v7207 = vmul.f32 %v6695, %v7070
        %v7208 = vmul.f32 %v6696, %v7075
        %v7209 = vmul.f32 %v6697, %v7080
        %v7210 = vmul.f32 %v6698, %v7085
        %v7211 = vmul.f32 %v6699, %v7090
        %v7212 = vmul.f32 %v6700, %v7095
        %v7213 = vmul.f32 %v6701, %v7100
        %v7214 = vmul.f32 %v6702, %v7105
        %v7215 = vmul.f32 %v6703, %v7110
        %v7216 = vmul.f32 %v6704, %v7115
        %v7217 = vmul.f32 %v6705, %v7120
        %v7218 = vmul.f32 %v6706, %v7125
        %v7219 = vmul.f32 %v6707, %v7130
        %v7220 = vmul.f32 %v6708, %v7135
        %v7221 = vmul.f32 %v6709, %v7140
        %v7222 = vmul.f32 %v6710, %v7145
        %v7223 = vmul.f32 %v6711, %v7150
        %v7224 = vmul.f32 %v6712, %v7155
        %v7225 = vmul.f32 %v6713, %v7160
        %v7226 = vsel %vm532, %v7162, 0.0
        %v7227 = vsel %vm532, %v7163, 0.0
        %v7228 = vadd.f32 %v7226, %v7227
        %v7229 = vsel %vm532, %v7164, 0.0
        %v7230 = vadd.f32 %v7228, %v7229
        %v7231 = vsel %vm532, %v7165, 0.0
        %v7232 = vadd.f32 %v7230, %v7231
        %v7233 = vsel %vm532, %v7166, 0.0
        %v7234 = vadd.f32 %v7232, %v7233
        %v7235 = vsel %vm532, %v7167, 0.0
        %v7236 = vadd.f32 %v7234, %v7235
        %v7237 = vsel %vm532, %v7168, 0.0
        %v7238 = vadd.f32 %v7236, %v7237
        %v7239 = vsel %vm532, %v7169, 0.0
        %v7240 = vadd.f32 %v7238, %v7239
        %v7241 = vsel %vm532, %v7170, 0.0
        %v7242 = vadd.f32 %v7240, %v7241
        %v7243 = vsel %vm532, %v7171, 0.0
        %v7244 = vadd.f32 %v7242, %v7243
        %v7245 = vsel %vm532, %v7172, 0.0
        %v7246 = vadd.f32 %v7244, %v7245
        %v7247 = vsel %vm532, %v7173, 0.0
        %v7248 = vadd.f32 %v7246, %v7247
        %v7249 = vsel %vm532, %v7174, 0.0
        %v7250 = vadd.f32 %v7248, %v7249
        %v7251 = vsel %vm532, %v7175, 0.0
        %v7252 = vadd.f32 %v7250, %v7251
        %v7253 = vsel %vm532, %v7176, 0.0
        %v7254 = vadd.f32 %v7252, %v7253
        %v7255 = vsel %vm532, %v7177, 0.0
        %v7256 = vadd.f32 %v7254, %v7255
        %v7257 = vsel %vm532, %v7178, 0.0
        %v7258 = vadd.f32 %v7256, %v7257
        %v7259 = vsel %vm532, %v7179, 0.0
        %v7260 = vadd.f32 %v7258, %v7259
        %v7261 = vsel %vm532, %v7180, 0.0
        %v7262 = vadd.f32 %v7260, %v7261
        %v7263 = vsel %vm532, %v7181, 0.0
        %v7264 = vadd.f32 %v7262, %v7263
        %v7265 = vsel %vm532, %v7182, 0.0
        %v7266 = vadd.f32 %v7264, %v7265
        %v7267 = vsel %vm532, %v7183, 0.0
        %v7268 = vadd.f32 %v7266, %v7267
        %v7269 = vsel %vm532, %v7184, 0.0
        %v7270 = vadd.f32 %v7268, %v7269
        %v7271 = vsel %vm532, %v7185, 0.0
        %v7272 = vadd.f32 %v7270, %v7271
        %v7273 = vsel %vm532, %v7186, 0.0
        %v7274 = vadd.f32 %v7272, %v7273
        %v7275 = vsel %vm532, %v7187, 0.0
        %v7276 = vadd.f32 %v7274, %v7275
        %v7277 = vsel %vm532, %v7188, 0.0
        %v7278 = vadd.f32 %v7276, %v7277
        %v7279 = vsel %vm532, %v7189, 0.0
        %v7280 = vadd.f32 %v7278, %v7279
        %v7281 = vsel %vm532, %v7190, 0.0
        %v7282 = vadd.f32 %v7280, %v7281
        %v7283 = vsel %vm532, %v7191, 0.0
        %v7284 = vadd.f32 %v7282, %v7283
        %v7285 = vsel %vm532, %v7192, 0.0
        %v7286 = vadd.f32 %v7284, %v7285
        %v7287 = vsel %vm532, %v7193, 0.0
        %v7288 = vadd.f32 %v7286, %v7287
        %v7289 = vsel %vm532, %v7194, 0.0
        %v7290 = vadd.f32 %v7288, %v7289
        %v7291 = vsel %vm532, %v7195, 0.0
        %v7292 = vadd.f32 %v7290, %v7291
        %v7293 = vsel %vm532, %v7196, 0.0
        %v7294 = vadd.f32 %v7292, %v7293
        %v7295 = vsel %vm532, %v7197, 0.0
        %v7296 = vadd.f32 %v7294, %v7295
        %v7297 = vsel %vm532, %v7198, 0.0
        %v7298 = vadd.f32 %v7296, %v7297
        %v7299 = vsel %vm532, %v7199, 0.0
        %v7300 = vadd.f32 %v7298, %v7299
        %v7301 = vsel %vm532, %v7200, 0.0
        %v7302 = vadd.f32 %v7300, %v7301
        %v7303 = vsel %vm532, %v7201, 0.0
        %v7304 = vadd.f32 %v7302, %v7303
        %v7305 = vsel %vm532, %v7202, 0.0
        %v7306 = vadd.f32 %v7304, %v7305
        %v7307 = vsel %vm532, %v7203, 0.0
        %v7308 = vadd.f32 %v7306, %v7307
        %v7309 = vsel %vm532, %v7204, 0.0
        %v7310 = vadd.f32 %v7308, %v7309
        %v7311 = vsel %vm532, %v7205, 0.0
        %v7312 = vadd.f32 %v7310, %v7311
        %v7313 = vsel %vm532, %v7206, 0.0
        %v7314 = vadd.f32 %v7312, %v7313
        %v7315 = vsel %vm532, %v7207, 0.0
        %v7316 = vadd.f32 %v7314, %v7315
        %v7317 = vsel %vm532, %v7208, 0.0
        %v7318 = vadd.f32 %v7316, %v7317
        %v7319 = vsel %vm532, %v7209, 0.0
        %v7320 = vadd.f32 %v7318, %v7319
        %v7321 = vsel %vm532, %v7210, 0.0
        %v7322 = vadd.f32 %v7320, %v7321
        %v7323 = vsel %vm532, %v7211, 0.0
        %v7324 = vadd.f32 %v7322, %v7323
        %v7325 = vsel %vm532, %v7212, 0.0
        %v7326 = vadd.f32 %v7324, %v7325
        %v7327 = vsel %vm532, %v7213, 0.0
        %v7328 = vadd.f32 %v7326, %v7327
        %v7329 = vsel %vm532, %v7214, 0.0
        %v7330 = vadd.f32 %v7328, %v7329
        %v7331 = vsel %vm532, %v7215, 0.0
        %v7332 = vadd.f32 %v7330, %v7331
        %v7333 = vsel %vm532, %v7216, 0.0
        %v7334 = vadd.f32 %v7332, %v7333
        %v7335 = vsel %vm532, %v7217, 0.0
        %v7336 = vadd.f32 %v7334, %v7335
        %v7337 = vsel %vm532, %v7218, 0.0
        %v7338 = vadd.f32 %v7336, %v7337
        %v7339 = vsel %vm532, %v7219, 0.0
        %v7340 = vadd.f32 %v7338, %v7339
        %v7341 = vsel %vm532, %v7220, 0.0
        %v7342 = vadd.f32 %v7340, %v7341
        %v7343 = vsel %vm532, %v7221, 0.0
        %v7344 = vadd.f32 %v7342, %v7343
        %v7345 = vsel %vm532, %v7222, 0.0
        %v7346 = vadd.f32 %v7344, %v7345
        %v7347 = vsel %vm532, %v7223, 0.0
        %v7348 = vadd.f32 %v7346, %v7347
        %v7349 = vsel %vm532, %v7224, 0.0
        %v7350 = vadd.f32 %v7348, %v7349
        %v7351 = vsel %vm532, %v7225, 0.0
        %v7352 = vadd.f32 %v7350, %v7351
        %v7353 = vrot.slane %v7352, 4
        %v7354 = vadd.f32 %v7352, %v7353
        %v7355 = vrot.slane %v7354, 2
        %v7356 = vadd.f32 %v7354, %v7355
        %v7357 = vrot.slane %v7356, 1
        %v7358 = vadd.f32 %v7356, %v7357
        %v7359 = vmul.f32 %v7162, %v6650
        %v7360 = vmul.f32 %v7163, %v6651
        %v7361 = vmul.f32 %v7164, %v6652
        %v7362 = vmul.f32 %v7165, %v6653
        %v7363 = vmul.f32 %v7166, %v6654
        %v7364 = vmul.f32 %v7167, %v6655
        %v7365 = vmul.f32 %v7168, %v6656
        %v7366 = vmul.f32 %v7169, %v6657
        %v7367 = vmul.f32 %v7170, %v6658
        %v7368 = vmul.f32 %v7171, %v6659
        %v7369 = vmul.f32 %v7172, %v6660
        %v7370 = vmul.f32 %v7173, %v6661
        %v7371 = vmul.f32 %v7174, %v6662
        %v7372 = vmul.f32 %v7175, %v6663
        %v7373 = vmul.f32 %v7176, %v6664
        %v7374 = vmul.f32 %v7177, %v6665
        %v7375 = vmul.f32 %v7178, %v6666
        %v7376 = vmul.f32 %v7179, %v6667
        %v7377 = vmul.f32 %v7180, %v6668
        %v7378 = vmul.f32 %v7181, %v6669
        %v7379 = vmul.f32 %v7182, %v6670
        %v7380 = vmul.f32 %v7183, %v6671
        %v7381 = vmul.f32 %v7184, %v6672
        %v7382 = vmul.f32 %v7185, %v6673
        %v7383 = vmul.f32 %v7186, %v6674
        %v7384 = vmul.f32 %v7187, %v6675
        %v7385 = vmul.f32 %v7188, %v6676
        %v7386 = vmul.f32 %v7189, %v6677
        %v7387 = vmul.f32 %v7190, %v6678
        %v7388 = vmul.f32 %v7191, %v6679
        %v7389 = vmul.f32 %v7192, %v6680
        %v7390 = vmul.f32 %v7193, %v6681
        %v7391 = vmul.f32 %v7194, %v6682
        %v7392 = vmul.f32 %v7195, %v6683
        %v7393 = vmul.f32 %v7196, %v6684
        %v7394 = vmul.f32 %v7197, %v6685
        %v7395 = vmul.f32 %v7198, %v6686
        %v7396 = vmul.f32 %v7199, %v6687
        %v7397 = vmul.f32 %v7200, %v6688
        %v7398 = vmul.f32 %v7201, %v6689
        %v7399 = vmul.f32 %v7202, %v6690
        %v7400 = vmul.f32 %v7203, %v6691
        %v7401 = vmul.f32 %v7204, %v6692
        %v7402 = vmul.f32 %v7205, %v6693
        %v7403 = vmul.f32 %v7206, %v6694
        %v7404 = vmul.f32 %v7207, %v6695
        %v7405 = vmul.f32 %v7208, %v6696
        %v7406 = vmul.f32 %v7209, %v6697
        %v7407 = vmul.f32 %v7210, %v6698
        %v7408 = vmul.f32 %v7211, %v6699
        %v7409 = vmul.f32 %v7212, %v6700
        %v7410 = vmul.f32 %v7213, %v6701
        %v7411 = vmul.f32 %v7214, %v6702
        %v7412 = vmul.f32 %v7215, %v6703
        %v7413 = vmul.f32 %v7216, %v6704
        %v7414 = vmul.f32 %v7217, %v6705
        %v7415 = vmul.f32 %v7218, %v6706
        %v7416 = vmul.f32 %v7219, %v6707
        %v7417 = vmul.f32 %v7220, %v6708
        %v7418 = vmul.f32 %v7221, %v6709
        %v7419 = vmul.f32 %v7222, %v6710
        %v7420 = vmul.f32 %v7223, %v6711
        %v7421 = vmul.f32 %v7224, %v6712
        %v7422 = vmul.f32 %v7225, %v6713
        %v7423 = vsel %vm532, %v7359, 0.0
        %v7424 = vsel %vm532, %v7360, 0.0
        %v7425 = vadd.f32 %v7423, %v7424
        %v7426 = vsel %vm532, %v7361, 0.0
        %v7427 = vadd.f32 %v7425, %v7426
        %v7428 = vsel %vm532, %v7362, 0.0
        %v7429 = vadd.f32 %v7427, %v7428
        %v7430 = vsel %vm532, %v7363, 0.0
        %v7431 = vadd.f32 %v7429, %v7430
        %v7432 = vsel %vm532, %v7364, 0.0
        %v7433 = vadd.f32 %v7431, %v7432
        %v7434 = vsel %vm532, %v7365, 0.0
        %v7435 = vadd.f32 %v7433, %v7434
        %v7436 = vsel %vm532, %v7366, 0.0
        %v7437 = vadd.f32 %v7435, %v7436
        %v7438 = vsel %vm532, %v7367, 0.0
        %v7439 = vadd.f32 %v7437, %v7438
        %v7440 = vsel %vm532, %v7368, 0.0
        %v7441 = vadd.f32 %v7439, %v7440
        %v7442 = vsel %vm532, %v7369, 0.0
        %v7443 = vadd.f32 %v7441, %v7442
        %v7444 = vsel %vm532, %v7370, 0.0
        %v7445 = vadd.f32 %v7443, %v7444
        %v7446 = vsel %vm532, %v7371, 0.0
        %v7447 = vadd.f32 %v7445, %v7446
        %v7448 = vsel %vm532, %v7372, 0.0
        %v7449 = vadd.f32 %v7447, %v7448
        %v7450 = vsel %vm532, %v7373, 0.0
        %v7451 = vadd.f32 %v7449, %v7450
        %v7452 = vsel %vm532, %v7374, 0.0
        %v7453 = vadd.f32 %v7451, %v7452
        %v7454 = vsel %vm532, %v7375, 0.0
        %v7455 = vadd.f32 %v7453, %v7454
        %v7456 = vsel %vm532, %v7376, 0.0
        %v7457 = vadd.f32 %v7455, %v7456
        %v7458 = vsel %vm532, %v7377, 0.0
        %v7459 = vadd.f32 %v7457, %v7458
        %v7460 = vsel %vm532, %v7378, 0.0
        %v7461 = vadd.f32 %v7459, %v7460
        %v7462 = vsel %vm532, %v7379, 0.0
        %v7463 = vadd.f32 %v7461, %v7462
        %v7464 = vsel %vm532, %v7380, 0.0
        %v7465 = vadd.f32 %v7463, %v7464
        %v7466 = vsel %vm532, %v7381, 0.0
        %v7467 = vadd.f32 %v7465, %v7466
        %v7468 = vsel %vm532, %v7382, 0.0
        %v7469 = vadd.f32 %v7467, %v7468
        %v7470 = vsel %vm532, %v7383, 0.0
        %v7471 = vadd.f32 %v7469, %v7470
        %v7472 = vsel %vm532, %v7384, 0.0
        %v7473 = vadd.f32 %v7471, %v7472
        %v7474 = vsel %vm532, %v7385, 0.0
        %v7475 = vadd.f32 %v7473, %v7474
        %v7476 = vsel %vm532, %v7386, 0.0
        %v7477 = vadd.f32 %v7475, %v7476
        %v7478 = vsel %vm532, %v7387, 0.0
        %v7479 = vadd.f32 %v7477, %v7478
        %v7480 = vsel %vm532, %v7388, 0.0
        %v7481 = vadd.f32 %v7479, %v7480
        %v7482 = vsel %vm532, %v7389, 0.0
        %v7483 = vadd.f32 %v7481, %v7482
        %v7484 = vsel %vm532, %v7390, 0.0
        %v7485 = vadd.f32 %v7483, %v7484
        %v7486 = vsel %vm532, %v7391, 0.0
        %v7487 = vadd.f32 %v7485, %v7486
        %v7488 = vsel %vm532, %v7392, 0.0
        %v7489 = vadd.f32 %v7487, %v7488
        %v7490 = vsel %vm532, %v7393, 0.0
        %v7491 = vadd.f32 %v7489, %v7490
        %v7492 = vsel %vm532, %v7394, 0.0
        %v7493 = vadd.f32 %v7491, %v7492
        %v7494 = vsel %vm532, %v7395, 0.0
        %v7495 = vadd.f32 %v7493, %v7494
        %v7496 = vsel %vm532, %v7396, 0.0
        %v7497 = vadd.f32 %v7495, %v7496
        %v7498 = vsel %vm532, %v7397, 0.0
        %v7499 = vadd.f32 %v7497, %v7498
        %v7500 = vsel %vm532, %v7398, 0.0
        %v7501 = vadd.f32 %v7499, %v7500
        %v7502 = vsel %vm532, %v7399, 0.0
        %v7503 = vadd.f32 %v7501, %v7502
        %v7504 = vsel %vm532, %v7400, 0.0
        %v7505 = vadd.f32 %v7503, %v7504
        %v7506 = vsel %vm532, %v7401, 0.0
        %v7507 = vadd.f32 %v7505, %v7506
        %v7508 = vsel %vm532, %v7402, 0.0
        %v7509 = vadd.f32 %v7507, %v7508
        %v7510 = vsel %vm532, %v7403, 0.0
        %v7511 = vadd.f32 %v7509, %v7510
        %v7512 = vsel %vm532, %v7404, 0.0
        %v7513 = vadd.f32 %v7511, %v7512
        %v7514 = vsel %vm532, %v7405, 0.0
        %v7515 = vadd.f32 %v7513, %v7514
        %v7516 = vsel %vm532, %v7406, 0.0
        %v7517 = vadd.f32 %v7515, %v7516
        %v7518 = vsel %vm532, %v7407, 0.0
        %v7519 = vadd.f32 %v7517, %v7518
        %v7520 = vsel %vm532, %v7408, 0.0
        %v7521 = vadd.f32 %v7519, %v7520
        %v7522 = vsel %vm532, %v7409, 0.0
        %v7523 = vadd.f32 %v7521, %v7522
        %v7524 = vsel %vm532, %v7410, 0.0
        %v7525 = vadd.f32 %v7523, %v7524
        %v7526 = vsel %vm532, %v7411, 0.0
        %v7527 = vadd.f32 %v7525, %v7526
        %v7528 = vsel %vm532, %v7412, 0.0
        %v7529 = vadd.f32 %v7527, %v7528
        %v7530 = vsel %vm532, %v7413, 0.0
        %v7531 = vadd.f32 %v7529, %v7530
        %v7532 = vsel %vm532, %v7414, 0.0
        %v7533 = vadd.f32 %v7531, %v7532
        %v7534 = vsel %vm532, %v7415, 0.0
        %v7535 = vadd.f32 %v7533, %v7534
        %v7536 = vsel %vm532, %v7416, 0.0
        %v7537 = vadd.f32 %v7535, %v7536
        %v7538 = vsel %vm532, %v7417, 0.0
        %v7539 = vadd.f32 %v7537, %v7538
        %v7540 = vsel %vm532, %v7418, 0.0
        %v7541 = vadd.f32 %v7539, %v7540
        %v7542 = vsel %vm532, %v7419, 0.0
        %v7543 = vadd.f32 %v7541, %v7542
        %v7544 = vsel %vm532, %v7420, 0.0
        %v7545 = vadd.f32 %v7543, %v7544
        %v7546 = vsel %vm532, %v7421, 0.0
        %v7547 = vadd.f32 %v7545, %v7546
        %v7548 = vsel %vm532, %v7422, 0.0
        %v7549 = vadd.f32 %v7547, %v7548
        %v7550 = vrot.slane %v7549, 4
        %v7551 = vadd.f32 %v7549, %v7550
        %v7552 = vrot.slane %v7551, 2
        %v7553 = vadd.f32 %v7551, %v7552
        %v7554 = vrot.slane %v7553, 1
        %v7555 = vadd.f32 %v7553, %v7554
        %v7556 = vlaneseq
        %v7557 = vshrl.u32 %v7556, 7
        %vm7558 = vcmp.eq.s32.totalorder %v7557, 0
        %v7559 = vsel %vm7558, %v7358, 0.0
        %vm7560 = vcmp.eq.s32.totalorder %v7557, 1
        %v7561 = vsel %vm7560, %v7555, 0.0
        %v7562 = vadd.f32 %v7559, %v7561
        %7563 = vst.msk [vmem:[%s200] sm:$0xff] %vm532, %v7562
        %s7564 = smul.u32 64, %s20
        %p7565 = scmp.lt.s32.totalorder %s7564, 127
        %s7566 = scalar_select %p7565, %s7564, 127
        %s7567 = smul.addr %s7566, 8
        %s7568 = scalar_lea.vmem %s4, %s7567
        %s7569 = sand.u32 %s122, 1
        %s7570 = scalar_lea.sflag [#allocation5], %s7569
        %s7571 = sand.u32 %s122, 1
        %s7572 = smul.addr %s7571, 8
        %s7573 = scalar_lea.vmem [#allocation4], %s7572
        // Predicated region
        $region67: #{tpu_custom_call.1} parent=31 // pred_check
          %p7574 = pneg %p106
        $region68: #{tpu_custom_call.1} parent=31 // pred_check_branch
          %7576 = sbr.rel (%p7574) target = $region70
        $region69: #{tpu_custom_call.1} parent=31 // pred_region
          %s7577 = smul.u32 64, %s20
        $region70: #{tpu_custom_call.1} parent=31 // pred_fallthru
          _
        // Predicated region
        $region71: #{tpu_custom_call.1} parent=31 // pred_check
          %p7578 = pneg %p132
        $region72: #{tpu_custom_call.1} parent=31 // pred_check_branch
          %7580 = sbr.rel (%p7578) target = $region74
        $region73: #{tpu_custom_call.1} parent=31 // pred_region
          %s7582 = ssub.s32 128, 128
          %7583 = vsyncadd %s7570, %s7582
          %s7584 = smul.addr %s20, 128
          %s7585 = scalar_lea.hbm %s5, %s7584
          %s7587 = sshll.u32 %s7573, 4
          %s7588 = int_to_ptr.vmem [resolvable:$true] %s7587
          %7590 = dma.vmem_to_hbm [thread:$0]  %s7588, 128, %s7585, %s7570
        $region74: #{tpu_custom_call.1} parent=31 // pred_fallthru
          _
      $region32: #{tpu_custom_call.1} parent=5 // pred_fallthru
        _
      %p7591 = scmp.le.s32.totalorder 2, %s15
      // Predicated region
      $region75: #{tpu_custom_call.1} parent=5 // pred_check
        %p7592 = pneg %p7591
      $region76: #{tpu_custom_call.1} parent=5 // pred_check_branch
        %7594 = sbr.rel (%p7592) target = $region78
      $region77: #{tpu_custom_call.1} parent=5 // pred_region
        %s7595 = ssub.s32 %s15, 2
        // Predicated region
        $region79: #{tpu_custom_call.1} parent=77 // pred_check
          %p7596 = pneg %p112
        $region80: #{tpu_custom_call.1} parent=77 // pred_check_branch
          %7598 = sbr.rel (%p7596) target = $region82
        $region81: #{tpu_custom_call.1} parent=77 // pred_region
          %s7599 = smul.u32 64, %s21
          %p7600 = scmp.lt.s32.totalorder %s7599, 127
          %s7601 = scalar_select %p7600, %s7599, 127
          %s7602 = smul.addr %s7601, 8
          %s7603 = scalar_lea.vmem %s4, %s7602
        $region82: #{tpu_custom_call.1} parent=77 // pred_fallthru
          _
        // Predicated region
        $region83: #{tpu_custom_call.1} parent=77 // pred_check
          %p7604 = pneg %p138
        $region84: #{tpu_custom_call.1} parent=77 // pred_check_branch
          %7606 = sbr.rel (%p7604) target = $region86
        $region85: #{tpu_custom_call.1} parent=77 // pred_region
          %s7607 = sand.u32 %s123, 1
          %s7608 = scalar_lea.sflag [#allocation5], %s7607
          %s7609 = sand.u32 %s123, 1
          %s7610 = smul.addr %s7609, 8
          %s7611 = scalar_lea.vmem [#allocation4], %s7610
          %7612 = dma.done %s7608, 128
        $region86: #{tpu_custom_call.1} parent=77 // pred_fallthru
          _
      $region78: #{tpu_custom_call.1} parent=5 // pred_fallthru
        _
    $region6: #{tpu_custom_call.1} parent=1 // loop_footer
      %s19 = sadd.s32 1, %s15
    $region7: #{tpu_custom_call.1} parent=1 // loop_footer_branch
      %14 = sbr.rel target = $region3
    $region8: #{tpu_custom_call.1} parent=1 // loop_exit
      _
    %7613 = vsyncpa [#allocation5], 1
    %s7614 = scalar_lea.sflag [#allocation5], 1
    %7615 = vsyncpa %s7614, 1
  %7616 = vsyncmov [#allocation3]
  %s7617 = vpop.sfrf %7616
  %p7618 = scmp.eq.s32.totalorder %s7617, 0
  %p7619 = pneg %p7618
  %7621 = shalt.err (%p7619)

</llo_original>
